<compile_context>
chip_gen: v5e
topology: v5e:2x2
jax: 0.10.0
libtpu: 0.0.40
codegen_flags: <defaults>
</compile_context>

<pallas_src>
import jax
import jax.numpy as jnp
from jax.experimental import pallas as pl
from jax.experimental.pallas import tpu as pltpu

IMG_SHAPE = (1, 28, 28)
IMG_FLAT = 1 * 28 * 28          # 784
LATENT = 100
K_PAD = 128                     # padded latent / contraction dim (from 100)
BN_EPS = 0.8                    # nn.BatchNorm1d(out_feat, 0.8) -> eps=0.8
LEAKY_SLOPE = 0.2

# Feature widths and static offsets into the packed (2, 2704) parameter slab:
#   row 0 = [b1(128) | gamma2(256) | gamma3(512) | gamma4(1024) | b5(784)]
#   row 1 = [  0     | beta2       | beta3       | beta4        |  0     ]
_F1, _F2, _F3, _F4 = 128, 256, 512, 1024
_OFF1 = 0
_OFF2 = _OFF1 + _F1            # 128
_OFF3 = _OFF2 + _F2            # 384
_OFF4 = _OFF3 + _F3            # 896
_OFF5 = _OFF4 + _F4            # 1920
_SLAB_W = _OFF5 + IMG_FLAT     # 2704


def _bn_lrelu(t, gamma, beta):
    """Training-mode BatchNorm1d (batch mean, biased batch var, eps=0.8)
    folded into a single scale/shift, then LeakyReLU(0.2).  The preceding
    Linear bias is omitted: the batch-mean subtraction cancels it exactly.
    All math in f32."""
    mean = jnp.mean(t, axis=0, keepdims=True)
    var = jnp.mean((t - mean) ** 2, axis=0, keepdims=True)
    scale = gamma * jax.lax.rsqrt(var + BN_EPS)       # EUP rsqrt
    shift = beta - mean * scale
    y = t * scale + shift                             # 2 VPU ops per element
    return jnp.maximum(y, LEAKY_SLOPE * y)            # LeakyReLU(0.2)


def generator_kernel(
    z_ref,                      # (B, 100) f32, VMEM
    w1_ref, w2_ref, w3_ref,     # bf16 weights, VMEM (auto-DMA)
    w4_hbm, w5_hbm,             # bf16 weights, HBM (manual DMA)
    p_ref,                      # (2, 2704) f32 param slab, VMEM
    out_ref,                    # (B, 784) f32, VMEM
    w4_vmem, w5_vmem,           # VMEM scratch for the manual copies
    zpad_ref,                   # (B, 128) f32 scratch (latent K padding)
    sem,                        # DMA semaphores (2,)
):
    # Kick off the two big weight DMAs immediately so they overlap with the
    # compute of layers 1-3 (w4) and layers 1-4 (w5).
    w4_copy = pltpu.make_async_copy(w4_hbm, w4_vmem, sem.at[0])
    w5_copy = pltpu.make_async_copy(w5_hbm, w5_vmem, sem.at[1])
    w4_copy.start()
    w5_copy.start()

    def mm(x, w_ref):
        # bf16 x bf16 MXU matmul with f32 accumulation.
        return jnp.dot(x.astype(jnp.bfloat16), w_ref[...],
                       preferred_element_type=jnp.float32)

    # Static slices of the packed parameter slab.
    b1 = p_ref[0:1, _OFF1:_OFF2]
    g2, be2 = p_ref[0:1, _OFF2:_OFF3], p_ref[1:2, _OFF2:_OFF3]
    g3, be3 = p_ref[0:1, _OFF3:_OFF4], p_ref[1:2, _OFF3:_OFF4]
    g4, be4 = p_ref[0:1, _OFF4:_OFF5], p_ref[1:2, _OFF4:_OFF5]
    b5 = p_ref[0:1, _OFF5:_SLAB_W]

    # block(100, 128, normalize=False): zero-pad the latent K 100 -> 128 in a
    # VMEM scratch (w1 has matching zero rows, so the dot is exact).
    zpad_ref[...] = jnp.zeros_like(zpad_ref)
    zpad_ref[:, 0:LATENT] = z_ref[...]
    h = mm(zpad_ref[...], w1_ref) + b1
    h = jnp.maximum(h, LEAKY_SLOPE * h)

    # block(128, 256) / block(256, 512)  -- runs under the w4/w5 DMAs.
    h = _bn_lrelu(mm(h, w2_ref), g2, be2)
    h = _bn_lrelu(mm(h, w3_ref), g3, be3)

    # block(512, 1024)
    w4_copy.wait()
    h = _bn_lrelu(mm(h, w4_vmem), g4, be4)

    # Linear(1024, 784) + Tanh  (lane width 784 = full output array dim)
    w5_copy.wait()
    h = mm(h, w5_vmem) + b5
    out_ref[...] = jnp.tanh(h)


@jax.jit
def generator_forward(z, kernel_params):
    """z: (B, 100) float32 -> img: (B, 1, 28, 28) float32."""
    B = z.shape[0]
    w1, w2, w3, w4, w5, pslab = kernel_params

    vmem = pl.BlockSpec(memory_space=pltpu.VMEM)
    hbm = pl.BlockSpec(memory_space=pl.ANY)

    flops = 2 * B * (K_PAD * _F1 + _F1 * _F2 + _F2 * _F3 + _F3 * _F4
                     + _F4 * IMG_FLAT)
    bytes_accessed = (
        sum(int(w.size) * w.dtype.itemsize for w in (w1, w2, w3, w4, w5))
        + int(pslab.size) * 4 + B * LATENT * 4 + B * IMG_FLAT * 4)

    out = pl.pallas_call(
        generator_kernel,
        out_shape=jax.ShapeDtypeStruct((B, IMG_FLAT), jnp.float32),
        in_specs=[vmem, vmem, vmem, vmem, hbm, hbm, vmem],
        out_specs=vmem,
        scratch_shapes=[
            pltpu.VMEM(w4.shape, jnp.bfloat16),       # manual buffer for w4
            pltpu.VMEM(w5.shape, jnp.bfloat16),       # manual buffer for w5
            pltpu.VMEM((B, K_PAD), jnp.float32),      # zero-padded latent
            pltpu.SemaphoreType.DMA((2,)),
        ],
        compiler_params=pltpu.CompilerParams(
            vmem_limit_bytes=16 * 1024 * 1024),
        cost_estimate=pl.CostEstimate(
            flops=flops,
            transcendentals=B * IMG_FLAT + (_F2 + _F3 + _F4),
            bytes_accessed=bytes_accessed),
    )(z.astype(jnp.float32), w1, w2, w3, w4, w5, pslab)

    # Glue: img.view(B, 1, 28, 28) — a free reshape.
    return out.reshape(B, *IMG_SHAPE)


def init_params(key):
    """Deterministic synthetic parameters (PyTorch-like uniform init for
    Linear, ones/zeros for BatchNorm affine).

    Returns (kernel_params, ref_params):
      kernel_params = [w1p, w2, w3, w4, w5, pslab]
        - weights stored (in, out) in bf16; w1 zero-padded 100->128 rows;
        - pslab (2, 2704) f32 = packed [b1 | gamma2..4 | b5] / [0 | beta2..4 | 0]
          (b2/b3/b4 are omitted: cancelled exactly by training-mode BN).
      ref_params = full-precision f32 weights/biases/gamma/beta for references.
    """
    sizes = [(LATENT, _F1), (_F1, _F2), (_F2, _F3), (_F3, _F4), (_F4, IMG_FLAT)]
    keys = jax.random.split(key, 2 * len(sizes))
    ws, bs = [], []
    for i, (fin, fout) in enumerate(sizes):
        bound = 1.0 / (fin ** 0.5)
        ws.append(jax.random.uniform(keys[2 * i], (fin, fout), jnp.float32,
                                     -bound, bound))
        bs.append(jax.random.uniform(keys[2 * i + 1], (1, fout), jnp.float32,
                                     -bound, bound))
    gammas = [jnp.ones((1, f), jnp.float32) for f in (_F2, _F3, _F4)]
    betas = [jnp.zeros((1, f), jnp.float32) for f in (_F2, _F3, _F4)]

    # K padding for layer 1 (zero rows contribute nothing).
    w1p = jnp.zeros((K_PAD, _F1), jnp.float32).at[:LATENT, :].set(ws[0])

    # Packed parameter slab (2, 2704).
    row0 = jnp.concatenate([bs[0], gammas[0], gammas[1], gammas[2], bs[4]],
                           axis=1)
    row1 = jnp.concatenate([jnp.zeros((1, _F1), jnp.float32),
                            betas[0], betas[1], betas[2],
                            jnp.zeros((1, IMG_FLAT), jnp.float32)], axis=1)
    pslab = jnp.concatenate([row0, row1], axis=0)
    assert pslab.shape == (2, _SLAB_W)

    kernel_params = [
        w1p.astype(jnp.bfloat16),
        ws[1].astype(jnp.bfloat16),
        ws[2].astype(jnp.bfloat16),
        ws[3].astype(jnp.bfloat16),
        ws[4].astype(jnp.bfloat16),
        pslab,
    ]
    ref_params = (ws, bs, gammas, betas)
    return kernel_params, ref_params


def reference_forward(z, ref_params, weights_dtype):
    """Pure-JAX reference with textbook training-mode BatchNorm (including the
    Linear biases the kernel drops) and where-based LeakyReLU.  weights_dtype
    = bf16 reproduces the kernel's weight precision (tight check); f32 gives
    the true full-precision PyTorch semantics (loose check)."""
    ws, bs, gammas, betas = ref_params

    def mm(x, w):
        return jnp.dot(x.astype(weights_dtype), w.astype(weights_dtype),
                       preferred_element_type=jnp.float32)

    def lrelu(x):
        return jnp.where(x > 0, x, LEAKY_SLOPE * x)

    def bn(t, g, be, bias):
        t = t + bias
        m = jnp.mean(t, axis=0, keepdims=True)
        v = jnp.mean((t - m) ** 2, axis=0, keepdims=True)
        return g * (t - m) / jnp.sqrt(v + BN_EPS) + be

    h = lrelu(mm(z.astype(jnp.float32), ws[0]) + bs[0])
    h = lrelu(bn(mm(h, ws[1]), gammas[0], betas[0], bs[1]))
    h = lrelu(bn(mm(h, ws[2]), gammas[1], betas[1], bs[2]))
    h = lrelu(bn(mm(h, ws[3]), gammas[2], betas[2], bs[3]))
    h = jnp.tanh(mm(h, ws[4]) + bs[4])
    return h.reshape(z.shape[0], *IMG_SHAPE)


if __name__ == "__main__":
    key = jax.random.PRNGKey(0)
    pkey, zkey = jax.random.split(key)

    B = 8  # small batch (BatchNorm batch stats need B > 1)
    kernel_params, ref_params = init_params(pkey)
    z = jax.random.normal(zkey, (B, LATENT), jnp.float32)

    img = jax.block_until_ready(generator_forward(z, kernel_params))
    assert img.shape == (B, 1, 28, 28), img.shape

    # Tight check vs a reference using the same bf16 weights (validates the
    # fused/folded kernel math, bias cancellation, padding, manual DMA).
    ref_bf16 = reference_forward(z, ref_params, jnp.bfloat16)
    err_bf16 = float(jnp.max(jnp.abs(img - ref_bf16)))
    assert err_bf16 < 1e-2, f"bf16-reference mismatch: {err_bf16}"

    # Loose check vs the true f32 PyTorch-semantics reference (validates that
    # bf16 weight storage does not drift materially over the 5 layers).
    ref_f32 = reference_forward(z, ref_params, jnp.float32)
    err_f32 = float(jnp.max(jnp.abs(img - ref_f32)))
    assert err_f32 < 1e-1, f"f32-reference drift: {err_f32}"

    print("KERNEL_OK")
</pallas_src>

<mosaic_0001>
module attributes {stable_mosaic.version = 11 : i64} {
  func.func @generator_kernel(%arg0: memref<8x100xf32, #tpu.memory_space<vmem>>, %arg1: memref<128x128xbf16, #tpu.memory_space<vmem>>, %arg2: memref<128x256xbf16, #tpu.memory_space<vmem>>, %arg3: memref<256x512xbf16, #tpu.memory_space<vmem>>, %arg4: memref<512x1024xbf16, #tpu.memory_space<any>>, %arg5: memref<1024x784xbf16, #tpu.memory_space<any>>, %arg6: memref<2x2704xf32, #tpu.memory_space<vmem>>, %arg7: memref<8x784xf32, #tpu.memory_space<vmem>>, %arg8: memref<512x1024xbf16, #tpu.memory_space<vmem>>, %arg9: memref<1024x784xbf16, #tpu.memory_space<vmem>>, %arg10: memref<8x128xf32, #tpu.memory_space<vmem>>, %arg11: memref<2x!tpu.dma_semaphore, #tpu.memory_space<semaphore_mem>>) attributes {dimension_semantics = [], scalar_prefetch = 0 : i64, scratch_operands = 4 : i64, tpu.core_type = #tpu.core_type<tc>} {
    %c0_i32 = arith.constant 0 : i32
    %0 = tpu.memref_slice %arg11[%c0_i32] : memref<2x!tpu.dma_semaphore, #tpu.memory_space<semaphore_mem>> -> memref<1x!tpu.dma_semaphore, #tpu.memory_space<semaphore_mem>>
    %1 = tpu.memref_squeeze %0 : memref<1x!tpu.dma_semaphore, #tpu.memory_space<semaphore_mem>> -> memref<!tpu.dma_semaphore, #tpu.memory_space<semaphore_mem>>
    tpu.enqueue_dma source(%arg4 : memref<512x1024xbf16, #tpu.memory_space<any>>) target(%arg8 : memref<512x1024xbf16, #tpu.memory_space<vmem>>) target_semaphore(%1 : memref<!tpu.dma_semaphore, #tpu.memory_space<semaphore_mem>>)
    %c1_i32 = arith.constant 1 : i32
    %2 = tpu.memref_slice %arg11[%c1_i32] : memref<2x!tpu.dma_semaphore, #tpu.memory_space<semaphore_mem>> -> memref<1x!tpu.dma_semaphore, #tpu.memory_space<semaphore_mem>>
    %3 = tpu.memref_squeeze %2 : memref<1x!tpu.dma_semaphore, #tpu.memory_space<semaphore_mem>> -> memref<!tpu.dma_semaphore, #tpu.memory_space<semaphore_mem>>
    tpu.enqueue_dma source(%arg5 : memref<1024x784xbf16, #tpu.memory_space<any>>) target(%arg9 : memref<1024x784xbf16, #tpu.memory_space<vmem>>) target_semaphore(%3 : memref<!tpu.dma_semaphore, #tpu.memory_space<semaphore_mem>>)
    %c0 = arith.constant 0 : index
    %c0_0 = arith.constant 0 : index
    %4 = vector.load %arg6[%c0, %c0_0] : memref<2x2704xf32, #tpu.memory_space<vmem>>, vector<1x128xf32>
    %c0_1 = arith.constant 0 : index
    %c128 = arith.constant 128 : index
    %5 = vector.load %arg6[%c0_1, %c128] : memref<2x2704xf32, #tpu.memory_space<vmem>>, vector<1x256xf32>
    %c1 = arith.constant 1 : index
    %c128_2 = arith.constant 128 : index
    %6 = vector.load %arg6[%c1, %c128_2] : memref<2x2704xf32, #tpu.memory_space<vmem>>, vector<1x256xf32>
    %c0_3 = arith.constant 0 : index
    %c384 = arith.constant 384 : index
    %7 = vector.load %arg6[%c0_3, %c384] : memref<2x2704xf32, #tpu.memory_space<vmem>>, vector<1x512xf32>
    %c1_4 = arith.constant 1 : index
    %c384_5 = arith.constant 384 : index
    %8 = vector.load %arg6[%c1_4, %c384_5] : memref<2x2704xf32, #tpu.memory_space<vmem>>, vector<1x512xf32>
    %c0_6 = arith.constant 0 : index
    %c896 = arith.constant 896 : index
    %9 = vector.load %arg6[%c0_6, %c896] : memref<2x2704xf32, #tpu.memory_space<vmem>>, vector<1x1024xf32>
    %c1_7 = arith.constant 1 : index
    %c896_8 = arith.constant 896 : index
    %10 = vector.load %arg6[%c1_7, %c896_8] : memref<2x2704xf32, #tpu.memory_space<vmem>>, vector<1x1024xf32>
    %c0_9 = arith.constant 0 : index
    %c1920 = arith.constant 1920 : index
    %11 = vector.load %arg6[%c0_9, %c1920] : memref<2x2704xf32, #tpu.memory_space<vmem>>, vector<1x784xf32>
    %cst = arith.constant 0.000000e+00 : f32
    %12 = vector.broadcast %cst : f32 to vector<8x128xf32>
    %c0_10 = arith.constant 0 : index
    %c0_11 = arith.constant 0 : index
    %13 = vector.load %arg10[%c0_10, %c0_11] : memref<8x128xf32, #tpu.memory_space<vmem>>, vector<8x128xf32>
    tpu.vector_store %arg10[%c0_10, %c0_11], %12 {strides = array<i32>} : memref<8x128xf32, #tpu.memory_space<vmem>>, vector<8x128xf32>,
    %c0_12 = arith.constant 0 : index
    %c0_13 = arith.constant 0 : index
    %14 = vector.load %arg0[%c0_12, %c0_13] : memref<8x100xf32, #tpu.memory_space<vmem>>, vector<8x100xf32>
    %c0_14 = arith.constant 0 : index
    %c0_15 = arith.constant 0 : index
    %15 = vector.load %arg10[%c0_14, %c0_15] : memref<8x128xf32, #tpu.memory_space<vmem>>, vector<8x100xf32>
    tpu.vector_store %arg10[%c0_14, %c0_15], %14 {strides = array<i32>} : memref<8x128xf32, #tpu.memory_space<vmem>>, vector<8x100xf32>,
    %c0_16 = arith.constant 0 : index
    %c0_17 = arith.constant 0 : index
    %16 = vector.load %arg10[%c0_16, %c0_17] : memref<8x128xf32, #tpu.memory_space<vmem>>, vector<8x128xf32>
    %17 = arith.truncf %16 : vector<8x128xf32> to vector<8x128xbf16>
    %c0_18 = arith.constant 0 : index
    %c0_19 = arith.constant 0 : index
    %18 = vector.load %arg1[%c0_18, %c0_19] : memref<128x128xbf16, #tpu.memory_space<vmem>>, vector<128x128xbf16>
    %cst_20 = arith.constant dense<0.000000e+00> : vector<8x128xf32>
    %19 = tpu.matmul %17, %18, %cst_20 {dimension_numbers = #tpu.dot_dimension_numbers<[1], [0], [0], [1], [0, 0, 1, 1], [], []>} : vector<8x128xbf16>, vector<128x128xbf16>, vector<8x128xf32> -> vector<8x128xf32>
    %20 = vector.broadcast %4 : vector<1x128xf32> to vector<8x128xf32>
    %21 = arith.addf %19, %20 : vector<8x128xf32>
    %cst_21 = arith.constant 2.000000e-01 : f32
    %22 = vector.broadcast %cst_21 : f32 to vector<8x128xf32>
    %23 = arith.mulf %22, %21 : vector<8x128xf32>
    %24 = arith.maximumf %21, %23 : vector<8x128xf32>
    %25 = arith.truncf %24 : vector<8x128xf32> to vector<8x128xbf16>
    %c0_22 = arith.constant 0 : index
    %c0_23 = arith.constant 0 : index
    %26 = vector.load %arg2[%c0_22, %c0_23] : memref<128x256xbf16, #tpu.memory_space<vmem>>, vector<128x256xbf16>
    %cst_24 = arith.constant dense<0.000000e+00> : vector<8x256xf32>
    %27 = tpu.matmul %25, %26, %cst_24 {dimension_numbers = #tpu.dot_dimension_numbers<[1], [0], [0], [1], [0, 0, 1, 1], [], []>} : vector<8x128xbf16>, vector<128x256xbf16>, vector<8x256xf32> -> vector<8x256xf32>
    %cst_25 = arith.constant dense<0.000000e+00> : vector<256xf32>
    %28 = vector.multi_reduction <add>, %27, %cst_25 [0] : vector<8x256xf32> to vector<256xf32>
    %29 = vector.shape_cast %28 : vector<256xf32> to vector<1x256xf32>
    %cst_26 = arith.constant 8.000000e+00 : f32
    %30 = vector.broadcast %cst_26 : f32 to vector<1x256xf32>
    %31 = arith.divf %29, %30 : vector<1x256xf32>
    %32 = vector.broadcast %31 : vector<1x256xf32> to vector<8x256xf32>
    %33 = arith.subf %27, %32 : vector<8x256xf32>
    %34 = arith.mulf %33, %33 : vector<8x256xf32>
    %cst_27 = arith.constant dense<0.000000e+00> : vector<256xf32>
    %35 = vector.multi_reduction <add>, %34, %cst_27 [0] : vector<8x256xf32> to vector<256xf32>
    %36 = vector.shape_cast %35 : vector<256xf32> to vector<1x256xf32>
    %cst_28 = arith.constant 8.000000e+00 : f32
    %37 = vector.broadcast %cst_28 : f32 to vector<1x256xf32>
    %38 = arith.divf %36, %37 : vector<1x256xf32>
    %cst_29 = arith.constant 8.000000e-01 : f32
    %39 = vector.broadcast %cst_29 : f32 to vector<1x256xf32>
    %40 = arith.addf %38, %39 : vector<1x256xf32>
    %41 = math.rsqrt %40 : vector<1x256xf32>
    %42 = arith.mulf %5, %41 : vector<1x256xf32>
    %43 = arith.mulf %31, %42 : vector<1x256xf32>
    %44 = arith.subf %6, %43 : vector<1x256xf32>
    %45 = vector.broadcast %42 : vector<1x256xf32> to vector<8x256xf32>
    %46 = arith.mulf %27, %45 : vector<8x256xf32>
    %47 = vector.broadcast %44 : vector<1x256xf32> to vector<8x256xf32>
    %48 = arith.addf %46, %47 : vector<8x256xf32>
    %cst_30 = arith.constant 2.000000e-01 : f32
    %49 = vector.broadcast %cst_30 : f32 to vector<8x256xf32>
    %50 = arith.mulf %49, %48 : vector<8x256xf32>
    %51 = arith.maximumf %48, %50 : vector<8x256xf32>
    %52 = arith.truncf %51 : vector<8x256xf32> to vector<8x256xbf16>
    %c0_31 = arith.constant 0 : index
    %c0_32 = arith.constant 0 : index
    %53 = vector.load %arg3[%c0_31, %c0_32] : memref<256x512xbf16, #tpu.memory_space<vmem>>, vector<256x512xbf16>
    %cst_33 = arith.constant dense<0.000000e+00> : vector<8x512xf32>
    %54 = tpu.matmul %52, %53, %cst_33 {dimension_numbers = #tpu.dot_dimension_numbers<[1], [0], [0], [1], [0, 0, 1, 1], [], []>} : vector<8x256xbf16>, vector<256x512xbf16>, vector<8x512xf32> -> vector<8x512xf32>
    %cst_34 = arith.constant dense<0.000000e+00> : vector<512xf32>
    %55 = vector.multi_reduction <add>, %54, %cst_34 [0] : vector<8x512xf32> to vector<512xf32>
    %56 = vector.shape_cast %55 : vector<512xf32> to vector<1x512xf32>
    %cst_35 = arith.constant 8.000000e+00 : f32
    %57 = vector.broadcast %cst_35 : f32 to vector<1x512xf32>
    %58 = arith.divf %56, %57 : vector<1x512xf32>
    %59 = vector.broadcast %58 : vector<1x512xf32> to vector<8x512xf32>
    %60 = arith.subf %54, %59 : vector<8x512xf32>
    %61 = arith.mulf %60, %60 : vector<8x512xf32>
    %cst_36 = arith.constant dense<0.000000e+00> : vector<512xf32>
    %62 = vector.multi_reduction <add>, %61, %cst_36 [0] : vector<8x512xf32> to vector<512xf32>
    %63 = vector.shape_cast %62 : vector<512xf32> to vector<1x512xf32>
    %cst_37 = arith.constant 8.000000e+00 : f32
    %64 = vector.broadcast %cst_37 : f32 to vector<1x512xf32>
    %65 = arith.divf %63, %64 : vector<1x512xf32>
    %cst_38 = arith.constant 8.000000e-01 : f32
    %66 = vector.broadcast %cst_38 : f32 to vector<1x512xf32>
    %67 = arith.addf %65, %66 : vector<1x512xf32>
    %68 = math.rsqrt %67 : vector<1x512xf32>
    %69 = arith.mulf %7, %68 : vector<1x512xf32>
    %70 = arith.mulf %58, %69 : vector<1x512xf32>
    %71 = arith.subf %8, %70 : vector<1x512xf32>
    %72 = vector.broadcast %69 : vector<1x512xf32> to vector<8x512xf32>
    %73 = arith.mulf %54, %72 : vector<8x512xf32>
    %74 = vector.broadcast %71 : vector<1x512xf32> to vector<8x512xf32>
    %75 = arith.addf %73, %74 : vector<8x512xf32>
    %cst_39 = arith.constant 2.000000e-01 : f32
    %76 = vector.broadcast %cst_39 : f32 to vector<8x512xf32>
    %77 = arith.mulf %76, %75 : vector<8x512xf32>
    %78 = arith.maximumf %75, %77 : vector<8x512xf32>
    %c0_i32_40 = arith.constant 0 : i32
    %79 = tpu.memref_slice %arg11[%c0_i32_40] : memref<2x!tpu.dma_semaphore, #tpu.memory_space<semaphore_mem>> -> memref<1x!tpu.dma_semaphore, #tpu.memory_space<semaphore_mem>>
    %80 = tpu.memref_squeeze %79 : memref<1x!tpu.dma_semaphore, #tpu.memory_space<semaphore_mem>> -> memref<!tpu.dma_semaphore, #tpu.memory_space<semaphore_mem>>
    tpu.wait_dma2 semaphore(%80 : memref<!tpu.dma_semaphore, #tpu.memory_space<semaphore_mem>>) src(%arg4 : memref<512x1024xbf16, #tpu.memory_space<any>>) dst(%arg8 : memref<512x1024xbf16, #tpu.memory_space<vmem>>)
    %81 = arith.truncf %78 : vector<8x512xf32> to vector<8x512xbf16>
    %c0_41 = arith.constant 0 : index
    %c0_42 = arith.constant 0 : index
    %82 = vector.load %arg8[%c0_41, %c0_42] : memref<512x1024xbf16, #tpu.memory_space<vmem>>, vector<512x1024xbf16>
    %cst_43 = arith.constant dense<0.000000e+00> : vector<8x1024xf32>
    %83 = tpu.matmul %81, %82, %cst_43 {dimension_numbers = #tpu.dot_dimension_numbers<[1], [0], [0], [1], [0, 0, 1, 1], [], []>} : vector<8x512xbf16>, vector<512x1024xbf16>, vector<8x1024xf32> -> vector<8x1024xf32>
    %cst_44 = arith.constant dense<0.000000e+00> : vector<1024xf32>
    %84 = vector.multi_reduction <add>, %83, %cst_44 [0] : vector<8x1024xf32> to vector<1024xf32>
    %85 = vector.shape_cast %84 : vector<1024xf32> to vector<1x1024xf32>
    %cst_45 = arith.constant 8.000000e+00 : f32
    %86 = vector.broadcast %cst_45 : f32 to vector<1x1024xf32>
    %87 = arith.divf %85, %86 : vector<1x1024xf32>
    %88 = vector.broadcast %87 : vector<1x1024xf32> to vector<8x1024xf32>
    %89 = arith.subf %83, %88 : vector<8x1024xf32>
    %90 = arith.mulf %89, %89 : vector<8x1024xf32>
    %cst_46 = arith.constant dense<0.000000e+00> : vector<1024xf32>
    %91 = vector.multi_reduction <add>, %90, %cst_46 [0] : vector<8x1024xf32> to vector<1024xf32>
    %92 = vector.shape_cast %91 : vector<1024xf32> to vector<1x1024xf32>
    %cst_47 = arith.constant 8.000000e+00 : f32
    %93 = vector.broadcast %cst_47 : f32 to vector<1x1024xf32>
    %94 = arith.divf %92, %93 : vector<1x1024xf32>
    %cst_48 = arith.constant 8.000000e-01 : f32
    %95 = vector.broadcast %cst_48 : f32 to vector<1x1024xf32>
    %96 = arith.addf %94, %95 : vector<1x1024xf32>
    %97 = math.rsqrt %96 : vector<1x1024xf32>
    %98 = arith.mulf %9, %97 : vector<1x1024xf32>
    %99 = arith.mulf %87, %98 : vector<1x1024xf32>
    %100 = arith.subf %10, %99 : vector<1x1024xf32>
    %101 = vector.broadcast %98 : vector<1x1024xf32> to vector<8x1024xf32>
    %102 = arith.mulf %83, %101 : vector<8x1024xf32>
    %103 = vector.broadcast %100 : vector<1x1024xf32> to vector<8x1024xf32>
    %104 = arith.addf %102, %103 : vector<8x1024xf32>
    %cst_49 = arith.constant 2.000000e-01 : f32
    %105 = vector.broadcast %cst_49 : f32 to vector<8x1024xf32>
    %106 = arith.mulf %105, %104 : vector<8x1024xf32>
    %107 = arith.maximumf %104, %106 : vector<8x1024xf32>
    %c1_i32_50 = arith.constant 1 : i32
    %108 = tpu.memref_slice %arg11[%c1_i32_50] : memref<2x!tpu.dma_semaphore, #tpu.memory_space<semaphore_mem>> -> memref<1x!tpu.dma_semaphore, #tpu.memory_space<semaphore_mem>>
    %109 = tpu.memref_squeeze %108 : memref<1x!tpu.dma_semaphore, #tpu.memory_space<semaphore_mem>> -> memref<!tpu.dma_semaphore, #tpu.memory_space<semaphore_mem>>
    tpu.wait_dma2 semaphore(%109 : memref<!tpu.dma_semaphore, #tpu.memory_space<semaphore_mem>>) src(%arg5 : memref<1024x784xbf16, #tpu.memory_space<any>>) dst(%arg9 : memref<1024x784xbf16, #tpu.memory_space<vmem>>)
    %110 = arith.truncf %107 : vector<8x1024xf32> to vector<8x1024xbf16>
    %c0_51 = arith.constant 0 : index
    %c0_52 = arith.constant 0 : index
    %111 = vector.load %arg9[%c0_51, %c0_52] : memref<1024x784xbf16, #tpu.memory_space<vmem>>, vector<1024x784xbf16>
    %cst_53 = arith.constant dense<0.000000e+00> : vector<8x784xf32>
    %112 = tpu.matmul %110, %111, %cst_53 {dimension_numbers = #tpu.dot_dimension_numbers<[1], [0], [0], [1], [0, 0, 1, 1], [], []>} : vector<8x1024xbf16>, vector<1024x784xbf16>, vector<8x784xf32> -> vector<8x784xf32>
    %113 = vector.broadcast %11 : vector<1x784xf32> to vector<8x784xf32>
    %114 = arith.addf %112, %113 : vector<8x784xf32>
    %115 = math.tanh %114 : vector<8x784xf32>
    %c0_54 = arith.constant 0 : index
    %c0_55 = arith.constant 0 : index
    %116 = vector.load %arg7[%c0_54, %c0_55] : memref<8x784xf32, #tpu.memory_space<vmem>>, vector<8x784xf32>
    tpu.vector_store %arg7[%c0_54, %c0_55], %115 {strides = array<i32>} : memref<8x784xf32, #tpu.memory_space<vmem>>, vector<8x784xf32>,
    return
  }
}

</mosaic_0001>

<llo_original>
// kernel: generator_forward.1
$region0: #{generator_forward.1}
  #allocation0 [shape = 'u32[]', space=smem, size = 0x4, offset = 0x4, fixed_abs, tag = 'smem constant byte address 0x4 - core index']
  #allocation1 [shape = 'u32[72,128]{1,0:T(1,128)}', space=vmem, size = 0x9000, scoped, tag = 'internal scratch']
  #allocation2 [shape = 'bf16[512,1024]{1,0:T(8,128)(2,1)}', space=vmem, size = 0x100000, scoped, tag = 'scratch operand']
  #allocation3 [shape = 'bf16[1024,784]{1,0:T(8,128)(2,1)}', space=vmem, size = 0x1c0000, scoped, tag = 'scratch operand']
  #allocation4 [shape = 'f32[8,128]{1,0:T(8,128)}', space=vmem, size = 0x1000, scoped, tag = 'scratch operand']
  #allocation5 [shape = 's32[2]{0}', space=sflag, size = 0x8, scoped, tag = 'scratch operand']
  #allocation6 [shape = 's32[]', space=sflag, size = 0x4, offset = 0, fixed_abs, tag = 'sflag constant byte address 0x0 - dummy sync flag']
  #allocation7 [shape = 's32[]', space=sflag, size = 0x4, offset = 0, fixed_abs, tag = 'sflag constant byte address 0x0 - dummy sync flag']
  %s0 = inlined_call_operand.vmem [shape: f32[8,100], index: 0, kind: input, shape index: {}]
  %s1 = inlined_call_operand.vmem [shape: bf16[128,128], index: 1, kind: input, shape index: {}]
  %s2 = inlined_call_operand.vmem [shape: bf16[128,256], index: 2, kind: input, shape index: {}]
  %s3 = inlined_call_operand.vmem [shape: bf16[256,512], index: 3, kind: input, shape index: {}]
  %s4 = inlined_call_operand.vmem [shape: bf16[512,1024], index: 4, kind: input, shape index: {}]
  %s5 = inlined_call_operand.vmem [shape: bf16[1024,784], index: 5, kind: input, shape index: {}]
  %s6 = inlined_call_operand.vmem [shape: f32[2,2704], index: 6, kind: input, shape index: {}]
  %s7 = inlined_call_operand.vmem [shape: f32[8,784], index: 7, kind: output, shape index: {}]
  %s8 = sld [smem:[#allocation0]]
  $region68: #{generator_forward.1} parent=0
    _
  %s10 = ssub.s32 1, %s8
  %s11 = scalar_select 0, %s10, %s8
  // Predicated region
  $region2: #{generator_forward.1} parent=0 // pred_check
    _
  $region3: #{generator_forward.1} parent=0 // pred_check_branch
    %13 = sbr.rel (0) target = $region5
  $region4: #{generator_forward.1} parent=0 // pred_region
    _
  $region5: #{generator_forward.1} parent=0 // pred_fallthru
    _
  // Predicated region
  $region6: #{generator_forward.1} parent=0 // pred_check
    _
  $region7: #{generator_forward.1} parent=0 // pred_check_branch
    %15 = sbr.rel (0) target = $region9
  $region8: #{generator_forward.1} parent=0 // pred_region
    _
  $region9: #{generator_forward.1} parent=0 // pred_fallthru
    _
  // Predicated region
  $region10: #{generator_forward.1} parent=0 // pred_check
    _
  $region11: #{generator_forward.1} parent=0 // pred_check_branch
    %17 = sbr.rel (0) target = $region13
  $region12: #{generator_forward.1} parent=0 // pred_region
    _
  $region13: #{generator_forward.1} parent=0 // pred_fallthru
    _
  // Predicated region
  $region14: #{generator_forward.1} parent=0 // pred_check
    _
  $region15: #{generator_forward.1} parent=0 // pred_check_branch
    %19 = sbr.rel (0) target = $region17
  $region16: #{generator_forward.1} parent=0 // pred_region
    _
  $region17: #{generator_forward.1} parent=0 // pred_fallthru
    _
  // Predicated region
  $region18: #{generator_forward.1} parent=0 // pred_check
    _
  $region19: #{generator_forward.1} parent=0 // pred_check_branch
    %21 = sbr.rel (0) target = $region21
  $region20: #{generator_forward.1} parent=0 // pred_region
    _
  $region21: #{generator_forward.1} parent=0 // pred_fallthru
    _
  // Predicated region
  $region22: #{generator_forward.1} parent=0 // pred_check
    _
  $region23: #{generator_forward.1} parent=0 // pred_check_branch
    %23 = sbr.rel (0) target = $region25
  $region24: #{generator_forward.1} parent=0 // pred_region
    loop: start=0, step=1, limit=1
    $region26: #{generator_forward.1} parent=24 // loop_pre_header
      _
    $region27: #{generator_forward.1} parent=24 // loop_header
      %s25 = sphi 0, %s29
      %p26 = scmp.ge.s32.totalorder %s25, 1
      %s30 = sphi %s4, %s4
      %s31 = sphi [#allocation2], [#allocation2]
    $region28: #{generator_forward.1} parent=24 // loop_header_branch
      %28 = sbr.rel (%p26) target = $region32
    $region29: #{generator_forward.1} parent=24 // loop_body
      %v32 = vld [vmem:[%s30] sm:$0xff]
      %33 = vst [vmem:[%s31] sm:$0xff] %v32
      %v34 = vld [vmem:[%s30 + $0x8] sm:$0xff]
      %35 = vst [vmem:[%s31 + $0x8] sm:$0xff] %v34
      %v36 = vld [vmem:[%s30 + $0x10] sm:$0xff]
      %37 = vst [vmem:[%s31 + $0x10] sm:$0xff] %v36
      %v38 = vld [vmem:[%s30 + $0x18] sm:$0xff]
      %39 = vst [vmem:[%s31 + $0x18] sm:$0xff] %v38
      %v40 = vld [vmem:[%s30 + $0x20] sm:$0xff]
      %41 = vst [vmem:[%s31 + $0x20] sm:$0xff] %v40
      %v42 = vld [vmem:[%s30 + $0x28] sm:$0xff]
      %43 = vst [vmem:[%s31 + $0x28] sm:$0xff] %v42
      %v44 = vld [vmem:[%s30 + $0x30] sm:$0xff]
      %45 = vst [vmem:[%s31 + $0x30] sm:$0xff] %v44
      %v46 = vld [vmem:[%s30 + $0x38] sm:$0xff]
      %47 = vst [vmem:[%s31 + $0x38] sm:$0xff] %v46
      %v48 = vld [vmem:[%s30 + $0x40] sm:$0xff]
      %49 = vst [vmem:[%s31 + $0x40] sm:$0xff] %v48
      %v50 = vld [vmem:[%s30 + $0x48] sm:$0xff]
      %51 = vst [vmem:[%s31 + $0x48] sm:$0xff] %v50
      %v52 = vld [vmem:[%s30 + $0x50] sm:$0xff]
      %53 = vst [vmem:[%s31 + $0x50] sm:$0xff] %v52
      %v54 = vld [vmem:[%s30 + $0x58] sm:$0xff]
      %55 = vst [vmem:[%s31 + $0x58] sm:$0xff] %v54
      %v56 = vld [vmem:[%s30 + $0x60] sm:$0xff]
      %57 = vst [vmem:[%s31 + $0x60] sm:$0xff] %v56
      %v58 = vld [vmem:[%s30 + $0x68] sm:$0xff]
      %59 = vst [vmem:[%s31 + $0x68] sm:$0xff] %v58
      %v60 = vld [vmem:[%s30 + $0x70] sm:$0xff]
      %61 = vst [vmem:[%s31 + $0x70] sm:$0xff] %v60
      %v62 = vld [vmem:[%s30 + $0x78] sm:$0xff]
      %63 = vst [vmem:[%s31 + $0x78] sm:$0xff] %v62
      %v64 = vld [vmem:[%s30 + $0x80] sm:$0xff]
      %65 = vst [vmem:[%s31 + $0x80] sm:$0xff] %v64
      %v66 = vld [vmem:[%s30 + $0x88] sm:$0xff]
      %67 = vst [vmem:[%s31 + $0x88] sm:$0xff] %v66
      %v68 = vld [vmem:[%s30 + $0x90] sm:$0xff]
      %69 = vst [vmem:[%s31 + $0x90] sm:$0xff] %v68
      %v70 = vld [vmem:[%s30 + $0x98] sm:$0xff]
      %71 = vst [vmem:[%s31 + $0x98] sm:$0xff] %v70
      %v72 = vld [vmem:[%s30 + $0xa0] sm:$0xff]
      %73 = vst [vmem:[%s31 + $0xa0] sm:$0xff] %v72
      %v74 = vld [vmem:[%s30 + $0xa8] sm:$0xff]
      %75 = vst [vmem:[%s31 + $0xa8] sm:$0xff] %v74
      %v76 = vld [vmem:[%s30 + $0xb0] sm:$0xff]
      %77 = vst [vmem:[%s31 + $0xb0] sm:$0xff] %v76
      %v78 = vld [vmem:[%s30 + $0xb8] sm:$0xff]
      %79 = vst [vmem:[%s31 + $0xb8] sm:$0xff] %v78
      %v80 = vld [vmem:[%s30 + $0xc0] sm:$0xff]
      %81 = vst [vmem:[%s31 + $0xc0] sm:$0xff] %v80
      %v82 = vld [vmem:[%s30 + $0xc8] sm:$0xff]
      %83 = vst [vmem:[%s31 + $0xc8] sm:$0xff] %v82
      %v84 = vld [vmem:[%s30 + $0xd0] sm:$0xff]
      %85 = vst [vmem:[%s31 + $0xd0] sm:$0xff] %v84
      %v86 = vld [vmem:[%s30 + $0xd8] sm:$0xff]
      %87 = vst [vmem:[%s31 + $0xd8] sm:$0xff] %v86
      %v88 = vld [vmem:[%s30 + $0xe0] sm:$0xff]
      %89 = vst [vmem:[%s31 + $0xe0] sm:$0xff] %v88
      %v90 = vld [vmem:[%s30 + $0xe8] sm:$0xff]
      %91 = vst [vmem:[%s31 + $0xe8] sm:$0xff] %v90
      %v92 = vld [vmem:[%s30 + $0xf0] sm:$0xff]
      %93 = vst [vmem:[%s31 + $0xf0] sm:$0xff] %v92
      %v94 = vld [vmem:[%s30 + $0xf8] sm:$0xff]
      %95 = vst [vmem:[%s31 + $0xf8] sm:$0xff] %v94
      %v96 = vld [vmem:[%s30 + $0x100] sm:$0xff]
      %97 = vst [vmem:[%s31 + $0x100] sm:$0xff] %v96
      %v98 = vld [vmem:[%s30 + $0x108] sm:$0xff]
      %99 = vst [vmem:[%s31 + $0x108] sm:$0xff] %v98
      %v100 = vld [vmem:[%s30 + $0x110] sm:$0xff]
      %101 = vst [vmem:[%s31 + $0x110] sm:$0xff] %v100
      %v102 = vld [vmem:[%s30 + $0x118] sm:$0xff]
      %103 = vst [vmem:[%s31 + $0x118] sm:$0xff] %v102
      %v104 = vld [vmem:[%s30 + $0x120] sm:$0xff]
      %105 = vst [vmem:[%s31 + $0x120] sm:$0xff] %v104
      %v106 = vld [vmem:[%s30 + $0x128] sm:$0xff]
      %107 = vst [vmem:[%s31 + $0x128] sm:$0xff] %v106
      %v108 = vld [vmem:[%s30 + $0x130] sm:$0xff]
      %109 = vst [vmem:[%s31 + $0x130] sm:$0xff] %v108
      %v110 = vld [vmem:[%s30 + $0x138] sm:$0xff]
      %111 = vst [vmem:[%s31 + $0x138] sm:$0xff] %v110
      %v112 = vld [vmem:[%s30 + $0x140] sm:$0xff]
      %113 = vst [vmem:[%s31 + $0x140] sm:$0xff] %v112
      %v114 = vld [vmem:[%s30 + $0x148] sm:$0xff]
      %115 = vst [vmem:[%s31 + $0x148] sm:$0xff] %v114
      %v116 = vld [vmem:[%s30 + $0x150] sm:$0xff]
      %117 = vst [vmem:[%s31 + $0x150] sm:$0xff] %v116
      %v118 = vld [vmem:[%s30 + $0x158] sm:$0xff]
      %119 = vst [vmem:[%s31 + $0x158] sm:$0xff] %v118
      %v120 = vld [vmem:[%s30 + $0x160] sm:$0xff]
      %121 = vst [vmem:[%s31 + $0x160] sm:$0xff] %v120
      %v122 = vld [vmem:[%s30 + $0x168] sm:$0xff]
      %123 = vst [vmem:[%s31 + $0x168] sm:$0xff] %v122
      %v124 = vld [vmem:[%s30 + $0x170] sm:$0xff]
      %125 = vst [vmem:[%s31 + $0x170] sm:$0xff] %v124
      %v126 = vld [vmem:[%s30 + $0x178] sm:$0xff]
      %127 = vst [vmem:[%s31 + $0x178] sm:$0xff] %v126
      %v128 = vld [vmem:[%s30 + $0x180] sm:$0xff]
      %129 = vst [vmem:[%s31 + $0x180] sm:$0xff] %v128
      %v130 = vld [vmem:[%s30 + $0x188] sm:$0xff]
      %131 = vst [vmem:[%s31 + $0x188] sm:$0xff] %v130
      %v132 = vld [vmem:[%s30 + $0x190] sm:$0xff]
      %133 = vst [vmem:[%s31 + $0x190] sm:$0xff] %v132
      %v134 = vld [vmem:[%s30 + $0x198] sm:$0xff]
      %135 = vst [vmem:[%s31 + $0x198] sm:$0xff] %v134
      %v136 = vld [vmem:[%s30 + $0x1a0] sm:$0xff]
      %137 = vst [vmem:[%s31 + $0x1a0] sm:$0xff] %v136
      %v138 = vld [vmem:[%s30 + $0x1a8] sm:$0xff]
      %139 = vst [vmem:[%s31 + $0x1a8] sm:$0xff] %v138
      %v140 = vld [vmem:[%s30 + $0x1b0] sm:$0xff]
      %141 = vst [vmem:[%s31 + $0x1b0] sm:$0xff] %v140
      %v142 = vld [vmem:[%s30 + $0x1b8] sm:$0xff]
      %143 = vst [vmem:[%s31 + $0x1b8] sm:$0xff] %v142
      %v144 = vld [vmem:[%s30 + $0x1c0] sm:$0xff]
      %145 = vst [vmem:[%s31 + $0x1c0] sm:$0xff] %v144
      %v146 = vld [vmem:[%s30 + $0x1c8] sm:$0xff]
      %147 = vst [vmem:[%s31 + $0x1c8] sm:$0xff] %v146
      %v148 = vld [vmem:[%s30 + $0x1d0] sm:$0xff]
      %149 = vst [vmem:[%s31 + $0x1d0] sm:$0xff] %v148
      %v150 = vld [vmem:[%s30 + $0x1d8] sm:$0xff]
      %151 = vst [vmem:[%s31 + $0x1d8] sm:$0xff] %v150
      %v152 = vld [vmem:[%s30 + $0x1e0] sm:$0xff]
      %153 = vst [vmem:[%s31 + $0x1e0] sm:$0xff] %v152
      %v154 = vld [vmem:[%s30 + $0x1e8] sm:$0xff]
      %155 = vst [vmem:[%s31 + $0x1e8] sm:$0xff] %v154
      %v156 = vld [vmem:[%s30 + $0x1f0] sm:$0xff]
      %157 = vst [vmem:[%s31 + $0x1f0] sm:$0xff] %v156
      %v158 = vld [vmem:[%s30 + $0x1f8] sm:$0xff]
      %159 = vst [vmem:[%s31 + $0x1f8] sm:$0xff] %v158
      %v160 = vld [vmem:[%s30 + $0x200] sm:$0xff]
      %161 = vst [vmem:[%s31 + $0x200] sm:$0xff] %v160
      %v162 = vld [vmem:[%s30 + $0x208] sm:$0xff]
      %163 = vst [vmem:[%s31 + $0x208] sm:$0xff] %v162
      %v164 = vld [vmem:[%s30 + $0x210] sm:$0xff]
      %165 = vst [vmem:[%s31 + $0x210] sm:$0xff] %v164
      %v166 = vld [vmem:[%s30 + $0x218] sm:$0xff]
      %167 = vst [vmem:[%s31 + $0x218] sm:$0xff] %v166
      %v168 = vld [vmem:[%s30 + $0x220] sm:$0xff]
      %169 = vst [vmem:[%s31 + $0x220] sm:$0xff] %v168
      %v170 = vld [vmem:[%s30 + $0x228] sm:$0xff]
      %171 = vst [vmem:[%s31 + $0x228] sm:$0xff] %v170
      %v172 = vld [vmem:[%s30 + $0x230] sm:$0xff]
      %173 = vst [vmem:[%s31 + $0x230] sm:$0xff] %v172
      %v174 = vld [vmem:[%s30 + $0x238] sm:$0xff]
      %175 = vst [vmem:[%s31 + $0x238] sm:$0xff] %v174
      %v176 = vld [vmem:[%s30 + $0x240] sm:$0xff]
      %177 = vst [vmem:[%s31 + $0x240] sm:$0xff] %v176
      %v178 = vld [vmem:[%s30 + $0x248] sm:$0xff]
      %179 = vst [vmem:[%s31 + $0x248] sm:$0xff] %v178
      %v180 = vld [vmem:[%s30 + $0x250] sm:$0xff]
      %181 = vst [vmem:[%s31 + $0x250] sm:$0xff] %v180
      %v182 = vld [vmem:[%s30 + $0x258] sm:$0xff]
      %183 = vst [vmem:[%s31 + $0x258] sm:$0xff] %v182
      %v184 = vld [vmem:[%s30 + $0x260] sm:$0xff]
      %185 = vst [vmem:[%s31 + $0x260] sm:$0xff] %v184
      %v186 = vld [vmem:[%s30 + $0x268] sm:$0xff]
      %187 = vst [vmem:[%s31 + $0x268] sm:$0xff] %v186
      %v188 = vld [vmem:[%s30 + $0x270] sm:$0xff]
      %189 = vst [vmem:[%s31 + $0x270] sm:$0xff] %v188
      %v190 = vld [vmem:[%s30 + $0x278] sm:$0xff]
      %191 = vst [vmem:[%s31 + $0x278] sm:$0xff] %v190
      %v192 = vld [vmem:[%s30 + $0x280] sm:$0xff]
      %193 = vst [vmem:[%s31 + $0x280] sm:$0xff] %v192
      %v194 = vld [vmem:[%s30 + $0x288] sm:$0xff]
      %195 = vst [vmem:[%s31 + $0x288] sm:$0xff] %v194
      %v196 = vld [vmem:[%s30 + $0x290] sm:$0xff]
      %197 = vst [vmem:[%s31 + $0x290] sm:$0xff] %v196
      %v198 = vld [vmem:[%s30 + $0x298] sm:$0xff]
      %199 = vst [vmem:[%s31 + $0x298] sm:$0xff] %v198
      %v200 = vld [vmem:[%s30 + $0x2a0] sm:$0xff]
      %201 = vst [vmem:[%s31 + $0x2a0] sm:$0xff] %v200
      %v202 = vld [vmem:[%s30 + $0x2a8] sm:$0xff]
      %203 = vst [vmem:[%s31 + $0x2a8] sm:$0xff] %v202
      %v204 = vld [vmem:[%s30 + $0x2b0] sm:$0xff]
      %205 = vst [vmem:[%s31 + $0x2b0] sm:$0xff] %v204
      %v206 = vld [vmem:[%s30 + $0x2b8] sm:$0xff]
      %207 = vst [vmem:[%s31 + $0x2b8] sm:$0xff] %v206
      %v208 = vld [vmem:[%s30 + $0x2c0] sm:$0xff]
      %209 = vst [vmem:[%s31 + $0x2c0] sm:$0xff] %v208
      %v210 = vld [vmem:[%s30 + $0x2c8] sm:$0xff]
      %211 = vst [vmem:[%s31 + $0x2c8] sm:$0xff] %v210
      %v212 = vld [vmem:[%s30 + $0x2d0] sm:$0xff]
      %213 = vst [vmem:[%s31 + $0x2d0] sm:$0xff] %v212
      %v214 = vld [vmem:[%s30 + $0x2d8] sm:$0xff]
      %215 = vst [vmem:[%s31 + $0x2d8] sm:$0xff] %v214
      %v216 = vld [vmem:[%s30 + $0x2e0] sm:$0xff]
      %217 = vst [vmem:[%s31 + $0x2e0] sm:$0xff] %v216
      %v218 = vld [vmem:[%s30 + $0x2e8] sm:$0xff]
      %219 = vst [vmem:[%s31 + $0x2e8] sm:$0xff] %v218
      %v220 = vld [vmem:[%s30 + $0x2f0] sm:$0xff]
      %221 = vst [vmem:[%s31 + $0x2f0] sm:$0xff] %v220
      %v222 = vld [vmem:[%s30 + $0x2f8] sm:$0xff]
      %223 = vst [vmem:[%s31 + $0x2f8] sm:$0xff] %v222
      %v224 = vld [vmem:[%s30 + $0x300] sm:$0xff]
      %225 = vst [vmem:[%s31 + $0x300] sm:$0xff] %v224
      %v226 = vld [vmem:[%s30 + $0x308] sm:$0xff]
      %227 = vst [vmem:[%s31 + $0x308] sm:$0xff] %v226
      %v228 = vld [vmem:[%s30 + $0x310] sm:$0xff]
      %229 = vst [vmem:[%s31 + $0x310] sm:$0xff] %v228
      %v230 = vld [vmem:[%s30 + $0x318] sm:$0xff]
      %231 = vst [vmem:[%s31 + $0x318] sm:$0xff] %v230
      %v232 = vld [vmem:[%s30 + $0x320] sm:$0xff]
      %233 = vst [vmem:[%s31 + $0x320] sm:$0xff] %v232
      %v234 = vld [vmem:[%s30 + $0x328] sm:$0xff]
      %235 = vst [vmem:[%s31 + $0x328] sm:$0xff] %v234
      %v236 = vld [vmem:[%s30 + $0x330] sm:$0xff]
      %237 = vst [vmem:[%s31 + $0x330] sm:$0xff] %v236
      %v238 = vld [vmem:[%s30 + $0x338] sm:$0xff]
      %239 = vst [vmem:[%s31 + $0x338] sm:$0xff] %v238
      %v240 = vld [vmem:[%s30 + $0x340] sm:$0xff]
      %241 = vst [vmem:[%s31 + $0x340] sm:$0xff] %v240
      %v242 = vld [vmem:[%s30 + $0x348] sm:$0xff]
      %243 = vst [vmem:[%s31 + $0x348] sm:$0xff] %v242
      %v244 = vld [vmem:[%s30 + $0x350] sm:$0xff]
      %245 = vst [vmem:[%s31 + $0x350] sm:$0xff] %v244
      %v246 = vld [vmem:[%s30 + $0x358] sm:$0xff]
      %247 = vst [vmem:[%s31 + $0x358] sm:$0xff] %v246
      %v248 = vld [vmem:[%s30 + $0x360] sm:$0xff]
      %249 = vst [vmem:[%s31 + $0x360] sm:$0xff] %v248
      %v250 = vld [vmem:[%s30 + $0x368] sm:$0xff]
      %251 = vst [vmem:[%s31 + $0x368] sm:$0xff] %v250
      %v252 = vld [vmem:[%s30 + $0x370] sm:$0xff]
      %253 = vst [vmem:[%s31 + $0x370] sm:$0xff] %v252
      %v254 = vld [vmem:[%s30 + $0x378] sm:$0xff]
      %255 = vst [vmem:[%s31 + $0x378] sm:$0xff] %v254
      %v256 = vld [vmem:[%s30 + $0x380] sm:$0xff]
      %257 = vst [vmem:[%s31 + $0x380] sm:$0xff] %v256
      %v258 = vld [vmem:[%s30 + $0x388] sm:$0xff]
      %259 = vst [vmem:[%s31 + $0x388] sm:$0xff] %v258
      %v260 = vld [vmem:[%s30 + $0x390] sm:$0xff]
      %261 = vst [vmem:[%s31 + $0x390] sm:$0xff] %v260
      %v262 = vld [vmem:[%s30 + $0x398] sm:$0xff]
      %263 = vst [vmem:[%s31 + $0x398] sm:$0xff] %v262
      %v264 = vld [vmem:[%s30 + $0x3a0] sm:$0xff]
      %265 = vst [vmem:[%s31 + $0x3a0] sm:$0xff] %v264
      %v266 = vld [vmem:[%s30 + $0x3a8] sm:$0xff]
      %267 = vst [vmem:[%s31 + $0x3a8] sm:$0xff] %v266
      %v268 = vld [vmem:[%s30 + $0x3b0] sm:$0xff]
      %269 = vst [vmem:[%s31 + $0x3b0] sm:$0xff] %v268
      %v270 = vld [vmem:[%s30 + $0x3b8] sm:$0xff]
      %271 = vst [vmem:[%s31 + $0x3b8] sm:$0xff] %v270
      %v272 = vld [vmem:[%s30 + $0x3c0] sm:$0xff]
      %273 = vst [vmem:[%s31 + $0x3c0] sm:$0xff] %v272
      %v274 = vld [vmem:[%s30 + $0x3c8] sm:$0xff]
      %275 = vst [vmem:[%s31 + $0x3c8] sm:$0xff] %v274
      %v276 = vld [vmem:[%s30 + $0x3d0] sm:$0xff]
      %277 = vst [vmem:[%s31 + $0x3d0] sm:$0xff] %v276
      %v278 = vld [vmem:[%s30 + $0x3d8] sm:$0xff]
      %279 = vst [vmem:[%s31 + $0x3d8] sm:$0xff] %v278
      %v280 = vld [vmem:[%s30 + $0x3e0] sm:$0xff]
      %281 = vst [vmem:[%s31 + $0x3e0] sm:$0xff] %v280
      %v282 = vld [vmem:[%s30 + $0x3e8] sm:$0xff]
      %283 = vst [vmem:[%s31 + $0x3e8] sm:$0xff] %v282
      %v284 = vld [vmem:[%s30 + $0x3f0] sm:$0xff]
      %285 = vst [vmem:[%s31 + $0x3f0] sm:$0xff] %v284
      %v286 = vld [vmem:[%s30 + $0x3f8] sm:$0xff]
      %287 = vst [vmem:[%s31 + $0x3f8] sm:$0xff] %v286
      %v288 = vld [vmem:[%s30 + $0x400] sm:$0xff]
      %289 = vst [vmem:[%s31 + $0x400] sm:$0xff] %v288
      %v290 = vld [vmem:[%s30 + $0x408] sm:$0xff]
      %291 = vst [vmem:[%s31 + $0x408] sm:$0xff] %v290
      %v292 = vld [vmem:[%s30 + $0x410] sm:$0xff]
      %293 = vst [vmem:[%s31 + $0x410] sm:$0xff] %v292
      %v294 = vld [vmem:[%s30 + $0x418] sm:$0xff]
      %295 = vst [vmem:[%s31 + $0x418] sm:$0xff] %v294
      %v296 = vld [vmem:[%s30 + $0x420] sm:$0xff]
      %297 = vst [vmem:[%s31 + $0x420] sm:$0xff] %v296
      %v298 = vld [vmem:[%s30 + $0x428] sm:$0xff]
      %299 = vst [vmem:[%s31 + $0x428] sm:$0xff] %v298
      %v300 = vld [vmem:[%s30 + $0x430] sm:$0xff]
      %301 = vst [vmem:[%s31 + $0x430] sm:$0xff] %v300
      %v302 = vld [vmem:[%s30 + $0x438] sm:$0xff]
      %303 = vst [vmem:[%s31 + $0x438] sm:$0xff] %v302
      %v304 = vld [vmem:[%s30 + $0x440] sm:$0xff]
      %305 = vst [vmem:[%s31 + $0x440] sm:$0xff] %v304
      %v306 = vld [vmem:[%s30 + $0x448] sm:$0xff]
      %307 = vst [vmem:[%s31 + $0x448] sm:$0xff] %v306
      %v308 = vld [vmem:[%s30 + $0x450] sm:$0xff]
      %309 = vst [vmem:[%s31 + $0x450] sm:$0xff] %v308
      %v310 = vld [vmem:[%s30 + $0x458] sm:$0xff]
      %311 = vst [vmem:[%s31 + $0x458] sm:$0xff] %v310
      %v312 = vld [vmem:[%s30 + $0x460] sm:$0xff]
      %313 = vst [vmem:[%s31 + $0x460] sm:$0xff] %v312
      %v314 = vld [vmem:[%s30 + $0x468] sm:$0xff]
      %315 = vst [vmem:[%s31 + $0x468] sm:$0xff] %v314
      %v316 = vld [vmem:[%s30 + $0x470] sm:$0xff]
      %317 = vst [vmem:[%s31 + $0x470] sm:$0xff] %v316
      %v318 = vld [vmem:[%s30 + $0x478] sm:$0xff]
      %319 = vst [vmem:[%s31 + $0x478] sm:$0xff] %v318
      %v320 = vld [vmem:[%s30 + $0x480] sm:$0xff]
      %321 = vst [vmem:[%s31 + $0x480] sm:$0xff] %v320
      %v322 = vld [vmem:[%s30 + $0x488] sm:$0xff]
      %323 = vst [vmem:[%s31 + $0x488] sm:$0xff] %v322
      %v324 = vld [vmem:[%s30 + $0x490] sm:$0xff]
      %325 = vst [vmem:[%s31 + $0x490] sm:$0xff] %v324
      %v326 = vld [vmem:[%s30 + $0x498] sm:$0xff]
      %327 = vst [vmem:[%s31 + $0x498] sm:$0xff] %v326
      %v328 = vld [vmem:[%s30 + $0x4a0] sm:$0xff]
      %329 = vst [vmem:[%s31 + $0x4a0] sm:$0xff] %v328
      %v330 = vld [vmem:[%s30 + $0x4a8] sm:$0xff]
      %331 = vst [vmem:[%s31 + $0x4a8] sm:$0xff] %v330
      %v332 = vld [vmem:[%s30 + $0x4b0] sm:$0xff]
      %333 = vst [vmem:[%s31 + $0x4b0] sm:$0xff] %v332
      %v334 = vld [vmem:[%s30 + $0x4b8] sm:$0xff]
      %335 = vst [vmem:[%s31 + $0x4b8] sm:$0xff] %v334
      %v336 = vld [vmem:[%s30 + $0x4c0] sm:$0xff]
      %337 = vst [vmem:[%s31 + $0x4c0] sm:$0xff] %v336
      %v338 = vld [vmem:[%s30 + $0x4c8] sm:$0xff]
      %339 = vst [vmem:[%s31 + $0x4c8] sm:$0xff] %v338
      %v340 = vld [vmem:[%s30 + $0x4d0] sm:$0xff]
      %341 = vst [vmem:[%s31 + $0x4d0] sm:$0xff] %v340
      %v342 = vld [vmem:[%s30 + $0x4d8] sm:$0xff]
      %343 = vst [vmem:[%s31 + $0x4d8] sm:$0xff] %v342
      %v344 = vld [vmem:[%s30 + $0x4e0] sm:$0xff]
      %345 = vst [vmem:[%s31 + $0x4e0] sm:$0xff] %v344
      %v346 = vld [vmem:[%s30 + $0x4e8] sm:$0xff]
      %347 = vst [vmem:[%s31 + $0x4e8] sm:$0xff] %v346
      %v348 = vld [vmem:[%s30 + $0x4f0] sm:$0xff]
      %349 = vst [vmem:[%s31 + $0x4f0] sm:$0xff] %v348
      %v350 = vld [vmem:[%s30 + $0x4f8] sm:$0xff]
      %351 = vst [vmem:[%s31 + $0x4f8] sm:$0xff] %v350
      %v352 = vld [vmem:[%s30 + $0x500] sm:$0xff]
      %353 = vst [vmem:[%s31 + $0x500] sm:$0xff] %v352
      %v354 = vld [vmem:[%s30 + $0x508] sm:$0xff]
      %355 = vst [vmem:[%s31 + $0x508] sm:$0xff] %v354
      %v356 = vld [vmem:[%s30 + $0x510] sm:$0xff]
      %357 = vst [vmem:[%s31 + $0x510] sm:$0xff] %v356
      %v358 = vld [vmem:[%s30 + $0x518] sm:$0xff]
      %359 = vst [vmem:[%s31 + $0x518] sm:$0xff] %v358
      %v360 = vld [vmem:[%s30 + $0x520] sm:$0xff]
      %361 = vst [vmem:[%s31 + $0x520] sm:$0xff] %v360
      %v362 = vld [vmem:[%s30 + $0x528] sm:$0xff]
      %363 = vst [vmem:[%s31 + $0x528] sm:$0xff] %v362
      %v364 = vld [vmem:[%s30 + $0x530] sm:$0xff]
      %365 = vst [vmem:[%s31 + $0x530] sm:$0xff] %v364
      %v366 = vld [vmem:[%s30 + $0x538] sm:$0xff]
      %367 = vst [vmem:[%s31 + $0x538] sm:$0xff] %v366
      %v368 = vld [vmem:[%s30 + $0x540] sm:$0xff]
      %369 = vst [vmem:[%s31 + $0x540] sm:$0xff] %v368
      %v370 = vld [vmem:[%s30 + $0x548] sm:$0xff]
      %371 = vst [vmem:[%s31 + $0x548] sm:$0xff] %v370
      %v372 = vld [vmem:[%s30 + $0x550] sm:$0xff]
      %373 = vst [vmem:[%s31 + $0x550] sm:$0xff] %v372
      %v374 = vld [vmem:[%s30 + $0x558] sm:$0xff]
      %375 = vst [vmem:[%s31 + $0x558] sm:$0xff] %v374
      %v376 = vld [vmem:[%s30 + $0x560] sm:$0xff]
      %377 = vst [vmem:[%s31 + $0x560] sm:$0xff] %v376
      %v378 = vld [vmem:[%s30 + $0x568] sm:$0xff]
      %379 = vst [vmem:[%s31 + $0x568] sm:$0xff] %v378
      %v380 = vld [vmem:[%s30 + $0x570] sm:$0xff]
      %381 = vst [vmem:[%s31 + $0x570] sm:$0xff] %v380
      %v382 = vld [vmem:[%s30 + $0x578] sm:$0xff]
      %383 = vst [vmem:[%s31 + $0x578] sm:$0xff] %v382
      %v384 = vld [vmem:[%s30 + $0x580] sm:$0xff]
      %385 = vst [vmem:[%s31 + $0x580] sm:$0xff] %v384
      %v386 = vld [vmem:[%s30 + $0x588] sm:$0xff]
      %387 = vst [vmem:[%s31 + $0x588] sm:$0xff] %v386
      %v388 = vld [vmem:[%s30 + $0x590] sm:$0xff]
      %389 = vst [vmem:[%s31 + $0x590] sm:$0xff] %v388
      %v390 = vld [vmem:[%s30 + $0x598] sm:$0xff]
      %391 = vst [vmem:[%s31 + $0x598] sm:$0xff] %v390
      %v392 = vld [vmem:[%s30 + $0x5a0] sm:$0xff]
      %393 = vst [vmem:[%s31 + $0x5a0] sm:$0xff] %v392
      %v394 = vld [vmem:[%s30 + $0x5a8] sm:$0xff]
      %395 = vst [vmem:[%s31 + $0x5a8] sm:$0xff] %v394
      %v396 = vld [vmem:[%s30 + $0x5b0] sm:$0xff]
      %397 = vst [vmem:[%s31 + $0x5b0] sm:$0xff] %v396
      %v398 = vld [vmem:[%s30 + $0x5b8] sm:$0xff]
      %399 = vst [vmem:[%s31 + $0x5b8] sm:$0xff] %v398
      %v400 = vld [vmem:[%s30 + $0x5c0] sm:$0xff]
      %401 = vst [vmem:[%s31 + $0x5c0] sm:$0xff] %v400
      %v402 = vld [vmem:[%s30 + $0x5c8] sm:$0xff]
      %403 = vst [vmem:[%s31 + $0x5c8] sm:$0xff] %v402
      %v404 = vld [vmem:[%s30 + $0x5d0] sm:$0xff]
      %405 = vst [vmem:[%s31 + $0x5d0] sm:$0xff] %v404
      %v406 = vld [vmem:[%s30 + $0x5d8] sm:$0xff]
      %407 = vst [vmem:[%s31 + $0x5d8] sm:$0xff] %v406
      %v408 = vld [vmem:[%s30 + $0x5e0] sm:$0xff]
      %409 = vst [vmem:[%s31 + $0x5e0] sm:$0xff] %v408
      %v410 = vld [vmem:[%s30 + $0x5e8] sm:$0xff]
      %411 = vst [vmem:[%s31 + $0x5e8] sm:$0xff] %v410
      %v412 = vld [vmem:[%s30 + $0x5f0] sm:$0xff]
      %413 = vst [vmem:[%s31 + $0x5f0] sm:$0xff] %v412
      %v414 = vld [vmem:[%s30 + $0x5f8] sm:$0xff]
      %415 = vst [vmem:[%s31 + $0x5f8] sm:$0xff] %v414
      %v416 = vld [vmem:[%s30 + $0x600] sm:$0xff]
      %417 = vst [vmem:[%s31 + $0x600] sm:$0xff] %v416
      %v418 = vld [vmem:[%s30 + $0x608] sm:$0xff]
      %419 = vst [vmem:[%s31 + $0x608] sm:$0xff] %v418
      %v420 = vld [vmem:[%s30 + $0x610] sm:$0xff]
      %421 = vst [vmem:[%s31 + $0x610] sm:$0xff] %v420
      %v422 = vld [vmem:[%s30 + $0x618] sm:$0xff]
      %423 = vst [vmem:[%s31 + $0x618] sm:$0xff] %v422
      %v424 = vld [vmem:[%s30 + $0x620] sm:$0xff]
      %425 = vst [vmem:[%s31 + $0x620] sm:$0xff] %v424
      %v426 = vld [vmem:[%s30 + $0x628] sm:$0xff]
      %427 = vst [vmem:[%s31 + $0x628] sm:$0xff] %v426
      %v428 = vld [vmem:[%s30 + $0x630] sm:$0xff]
      %429 = vst [vmem:[%s31 + $0x630] sm:$0xff] %v428
      %v430 = vld [vmem:[%s30 + $0x638] sm:$0xff]
      %431 = vst [vmem:[%s31 + $0x638] sm:$0xff] %v430
      %v432 = vld [vmem:[%s30 + $0x640] sm:$0xff]
      %433 = vst [vmem:[%s31 + $0x640] sm:$0xff] %v432
      %v434 = vld [vmem:[%s30 + $0x648] sm:$0xff]
      %435 = vst [vmem:[%s31 + $0x648] sm:$0xff] %v434
      %v436 = vld [vmem:[%s30 + $0x650] sm:$0xff]
      %437 = vst [vmem:[%s31 + $0x650] sm:$0xff] %v436
      %v438 = vld [vmem:[%s30 + $0x658] sm:$0xff]
      %439 = vst [vmem:[%s31 + $0x658] sm:$0xff] %v438
      %v440 = vld [vmem:[%s30 + $0x660] sm:$0xff]
      %441 = vst [vmem:[%s31 + $0x660] sm:$0xff] %v440
      %v442 = vld [vmem:[%s30 + $0x668] sm:$0xff]
      %443 = vst [vmem:[%s31 + $0x668] sm:$0xff] %v442
      %v444 = vld [vmem:[%s30 + $0x670] sm:$0xff]
      %445 = vst [vmem:[%s31 + $0x670] sm:$0xff] %v444
      %v446 = vld [vmem:[%s30 + $0x678] sm:$0xff]
      %447 = vst [vmem:[%s31 + $0x678] sm:$0xff] %v446
      %v448 = vld [vmem:[%s30 + $0x680] sm:$0xff]
      %449 = vst [vmem:[%s31 + $0x680] sm:$0xff] %v448
      %v450 = vld [vmem:[%s30 + $0x688] sm:$0xff]
      %451 = vst [vmem:[%s31 + $0x688] sm:$0xff] %v450
      %v452 = vld [vmem:[%s30 + $0x690] sm:$0xff]
      %453 = vst [vmem:[%s31 + $0x690] sm:$0xff] %v452
      %v454 = vld [vmem:[%s30 + $0x698] sm:$0xff]
      %455 = vst [vmem:[%s31 + $0x698] sm:$0xff] %v454
      %v456 = vld [vmem:[%s30 + $0x6a0] sm:$0xff]
      %457 = vst [vmem:[%s31 + $0x6a0] sm:$0xff] %v456
      %v458 = vld [vmem:[%s30 + $0x6a8] sm:$0xff]
      %459 = vst [vmem:[%s31 + $0x6a8] sm:$0xff] %v458
      %v460 = vld [vmem:[%s30 + $0x6b0] sm:$0xff]
      %461 = vst [vmem:[%s31 + $0x6b0] sm:$0xff] %v460
      %v462 = vld [vmem:[%s30 + $0x6b8] sm:$0xff]
      %463 = vst [vmem:[%s31 + $0x6b8] sm:$0xff] %v462
      %v464 = vld [vmem:[%s30 + $0x6c0] sm:$0xff]
      %465 = vst [vmem:[%s31 + $0x6c0] sm:$0xff] %v464
      %v466 = vld [vmem:[%s30 + $0x6c8] sm:$0xff]
      %467 = vst [vmem:[%s31 + $0x6c8] sm:$0xff] %v466
      %v468 = vld [vmem:[%s30 + $0x6d0] sm:$0xff]
      %469 = vst [vmem:[%s31 + $0x6d0] sm:$0xff] %v468
      %v470 = vld [vmem:[%s30 + $0x6d8] sm:$0xff]
      %471 = vst [vmem:[%s31 + $0x6d8] sm:$0xff] %v470
      %v472 = vld [vmem:[%s30 + $0x6e0] sm:$0xff]
      %473 = vst [vmem:[%s31 + $0x6e0] sm:$0xff] %v472
      %v474 = vld [vmem:[%s30 + $0x6e8] sm:$0xff]
      %475 = vst [vmem:[%s31 + $0x6e8] sm:$0xff] %v474
      %v476 = vld [vmem:[%s30 + $0x6f0] sm:$0xff]
      %477 = vst [vmem:[%s31 + $0x6f0] sm:$0xff] %v476
      %v478 = vld [vmem:[%s30 + $0x6f8] sm:$0xff]
      %479 = vst [vmem:[%s31 + $0x6f8] sm:$0xff] %v478
      %v480 = vld [vmem:[%s30 + $0x700] sm:$0xff]
      %481 = vst [vmem:[%s31 + $0x700] sm:$0xff] %v480
      %v482 = vld [vmem:[%s30 + $0x708] sm:$0xff]
      %483 = vst [vmem:[%s31 + $0x708] sm:$0xff] %v482
      %v484 = vld [vmem:[%s30 + $0x710] sm:$0xff]
      %485 = vst [vmem:[%s31 + $0x710] sm:$0xff] %v484
      %v486 = vld [vmem:[%s30 + $0x718] sm:$0xff]
      %487 = vst [vmem:[%s31 + $0x718] sm:$0xff] %v486
      %v488 = vld [vmem:[%s30 + $0x720] sm:$0xff]
      %489 = vst [vmem:[%s31 + $0x720] sm:$0xff] %v488
      %v490 = vld [vmem:[%s30 + $0x728] sm:$0xff]
      %491 = vst [vmem:[%s31 + $0x728] sm:$0xff] %v490
      %v492 = vld [vmem:[%s30 + $0x730] sm:$0xff]
      %493 = vst [vmem:[%s31 + $0x730] sm:$0xff] %v492
      %v494 = vld [vmem:[%s30 + $0x738] sm:$0xff]
      %495 = vst [vmem:[%s31 + $0x738] sm:$0xff] %v494
      %v496 = vld [vmem:[%s30 + $0x740] sm:$0xff]
      %497 = vst [vmem:[%s31 + $0x740] sm:$0xff] %v496
      %v498 = vld [vmem:[%s30 + $0x748] sm:$0xff]
      %499 = vst [vmem:[%s31 + $0x748] sm:$0xff] %v498
      %v500 = vld [vmem:[%s30 + $0x750] sm:$0xff]
      %501 = vst [vmem:[%s31 + $0x750] sm:$0xff] %v500
      %v502 = vld [vmem:[%s30 + $0x758] sm:$0xff]
      %503 = vst [vmem:[%s31 + $0x758] sm:$0xff] %v502
      %v504 = vld [vmem:[%s30 + $0x760] sm:$0xff]
      %505 = vst [vmem:[%s31 + $0x760] sm:$0xff] %v504
      %v506 = vld [vmem:[%s30 + $0x768] sm:$0xff]
      %507 = vst [vmem:[%s31 + $0x768] sm:$0xff] %v506
      %v508 = vld [vmem:[%s30 + $0x770] sm:$0xff]
      %509 = vst [vmem:[%s31 + $0x770] sm:$0xff] %v508
      %v510 = vld [vmem:[%s30 + $0x778] sm:$0xff]
      %511 = vst [vmem:[%s31 + $0x778] sm:$0xff] %v510
      %v512 = vld [vmem:[%s30 + $0x780] sm:$0xff]
      %513 = vst [vmem:[%s31 + $0x780] sm:$0xff] %v512
      %v514 = vld [vmem:[%s30 + $0x788] sm:$0xff]
      %515 = vst [vmem:[%s31 + $0x788] sm:$0xff] %v514
      %v516 = vld [vmem:[%s30 + $0x790] sm:$0xff]
      %517 = vst [vmem:[%s31 + $0x790] sm:$0xff] %v516
      %v518 = vld [vmem:[%s30 + $0x798] sm:$0xff]
      %519 = vst [vmem:[%s31 + $0x798] sm:$0xff] %v518
      %v520 = vld [vmem:[%s30 + $0x7a0] sm:$0xff]
      %521 = vst [vmem:[%s31 + $0x7a0] sm:$0xff] %v520
      %v522 = vld [vmem:[%s30 + $0x7a8] sm:$0xff]
      %523 = vst [vmem:[%s31 + $0x7a8] sm:$0xff] %v522
      %v524 = vld [vmem:[%s30 + $0x7b0] sm:$0xff]
      %525 = vst [vmem:[%s31 + $0x7b0] sm:$0xff] %v524
      %v526 = vld [vmem:[%s30 + $0x7b8] sm:$0xff]
      %527 = vst [vmem:[%s31 + $0x7b8] sm:$0xff] %v526
      %v528 = vld [vmem:[%s30 + $0x7c0] sm:$0xff]
      %529 = vst [vmem:[%s31 + $0x7c0] sm:$0xff] %v528
      %v530 = vld [vmem:[%s30 + $0x7c8] sm:$0xff]
      %531 = vst [vmem:[%s31 + $0x7c8] sm:$0xff] %v530
      %v532 = vld [vmem:[%s30 + $0x7d0] sm:$0xff]
      %533 = vst [vmem:[%s31 + $0x7d0] sm:$0xff] %v532
      %v534 = vld [vmem:[%s30 + $0x7d8] sm:$0xff]
      %535 = vst [vmem:[%s31 + $0x7d8] sm:$0xff] %v534
      %v536 = vld [vmem:[%s30 + $0x7e0] sm:$0xff]
      %537 = vst [vmem:[%s31 + $0x7e0] sm:$0xff] %v536
      %v538 = vld [vmem:[%s30 + $0x7e8] sm:$0xff]
      %539 = vst [vmem:[%s31 + $0x7e8] sm:$0xff] %v538
      %v540 = vld [vmem:[%s30 + $0x7f0] sm:$0xff]
      %541 = vst [vmem:[%s31 + $0x7f0] sm:$0xff] %v540
      %v542 = vld [vmem:[%s30 + $0x7f8] sm:$0xff]
      %543 = vst [vmem:[%s31 + $0x7f8] sm:$0xff] %v542
    $region30: #{generator_forward.1} parent=24 // loop_footer
      %s29 = sadd.s32 1, %s25
    $region31: #{generator_forward.1} parent=24 // loop_footer_branch
      %24 = sbr.rel target = $region27
    $region32: #{generator_forward.1} parent=24 // loop_exit
      _
  $region25: #{generator_forward.1} parent=0 // pred_fallthru
    _
  // Predicated region
  $region33: #{generator_forward.1} parent=0 // pred_check
    _
  $region34: #{generator_forward.1} parent=0 // pred_check_branch
    %545 = sbr.rel target = $region36
  $region35: #{generator_forward.1} parent=0 // pred_region
    _
  $region36: #{generator_forward.1} parent=0 // pred_fallthru
    _
  // Predicated region
  $region37: #{generator_forward.1} parent=0 // pred_check
    _
  $region38: #{generator_forward.1} parent=0 // pred_check_branch
    %548 = sbr.rel (0) target = $region40
  $region39: #{generator_forward.1} parent=0 // pred_region
    %549 = vsyncadd [#allocation5], 32768
  $region40: #{generator_forward.1} parent=0 // pred_fallthru
    _
  %s550 = scalar_lea.sflag [#allocation5], 1
  // Predicated region
  $region41: #{generator_forward.1} parent=0 // pred_check
    _
  $region42: #{generator_forward.1} parent=0 // pred_check_branch
    %552 = sbr.rel (0) target = $region44
  $region43: #{generator_forward.1} parent=0 // pred_region
    loop: start=0, step=1, limit=1
    $region45: #{generator_forward.1} parent=43 // loop_pre_header
      _
    $region46: #{generator_forward.1} parent=43 // loop_header
      %s554 = sphi 0, %s558
      %p555 = scmp.ge.s32.totalorder %s554, 1
      %s559 = sphi %s5, %s5
      %s560 = sphi [#allocation3], [#allocation3]
    $region47: #{generator_forward.1} parent=43 // loop_header_branch
      %557 = sbr.rel (%p555) target = $region51
    $region48: #{generator_forward.1} parent=43 // loop_body
      %v561 = vld [vmem:[%s559] sm:$0xff]
      %562 = vst [vmem:[%s560] sm:$0xff] %v561
      %v563 = vld [vmem:[%s559 + $0x8] sm:$0xff]
      %564 = vst [vmem:[%s560 + $0x8] sm:$0xff] %v563
      %v565 = vld [vmem:[%s559 + $0x10] sm:$0xff]
      %566 = vst [vmem:[%s560 + $0x10] sm:$0xff] %v565
      %v567 = vld [vmem:[%s559 + $0x18] sm:$0xff]
      %568 = vst [vmem:[%s560 + $0x18] sm:$0xff] %v567
      %v569 = vld [vmem:[%s559 + $0x20] sm:$0xff]
      %570 = vst [vmem:[%s560 + $0x20] sm:$0xff] %v569
      %v571 = vld [vmem:[%s559 + $0x28] sm:$0xff]
      %572 = vst [vmem:[%s560 + $0x28] sm:$0xff] %v571
      %v573 = vld [vmem:[%s559 + $0x30] sm:$0xff]
      %574 = vst [vmem:[%s560 + $0x30] sm:$0xff] %v573
      %v575 = vld [vmem:[%s559 + $0x38] sm:$0xff]
      %576 = vst [vmem:[%s560 + $0x38] sm:$0xff] %v575
      %v577 = vld [vmem:[%s559 + $0x40] sm:$0xff]
      %578 = vst [vmem:[%s560 + $0x40] sm:$0xff] %v577
      %v579 = vld [vmem:[%s559 + $0x48] sm:$0xff]
      %580 = vst [vmem:[%s560 + $0x48] sm:$0xff] %v579
      %v581 = vld [vmem:[%s559 + $0x50] sm:$0xff]
      %582 = vst [vmem:[%s560 + $0x50] sm:$0xff] %v581
      %v583 = vld [vmem:[%s559 + $0x58] sm:$0xff]
      %584 = vst [vmem:[%s560 + $0x58] sm:$0xff] %v583
      %v585 = vld [vmem:[%s559 + $0x60] sm:$0xff]
      %586 = vst [vmem:[%s560 + $0x60] sm:$0xff] %v585
      %v587 = vld [vmem:[%s559 + $0x68] sm:$0xff]
      %588 = vst [vmem:[%s560 + $0x68] sm:$0xff] %v587
      %v589 = vld [vmem:[%s559 + $0x70] sm:$0xff]
      %590 = vst [vmem:[%s560 + $0x70] sm:$0xff] %v589
      %v591 = vld [vmem:[%s559 + $0x78] sm:$0xff]
      %592 = vst [vmem:[%s560 + $0x78] sm:$0xff] %v591
      %v593 = vld [vmem:[%s559 + $0x80] sm:$0xff]
      %594 = vst [vmem:[%s560 + $0x80] sm:$0xff] %v593
      %v595 = vld [vmem:[%s559 + $0x88] sm:$0xff]
      %596 = vst [vmem:[%s560 + $0x88] sm:$0xff] %v595
      %v597 = vld [vmem:[%s559 + $0x90] sm:$0xff]
      %598 = vst [vmem:[%s560 + $0x90] sm:$0xff] %v597
      %v599 = vld [vmem:[%s559 + $0x98] sm:$0xff]
      %600 = vst [vmem:[%s560 + $0x98] sm:$0xff] %v599
      %v601 = vld [vmem:[%s559 + $0xa0] sm:$0xff]
      %602 = vst [vmem:[%s560 + $0xa0] sm:$0xff] %v601
      %v603 = vld [vmem:[%s559 + $0xa8] sm:$0xff]
      %604 = vst [vmem:[%s560 + $0xa8] sm:$0xff] %v603
      %v605 = vld [vmem:[%s559 + $0xb0] sm:$0xff]
      %606 = vst [vmem:[%s560 + $0xb0] sm:$0xff] %v605
      %v607 = vld [vmem:[%s559 + $0xb8] sm:$0xff]
      %608 = vst [vmem:[%s560 + $0xb8] sm:$0xff] %v607
      %v609 = vld [vmem:[%s559 + $0xc0] sm:$0xff]
      %610 = vst [vmem:[%s560 + $0xc0] sm:$0xff] %v609
      %v611 = vld [vmem:[%s559 + $0xc8] sm:$0xff]
      %612 = vst [vmem:[%s560 + $0xc8] sm:$0xff] %v611
      %v613 = vld [vmem:[%s559 + $0xd0] sm:$0xff]
      %614 = vst [vmem:[%s560 + $0xd0] sm:$0xff] %v613
      %v615 = vld [vmem:[%s559 + $0xd8] sm:$0xff]
      %616 = vst [vmem:[%s560 + $0xd8] sm:$0xff] %v615
      %v617 = vld [vmem:[%s559 + $0xe0] sm:$0xff]
      %618 = vst [vmem:[%s560 + $0xe0] sm:$0xff] %v617
      %v619 = vld [vmem:[%s559 + $0xe8] sm:$0xff]
      %620 = vst [vmem:[%s560 + $0xe8] sm:$0xff] %v619
      %v621 = vld [vmem:[%s559 + $0xf0] sm:$0xff]
      %622 = vst [vmem:[%s560 + $0xf0] sm:$0xff] %v621
      %v623 = vld [vmem:[%s559 + $0xf8] sm:$0xff]
      %624 = vst [vmem:[%s560 + $0xf8] sm:$0xff] %v623
      %v625 = vld [vmem:[%s559 + $0x100] sm:$0xff]
      %626 = vst [vmem:[%s560 + $0x100] sm:$0xff] %v625
      %v627 = vld [vmem:[%s559 + $0x108] sm:$0xff]
      %628 = vst [vmem:[%s560 + $0x108] sm:$0xff] %v627
      %v629 = vld [vmem:[%s559 + $0x110] sm:$0xff]
      %630 = vst [vmem:[%s560 + $0x110] sm:$0xff] %v629
      %v631 = vld [vmem:[%s559 + $0x118] sm:$0xff]
      %632 = vst [vmem:[%s560 + $0x118] sm:$0xff] %v631
      %v633 = vld [vmem:[%s559 + $0x120] sm:$0xff]
      %634 = vst [vmem:[%s560 + $0x120] sm:$0xff] %v633
      %v635 = vld [vmem:[%s559 + $0x128] sm:$0xff]
      %636 = vst [vmem:[%s560 + $0x128] sm:$0xff] %v635
      %v637 = vld [vmem:[%s559 + $0x130] sm:$0xff]
      %638 = vst [vmem:[%s560 + $0x130] sm:$0xff] %v637
      %v639 = vld [vmem:[%s559 + $0x138] sm:$0xff]
      %640 = vst [vmem:[%s560 + $0x138] sm:$0xff] %v639
      %v641 = vld [vmem:[%s559 + $0x140] sm:$0xff]
      %642 = vst [vmem:[%s560 + $0x140] sm:$0xff] %v641
      %v643 = vld [vmem:[%s559 + $0x148] sm:$0xff]
      %644 = vst [vmem:[%s560 + $0x148] sm:$0xff] %v643
      %v645 = vld [vmem:[%s559 + $0x150] sm:$0xff]
      %646 = vst [vmem:[%s560 + $0x150] sm:$0xff] %v645
      %v647 = vld [vmem:[%s559 + $0x158] sm:$0xff]
      %648 = vst [vmem:[%s560 + $0x158] sm:$0xff] %v647
      %v649 = vld [vmem:[%s559 + $0x160] sm:$0xff]
      %650 = vst [vmem:[%s560 + $0x160] sm:$0xff] %v649
      %v651 = vld [vmem:[%s559 + $0x168] sm:$0xff]
      %652 = vst [vmem:[%s560 + $0x168] sm:$0xff] %v651
      %v653 = vld [vmem:[%s559 + $0x170] sm:$0xff]
      %654 = vst [vmem:[%s560 + $0x170] sm:$0xff] %v653
      %v655 = vld [vmem:[%s559 + $0x178] sm:$0xff]
      %656 = vst [vmem:[%s560 + $0x178] sm:$0xff] %v655
      %v657 = vld [vmem:[%s559 + $0x180] sm:$0xff]
      %658 = vst [vmem:[%s560 + $0x180] sm:$0xff] %v657
      %v659 = vld [vmem:[%s559 + $0x188] sm:$0xff]
      %660 = vst [vmem:[%s560 + $0x188] sm:$0xff] %v659
      %v661 = vld [vmem:[%s559 + $0x190] sm:$0xff]
      %662 = vst [vmem:[%s560 + $0x190] sm:$0xff] %v661
      %v663 = vld [vmem:[%s559 + $0x198] sm:$0xff]
      %664 = vst [vmem:[%s560 + $0x198] sm:$0xff] %v663
      %v665 = vld [vmem:[%s559 + $0x1a0] sm:$0xff]
      %666 = vst [vmem:[%s560 + $0x1a0] sm:$0xff] %v665
      %v667 = vld [vmem:[%s559 + $0x1a8] sm:$0xff]
      %668 = vst [vmem:[%s560 + $0x1a8] sm:$0xff] %v667
      %v669 = vld [vmem:[%s559 + $0x1b0] sm:$0xff]
      %670 = vst [vmem:[%s560 + $0x1b0] sm:$0xff] %v669
      %v671 = vld [vmem:[%s559 + $0x1b8] sm:$0xff]
      %672 = vst [vmem:[%s560 + $0x1b8] sm:$0xff] %v671
      %v673 = vld [vmem:[%s559 + $0x1c0] sm:$0xff]
      %674 = vst [vmem:[%s560 + $0x1c0] sm:$0xff] %v673
      %v675 = vld [vmem:[%s559 + $0x1c8] sm:$0xff]
      %676 = vst [vmem:[%s560 + $0x1c8] sm:$0xff] %v675
      %v677 = vld [vmem:[%s559 + $0x1d0] sm:$0xff]
      %678 = vst [vmem:[%s560 + $0x1d0] sm:$0xff] %v677
      %v679 = vld [vmem:[%s559 + $0x1d8] sm:$0xff]
      %680 = vst [vmem:[%s560 + $0x1d8] sm:$0xff] %v679
      %v681 = vld [vmem:[%s559 + $0x1e0] sm:$0xff]
      %682 = vst [vmem:[%s560 + $0x1e0] sm:$0xff] %v681
      %v683 = vld [vmem:[%s559 + $0x1e8] sm:$0xff]
      %684 = vst [vmem:[%s560 + $0x1e8] sm:$0xff] %v683
      %v685 = vld [vmem:[%s559 + $0x1f0] sm:$0xff]
      %686 = vst [vmem:[%s560 + $0x1f0] sm:$0xff] %v685
      %v687 = vld [vmem:[%s559 + $0x1f8] sm:$0xff]
      %688 = vst [vmem:[%s560 + $0x1f8] sm:$0xff] %v687
      %v689 = vld [vmem:[%s559 + $0x200] sm:$0xff]
      %690 = vst [vmem:[%s560 + $0x200] sm:$0xff] %v689
      %v691 = vld [vmem:[%s559 + $0x208] sm:$0xff]
      %692 = vst [vmem:[%s560 + $0x208] sm:$0xff] %v691
      %v693 = vld [vmem:[%s559 + $0x210] sm:$0xff]
      %694 = vst [vmem:[%s560 + $0x210] sm:$0xff] %v693
      %v695 = vld [vmem:[%s559 + $0x218] sm:$0xff]
      %696 = vst [vmem:[%s560 + $0x218] sm:$0xff] %v695
      %v697 = vld [vmem:[%s559 + $0x220] sm:$0xff]
      %698 = vst [vmem:[%s560 + $0x220] sm:$0xff] %v697
      %v699 = vld [vmem:[%s559 + $0x228] sm:$0xff]
      %700 = vst [vmem:[%s560 + $0x228] sm:$0xff] %v699
      %v701 = vld [vmem:[%s559 + $0x230] sm:$0xff]
      %702 = vst [vmem:[%s560 + $0x230] sm:$0xff] %v701
      %v703 = vld [vmem:[%s559 + $0x238] sm:$0xff]
      %704 = vst [vmem:[%s560 + $0x238] sm:$0xff] %v703
      %v705 = vld [vmem:[%s559 + $0x240] sm:$0xff]
      %706 = vst [vmem:[%s560 + $0x240] sm:$0xff] %v705
      %v707 = vld [vmem:[%s559 + $0x248] sm:$0xff]
      %708 = vst [vmem:[%s560 + $0x248] sm:$0xff] %v707
      %v709 = vld [vmem:[%s559 + $0x250] sm:$0xff]
      %710 = vst [vmem:[%s560 + $0x250] sm:$0xff] %v709
      %v711 = vld [vmem:[%s559 + $0x258] sm:$0xff]
      %712 = vst [vmem:[%s560 + $0x258] sm:$0xff] %v711
      %v713 = vld [vmem:[%s559 + $0x260] sm:$0xff]
      %714 = vst [vmem:[%s560 + $0x260] sm:$0xff] %v713
      %v715 = vld [vmem:[%s559 + $0x268] sm:$0xff]
      %716 = vst [vmem:[%s560 + $0x268] sm:$0xff] %v715
      %v717 = vld [vmem:[%s559 + $0x270] sm:$0xff]
      %718 = vst [vmem:[%s560 + $0x270] sm:$0xff] %v717
      %v719 = vld [vmem:[%s559 + $0x278] sm:$0xff]
      %720 = vst [vmem:[%s560 + $0x278] sm:$0xff] %v719
      %v721 = vld [vmem:[%s559 + $0x280] sm:$0xff]
      %722 = vst [vmem:[%s560 + $0x280] sm:$0xff] %v721
      %v723 = vld [vmem:[%s559 + $0x288] sm:$0xff]
      %724 = vst [vmem:[%s560 + $0x288] sm:$0xff] %v723
      %v725 = vld [vmem:[%s559 + $0x290] sm:$0xff]
      %726 = vst [vmem:[%s560 + $0x290] sm:$0xff] %v725
      %v727 = vld [vmem:[%s559 + $0x298] sm:$0xff]
      %728 = vst [vmem:[%s560 + $0x298] sm:$0xff] %v727
      %v729 = vld [vmem:[%s559 + $0x2a0] sm:$0xff]
      %730 = vst [vmem:[%s560 + $0x2a0] sm:$0xff] %v729
      %v731 = vld [vmem:[%s559 + $0x2a8] sm:$0xff]
      %732 = vst [vmem:[%s560 + $0x2a8] sm:$0xff] %v731
      %v733 = vld [vmem:[%s559 + $0x2b0] sm:$0xff]
      %734 = vst [vmem:[%s560 + $0x2b0] sm:$0xff] %v733
      %v735 = vld [vmem:[%s559 + $0x2b8] sm:$0xff]
      %736 = vst [vmem:[%s560 + $0x2b8] sm:$0xff] %v735
      %v737 = vld [vmem:[%s559 + $0x2c0] sm:$0xff]
      %738 = vst [vmem:[%s560 + $0x2c0] sm:$0xff] %v737
      %v739 = vld [vmem:[%s559 + $0x2c8] sm:$0xff]
      %740 = vst [vmem:[%s560 + $0x2c8] sm:$0xff] %v739
      %v741 = vld [vmem:[%s559 + $0x2d0] sm:$0xff]
      %742 = vst [vmem:[%s560 + $0x2d0] sm:$0xff] %v741
      %v743 = vld [vmem:[%s559 + $0x2d8] sm:$0xff]
      %744 = vst [vmem:[%s560 + $0x2d8] sm:$0xff] %v743
      %v745 = vld [vmem:[%s559 + $0x2e0] sm:$0xff]
      %746 = vst [vmem:[%s560 + $0x2e0] sm:$0xff] %v745
      %v747 = vld [vmem:[%s559 + $0x2e8] sm:$0xff]
      %748 = vst [vmem:[%s560 + $0x2e8] sm:$0xff] %v747
      %v749 = vld [vmem:[%s559 + $0x2f0] sm:$0xff]
      %750 = vst [vmem:[%s560 + $0x2f0] sm:$0xff] %v749
      %v751 = vld [vmem:[%s559 + $0x2f8] sm:$0xff]
      %752 = vst [vmem:[%s560 + $0x2f8] sm:$0xff] %v751
      %v753 = vld [vmem:[%s559 + $0x300] sm:$0xff]
      %754 = vst [vmem:[%s560 + $0x300] sm:$0xff] %v753
      %v755 = vld [vmem:[%s559 + $0x308] sm:$0xff]
      %756 = vst [vmem:[%s560 + $0x308] sm:$0xff] %v755
      %v757 = vld [vmem:[%s559 + $0x310] sm:$0xff]
      %758 = vst [vmem:[%s560 + $0x310] sm:$0xff] %v757
      %v759 = vld [vmem:[%s559 + $0x318] sm:$0xff]
      %760 = vst [vmem:[%s560 + $0x318] sm:$0xff] %v759
      %v761 = vld [vmem:[%s559 + $0x320] sm:$0xff]
      %762 = vst [vmem:[%s560 + $0x320] sm:$0xff] %v761
      %v763 = vld [vmem:[%s559 + $0x328] sm:$0xff]
      %764 = vst [vmem:[%s560 + $0x328] sm:$0xff] %v763
      %v765 = vld [vmem:[%s559 + $0x330] sm:$0xff]
      %766 = vst [vmem:[%s560 + $0x330] sm:$0xff] %v765
      %v767 = vld [vmem:[%s559 + $0x338] sm:$0xff]
      %768 = vst [vmem:[%s560 + $0x338] sm:$0xff] %v767
      %v769 = vld [vmem:[%s559 + $0x340] sm:$0xff]
      %770 = vst [vmem:[%s560 + $0x340] sm:$0xff] %v769
      %v771 = vld [vmem:[%s559 + $0x348] sm:$0xff]
      %772 = vst [vmem:[%s560 + $0x348] sm:$0xff] %v771
      %v773 = vld [vmem:[%s559 + $0x350] sm:$0xff]
      %774 = vst [vmem:[%s560 + $0x350] sm:$0xff] %v773
      %v775 = vld [vmem:[%s559 + $0x358] sm:$0xff]
      %776 = vst [vmem:[%s560 + $0x358] sm:$0xff] %v775
      %v777 = vld [vmem:[%s559 + $0x360] sm:$0xff]
      %778 = vst [vmem:[%s560 + $0x360] sm:$0xff] %v777
      %v779 = vld [vmem:[%s559 + $0x368] sm:$0xff]
      %780 = vst [vmem:[%s560 + $0x368] sm:$0xff] %v779
      %v781 = vld [vmem:[%s559 + $0x370] sm:$0xff]
      %782 = vst [vmem:[%s560 + $0x370] sm:$0xff] %v781
      %v783 = vld [vmem:[%s559 + $0x378] sm:$0xff]
      %784 = vst [vmem:[%s560 + $0x378] sm:$0xff] %v783
      %v785 = vld [vmem:[%s559 + $0x380] sm:$0xff]
      %786 = vst [vmem:[%s560 + $0x380] sm:$0xff] %v785
      %v787 = vld [vmem:[%s559 + $0x388] sm:$0xff]
      %788 = vst [vmem:[%s560 + $0x388] sm:$0xff] %v787
      %v789 = vld [vmem:[%s559 + $0x390] sm:$0xff]
      %790 = vst [vmem:[%s560 + $0x390] sm:$0xff] %v789
      %v791 = vld [vmem:[%s559 + $0x398] sm:$0xff]
      %792 = vst [vmem:[%s560 + $0x398] sm:$0xff] %v791
      %v793 = vld [vmem:[%s559 + $0x3a0] sm:$0xff]
      %794 = vst [vmem:[%s560 + $0x3a0] sm:$0xff] %v793
      %v795 = vld [vmem:[%s559 + $0x3a8] sm:$0xff]
      %796 = vst [vmem:[%s560 + $0x3a8] sm:$0xff] %v795
      %v797 = vld [vmem:[%s559 + $0x3b0] sm:$0xff]
      %798 = vst [vmem:[%s560 + $0x3b0] sm:$0xff] %v797
      %v799 = vld [vmem:[%s559 + $0x3b8] sm:$0xff]
      %800 = vst [vmem:[%s560 + $0x3b8] sm:$0xff] %v799
      %v801 = vld [vmem:[%s559 + $0x3c0] sm:$0xff]
      %802 = vst [vmem:[%s560 + $0x3c0] sm:$0xff] %v801
      %v803 = vld [vmem:[%s559 + $0x3c8] sm:$0xff]
      %804 = vst [vmem:[%s560 + $0x3c8] sm:$0xff] %v803
      %v805 = vld [vmem:[%s559 + $0x3d0] sm:$0xff]
      %806 = vst [vmem:[%s560 + $0x3d0] sm:$0xff] %v805
      %v807 = vld [vmem:[%s559 + $0x3d8] sm:$0xff]
      %808 = vst [vmem:[%s560 + $0x3d8] sm:$0xff] %v807
      %v809 = vld [vmem:[%s559 + $0x3e0] sm:$0xff]
      %810 = vst [vmem:[%s560 + $0x3e0] sm:$0xff] %v809
      %v811 = vld [vmem:[%s559 + $0x3e8] sm:$0xff]
      %812 = vst [vmem:[%s560 + $0x3e8] sm:$0xff] %v811
      %v813 = vld [vmem:[%s559 + $0x3f0] sm:$0xff]
      %814 = vst [vmem:[%s560 + $0x3f0] sm:$0xff] %v813
      %v815 = vld [vmem:[%s559 + $0x3f8] sm:$0xff]
      %816 = vst [vmem:[%s560 + $0x3f8] sm:$0xff] %v815
      %v817 = vld [vmem:[%s559 + $0x400] sm:$0xff]
      %818 = vst [vmem:[%s560 + $0x400] sm:$0xff] %v817
      %v819 = vld [vmem:[%s559 + $0x408] sm:$0xff]
      %820 = vst [vmem:[%s560 + $0x408] sm:$0xff] %v819
      %v821 = vld [vmem:[%s559 + $0x410] sm:$0xff]
      %822 = vst [vmem:[%s560 + $0x410] sm:$0xff] %v821
      %v823 = vld [vmem:[%s559 + $0x418] sm:$0xff]
      %824 = vst [vmem:[%s560 + $0x418] sm:$0xff] %v823
      %v825 = vld [vmem:[%s559 + $0x420] sm:$0xff]
      %826 = vst [vmem:[%s560 + $0x420] sm:$0xff] %v825
      %v827 = vld [vmem:[%s559 + $0x428] sm:$0xff]
      %828 = vst [vmem:[%s560 + $0x428] sm:$0xff] %v827
      %v829 = vld [vmem:[%s559 + $0x430] sm:$0xff]
      %830 = vst [vmem:[%s560 + $0x430] sm:$0xff] %v829
      %v831 = vld [vmem:[%s559 + $0x438] sm:$0xff]
      %832 = vst [vmem:[%s560 + $0x438] sm:$0xff] %v831
      %v833 = vld [vmem:[%s559 + $0x440] sm:$0xff]
      %834 = vst [vmem:[%s560 + $0x440] sm:$0xff] %v833
      %v835 = vld [vmem:[%s559 + $0x448] sm:$0xff]
      %836 = vst [vmem:[%s560 + $0x448] sm:$0xff] %v835
      %v837 = vld [vmem:[%s559 + $0x450] sm:$0xff]
      %838 = vst [vmem:[%s560 + $0x450] sm:$0xff] %v837
      %v839 = vld [vmem:[%s559 + $0x458] sm:$0xff]
      %840 = vst [vmem:[%s560 + $0x458] sm:$0xff] %v839
      %v841 = vld [vmem:[%s559 + $0x460] sm:$0xff]
      %842 = vst [vmem:[%s560 + $0x460] sm:$0xff] %v841
      %v843 = vld [vmem:[%s559 + $0x468] sm:$0xff]
      %844 = vst [vmem:[%s560 + $0x468] sm:$0xff] %v843
      %v845 = vld [vmem:[%s559 + $0x470] sm:$0xff]
      %846 = vst [vmem:[%s560 + $0x470] sm:$0xff] %v845
      %v847 = vld [vmem:[%s559 + $0x478] sm:$0xff]
      %848 = vst [vmem:[%s560 + $0x478] sm:$0xff] %v847
      %v849 = vld [vmem:[%s559 + $0x480] sm:$0xff]
      %850 = vst [vmem:[%s560 + $0x480] sm:$0xff] %v849
      %v851 = vld [vmem:[%s559 + $0x488] sm:$0xff]
      %852 = vst [vmem:[%s560 + $0x488] sm:$0xff] %v851
      %v853 = vld [vmem:[%s559 + $0x490] sm:$0xff]
      %854 = vst [vmem:[%s560 + $0x490] sm:$0xff] %v853
      %v855 = vld [vmem:[%s559 + $0x498] sm:$0xff]
      %856 = vst [vmem:[%s560 + $0x498] sm:$0xff] %v855
      %v857 = vld [vmem:[%s559 + $0x4a0] sm:$0xff]
      %858 = vst [vmem:[%s560 + $0x4a0] sm:$0xff] %v857
      %v859 = vld [vmem:[%s559 + $0x4a8] sm:$0xff]
      %860 = vst [vmem:[%s560 + $0x4a8] sm:$0xff] %v859
      %v861 = vld [vmem:[%s559 + $0x4b0] sm:$0xff]
      %862 = vst [vmem:[%s560 + $0x4b0] sm:$0xff] %v861
      %v863 = vld [vmem:[%s559 + $0x4b8] sm:$0xff]
      %864 = vst [vmem:[%s560 + $0x4b8] sm:$0xff] %v863
      %v865 = vld [vmem:[%s559 + $0x4c0] sm:$0xff]
      %866 = vst [vmem:[%s560 + $0x4c0] sm:$0xff] %v865
      %v867 = vld [vmem:[%s559 + $0x4c8] sm:$0xff]
      %868 = vst [vmem:[%s560 + $0x4c8] sm:$0xff] %v867
      %v869 = vld [vmem:[%s559 + $0x4d0] sm:$0xff]
      %870 = vst [vmem:[%s560 + $0x4d0] sm:$0xff] %v869
      %v871 = vld [vmem:[%s559 + $0x4d8] sm:$0xff]
      %872 = vst [vmem:[%s560 + $0x4d8] sm:$0xff] %v871
      %v873 = vld [vmem:[%s559 + $0x4e0] sm:$0xff]
      %874 = vst [vmem:[%s560 + $0x4e0] sm:$0xff] %v873
      %v875 = vld [vmem:[%s559 + $0x4e8] sm:$0xff]
      %876 = vst [vmem:[%s560 + $0x4e8] sm:$0xff] %v875
      %v877 = vld [vmem:[%s559 + $0x4f0] sm:$0xff]
      %878 = vst [vmem:[%s560 + $0x4f0] sm:$0xff] %v877
      %v879 = vld [vmem:[%s559 + $0x4f8] sm:$0xff]
      %880 = vst [vmem:[%s560 + $0x4f8] sm:$0xff] %v879
      %v881 = vld [vmem:[%s559 + $0x500] sm:$0xff]
      %882 = vst [vmem:[%s560 + $0x500] sm:$0xff] %v881
      %v883 = vld [vmem:[%s559 + $0x508] sm:$0xff]
      %884 = vst [vmem:[%s560 + $0x508] sm:$0xff] %v883
      %v885 = vld [vmem:[%s559 + $0x510] sm:$0xff]
      %886 = vst [vmem:[%s560 + $0x510] sm:$0xff] %v885
      %v887 = vld [vmem:[%s559 + $0x518] sm:$0xff]
      %888 = vst [vmem:[%s560 + $0x518] sm:$0xff] %v887
      %v889 = vld [vmem:[%s559 + $0x520] sm:$0xff]
      %890 = vst [vmem:[%s560 + $0x520] sm:$0xff] %v889
      %v891 = vld [vmem:[%s559 + $0x528] sm:$0xff]
      %892 = vst [vmem:[%s560 + $0x528] sm:$0xff] %v891
      %v893 = vld [vmem:[%s559 + $0x530] sm:$0xff]
      %894 = vst [vmem:[%s560 + $0x530] sm:$0xff] %v893
      %v895 = vld [vmem:[%s559 + $0x538] sm:$0xff]
      %896 = vst [vmem:[%s560 + $0x538] sm:$0xff] %v895
      %v897 = vld [vmem:[%s559 + $0x540] sm:$0xff]
      %898 = vst [vmem:[%s560 + $0x540] sm:$0xff] %v897
      %v899 = vld [vmem:[%s559 + $0x548] sm:$0xff]
      %900 = vst [vmem:[%s560 + $0x548] sm:$0xff] %v899
      %v901 = vld [vmem:[%s559 + $0x550] sm:$0xff]
      %902 = vst [vmem:[%s560 + $0x550] sm:$0xff] %v901
      %v903 = vld [vmem:[%s559 + $0x558] sm:$0xff]
      %904 = vst [vmem:[%s560 + $0x558] sm:$0xff] %v903
      %v905 = vld [vmem:[%s559 + $0x560] sm:$0xff]
      %906 = vst [vmem:[%s560 + $0x560] sm:$0xff] %v905
      %v907 = vld [vmem:[%s559 + $0x568] sm:$0xff]
      %908 = vst [vmem:[%s560 + $0x568] sm:$0xff] %v907
      %v909 = vld [vmem:[%s559 + $0x570] sm:$0xff]
      %910 = vst [vmem:[%s560 + $0x570] sm:$0xff] %v909
      %v911 = vld [vmem:[%s559 + $0x578] sm:$0xff]
      %912 = vst [vmem:[%s560 + $0x578] sm:$0xff] %v911
      %v913 = vld [vmem:[%s559 + $0x580] sm:$0xff]
      %914 = vst [vmem:[%s560 + $0x580] sm:$0xff] %v913
      %v915 = vld [vmem:[%s559 + $0x588] sm:$0xff]
      %916 = vst [vmem:[%s560 + $0x588] sm:$0xff] %v915
      %v917 = vld [vmem:[%s559 + $0x590] sm:$0xff]
      %918 = vst [vmem:[%s560 + $0x590] sm:$0xff] %v917
      %v919 = vld [vmem:[%s559 + $0x598] sm:$0xff]
      %920 = vst [vmem:[%s560 + $0x598] sm:$0xff] %v919
      %v921 = vld [vmem:[%s559 + $0x5a0] sm:$0xff]
      %922 = vst [vmem:[%s560 + $0x5a0] sm:$0xff] %v921
      %v923 = vld [vmem:[%s559 + $0x5a8] sm:$0xff]
      %924 = vst [vmem:[%s560 + $0x5a8] sm:$0xff] %v923
      %v925 = vld [vmem:[%s559 + $0x5b0] sm:$0xff]
      %926 = vst [vmem:[%s560 + $0x5b0] sm:$0xff] %v925
      %v927 = vld [vmem:[%s559 + $0x5b8] sm:$0xff]
      %928 = vst [vmem:[%s560 + $0x5b8] sm:$0xff] %v927
      %v929 = vld [vmem:[%s559 + $0x5c0] sm:$0xff]
      %930 = vst [vmem:[%s560 + $0x5c0] sm:$0xff] %v929
      %v931 = vld [vmem:[%s559 + $0x5c8] sm:$0xff]
      %932 = vst [vmem:[%s560 + $0x5c8] sm:$0xff] %v931
      %v933 = vld [vmem:[%s559 + $0x5d0] sm:$0xff]
      %934 = vst [vmem:[%s560 + $0x5d0] sm:$0xff] %v933
      %v935 = vld [vmem:[%s559 + $0x5d8] sm:$0xff]
      %936 = vst [vmem:[%s560 + $0x5d8] sm:$0xff] %v935
      %v937 = vld [vmem:[%s559 + $0x5e0] sm:$0xff]
      %938 = vst [vmem:[%s560 + $0x5e0] sm:$0xff] %v937
      %v939 = vld [vmem:[%s559 + $0x5e8] sm:$0xff]
      %940 = vst [vmem:[%s560 + $0x5e8] sm:$0xff] %v939
      %v941 = vld [vmem:[%s559 + $0x5f0] sm:$0xff]
      %942 = vst [vmem:[%s560 + $0x5f0] sm:$0xff] %v941
      %v943 = vld [vmem:[%s559 + $0x5f8] sm:$0xff]
      %944 = vst [vmem:[%s560 + $0x5f8] sm:$0xff] %v943
      %v945 = vld [vmem:[%s559 + $0x600] sm:$0xff]
      %946 = vst [vmem:[%s560 + $0x600] sm:$0xff] %v945
      %v947 = vld [vmem:[%s559 + $0x608] sm:$0xff]
      %948 = vst [vmem:[%s560 + $0x608] sm:$0xff] %v947
      %v949 = vld [vmem:[%s559 + $0x610] sm:$0xff]
      %950 = vst [vmem:[%s560 + $0x610] sm:$0xff] %v949
      %v951 = vld [vmem:[%s559 + $0x618] sm:$0xff]
      %952 = vst [vmem:[%s560 + $0x618] sm:$0xff] %v951
      %v953 = vld [vmem:[%s559 + $0x620] sm:$0xff]
      %954 = vst [vmem:[%s560 + $0x620] sm:$0xff] %v953
      %v955 = vld [vmem:[%s559 + $0x628] sm:$0xff]
      %956 = vst [vmem:[%s560 + $0x628] sm:$0xff] %v955
      %v957 = vld [vmem:[%s559 + $0x630] sm:$0xff]
      %958 = vst [vmem:[%s560 + $0x630] sm:$0xff] %v957
      %v959 = vld [vmem:[%s559 + $0x638] sm:$0xff]
      %960 = vst [vmem:[%s560 + $0x638] sm:$0xff] %v959
      %v961 = vld [vmem:[%s559 + $0x640] sm:$0xff]
      %962 = vst [vmem:[%s560 + $0x640] sm:$0xff] %v961
      %v963 = vld [vmem:[%s559 + $0x648] sm:$0xff]
      %964 = vst [vmem:[%s560 + $0x648] sm:$0xff] %v963
      %v965 = vld [vmem:[%s559 + $0x650] sm:$0xff]
      %966 = vst [vmem:[%s560 + $0x650] sm:$0xff] %v965
      %v967 = vld [vmem:[%s559 + $0x658] sm:$0xff]
      %968 = vst [vmem:[%s560 + $0x658] sm:$0xff] %v967
      %v969 = vld [vmem:[%s559 + $0x660] sm:$0xff]
      %970 = vst [vmem:[%s560 + $0x660] sm:$0xff] %v969
      %v971 = vld [vmem:[%s559 + $0x668] sm:$0xff]
      %972 = vst [vmem:[%s560 + $0x668] sm:$0xff] %v971
      %v973 = vld [vmem:[%s559 + $0x670] sm:$0xff]
      %974 = vst [vmem:[%s560 + $0x670] sm:$0xff] %v973
      %v975 = vld [vmem:[%s559 + $0x678] sm:$0xff]
      %976 = vst [vmem:[%s560 + $0x678] sm:$0xff] %v975
      %v977 = vld [vmem:[%s559 + $0x680] sm:$0xff]
      %978 = vst [vmem:[%s560 + $0x680] sm:$0xff] %v977
      %v979 = vld [vmem:[%s559 + $0x688] sm:$0xff]
      %980 = vst [vmem:[%s560 + $0x688] sm:$0xff] %v979
      %v981 = vld [vmem:[%s559 + $0x690] sm:$0xff]
      %982 = vst [vmem:[%s560 + $0x690] sm:$0xff] %v981
      %v983 = vld [vmem:[%s559 + $0x698] sm:$0xff]
      %984 = vst [vmem:[%s560 + $0x698] sm:$0xff] %v983
      %v985 = vld [vmem:[%s559 + $0x6a0] sm:$0xff]
      %986 = vst [vmem:[%s560 + $0x6a0] sm:$0xff] %v985
      %v987 = vld [vmem:[%s559 + $0x6a8] sm:$0xff]
      %988 = vst [vmem:[%s560 + $0x6a8] sm:$0xff] %v987
      %v989 = vld [vmem:[%s559 + $0x6b0] sm:$0xff]
      %990 = vst [vmem:[%s560 + $0x6b0] sm:$0xff] %v989
      %v991 = vld [vmem:[%s559 + $0x6b8] sm:$0xff]
      %992 = vst [vmem:[%s560 + $0x6b8] sm:$0xff] %v991
      %v993 = vld [vmem:[%s559 + $0x6c0] sm:$0xff]
      %994 = vst [vmem:[%s560 + $0x6c0] sm:$0xff] %v993
      %v995 = vld [vmem:[%s559 + $0x6c8] sm:$0xff]
      %996 = vst [vmem:[%s560 + $0x6c8] sm:$0xff] %v995
      %v997 = vld [vmem:[%s559 + $0x6d0] sm:$0xff]
      %998 = vst [vmem:[%s560 + $0x6d0] sm:$0xff] %v997
      %v999 = vld [vmem:[%s559 + $0x6d8] sm:$0xff]
      %1000 = vst [vmem:[%s560 + $0x6d8] sm:$0xff] %v999
      %v1001 = vld [vmem:[%s559 + $0x6e0] sm:$0xff]
      %1002 = vst [vmem:[%s560 + $0x6e0] sm:$0xff] %v1001
      %v1003 = vld [vmem:[%s559 + $0x6e8] sm:$0xff]
      %1004 = vst [vmem:[%s560 + $0x6e8] sm:$0xff] %v1003
      %v1005 = vld [vmem:[%s559 + $0x6f0] sm:$0xff]
      %1006 = vst [vmem:[%s560 + $0x6f0] sm:$0xff] %v1005
      %v1007 = vld [vmem:[%s559 + $0x6f8] sm:$0xff]
      %1008 = vst [vmem:[%s560 + $0x6f8] sm:$0xff] %v1007
      %v1009 = vld [vmem:[%s559 + $0x700] sm:$0xff]
      %1010 = vst [vmem:[%s560 + $0x700] sm:$0xff] %v1009
      %v1011 = vld [vmem:[%s559 + $0x708] sm:$0xff]
      %1012 = vst [vmem:[%s560 + $0x708] sm:$0xff] %v1011
      %v1013 = vld [vmem:[%s559 + $0x710] sm:$0xff]
      %1014 = vst [vmem:[%s560 + $0x710] sm:$0xff] %v1013
      %v1015 = vld [vmem:[%s559 + $0x718] sm:$0xff]
      %1016 = vst [vmem:[%s560 + $0x718] sm:$0xff] %v1015
      %v1017 = vld [vmem:[%s559 + $0x720] sm:$0xff]
      %1018 = vst [vmem:[%s560 + $0x720] sm:$0xff] %v1017
      %v1019 = vld [vmem:[%s559 + $0x728] sm:$0xff]
      %1020 = vst [vmem:[%s560 + $0x728] sm:$0xff] %v1019
      %v1021 = vld [vmem:[%s559 + $0x730] sm:$0xff]
      %1022 = vst [vmem:[%s560 + $0x730] sm:$0xff] %v1021
      %v1023 = vld [vmem:[%s559 + $0x738] sm:$0xff]
      %1024 = vst [vmem:[%s560 + $0x738] sm:$0xff] %v1023
      %v1025 = vld [vmem:[%s559 + $0x740] sm:$0xff]
      %1026 = vst [vmem:[%s560 + $0x740] sm:$0xff] %v1025
      %v1027 = vld [vmem:[%s559 + $0x748] sm:$0xff]
      %1028 = vst [vmem:[%s560 + $0x748] sm:$0xff] %v1027
      %v1029 = vld [vmem:[%s559 + $0x750] sm:$0xff]
      %1030 = vst [vmem:[%s560 + $0x750] sm:$0xff] %v1029
      %v1031 = vld [vmem:[%s559 + $0x758] sm:$0xff]
      %1032 = vst [vmem:[%s560 + $0x758] sm:$0xff] %v1031
      %v1033 = vld [vmem:[%s559 + $0x760] sm:$0xff]
      %1034 = vst [vmem:[%s560 + $0x760] sm:$0xff] %v1033
      %v1035 = vld [vmem:[%s559 + $0x768] sm:$0xff]
      %1036 = vst [vmem:[%s560 + $0x768] sm:$0xff] %v1035
      %v1037 = vld [vmem:[%s559 + $0x770] sm:$0xff]
      %1038 = vst [vmem:[%s560 + $0x770] sm:$0xff] %v1037
      %v1039 = vld [vmem:[%s559 + $0x778] sm:$0xff]
      %1040 = vst [vmem:[%s560 + $0x778] sm:$0xff] %v1039
      %v1041 = vld [vmem:[%s559 + $0x780] sm:$0xff]
      %1042 = vst [vmem:[%s560 + $0x780] sm:$0xff] %v1041
      %v1043 = vld [vmem:[%s559 + $0x788] sm:$0xff]
      %1044 = vst [vmem:[%s560 + $0x788] sm:$0xff] %v1043
      %v1045 = vld [vmem:[%s559 + $0x790] sm:$0xff]
      %1046 = vst [vmem:[%s560 + $0x790] sm:$0xff] %v1045
      %v1047 = vld [vmem:[%s559 + $0x798] sm:$0xff]
      %1048 = vst [vmem:[%s560 + $0x798] sm:$0xff] %v1047
      %v1049 = vld [vmem:[%s559 + $0x7a0] sm:$0xff]
      %1050 = vst [vmem:[%s560 + $0x7a0] sm:$0xff] %v1049
      %v1051 = vld [vmem:[%s559 + $0x7a8] sm:$0xff]
      %1052 = vst [vmem:[%s560 + $0x7a8] sm:$0xff] %v1051
      %v1053 = vld [vmem:[%s559 + $0x7b0] sm:$0xff]
      %1054 = vst [vmem:[%s560 + $0x7b0] sm:$0xff] %v1053
      %v1055 = vld [vmem:[%s559 + $0x7b8] sm:$0xff]
      %1056 = vst [vmem:[%s560 + $0x7b8] sm:$0xff] %v1055
      %v1057 = vld [vmem:[%s559 + $0x7c0] sm:$0xff]
      %1058 = vst [vmem:[%s560 + $0x7c0] sm:$0xff] %v1057
      %v1059 = vld [vmem:[%s559 + $0x7c8] sm:$0xff]
      %1060 = vst [vmem:[%s560 + $0x7c8] sm:$0xff] %v1059
      %v1061 = vld [vmem:[%s559 + $0x7d0] sm:$0xff]
      %1062 = vst [vmem:[%s560 + $0x7d0] sm:$0xff] %v1061
      %v1063 = vld [vmem:[%s559 + $0x7d8] sm:$0xff]
      %1064 = vst [vmem:[%s560 + $0x7d8] sm:$0xff] %v1063
      %v1065 = vld [vmem:[%s559 + $0x7e0] sm:$0xff]
      %1066 = vst [vmem:[%s560 + $0x7e0] sm:$0xff] %v1065
      %v1067 = vld [vmem:[%s559 + $0x7e8] sm:$0xff]
      %1068 = vst [vmem:[%s560 + $0x7e8] sm:$0xff] %v1067
      %v1069 = vld [vmem:[%s559 + $0x7f0] sm:$0xff]
      %1070 = vst [vmem:[%s560 + $0x7f0] sm:$0xff] %v1069
      %v1071 = vld [vmem:[%s559 + $0x7f8] sm:$0xff]
      %1072 = vst [vmem:[%s560 + $0x7f8] sm:$0xff] %v1071
      %v1073 = vld [vmem:[%s559 + $0x800] sm:$0xff]
      %1074 = vst [vmem:[%s560 + $0x800] sm:$0xff] %v1073
      %v1075 = vld [vmem:[%s559 + $0x808] sm:$0xff]
      %1076 = vst [vmem:[%s560 + $0x808] sm:$0xff] %v1075
      %v1077 = vld [vmem:[%s559 + $0x810] sm:$0xff]
      %1078 = vst [vmem:[%s560 + $0x810] sm:$0xff] %v1077
      %v1079 = vld [vmem:[%s559 + $0x818] sm:$0xff]
      %1080 = vst [vmem:[%s560 + $0x818] sm:$0xff] %v1079
      %v1081 = vld [vmem:[%s559 + $0x820] sm:$0xff]
      %1082 = vst [vmem:[%s560 + $0x820] sm:$0xff] %v1081
      %v1083 = vld [vmem:[%s559 + $0x828] sm:$0xff]
      %1084 = vst [vmem:[%s560 + $0x828] sm:$0xff] %v1083
      %v1085 = vld [vmem:[%s559 + $0x830] sm:$0xff]
      %1086 = vst [vmem:[%s560 + $0x830] sm:$0xff] %v1085
      %v1087 = vld [vmem:[%s559 + $0x838] sm:$0xff]
      %1088 = vst [vmem:[%s560 + $0x838] sm:$0xff] %v1087
      %v1089 = vld [vmem:[%s559 + $0x840] sm:$0xff]
      %1090 = vst [vmem:[%s560 + $0x840] sm:$0xff] %v1089
      %v1091 = vld [vmem:[%s559 + $0x848] sm:$0xff]
      %1092 = vst [vmem:[%s560 + $0x848] sm:$0xff] %v1091
      %v1093 = vld [vmem:[%s559 + $0x850] sm:$0xff]
      %1094 = vst [vmem:[%s560 + $0x850] sm:$0xff] %v1093
      %v1095 = vld [vmem:[%s559 + $0x858] sm:$0xff]
      %1096 = vst [vmem:[%s560 + $0x858] sm:$0xff] %v1095
      %v1097 = vld [vmem:[%s559 + $0x860] sm:$0xff]
      %1098 = vst [vmem:[%s560 + $0x860] sm:$0xff] %v1097
      %v1099 = vld [vmem:[%s559 + $0x868] sm:$0xff]
      %1100 = vst [vmem:[%s560 + $0x868] sm:$0xff] %v1099
      %v1101 = vld [vmem:[%s559 + $0x870] sm:$0xff]
      %1102 = vst [vmem:[%s560 + $0x870] sm:$0xff] %v1101
      %v1103 = vld [vmem:[%s559 + $0x878] sm:$0xff]
      %1104 = vst [vmem:[%s560 + $0x878] sm:$0xff] %v1103
      %v1105 = vld [vmem:[%s559 + $0x880] sm:$0xff]
      %1106 = vst [vmem:[%s560 + $0x880] sm:$0xff] %v1105
      %v1107 = vld [vmem:[%s559 + $0x888] sm:$0xff]
      %1108 = vst [vmem:[%s560 + $0x888] sm:$0xff] %v1107
      %v1109 = vld [vmem:[%s559 + $0x890] sm:$0xff]
      %1110 = vst [vmem:[%s560 + $0x890] sm:$0xff] %v1109
      %v1111 = vld [vmem:[%s559 + $0x898] sm:$0xff]
      %1112 = vst [vmem:[%s560 + $0x898] sm:$0xff] %v1111
      %v1113 = vld [vmem:[%s559 + $0x8a0] sm:$0xff]
      %1114 = vst [vmem:[%s560 + $0x8a0] sm:$0xff] %v1113
      %v1115 = vld [vmem:[%s559 + $0x8a8] sm:$0xff]
      %1116 = vst [vmem:[%s560 + $0x8a8] sm:$0xff] %v1115
      %v1117 = vld [vmem:[%s559 + $0x8b0] sm:$0xff]
      %1118 = vst [vmem:[%s560 + $0x8b0] sm:$0xff] %v1117
      %v1119 = vld [vmem:[%s559 + $0x8b8] sm:$0xff]
      %1120 = vst [vmem:[%s560 + $0x8b8] sm:$0xff] %v1119
      %v1121 = vld [vmem:[%s559 + $0x8c0] sm:$0xff]
      %1122 = vst [vmem:[%s560 + $0x8c0] sm:$0xff] %v1121
      %v1123 = vld [vmem:[%s559 + $0x8c8] sm:$0xff]
      %1124 = vst [vmem:[%s560 + $0x8c8] sm:$0xff] %v1123
      %v1125 = vld [vmem:[%s559 + $0x8d0] sm:$0xff]
      %1126 = vst [vmem:[%s560 + $0x8d0] sm:$0xff] %v1125
      %v1127 = vld [vmem:[%s559 + $0x8d8] sm:$0xff]
      %1128 = vst [vmem:[%s560 + $0x8d8] sm:$0xff] %v1127
      %v1129 = vld [vmem:[%s559 + $0x8e0] sm:$0xff]
      %1130 = vst [vmem:[%s560 + $0x8e0] sm:$0xff] %v1129
      %v1131 = vld [vmem:[%s559 + $0x8e8] sm:$0xff]
      %1132 = vst [vmem:[%s560 + $0x8e8] sm:$0xff] %v1131
      %v1133 = vld [vmem:[%s559 + $0x8f0] sm:$0xff]
      %1134 = vst [vmem:[%s560 + $0x8f0] sm:$0xff] %v1133
      %v1135 = vld [vmem:[%s559 + $0x8f8] sm:$0xff]
      %1136 = vst [vmem:[%s560 + $0x8f8] sm:$0xff] %v1135
      %v1137 = vld [vmem:[%s559 + $0x900] sm:$0xff]
      %1138 = vst [vmem:[%s560 + $0x900] sm:$0xff] %v1137
      %v1139 = vld [vmem:[%s559 + $0x908] sm:$0xff]
      %1140 = vst [vmem:[%s560 + $0x908] sm:$0xff] %v1139
      %v1141 = vld [vmem:[%s559 + $0x910] sm:$0xff]
      %1142 = vst [vmem:[%s560 + $0x910] sm:$0xff] %v1141
      %v1143 = vld [vmem:[%s559 + $0x918] sm:$0xff]
      %1144 = vst [vmem:[%s560 + $0x918] sm:$0xff] %v1143
      %v1145 = vld [vmem:[%s559 + $0x920] sm:$0xff]
      %1146 = vst [vmem:[%s560 + $0x920] sm:$0xff] %v1145
      %v1147 = vld [vmem:[%s559 + $0x928] sm:$0xff]
      %1148 = vst [vmem:[%s560 + $0x928] sm:$0xff] %v1147
      %v1149 = vld [vmem:[%s559 + $0x930] sm:$0xff]
      %1150 = vst [vmem:[%s560 + $0x930] sm:$0xff] %v1149
      %v1151 = vld [vmem:[%s559 + $0x938] sm:$0xff]
      %1152 = vst [vmem:[%s560 + $0x938] sm:$0xff] %v1151
      %v1153 = vld [vmem:[%s559 + $0x940] sm:$0xff]
      %1154 = vst [vmem:[%s560 + $0x940] sm:$0xff] %v1153
      %v1155 = vld [vmem:[%s559 + $0x948] sm:$0xff]
      %1156 = vst [vmem:[%s560 + $0x948] sm:$0xff] %v1155
      %v1157 = vld [vmem:[%s559 + $0x950] sm:$0xff]
      %1158 = vst [vmem:[%s560 + $0x950] sm:$0xff] %v1157
      %v1159 = vld [vmem:[%s559 + $0x958] sm:$0xff]
      %1160 = vst [vmem:[%s560 + $0x958] sm:$0xff] %v1159
      %v1161 = vld [vmem:[%s559 + $0x960] sm:$0xff]
      %1162 = vst [vmem:[%s560 + $0x960] sm:$0xff] %v1161
      %v1163 = vld [vmem:[%s559 + $0x968] sm:$0xff]
      %1164 = vst [vmem:[%s560 + $0x968] sm:$0xff] %v1163
      %v1165 = vld [vmem:[%s559 + $0x970] sm:$0xff]
      %1166 = vst [vmem:[%s560 + $0x970] sm:$0xff] %v1165
      %v1167 = vld [vmem:[%s559 + $0x978] sm:$0xff]
      %1168 = vst [vmem:[%s560 + $0x978] sm:$0xff] %v1167
      %v1169 = vld [vmem:[%s559 + $0x980] sm:$0xff]
      %1170 = vst [vmem:[%s560 + $0x980] sm:$0xff] %v1169
      %v1171 = vld [vmem:[%s559 + $0x988] sm:$0xff]
      %1172 = vst [vmem:[%s560 + $0x988] sm:$0xff] %v1171
      %v1173 = vld [vmem:[%s559 + $0x990] sm:$0xff]
      %1174 = vst [vmem:[%s560 + $0x990] sm:$0xff] %v1173
      %v1175 = vld [vmem:[%s559 + $0x998] sm:$0xff]
      %1176 = vst [vmem:[%s560 + $0x998] sm:$0xff] %v1175
      %v1177 = vld [vmem:[%s559 + $0x9a0] sm:$0xff]
      %1178 = vst [vmem:[%s560 + $0x9a0] sm:$0xff] %v1177
      %v1179 = vld [vmem:[%s559 + $0x9a8] sm:$0xff]
      %1180 = vst [vmem:[%s560 + $0x9a8] sm:$0xff] %v1179
      %v1181 = vld [vmem:[%s559 + $0x9b0] sm:$0xff]
      %1182 = vst [vmem:[%s560 + $0x9b0] sm:$0xff] %v1181
      %v1183 = vld [vmem:[%s559 + $0x9b8] sm:$0xff]
      %1184 = vst [vmem:[%s560 + $0x9b8] sm:$0xff] %v1183
      %v1185 = vld [vmem:[%s559 + $0x9c0] sm:$0xff]
      %1186 = vst [vmem:[%s560 + $0x9c0] sm:$0xff] %v1185
      %v1187 = vld [vmem:[%s559 + $0x9c8] sm:$0xff]
      %1188 = vst [vmem:[%s560 + $0x9c8] sm:$0xff] %v1187
      %v1189 = vld [vmem:[%s559 + $0x9d0] sm:$0xff]
      %1190 = vst [vmem:[%s560 + $0x9d0] sm:$0xff] %v1189
      %v1191 = vld [vmem:[%s559 + $0x9d8] sm:$0xff]
      %1192 = vst [vmem:[%s560 + $0x9d8] sm:$0xff] %v1191
      %v1193 = vld [vmem:[%s559 + $0x9e0] sm:$0xff]
      %1194 = vst [vmem:[%s560 + $0x9e0] sm:$0xff] %v1193
      %v1195 = vld [vmem:[%s559 + $0x9e8] sm:$0xff]
      %1196 = vst [vmem:[%s560 + $0x9e8] sm:$0xff] %v1195
      %v1197 = vld [vmem:[%s559 + $0x9f0] sm:$0xff]
      %1198 = vst [vmem:[%s560 + $0x9f0] sm:$0xff] %v1197
      %v1199 = vld [vmem:[%s559 + $0x9f8] sm:$0xff]
      %1200 = vst [vmem:[%s560 + $0x9f8] sm:$0xff] %v1199
      %v1201 = vld [vmem:[%s559 + $0xa00] sm:$0xff]
      %1202 = vst [vmem:[%s560 + $0xa00] sm:$0xff] %v1201
      %v1203 = vld [vmem:[%s559 + $0xa08] sm:$0xff]
      %1204 = vst [vmem:[%s560 + $0xa08] sm:$0xff] %v1203
      %v1205 = vld [vmem:[%s559 + $0xa10] sm:$0xff]
      %1206 = vst [vmem:[%s560 + $0xa10] sm:$0xff] %v1205
      %v1207 = vld [vmem:[%s559 + $0xa18] sm:$0xff]
      %1208 = vst [vmem:[%s560 + $0xa18] sm:$0xff] %v1207
      %v1209 = vld [vmem:[%s559 + $0xa20] sm:$0xff]
      %1210 = vst [vmem:[%s560 + $0xa20] sm:$0xff] %v1209
      %v1211 = vld [vmem:[%s559 + $0xa28] sm:$0xff]
      %1212 = vst [vmem:[%s560 + $0xa28] sm:$0xff] %v1211
      %v1213 = vld [vmem:[%s559 + $0xa30] sm:$0xff]
      %1214 = vst [vmem:[%s560 + $0xa30] sm:$0xff] %v1213
      %v1215 = vld [vmem:[%s559 + $0xa38] sm:$0xff]
      %1216 = vst [vmem:[%s560 + $0xa38] sm:$0xff] %v1215
      %v1217 = vld [vmem:[%s559 + $0xa40] sm:$0xff]
      %1218 = vst [vmem:[%s560 + $0xa40] sm:$0xff] %v1217
      %v1219 = vld [vmem:[%s559 + $0xa48] sm:$0xff]
      %1220 = vst [vmem:[%s560 + $0xa48] sm:$0xff] %v1219
      %v1221 = vld [vmem:[%s559 + $0xa50] sm:$0xff]
      %1222 = vst [vmem:[%s560 + $0xa50] sm:$0xff] %v1221
      %v1223 = vld [vmem:[%s559 + $0xa58] sm:$0xff]
      %1224 = vst [vmem:[%s560 + $0xa58] sm:$0xff] %v1223
      %v1225 = vld [vmem:[%s559 + $0xa60] sm:$0xff]
      %1226 = vst [vmem:[%s560 + $0xa60] sm:$0xff] %v1225
      %v1227 = vld [vmem:[%s559 + $0xa68] sm:$0xff]
      %1228 = vst [vmem:[%s560 + $0xa68] sm:$0xff] %v1227
      %v1229 = vld [vmem:[%s559 + $0xa70] sm:$0xff]
      %1230 = vst [vmem:[%s560 + $0xa70] sm:$0xff] %v1229
      %v1231 = vld [vmem:[%s559 + $0xa78] sm:$0xff]
      %1232 = vst [vmem:[%s560 + $0xa78] sm:$0xff] %v1231
      %v1233 = vld [vmem:[%s559 + $0xa80] sm:$0xff]
      %1234 = vst [vmem:[%s560 + $0xa80] sm:$0xff] %v1233
      %v1235 = vld [vmem:[%s559 + $0xa88] sm:$0xff]
      %1236 = vst [vmem:[%s560 + $0xa88] sm:$0xff] %v1235
      %v1237 = vld [vmem:[%s559 + $0xa90] sm:$0xff]
      %1238 = vst [vmem:[%s560 + $0xa90] sm:$0xff] %v1237
      %v1239 = vld [vmem:[%s559 + $0xa98] sm:$0xff]
      %1240 = vst [vmem:[%s560 + $0xa98] sm:$0xff] %v1239
      %v1241 = vld [vmem:[%s559 + $0xaa0] sm:$0xff]
      %1242 = vst [vmem:[%s560 + $0xaa0] sm:$0xff] %v1241
      %v1243 = vld [vmem:[%s559 + $0xaa8] sm:$0xff]
      %1244 = vst [vmem:[%s560 + $0xaa8] sm:$0xff] %v1243
      %v1245 = vld [vmem:[%s559 + $0xab0] sm:$0xff]
      %1246 = vst [vmem:[%s560 + $0xab0] sm:$0xff] %v1245
      %v1247 = vld [vmem:[%s559 + $0xab8] sm:$0xff]
      %1248 = vst [vmem:[%s560 + $0xab8] sm:$0xff] %v1247
      %v1249 = vld [vmem:[%s559 + $0xac0] sm:$0xff]
      %1250 = vst [vmem:[%s560 + $0xac0] sm:$0xff] %v1249
      %v1251 = vld [vmem:[%s559 + $0xac8] sm:$0xff]
      %1252 = vst [vmem:[%s560 + $0xac8] sm:$0xff] %v1251
      %v1253 = vld [vmem:[%s559 + $0xad0] sm:$0xff]
      %1254 = vst [vmem:[%s560 + $0xad0] sm:$0xff] %v1253
      %v1255 = vld [vmem:[%s559 + $0xad8] sm:$0xff]
      %1256 = vst [vmem:[%s560 + $0xad8] sm:$0xff] %v1255
      %v1257 = vld [vmem:[%s559 + $0xae0] sm:$0xff]
      %1258 = vst [vmem:[%s560 + $0xae0] sm:$0xff] %v1257
      %v1259 = vld [vmem:[%s559 + $0xae8] sm:$0xff]
      %1260 = vst [vmem:[%s560 + $0xae8] sm:$0xff] %v1259
      %v1261 = vld [vmem:[%s559 + $0xaf0] sm:$0xff]
      %1262 = vst [vmem:[%s560 + $0xaf0] sm:$0xff] %v1261
      %v1263 = vld [vmem:[%s559 + $0xaf8] sm:$0xff]
      %1264 = vst [vmem:[%s560 + $0xaf8] sm:$0xff] %v1263
      %v1265 = vld [vmem:[%s559 + $0xb00] sm:$0xff]
      %1266 = vst [vmem:[%s560 + $0xb00] sm:$0xff] %v1265
      %v1267 = vld [vmem:[%s559 + $0xb08] sm:$0xff]
      %1268 = vst [vmem:[%s560 + $0xb08] sm:$0xff] %v1267
      %v1269 = vld [vmem:[%s559 + $0xb10] sm:$0xff]
      %1270 = vst [vmem:[%s560 + $0xb10] sm:$0xff] %v1269
      %v1271 = vld [vmem:[%s559 + $0xb18] sm:$0xff]
      %1272 = vst [vmem:[%s560 + $0xb18] sm:$0xff] %v1271
      %v1273 = vld [vmem:[%s559 + $0xb20] sm:$0xff]
      %1274 = vst [vmem:[%s560 + $0xb20] sm:$0xff] %v1273
      %v1275 = vld [vmem:[%s559 + $0xb28] sm:$0xff]
      %1276 = vst [vmem:[%s560 + $0xb28] sm:$0xff] %v1275
      %v1277 = vld [vmem:[%s559 + $0xb30] sm:$0xff]
      %1278 = vst [vmem:[%s560 + $0xb30] sm:$0xff] %v1277
      %v1279 = vld [vmem:[%s559 + $0xb38] sm:$0xff]
      %1280 = vst [vmem:[%s560 + $0xb38] sm:$0xff] %v1279
      %v1281 = vld [vmem:[%s559 + $0xb40] sm:$0xff]
      %1282 = vst [vmem:[%s560 + $0xb40] sm:$0xff] %v1281
      %v1283 = vld [vmem:[%s559 + $0xb48] sm:$0xff]
      %1284 = vst [vmem:[%s560 + $0xb48] sm:$0xff] %v1283
      %v1285 = vld [vmem:[%s559 + $0xb50] sm:$0xff]
      %1286 = vst [vmem:[%s560 + $0xb50] sm:$0xff] %v1285
      %v1287 = vld [vmem:[%s559 + $0xb58] sm:$0xff]
      %1288 = vst [vmem:[%s560 + $0xb58] sm:$0xff] %v1287
      %v1289 = vld [vmem:[%s559 + $0xb60] sm:$0xff]
      %1290 = vst [vmem:[%s560 + $0xb60] sm:$0xff] %v1289
      %v1291 = vld [vmem:[%s559 + $0xb68] sm:$0xff]
      %1292 = vst [vmem:[%s560 + $0xb68] sm:$0xff] %v1291
      %v1293 = vld [vmem:[%s559 + $0xb70] sm:$0xff]
      %1294 = vst [vmem:[%s560 + $0xb70] sm:$0xff] %v1293
      %v1295 = vld [vmem:[%s559 + $0xb78] sm:$0xff]
      %1296 = vst [vmem:[%s560 + $0xb78] sm:$0xff] %v1295
      %v1297 = vld [vmem:[%s559 + $0xb80] sm:$0xff]
      %1298 = vst [vmem:[%s560 + $0xb80] sm:$0xff] %v1297
      %v1299 = vld [vmem:[%s559 + $0xb88] sm:$0xff]
      %1300 = vst [vmem:[%s560 + $0xb88] sm:$0xff] %v1299
      %v1301 = vld [vmem:[%s559 + $0xb90] sm:$0xff]
      %1302 = vst [vmem:[%s560 + $0xb90] sm:$0xff] %v1301
      %v1303 = vld [vmem:[%s559 + $0xb98] sm:$0xff]
      %1304 = vst [vmem:[%s560 + $0xb98] sm:$0xff] %v1303
      %v1305 = vld [vmem:[%s559 + $0xba0] sm:$0xff]
      %1306 = vst [vmem:[%s560 + $0xba0] sm:$0xff] %v1305
      %v1307 = vld [vmem:[%s559 + $0xba8] sm:$0xff]
      %1308 = vst [vmem:[%s560 + $0xba8] sm:$0xff] %v1307
      %v1309 = vld [vmem:[%s559 + $0xbb0] sm:$0xff]
      %1310 = vst [vmem:[%s560 + $0xbb0] sm:$0xff] %v1309
      %v1311 = vld [vmem:[%s559 + $0xbb8] sm:$0xff]
      %1312 = vst [vmem:[%s560 + $0xbb8] sm:$0xff] %v1311
      %v1313 = vld [vmem:[%s559 + $0xbc0] sm:$0xff]
      %1314 = vst [vmem:[%s560 + $0xbc0] sm:$0xff] %v1313
      %v1315 = vld [vmem:[%s559 + $0xbc8] sm:$0xff]
      %1316 = vst [vmem:[%s560 + $0xbc8] sm:$0xff] %v1315
      %v1317 = vld [vmem:[%s559 + $0xbd0] sm:$0xff]
      %1318 = vst [vmem:[%s560 + $0xbd0] sm:$0xff] %v1317
      %v1319 = vld [vmem:[%s559 + $0xbd8] sm:$0xff]
      %1320 = vst [vmem:[%s560 + $0xbd8] sm:$0xff] %v1319
      %v1321 = vld [vmem:[%s559 + $0xbe0] sm:$0xff]
      %1322 = vst [vmem:[%s560 + $0xbe0] sm:$0xff] %v1321
      %v1323 = vld [vmem:[%s559 + $0xbe8] sm:$0xff]
      %1324 = vst [vmem:[%s560 + $0xbe8] sm:$0xff] %v1323
      %v1325 = vld [vmem:[%s559 + $0xbf0] sm:$0xff]
      %1326 = vst [vmem:[%s560 + $0xbf0] sm:$0xff] %v1325
      %v1327 = vld [vmem:[%s559 + $0xbf8] sm:$0xff]
      %1328 = vst [vmem:[%s560 + $0xbf8] sm:$0xff] %v1327
      %v1329 = vld [vmem:[%s559 + $0xc00] sm:$0xff]
      %1330 = vst [vmem:[%s560 + $0xc00] sm:$0xff] %v1329
      %v1331 = vld [vmem:[%s559 + $0xc08] sm:$0xff]
      %1332 = vst [vmem:[%s560 + $0xc08] sm:$0xff] %v1331
      %v1333 = vld [vmem:[%s559 + $0xc10] sm:$0xff]
      %1334 = vst [vmem:[%s560 + $0xc10] sm:$0xff] %v1333
      %v1335 = vld [vmem:[%s559 + $0xc18] sm:$0xff]
      %1336 = vst [vmem:[%s560 + $0xc18] sm:$0xff] %v1335
      %v1337 = vld [vmem:[%s559 + $0xc20] sm:$0xff]
      %1338 = vst [vmem:[%s560 + $0xc20] sm:$0xff] %v1337
      %v1339 = vld [vmem:[%s559 + $0xc28] sm:$0xff]
      %1340 = vst [vmem:[%s560 + $0xc28] sm:$0xff] %v1339
      %v1341 = vld [vmem:[%s559 + $0xc30] sm:$0xff]
      %1342 = vst [vmem:[%s560 + $0xc30] sm:$0xff] %v1341
      %v1343 = vld [vmem:[%s559 + $0xc38] sm:$0xff]
      %1344 = vst [vmem:[%s560 + $0xc38] sm:$0xff] %v1343
      %v1345 = vld [vmem:[%s559 + $0xc40] sm:$0xff]
      %1346 = vst [vmem:[%s560 + $0xc40] sm:$0xff] %v1345
      %v1347 = vld [vmem:[%s559 + $0xc48] sm:$0xff]
      %1348 = vst [vmem:[%s560 + $0xc48] sm:$0xff] %v1347
      %v1349 = vld [vmem:[%s559 + $0xc50] sm:$0xff]
      %1350 = vst [vmem:[%s560 + $0xc50] sm:$0xff] %v1349
      %v1351 = vld [vmem:[%s559 + $0xc58] sm:$0xff]
      %1352 = vst [vmem:[%s560 + $0xc58] sm:$0xff] %v1351
      %v1353 = vld [vmem:[%s559 + $0xc60] sm:$0xff]
      %1354 = vst [vmem:[%s560 + $0xc60] sm:$0xff] %v1353
      %v1355 = vld [vmem:[%s559 + $0xc68] sm:$0xff]
      %1356 = vst [vmem:[%s560 + $0xc68] sm:$0xff] %v1355
      %v1357 = vld [vmem:[%s559 + $0xc70] sm:$0xff]
      %1358 = vst [vmem:[%s560 + $0xc70] sm:$0xff] %v1357
      %v1359 = vld [vmem:[%s559 + $0xc78] sm:$0xff]
      %1360 = vst [vmem:[%s560 + $0xc78] sm:$0xff] %v1359
      %v1361 = vld [vmem:[%s559 + $0xc80] sm:$0xff]
      %1362 = vst [vmem:[%s560 + $0xc80] sm:$0xff] %v1361
      %v1363 = vld [vmem:[%s559 + $0xc88] sm:$0xff]
      %1364 = vst [vmem:[%s560 + $0xc88] sm:$0xff] %v1363
      %v1365 = vld [vmem:[%s559 + $0xc90] sm:$0xff]
      %1366 = vst [vmem:[%s560 + $0xc90] sm:$0xff] %v1365
      %v1367 = vld [vmem:[%s559 + $0xc98] sm:$0xff]
      %1368 = vst [vmem:[%s560 + $0xc98] sm:$0xff] %v1367
      %v1369 = vld [vmem:[%s559 + $0xca0] sm:$0xff]
      %1370 = vst [vmem:[%s560 + $0xca0] sm:$0xff] %v1369
      %v1371 = vld [vmem:[%s559 + $0xca8] sm:$0xff]
      %1372 = vst [vmem:[%s560 + $0xca8] sm:$0xff] %v1371
      %v1373 = vld [vmem:[%s559 + $0xcb0] sm:$0xff]
      %1374 = vst [vmem:[%s560 + $0xcb0] sm:$0xff] %v1373
      %v1375 = vld [vmem:[%s559 + $0xcb8] sm:$0xff]
      %1376 = vst [vmem:[%s560 + $0xcb8] sm:$0xff] %v1375
      %v1377 = vld [vmem:[%s559 + $0xcc0] sm:$0xff]
      %1378 = vst [vmem:[%s560 + $0xcc0] sm:$0xff] %v1377
      %v1379 = vld [vmem:[%s559 + $0xcc8] sm:$0xff]
      %1380 = vst [vmem:[%s560 + $0xcc8] sm:$0xff] %v1379
      %v1381 = vld [vmem:[%s559 + $0xcd0] sm:$0xff]
      %1382 = vst [vmem:[%s560 + $0xcd0] sm:$0xff] %v1381
      %v1383 = vld [vmem:[%s559 + $0xcd8] sm:$0xff]
      %1384 = vst [vmem:[%s560 + $0xcd8] sm:$0xff] %v1383
      %v1385 = vld [vmem:[%s559 + $0xce0] sm:$0xff]
      %1386 = vst [vmem:[%s560 + $0xce0] sm:$0xff] %v1385
      %v1387 = vld [vmem:[%s559 + $0xce8] sm:$0xff]
      %1388 = vst [vmem:[%s560 + $0xce8] sm:$0xff] %v1387
      %v1389 = vld [vmem:[%s559 + $0xcf0] sm:$0xff]
      %1390 = vst [vmem:[%s560 + $0xcf0] sm:$0xff] %v1389
      %v1391 = vld [vmem:[%s559 + $0xcf8] sm:$0xff]
      %1392 = vst [vmem:[%s560 + $0xcf8] sm:$0xff] %v1391
      %v1393 = vld [vmem:[%s559 + $0xd00] sm:$0xff]
      %1394 = vst [vmem:[%s560 + $0xd00] sm:$0xff] %v1393
      %v1395 = vld [vmem:[%s559 + $0xd08] sm:$0xff]
      %1396 = vst [vmem:[%s560 + $0xd08] sm:$0xff] %v1395
      %v1397 = vld [vmem:[%s559 + $0xd10] sm:$0xff]
      %1398 = vst [vmem:[%s560 + $0xd10] sm:$0xff] %v1397
      %v1399 = vld [vmem:[%s559 + $0xd18] sm:$0xff]
      %1400 = vst [vmem:[%s560 + $0xd18] sm:$0xff] %v1399
      %v1401 = vld [vmem:[%s559 + $0xd20] sm:$0xff]
      %1402 = vst [vmem:[%s560 + $0xd20] sm:$0xff] %v1401
      %v1403 = vld [vmem:[%s559 + $0xd28] sm:$0xff]
      %1404 = vst [vmem:[%s560 + $0xd28] sm:$0xff] %v1403
      %v1405 = vld [vmem:[%s559 + $0xd30] sm:$0xff]
      %1406 = vst [vmem:[%s560 + $0xd30] sm:$0xff] %v1405
      %v1407 = vld [vmem:[%s559 + $0xd38] sm:$0xff]
      %1408 = vst [vmem:[%s560 + $0xd38] sm:$0xff] %v1407
      %v1409 = vld [vmem:[%s559 + $0xd40] sm:$0xff]
      %1410 = vst [vmem:[%s560 + $0xd40] sm:$0xff] %v1409
      %v1411 = vld [vmem:[%s559 + $0xd48] sm:$0xff]
      %1412 = vst [vmem:[%s560 + $0xd48] sm:$0xff] %v1411
      %v1413 = vld [vmem:[%s559 + $0xd50] sm:$0xff]
      %1414 = vst [vmem:[%s560 + $0xd50] sm:$0xff] %v1413
      %v1415 = vld [vmem:[%s559 + $0xd58] sm:$0xff]
      %1416 = vst [vmem:[%s560 + $0xd58] sm:$0xff] %v1415
      %v1417 = vld [vmem:[%s559 + $0xd60] sm:$0xff]
      %1418 = vst [vmem:[%s560 + $0xd60] sm:$0xff] %v1417
      %v1419 = vld [vmem:[%s559 + $0xd68] sm:$0xff]
      %1420 = vst [vmem:[%s560 + $0xd68] sm:$0xff] %v1419
      %v1421 = vld [vmem:[%s559 + $0xd70] sm:$0xff]
      %1422 = vst [vmem:[%s560 + $0xd70] sm:$0xff] %v1421
      %v1423 = vld [vmem:[%s559 + $0xd78] sm:$0xff]
      %1424 = vst [vmem:[%s560 + $0xd78] sm:$0xff] %v1423
      %v1425 = vld [vmem:[%s559 + $0xd80] sm:$0xff]
      %1426 = vst [vmem:[%s560 + $0xd80] sm:$0xff] %v1425
      %v1427 = vld [vmem:[%s559 + $0xd88] sm:$0xff]
      %1428 = vst [vmem:[%s560 + $0xd88] sm:$0xff] %v1427
      %v1429 = vld [vmem:[%s559 + $0xd90] sm:$0xff]
      %1430 = vst [vmem:[%s560 + $0xd90] sm:$0xff] %v1429
      %v1431 = vld [vmem:[%s559 + $0xd98] sm:$0xff]
      %1432 = vst [vmem:[%s560 + $0xd98] sm:$0xff] %v1431
      %v1433 = vld [vmem:[%s559 + $0xda0] sm:$0xff]
      %1434 = vst [vmem:[%s560 + $0xda0] sm:$0xff] %v1433
      %v1435 = vld [vmem:[%s559 + $0xda8] sm:$0xff]
      %1436 = vst [vmem:[%s560 + $0xda8] sm:$0xff] %v1435
      %v1437 = vld [vmem:[%s559 + $0xdb0] sm:$0xff]
      %1438 = vst [vmem:[%s560 + $0xdb0] sm:$0xff] %v1437
      %v1439 = vld [vmem:[%s559 + $0xdb8] sm:$0xff]
      %1440 = vst [vmem:[%s560 + $0xdb8] sm:$0xff] %v1439
      %v1441 = vld [vmem:[%s559 + $0xdc0] sm:$0xff]
      %1442 = vst [vmem:[%s560 + $0xdc0] sm:$0xff] %v1441
      %v1443 = vld [vmem:[%s559 + $0xdc8] sm:$0xff]
      %1444 = vst [vmem:[%s560 + $0xdc8] sm:$0xff] %v1443
      %v1445 = vld [vmem:[%s559 + $0xdd0] sm:$0xff]
      %1446 = vst [vmem:[%s560 + $0xdd0] sm:$0xff] %v1445
      %v1447 = vld [vmem:[%s559 + $0xdd8] sm:$0xff]
      %1448 = vst [vmem:[%s560 + $0xdd8] sm:$0xff] %v1447
      %v1449 = vld [vmem:[%s559 + $0xde0] sm:$0xff]
      %1450 = vst [vmem:[%s560 + $0xde0] sm:$0xff] %v1449
      %v1451 = vld [vmem:[%s559 + $0xde8] sm:$0xff]
      %1452 = vst [vmem:[%s560 + $0xde8] sm:$0xff] %v1451
      %v1453 = vld [vmem:[%s559 + $0xdf0] sm:$0xff]
      %1454 = vst [vmem:[%s560 + $0xdf0] sm:$0xff] %v1453
      %v1455 = vld [vmem:[%s559 + $0xdf8] sm:$0xff]
      %1456 = vst [vmem:[%s560 + $0xdf8] sm:$0xff] %v1455
    $region49: #{generator_forward.1} parent=43 // loop_footer
      %s558 = sadd.s32 1, %s554
    $region50: #{generator_forward.1} parent=43 // loop_footer_branch
      %553 = sbr.rel target = $region46
    $region51: #{generator_forward.1} parent=43 // loop_exit
      _
  $region44: #{generator_forward.1} parent=0 // pred_fallthru
    _
  // Predicated region
  $region52: #{generator_forward.1} parent=0 // pred_check
    _
  $region53: #{generator_forward.1} parent=0 // pred_check_branch
    %1458 = sbr.rel target = $region55
  $region54: #{generator_forward.1} parent=0 // pred_region
    _
  $region55: #{generator_forward.1} parent=0 // pred_fallthru
    _
  // Predicated region
  $region56: #{generator_forward.1} parent=0 // pred_check
    _
  $region57: #{generator_forward.1} parent=0 // pred_check_branch
    %1461 = sbr.rel (0) target = $region59
  $region58: #{generator_forward.1} parent=0 // pred_region
    %1462 = vsyncadd %s550, 57344
  $region59: #{generator_forward.1} parent=0 // pred_fallthru
    _
  %v1463 = vld [vmem:[%s6] sm:$0x1]
  %s1464 = scalar_lea.vmem %s6, 2
  %v1465 = vld [vmem:[%s1464] ss:$2 sm:$0x3]
  %s1466 = scalar_lea.vmem %s6, 3
  %v1467 = vld [vmem:[%s1466] ss:$2 sm:$0x3]
  %s1468 = scalar_lea.vmem %s6, 6
  %v1469 = vld [vmem:[%s1468] ss:$2 sm:$0xf]
  %s1470 = scalar_lea.vmem %s6, 7
  %v1471 = vld [vmem:[%s1470] ss:$2 sm:$0xf]
  %s1472 = scalar_lea.vmem %s6, 14
  %v1473 = vld [vmem:[%s1472] ss:$2 sm:$0xff]
  %s1474 = scalar_lea.vmem %s6, 15
  %v1475 = vld [vmem:[%s1474] ss:$2 sm:$0xff]
  %s1476 = scalar_lea.vmem %s6, 30
  %v1477 = vld [vmem:[%s1476] ss:$2 sm:$0x7f]
  %1478 = vst [vmem:[#allocation4] sm:$0xff] 0.0
  %v1479 = vld [vmem:[%s0] sm:$0xff]
  %vm1480 = vcmask 818176
  %1481 = vst.msk [vmem:[#allocation4] sm:$0xff] %vm1480, %v1479
  %v1482 = vld [vmem:[#allocation4] sm:$0xff]
  %v1483 = vpack.c.bf16 %v1482, %v1482
  %v1484 = vld [vmem:[%s1] sm:$0xf]
  %v1485 = vld [vmem:[%s1 + $0x4] sm:$0xf]
  %v1486 = vld [vmem:[%s1 + $0x8] sm:$0xf]
  %v1487 = vld [vmem:[%s1 + $0xc] sm:$0xf]
  %v1488 = vld [vmem:[%s1 + $0x10] sm:$0xf]
  %v1489 = vld [vmem:[%s1 + $0x14] sm:$0xf]
  %v1490 = vld [vmem:[%s1 + $0x18] sm:$0xf]
  %v1491 = vld [vmem:[%s1 + $0x1c] sm:$0xf]
  %v1492 = vld [vmem:[%s1 + $0x20] sm:$0xf]
  %v1493 = vld [vmem:[%s1 + $0x24] sm:$0xf]
  %v1494 = vld [vmem:[%s1 + $0x28] sm:$0xf]
  %v1495 = vld [vmem:[%s1 + $0x2c] sm:$0xf]
  %v1496 = vld [vmem:[%s1 + $0x30] sm:$0xf]
  %v1497 = vld [vmem:[%s1 + $0x34] sm:$0xf]
  %v1498 = vld [vmem:[%s1 + $0x38] sm:$0xf]
  %v1499 = vld [vmem:[%s1 + $0x3c] sm:$0xf]
  %v1500 = vperm.slane %v1463, 0
  %v1517 = vunpack.c.l.b16 %v1484
  %v1518 = vunpack.c.l.b16 %v1485
  %v1519 = vunpack.c.l.b16 %v1486
  %v1520 = vunpack.c.l.b16 %v1487
  %v1521 = vunpack.c.l.b16 %v1488
  %v1522 = vunpack.c.l.b16 %v1489
  %v1523 = vunpack.c.l.b16 %v1490
  %v1524 = vunpack.c.l.b16 %v1491
  %v1525 = vunpack.c.l.b16 %v1492
  %v1526 = vunpack.c.l.b16 %v1493
  %v1527 = vunpack.c.l.b16 %v1494
  %v1528 = vunpack.c.l.b16 %v1495
  %v1529 = vunpack.c.l.b16 %v1496
  %v1530 = vunpack.c.l.b16 %v1497
  %v1531 = vunpack.c.l.b16 %v1498
  %v1532 = vunpack.c.l.b16 %v1499
  %v1533 = vpack.c.b16 %v1518, %v1517
  %v1534 = vpack.c.b16 %v1520, %v1519
  %v1535 = vpack.c.b16 %v1522, %v1521
  %v1536 = vpack.c.b16 %v1524, %v1523
  %v1537 = vpack.c.b16 %v1526, %v1525
  %v1538 = vpack.c.b16 %v1528, %v1527
  %v1539 = vpack.c.b16 %v1530, %v1529
  %v1540 = vpack.c.b16 %v1532, %v1531
  %1549 = vmatpush.bf16.msra.mxu0 %v1540
  %1550 = vmatpush.bf16.msra.mxu0 %v1539
  %1551 = vmatpush.bf16.msra.mxu0 %v1538
  %1552 = vmatpush.bf16.msra.mxu0 %v1537
  %1553 = vmatpush.bf16.msra.mxu0 %v1536
  %1554 = vmatpush.bf16.msra.mxu0 %v1535
  %1555 = vmatpush.bf16.msra.mxu0 %v1534
  %1556 = vmatpush.bf16.msra.mxu0 %v1533
  %1557 = vmatmul.bf16.gmra.mxu0 %v1483
  %v1558 = vpop.f32.mrf.mxu0
  %v1559 = vadd.f32 %v1500, %v1558
  %v1560 = vpop.f32.mrf.mxu0
  %1561 = vdwg.mxu0
  %v1562 = vmul.f32 %v1559, 0.2
  %v1563 = vmax.f32 %v1559, %v1562
  %v1564 = vpack.c.bf16 %v1563, %v1563
  %v1565 = vld [vmem:[%s2] sm:$0xff]
  %v1566 = vld [vmem:[%s2 + $0x8] sm:$0xff]
  %v1567 = vld [vmem:[%s2 + $0x10] sm:$0xff]
  %v1568 = vld [vmem:[%s2 + $0x18] sm:$0xff]
  %v1569 = vld [vmem:[%s2 + $0x20] sm:$0xff]
  %v1570 = vld [vmem:[%s2 + $0x28] sm:$0xff]
  %v1571 = vld [vmem:[%s2 + $0x30] sm:$0xff]
  %v1572 = vld [vmem:[%s2 + $0x38] sm:$0xff]
  %v1573 = vld [vmem:[%s2 + $0x40] sm:$0xff]
  %v1574 = vld [vmem:[%s2 + $0x48] sm:$0xff]
  %v1575 = vld [vmem:[%s2 + $0x50] sm:$0xff]
  %v1576 = vld [vmem:[%s2 + $0x58] sm:$0xff]
  %v1577 = vld [vmem:[%s2 + $0x60] sm:$0xff]
  %v1578 = vld [vmem:[%s2 + $0x68] sm:$0xff]
  %v1579 = vld [vmem:[%s2 + $0x70] sm:$0xff]
  %v1580 = vld [vmem:[%s2 + $0x78] sm:$0xff]
  %v1597 = vunpack.c.l.b16 %v1565
  %v1598 = vunpack.c.h.b16 %v1565
  %v1599 = vunpack.c.l.b16 %v1566
  %v1600 = vunpack.c.h.b16 %v1566
  %v1601 = vunpack.c.l.b16 %v1567
  %v1602 = vunpack.c.h.b16 %v1567
  %v1603 = vunpack.c.l.b16 %v1568
  %v1604 = vunpack.c.h.b16 %v1568
  %v1605 = vunpack.c.l.b16 %v1569
  %v1606 = vunpack.c.h.b16 %v1569
  %v1607 = vunpack.c.l.b16 %v1570
  %v1608 = vunpack.c.h.b16 %v1570
  %v1609 = vunpack.c.l.b16 %v1571
  %v1610 = vunpack.c.h.b16 %v1571
  %v1611 = vunpack.c.l.b16 %v1572
  %v1612 = vunpack.c.h.b16 %v1572
  %v1613 = vunpack.c.l.b16 %v1573
  %v1614 = vunpack.c.h.b16 %v1573
  %v1615 = vunpack.c.l.b16 %v1574
  %v1616 = vunpack.c.h.b16 %v1574
  %v1617 = vunpack.c.l.b16 %v1575
  %v1618 = vunpack.c.h.b16 %v1575
  %v1619 = vunpack.c.l.b16 %v1576
  %v1620 = vunpack.c.h.b16 %v1576
  %v1621 = vunpack.c.l.b16 %v1577
  %v1622 = vunpack.c.h.b16 %v1577
  %v1623 = vunpack.c.l.b16 %v1578
  %v1624 = vunpack.c.h.b16 %v1578
  %v1625 = vunpack.c.l.b16 %v1579
  %v1626 = vunpack.c.h.b16 %v1579
  %v1627 = vunpack.c.l.b16 %v1580
  %v1628 = vunpack.c.h.b16 %v1580
  %v1629 = vpack.c.b16 %v1599, %v1597
  %v1630 = vpack.c.b16 %v1600, %v1598
  %v1631 = vpack.c.b16 %v1603, %v1601
  %v1632 = vpack.c.b16 %v1604, %v1602
  %v1633 = vpack.c.b16 %v1607, %v1605
  %v1634 = vpack.c.b16 %v1608, %v1606
  %v1635 = vpack.c.b16 %v1611, %v1609
  %v1636 = vpack.c.b16 %v1612, %v1610
  %v1637 = vpack.c.b16 %v1615, %v1613
  %v1638 = vpack.c.b16 %v1616, %v1614
  %v1639 = vpack.c.b16 %v1619, %v1617
  %v1640 = vpack.c.b16 %v1620, %v1618
  %v1641 = vpack.c.b16 %v1623, %v1621
  %v1642 = vpack.c.b16 %v1624, %v1622
  %v1643 = vpack.c.b16 %v1627, %v1625
  %v1644 = vpack.c.b16 %v1628, %v1626
  %1661 = vmatpush.bf16.msra.mxu0 %v1643
  %1662 = vmatpush.bf16.msra.mxu0 %v1641
  %1663 = vmatpush.bf16.msra.mxu0 %v1639
  %1664 = vmatpush.bf16.msra.mxu0 %v1637
  %1665 = vmatpush.bf16.msra.mxu0 %v1635
  %1666 = vmatpush.bf16.msra.mxu0 %v1633
  %1667 = vmatpush.bf16.msra.mxu0 %v1631
  %1668 = vmatpush.bf16.msra.mxu0 %v1629
  %1669 = vmatmul.bf16.gmra.mxu0 %v1564
  %v1670 = vpop.f32.mrf.mxu0
  %v1671 = vadd.f32 0.0, %v1670
  %v1672 = vpop.f32.mrf.mxu0
  %1673 = vdwg.mxu0
  %1674 = vmatpush.bf16.msra.mxu0 %v1644
  %1675 = vmatpush.bf16.msra.mxu0 %v1642
  %1676 = vmatpush.bf16.msra.mxu0 %v1640
  %1677 = vmatpush.bf16.msra.mxu0 %v1638
  %1678 = vmatpush.bf16.msra.mxu0 %v1636
  %1679 = vmatpush.bf16.msra.mxu0 %v1634
  %1680 = vmatpush.bf16.msra.mxu0 %v1632
  %1681 = vmatpush.bf16.msra.mxu0 %v1630
  %1682 = vmatmul.bf16.gmra.mxu0 %v1564
  %v1683 = vpop.f32.mrf.mxu0
  %v1684 = vadd.f32 0.0, %v1683
  %v1685 = vpop.f32.mrf.mxu0
  %1686 = vdwg.mxu0
  %v1687 = vrot.slane %v1671, 4
  %v1688 = vadd.f32 %v1671, %v1687
  %v1689 = vrot.slane %v1688, 2
  %v1690 = vadd.f32 %v1688, %v1689
  %v1691 = vrot.slane %v1690, 1
  %v1692 = vadd.f32 %v1690, %v1691
  %v1693 = vrot.slane %v1684, 4
  %v1694 = vadd.f32 %v1684, %v1693
  %v1695 = vrot.slane %v1694, 2
  %v1696 = vadd.f32 %v1694, %v1695
  %v1697 = vrot.slane %v1696, 1
  %v1698 = vadd.f32 %v1696, %v1697
  %v1699 = vrcp.pop 8.0
  %v1700 = vmul.f32 8.0, %v1699
  %v1701 = vsub.f32 1.0, %v1700
  %v1702 = vmul.f32 %v1699, %v1701
  %v1703 = vadd.f32 %v1699, %v1702
  %vm1704 = vweird.f32 %v1699
  %v1705 = vsel %vm1704, %v1699, %v1703
  %v1706 = vmul.f32 %v1692, %v1705
  %v1707 = vmul.f32 %v1698, %v1705
  %v1708 = vsub.f32 %v1671, %v1706
  %v1709 = vsub.f32 %v1684, %v1707
  %v1710 = vmul.f32 %v1708, %v1708
  %v1711 = vmul.f32 %v1709, %v1709
  %v1712 = vrot.slane %v1710, 4
  %v1713 = vadd.f32 %v1710, %v1712
  %v1714 = vrot.slane %v1713, 2
  %v1715 = vadd.f32 %v1713, %v1714
  %v1716 = vrot.slane %v1715, 1
  %v1717 = vadd.f32 %v1715, %v1716
  %v1718 = vrot.slane %v1711, 4
  %v1719 = vadd.f32 %v1711, %v1718
  %v1720 = vrot.slane %v1719, 2
  %v1721 = vadd.f32 %v1719, %v1720
  %v1722 = vrot.slane %v1721, 1
  %v1723 = vadd.f32 %v1721, %v1722
  %v1724 = vmul.f32 %v1717, %v1705
  %v1725 = vmul.f32 %v1723, %v1705
  %v1726 = vadd.f32 %v1724, 0.8
  %v1727 = vadd.f32 %v1725, 0.8
  %v1728 = vrsqrt.pop %v1726
  %v1729 = vmul.f32 %v1728, %v1726
  %v1730 = vmul.f32 %v1729, %v1728
  %v1731 = vmul.f32 0.5, %v1730
  %v1732 = vsub.f32 1.5, %v1731
  %v1733 = vmul.f32 %v1728, %v1732
  %vm1734 = vweird.f32 %v1726
  %vm1735 = vweird.f32 %v1728
  %vm1736 = vmor %vm1734, %vm1735
  %v1737 = vsel %vm1736, %v1728, %v1733
  %v1738 = vrsqrt.pop %v1727
  %v1739 = vmul.f32 %v1738, %v1727
  %v1740 = vmul.f32 %v1739, %v1738
  %v1741 = vmul.f32 0.5, %v1740
  %v1742 = vsub.f32 1.5, %v1741
  %v1743 = vmul.f32 %v1738, %v1742
  %vm1744 = vweird.f32 %v1727
  %vm1745 = vweird.f32 %v1738
  %vm1746 = vmor %vm1744, %vm1745
  %v1747 = vsel %vm1746, %v1738, %v1743
  %v1750 = vrot.slane %v1747, 7
  %vm1751 = vcmask 1040384
  %v1752 = vsel %vm1751, %v1737, %v1750
  %v1754 = vmul.f32 %v1465, %v1752
  %v1756 = vperm.slane %v1754, 0
  %v1757 = vperm.slane %v1754, 1
  %v1760 = vmul.f32 %v1706, %v1756
  %v1761 = vmul.f32 %v1707, %v1757
  %v1764 = vrot.slane %v1761, 7
  %v1765 = vsel %vm1751, %v1760, %v1764
  %v1767 = vsub.f32 %v1467, %v1765
  %v1768 = vmul.f32 %v1671, %v1756
  %v1769 = vmul.f32 %v1684, %v1757
  %v1771 = vperm.slane %v1767, 0
  %v1772 = vperm.slane %v1767, 1
  %v1775 = vadd.f32 %v1768, %v1771
  %v1776 = vadd.f32 %v1769, %v1772
  %v1777 = vmul.f32 %v1775, 0.2
  %v1778 = vmul.f32 %v1776, 0.2
  %v1779 = vmax.f32 %v1775, %v1777
  %v1780 = vmax.f32 %v1776, %v1778
  %v1781 = vpack.c.bf16 %v1779, %v1779
  %v1782 = vpack.c.bf16 %v1780, %v1780
  %v1783 = vld [vmem:[%s3] sm:$0xff]
  %v1784 = vld [vmem:[%s3 + $0x8] sm:$0xff]
  %v1785 = vld [vmem:[%s3 + $0x10] sm:$0xff]
  %v1786 = vld [vmem:[%s3 + $0x18] sm:$0xff]
  %v1787 = vld [vmem:[%s3 + $0x20] sm:$0xff]
  %v1788 = vld [vmem:[%s3 + $0x28] sm:$0xff]
  %v1789 = vld [vmem:[%s3 + $0x30] sm:$0xff]
  %v1790 = vld [vmem:[%s3 + $0x38] sm:$0xff]
  %v1791 = vld [vmem:[%s3 + $0x40] sm:$0xff]
  %v1792 = vld [vmem:[%s3 + $0x48] sm:$0xff]
  %v1793 = vld [vmem:[%s3 + $0x50] sm:$0xff]
  %v1794 = vld [vmem:[%s3 + $0x58] sm:$0xff]
  %v1795 = vld [vmem:[%s3 + $0x60] sm:$0xff]
  %v1796 = vld [vmem:[%s3 + $0x68] sm:$0xff]
  %v1797 = vld [vmem:[%s3 + $0x70] sm:$0xff]
  %v1798 = vld [vmem:[%s3 + $0x78] sm:$0xff]
  %v1799 = vld [vmem:[%s3 + $0x80] sm:$0xff]
  %v1800 = vld [vmem:[%s3 + $0x88] sm:$0xff]
  %v1801 = vld [vmem:[%s3 + $0x90] sm:$0xff]
  %v1802 = vld [vmem:[%s3 + $0x98] sm:$0xff]
  %v1803 = vld [vmem:[%s3 + $0xa0] sm:$0xff]
  %v1804 = vld [vmem:[%s3 + $0xa8] sm:$0xff]
  %v1805 = vld [vmem:[%s3 + $0xb0] sm:$0xff]
  %v1806 = vld [vmem:[%s3 + $0xb8] sm:$0xff]
  %v1807 = vld [vmem:[%s3 + $0xc0] sm:$0xff]
  %v1808 = vld [vmem:[%s3 + $0xc8] sm:$0xff]
  %v1809 = vld [vmem:[%s3 + $0xd0] sm:$0xff]
  %v1810 = vld [vmem:[%s3 + $0xd8] sm:$0xff]
  %v1811 = vld [vmem:[%s3 + $0xe0] sm:$0xff]
  %v1812 = vld [vmem:[%s3 + $0xe8] sm:$0xff]
  %v1813 = vld [vmem:[%s3 + $0xf0] sm:$0xff]
  %v1814 = vld [vmem:[%s3 + $0xf8] sm:$0xff]
  %v1815 = vld [vmem:[%s3 + $0x100] sm:$0xff]
  %v1816 = vld [vmem:[%s3 + $0x108] sm:$0xff]
  %v1817 = vld [vmem:[%s3 + $0x110] sm:$0xff]
  %v1818 = vld [vmem:[%s3 + $0x118] sm:$0xff]
  %v1819 = vld [vmem:[%s3 + $0x120] sm:$0xff]
  %v1820 = vld [vmem:[%s3 + $0x128] sm:$0xff]
  %v1821 = vld [vmem:[%s3 + $0x130] sm:$0xff]
  %v1822 = vld [vmem:[%s3 + $0x138] sm:$0xff]
  %v1823 = vld [vmem:[%s3 + $0x140] sm:$0xff]
  %v1824 = vld [vmem:[%s3 + $0x148] sm:$0xff]
  %v1825 = vld [vmem:[%s3 + $0x150] sm:$0xff]
  %v1826 = vld [vmem:[%s3 + $0x158] sm:$0xff]
  %v1827 = vld [vmem:[%s3 + $0x160] sm:$0xff]
  %v1828 = vld [vmem:[%s3 + $0x168] sm:$0xff]
  %v1829 = vld [vmem:[%s3 + $0x170] sm:$0xff]
  %v1830 = vld [vmem:[%s3 + $0x178] sm:$0xff]
  %v1831 = vld [vmem:[%s3 + $0x180] sm:$0xff]
  %v1832 = vld [vmem:[%s3 + $0x188] sm:$0xff]
  %v1833 = vld [vmem:[%s3 + $0x190] sm:$0xff]
  %v1834 = vld [vmem:[%s3 + $0x198] sm:$0xff]
  %v1835 = vld [vmem:[%s3 + $0x1a0] sm:$0xff]
  %v1836 = vld [vmem:[%s3 + $0x1a8] sm:$0xff]
  %v1837 = vld [vmem:[%s3 + $0x1b0] sm:$0xff]
  %v1838 = vld [vmem:[%s3 + $0x1b8] sm:$0xff]
  %v1839 = vld [vmem:[%s3 + $0x1c0] sm:$0xff]
  %v1840 = vld [vmem:[%s3 + $0x1c8] sm:$0xff]
  %v1841 = vld [vmem:[%s3 + $0x1d0] sm:$0xff]
  %v1842 = vld [vmem:[%s3 + $0x1d8] sm:$0xff]
  %v1843 = vld [vmem:[%s3 + $0x1e0] sm:$0xff]
  %v1844 = vld [vmem:[%s3 + $0x1e8] sm:$0xff]
  %v1845 = vld [vmem:[%s3 + $0x1f0] sm:$0xff]
  %v1846 = vld [vmem:[%s3 + $0x1f8] sm:$0xff]
  %v1911 = vunpack.c.l.b16 %v1783
  %v1912 = vunpack.c.h.b16 %v1783
  %v1913 = vunpack.c.l.b16 %v1784
  %v1914 = vunpack.c.h.b16 %v1784
  %v1915 = vunpack.c.l.b16 %v1785
  %v1916 = vunpack.c.h.b16 %v1785
  %v1917 = vunpack.c.l.b16 %v1786
  %v1918 = vunpack.c.h.b16 %v1786
  %v1919 = vunpack.c.l.b16 %v1787
  %v1920 = vunpack.c.h.b16 %v1787
  %v1921 = vunpack.c.l.b16 %v1788
  %v1922 = vunpack.c.h.b16 %v1788
  %v1923 = vunpack.c.l.b16 %v1789
  %v1924 = vunpack.c.h.b16 %v1789
  %v1925 = vunpack.c.l.b16 %v1790
  %v1926 = vunpack.c.h.b16 %v1790
  %v1927 = vunpack.c.l.b16 %v1791
  %v1928 = vunpack.c.h.b16 %v1791
  %v1929 = vunpack.c.l.b16 %v1792
  %v1930 = vunpack.c.h.b16 %v1792
  %v1931 = vunpack.c.l.b16 %v1793
  %v1932 = vunpack.c.h.b16 %v1793
  %v1933 = vunpack.c.l.b16 %v1794
  %v1934 = vunpack.c.h.b16 %v1794
  %v1935 = vunpack.c.l.b16 %v1795
  %v1936 = vunpack.c.h.b16 %v1795
  %v1937 = vunpack.c.l.b16 %v1796
  %v1938 = vunpack.c.h.b16 %v1796
  %v1939 = vunpack.c.l.b16 %v1797
  %v1940 = vunpack.c.h.b16 %v1797
  %v1941 = vunpack.c.l.b16 %v1798
  %v1942 = vunpack.c.h.b16 %v1798
  %v1943 = vunpack.c.l.b16 %v1799
  %v1944 = vunpack.c.h.b16 %v1799
  %v1945 = vunpack.c.l.b16 %v1800
  %v1946 = vunpack.c.h.b16 %v1800
  %v1947 = vunpack.c.l.b16 %v1801
  %v1948 = vunpack.c.h.b16 %v1801
  %v1949 = vunpack.c.l.b16 %v1802
  %v1950 = vunpack.c.h.b16 %v1802
  %v1951 = vunpack.c.l.b16 %v1803
  %v1952 = vunpack.c.h.b16 %v1803
  %v1953 = vunpack.c.l.b16 %v1804
  %v1954 = vunpack.c.h.b16 %v1804
  %v1955 = vunpack.c.l.b16 %v1805
  %v1956 = vunpack.c.h.b16 %v1805
  %v1957 = vunpack.c.l.b16 %v1806
  %v1958 = vunpack.c.h.b16 %v1806
  %v1959 = vunpack.c.l.b16 %v1807
  %v1960 = vunpack.c.h.b16 %v1807
  %v1961 = vunpack.c.l.b16 %v1808
  %v1962 = vunpack.c.h.b16 %v1808
  %v1963 = vunpack.c.l.b16 %v1809
  %v1964 = vunpack.c.h.b16 %v1809
  %v1965 = vunpack.c.l.b16 %v1810
  %v1966 = vunpack.c.h.b16 %v1810
  %v1967 = vunpack.c.l.b16 %v1811
  %v1968 = vunpack.c.h.b16 %v1811
  %v1969 = vunpack.c.l.b16 %v1812
  %v1970 = vunpack.c.h.b16 %v1812
  %v1971 = vunpack.c.l.b16 %v1813
  %v1972 = vunpack.c.h.b16 %v1813
  %v1973 = vunpack.c.l.b16 %v1814
  %v1974 = vunpack.c.h.b16 %v1814
  %v1975 = vunpack.c.l.b16 %v1815
  %v1976 = vunpack.c.h.b16 %v1815
  %v1977 = vunpack.c.l.b16 %v1816
  %v1978 = vunpack.c.h.b16 %v1816
  %v1979 = vunpack.c.l.b16 %v1817
  %v1980 = vunpack.c.h.b16 %v1817
  %v1981 = vunpack.c.l.b16 %v1818
  %v1982 = vunpack.c.h.b16 %v1818
  %v1983 = vunpack.c.l.b16 %v1819
  %v1984 = vunpack.c.h.b16 %v1819
  %v1985 = vunpack.c.l.b16 %v1820
  %v1986 = vunpack.c.h.b16 %v1820
  %v1987 = vunpack.c.l.b16 %v1821
  %v1988 = vunpack.c.h.b16 %v1821
  %v1989 = vunpack.c.l.b16 %v1822
  %v1990 = vunpack.c.h.b16 %v1822
  %v1991 = vunpack.c.l.b16 %v1823
  %v1992 = vunpack.c.h.b16 %v1823
  %v1993 = vunpack.c.l.b16 %v1824
  %v1994 = vunpack.c.h.b16 %v1824
  %v1995 = vunpack.c.l.b16 %v1825
  %v1996 = vunpack.c.h.b16 %v1825
  %v1997 = vunpack.c.l.b16 %v1826
  %v1998 = vunpack.c.h.b16 %v1826
  %v1999 = vunpack.c.l.b16 %v1827
  %v2000 = vunpack.c.h.b16 %v1827
  %v2001 = vunpack.c.l.b16 %v1828
  %v2002 = vunpack.c.h.b16 %v1828
  %v2003 = vunpack.c.l.b16 %v1829
  %v2004 = vunpack.c.h.b16 %v1829
  %v2005 = vunpack.c.l.b16 %v1830
  %v2006 = vunpack.c.h.b16 %v1830
  %v2007 = vunpack.c.l.b16 %v1831
  %v2008 = vunpack.c.h.b16 %v1831
  %v2009 = vunpack.c.l.b16 %v1832
  %v2010 = vunpack.c.h.b16 %v1832
  %v2011 = vunpack.c.l.b16 %v1833
  %v2012 = vunpack.c.h.b16 %v1833
  %v2013 = vunpack.c.l.b16 %v1834
  %v2014 = vunpack.c.h.b16 %v1834
  %v2015 = vunpack.c.l.b16 %v1835
  %v2016 = vunpack.c.h.b16 %v1835
  %v2017 = vunpack.c.l.b16 %v1836
  %v2018 = vunpack.c.h.b16 %v1836
  %v2019 = vunpack.c.l.b16 %v1837
  %v2020 = vunpack.c.h.b16 %v1837
  %v2021 = vunpack.c.l.b16 %v1838
  %v2022 = vunpack.c.h.b16 %v1838
  %v2023 = vunpack.c.l.b16 %v1839
  %v2024 = vunpack.c.h.b16 %v1839
  %v2025 = vunpack.c.l.b16 %v1840
  %v2026 = vunpack.c.h.b16 %v1840
  %v2027 = vunpack.c.l.b16 %v1841
  %v2028 = vunpack.c.h.b16 %v1841
  %v2029 = vunpack.c.l.b16 %v1842
  %v2030 = vunpack.c.h.b16 %v1842
  %v2031 = vunpack.c.l.b16 %v1843
  %v2032 = vunpack.c.h.b16 %v1843
  %v2033 = vunpack.c.l.b16 %v1844
  %v2034 = vunpack.c.h.b16 %v1844
  %v2035 = vunpack.c.l.b16 %v1845
  %v2036 = vunpack.c.h.b16 %v1845
  %v2037 = vunpack.c.l.b16 %v1846
  %v2038 = vunpack.c.h.b16 %v1846
  %v2039 = vpack.c.b16 %v1915, %v1911
  %v2040 = vpack.c.b16 %v1916, %v1912
  %v2041 = vpack.c.b16 %v1917, %v1913
  %v2042 = vpack.c.b16 %v1918, %v1914
  %v2043 = vpack.c.b16 %v1923, %v1919
  %v2044 = vpack.c.b16 %v1924, %v1920
  %v2045 = vpack.c.b16 %v1925, %v1921
  %v2046 = vpack.c.b16 %v1926, %v1922
  %v2047 = vpack.c.b16 %v1931, %v1927
  %v2048 = vpack.c.b16 %v1932, %v1928
  %v2049 = vpack.c.b16 %v1933, %v1929
  %v2050 = vpack.c.b16 %v1934, %v1930
  %v2051 = vpack.c.b16 %v1939, %v1935
  %v2052 = vpack.c.b16 %v1940, %v1936
  %v2053 = vpack.c.b16 %v1941, %v1937
  %v2054 = vpack.c.b16 %v1942, %v1938
  %v2055 = vpack.c.b16 %v1947, %v1943
  %v2056 = vpack.c.b16 %v1948, %v1944
  %v2057 = vpack.c.b16 %v1949, %v1945
  %v2058 = vpack.c.b16 %v1950, %v1946
  %v2059 = vpack.c.b16 %v1955, %v1951
  %v2060 = vpack.c.b16 %v1956, %v1952
  %v2061 = vpack.c.b16 %v1957, %v1953
  %v2062 = vpack.c.b16 %v1958, %v1954
  %v2063 = vpack.c.b16 %v1963, %v1959
  %v2064 = vpack.c.b16 %v1964, %v1960
  %v2065 = vpack.c.b16 %v1965, %v1961
  %v2066 = vpack.c.b16 %v1966, %v1962
  %v2067 = vpack.c.b16 %v1971, %v1967
  %v2068 = vpack.c.b16 %v1972, %v1968
  %v2069 = vpack.c.b16 %v1973, %v1969
  %v2070 = vpack.c.b16 %v1974, %v1970
  %v2071 = vpack.c.b16 %v1979, %v1975
  %v2072 = vpack.c.b16 %v1980, %v1976
  %v2073 = vpack.c.b16 %v1981, %v1977
  %v2074 = vpack.c.b16 %v1982, %v1978
  %v2075 = vpack.c.b16 %v1987, %v1983
  %v2076 = vpack.c.b16 %v1988, %v1984
  %v2077 = vpack.c.b16 %v1989, %v1985
  %v2078 = vpack.c.b16 %v1990, %v1986
  %v2079 = vpack.c.b16 %v1995, %v1991
  %v2080 = vpack.c.b16 %v1996, %v1992
  %v2081 = vpack.c.b16 %v1997, %v1993
  %v2082 = vpack.c.b16 %v1998, %v1994
  %v2083 = vpack.c.b16 %v2003, %v1999
  %v2084 = vpack.c.b16 %v2004, %v2000
  %v2085 = vpack.c.b16 %v2005, %v2001
  %v2086 = vpack.c.b16 %v2006, %v2002
  %v2087 = vpack.c.b16 %v2011, %v2007
  %v2088 = vpack.c.b16 %v2012, %v2008
  %v2089 = vpack.c.b16 %v2013, %v2009
  %v2090 = vpack.c.b16 %v2014, %v2010
  %v2091 = vpack.c.b16 %v2019, %v2015
  %v2092 = vpack.c.b16 %v2020, %v2016
  %v2093 = vpack.c.b16 %v2021, %v2017
  %v2094 = vpack.c.b16 %v2022, %v2018
  %v2095 = vpack.c.b16 %v2027, %v2023
  %v2096 = vpack.c.b16 %v2028, %v2024
  %v2097 = vpack.c.b16 %v2029, %v2025
  %v2098 = vpack.c.b16 %v2030, %v2026
  %v2099 = vpack.c.b16 %v2035, %v2031
  %v2100 = vpack.c.b16 %v2036, %v2032
  %v2101 = vpack.c.b16 %v2037, %v2033
  %v2102 = vpack.c.b16 %v2038, %v2034
  %2167 = vmatpush.bf16.msra.mxu0 %v2067
  %2168 = vmatpush.bf16.msra.mxu0 %v2063
  %2169 = vmatpush.bf16.msra.mxu0 %v2059
  %2170 = vmatpush.bf16.msra.mxu0 %v2055
  %2171 = vmatpush.bf16.msra.mxu0 %v2051
  %2172 = vmatpush.bf16.msra.mxu0 %v2047
  %2173 = vmatpush.bf16.msra.mxu0 %v2043
  %2174 = vmatpush.bf16.msra.mxu0 %v2039
  %2175 = vmatmul.bf16.gmra.mxu0 %v1781
  %v2176 = vpop.f32.mrf.mxu0
  %v2177 = vadd.f32 0.0, %v2176
  %v2178 = vpop.f32.mrf.mxu0
  %2179 = vdwg.mxu0
  %2180 = vmatpush.bf16.msra.mxu0 %v2099
  %2181 = vmatpush.bf16.msra.mxu0 %v2095
  %2182 = vmatpush.bf16.msra.mxu0 %v2091
  %2183 = vmatpush.bf16.msra.mxu0 %v2087
  %2184 = vmatpush.bf16.msra.mxu0 %v2083
  %2185 = vmatpush.bf16.msra.mxu0 %v2079
  %2186 = vmatpush.bf16.msra.mxu0 %v2075
  %2187 = vmatpush.bf16.msra.mxu0 %v2071
  %2188 = vmatmul.bf16.gmra.mxu0 %v1782
  %v2189 = vpop.f32.mrf.mxu0
  %v2190 = vadd.f32 %v2177, %v2189
  %v2191 = vpop.f32.mrf.mxu0
  %2192 = vdwg.mxu0
  %2193 = vmatpush.bf16.msra.mxu0 %v2068
  %2194 = vmatpush.bf16.msra.mxu0 %v2064
  %2195 = vmatpush.bf16.msra.mxu0 %v2060
  %2196 = vmatpush.bf16.msra.mxu0 %v2056
  %2197 = vmatpush.bf16.msra.mxu0 %v2052
  %2198 = vmatpush.bf16.msra.mxu0 %v2048
  %2199 = vmatpush.bf16.msra.mxu0 %v2044
  %2200 = vmatpush.bf16.msra.mxu0 %v2040
  %2201 = vmatmul.bf16.gmra.mxu0 %v1781
  %v2202 = vpop.f32.mrf.mxu0
  %v2203 = vadd.f32 0.0, %v2202
  %v2204 = vpop.f32.mrf.mxu0
  %2205 = vdwg.mxu0
  %2206 = vmatpush.bf16.msra.mxu0 %v2100
  %2207 = vmatpush.bf16.msra.mxu0 %v2096
  %2208 = vmatpush.bf16.msra.mxu0 %v2092
  %2209 = vmatpush.bf16.msra.mxu0 %v2088
  %2210 = vmatpush.bf16.msra.mxu0 %v2084
  %2211 = vmatpush.bf16.msra.mxu0 %v2080
  %2212 = vmatpush.bf16.msra.mxu0 %v2076
  %2213 = vmatpush.bf16.msra.mxu0 %v2072
  %2214 = vmatmul.bf16.gmra.mxu0 %v1782
  %v2215 = vpop.f32.mrf.mxu0
  %v2216 = vadd.f32 %v2203, %v2215
  %v2217 = vpop.f32.mrf.mxu0
  %2218 = vdwg.mxu0
  %2219 = vmatpush.bf16.msra.mxu0 %v2069
  %2220 = vmatpush.bf16.msra.mxu0 %v2065
  %2221 = vmatpush.bf16.msra.mxu0 %v2061
  %2222 = vmatpush.bf16.msra.mxu0 %v2057
  %2223 = vmatpush.bf16.msra.mxu0 %v2053
  %2224 = vmatpush.bf16.msra.mxu0 %v2049
  %2225 = vmatpush.bf16.msra.mxu0 %v2045
  %2226 = vmatpush.bf16.msra.mxu0 %v2041
  %2227 = vmatmul.bf16.gmra.mxu0 %v1781
  %v2228 = vpop.f32.mrf.mxu0
  %v2229 = vadd.f32 0.0, %v2228
  %v2230 = vpop.f32.mrf.mxu0
  %2231 = vdwg.mxu0
  %2232 = vmatpush.bf16.msra.mxu0 %v2101
  %2233 = vmatpush.bf16.msra.mxu0 %v2097
  %2234 = vmatpush.bf16.msra.mxu0 %v2093
  %2235 = vmatpush.bf16.msra.mxu0 %v2089
  %2236 = vmatpush.bf16.msra.mxu0 %v2085
  %2237 = vmatpush.bf16.msra.mxu0 %v2081
  %2238 = vmatpush.bf16.msra.mxu0 %v2077
  %2239 = vmatpush.bf16.msra.mxu0 %v2073
  %2240 = vmatmul.bf16.gmra.mxu0 %v1782
  %v2241 = vpop.f32.mrf.mxu0
  %v2242 = vadd.f32 %v2229, %v2241
  %v2243 = vpop.f32.mrf.mxu0
  %2244 = vdwg.mxu0
  %2245 = vmatpush.bf16.msra.mxu0 %v2070
  %2246 = vmatpush.bf16.msra.mxu0 %v2066
  %2247 = vmatpush.bf16.msra.mxu0 %v2062
  %2248 = vmatpush.bf16.msra.mxu0 %v2058
  %2249 = vmatpush.bf16.msra.mxu0 %v2054
  %2250 = vmatpush.bf16.msra.mxu0 %v2050
  %2251 = vmatpush.bf16.msra.mxu0 %v2046
  %2252 = vmatpush.bf16.msra.mxu0 %v2042
  %2253 = vmatmul.bf16.gmra.mxu0 %v1781
  %v2254 = vpop.f32.mrf.mxu0
  %v2255 = vadd.f32 0.0, %v2254
  %v2256 = vpop.f32.mrf.mxu0
  %2257 = vdwg.mxu0
  %2258 = vmatpush.bf16.msra.mxu0 %v2102
  %2259 = vmatpush.bf16.msra.mxu0 %v2098
  %2260 = vmatpush.bf16.msra.mxu0 %v2094
  %2261 = vmatpush.bf16.msra.mxu0 %v2090
  %2262 = vmatpush.bf16.msra.mxu0 %v2086
  %2263 = vmatpush.bf16.msra.mxu0 %v2082
  %2264 = vmatpush.bf16.msra.mxu0 %v2078
  %2265 = vmatpush.bf16.msra.mxu0 %v2074
  %2266 = vmatmul.bf16.gmra.mxu0 %v1782
  %v2267 = vpop.f32.mrf.mxu0
  %v2268 = vadd.f32 %v2255, %v2267
  %v2269 = vpop.f32.mrf.mxu0
  %2270 = vdwg.mxu0
  %v2271 = vrot.slane %v2190, 4
  %v2272 = vadd.f32 %v2190, %v2271
  %v2273 = vrot.slane %v2272, 2
  %v2274 = vadd.f32 %v2272, %v2273
  %v2275 = vrot.slane %v2274, 1
  %v2276 = vadd.f32 %v2274, %v2275
  %v2277 = vrot.slane %v2216, 4
  %v2278 = vadd.f32 %v2216, %v2277
  %v2279 = vrot.slane %v2278, 2
  %v2280 = vadd.f32 %v2278, %v2279
  %v2281 = vrot.slane %v2280, 1
  %v2282 = vadd.f32 %v2280, %v2281
  %v2283 = vrot.slane %v2242, 4
  %v2284 = vadd.f32 %v2242, %v2283
  %v2285 = vrot.slane %v2284, 2
  %v2286 = vadd.f32 %v2284, %v2285
  %v2287 = vrot.slane %v2286, 1
  %v2288 = vadd.f32 %v2286, %v2287
  %v2289 = vrot.slane %v2268, 4
  %v2290 = vadd.f32 %v2268, %v2289
  %v2291 = vrot.slane %v2290, 2
  %v2292 = vadd.f32 %v2290, %v2291
  %v2293 = vrot.slane %v2292, 1
  %v2294 = vadd.f32 %v2292, %v2293
  %v2295 = vmul.f32 %v2276, %v1705
  %v2296 = vmul.f32 %v2282, %v1705
  %v2297 = vmul.f32 %v2288, %v1705
  %v2298 = vmul.f32 %v2294, %v1705
  %v2299 = vsub.f32 %v2190, %v2295
  %v2300 = vsub.f32 %v2216, %v2296
  %v2301 = vsub.f32 %v2242, %v2297
  %v2302 = vsub.f32 %v2268, %v2298
  %v2303 = vmul.f32 %v2299, %v2299
  %v2304 = vmul.f32 %v2300, %v2300
  %v2305 = vmul.f32 %v2301, %v2301
  %v2306 = vmul.f32 %v2302, %v2302
  %v2307 = vrot.slane %v2303, 4
  %v2308 = vadd.f32 %v2303, %v2307
  %v2309 = vrot.slane %v2308, 2
  %v2310 = vadd.f32 %v2308, %v2309
  %v2311 = vrot.slane %v2310, 1
  %v2312 = vadd.f32 %v2310, %v2311
  %v2313 = vrot.slane %v2304, 4
  %v2314 = vadd.f32 %v2304, %v2313
  %v2315 = vrot.slane %v2314, 2
  %v2316 = vadd.f32 %v2314, %v2315
  %v2317 = vrot.slane %v2316, 1
  %v2318 = vadd.f32 %v2316, %v2317
  %v2319 = vrot.slane %v2305, 4
  %v2320 = vadd.f32 %v2305, %v2319
  %v2321 = vrot.slane %v2320, 2
  %v2322 = vadd.f32 %v2320, %v2321
  %v2323 = vrot.slane %v2322, 1
  %v2324 = vadd.f32 %v2322, %v2323
  %v2325 = vrot.slane %v2306, 4
  %v2326 = vadd.f32 %v2306, %v2325
  %v2327 = vrot.slane %v2326, 2
  %v2328 = vadd.f32 %v2326, %v2327
  %v2329 = vrot.slane %v2328, 1
  %v2330 = vadd.f32 %v2328, %v2329
  %v2331 = vmul.f32 %v2312, %v1705
  %v2332 = vmul.f32 %v2318, %v1705
  %v2333 = vmul.f32 %v2324, %v1705
  %v2334 = vmul.f32 %v2330, %v1705
  %v2335 = vadd.f32 %v2331, 0.8
  %v2336 = vadd.f32 %v2332, 0.8
  %v2337 = vadd.f32 %v2333, 0.8
  %v2338 = vadd.f32 %v2334, 0.8
  %v2339 = vrsqrt.pop %v2335
  %v2340 = vmul.f32 %v2339, %v2335
  %v2341 = vmul.f32 %v2340, %v2339
  %v2342 = vmul.f32 0.5, %v2341
  %v2343 = vsub.f32 1.5, %v2342
  %v2344 = vmul.f32 %v2339, %v2343
  %vm2345 = vweird.f32 %v2335
  %vm2346 = vweird.f32 %v2339
  %vm2347 = vmor %vm2345, %vm2346
  %v2348 = vsel %vm2347, %v2339, %v2344
  %v2349 = vrsqrt.pop %v2336
  %v2350 = vmul.f32 %v2349, %v2336
  %v2351 = vmul.f32 %v2350, %v2349
  %v2352 = vmul.f32 0.5, %v2351
  %v2353 = vsub.f32 1.5, %v2352
  %v2354 = vmul.f32 %v2349, %v2353
  %vm2355 = vweird.f32 %v2336
  %vm2356 = vweird.f32 %v2349
  %vm2357 = vmor %vm2355, %vm2356
  %v2358 = vsel %vm2357, %v2349, %v2354
  %v2359 = vrsqrt.pop %v2337
  %v2360 = vmul.f32 %v2359, %v2337
  %v2361 = vmul.f32 %v2360, %v2359
  %v2362 = vmul.f32 0.5, %v2361
  %v2363 = vsub.f32 1.5, %v2362
  %v2364 = vmul.f32 %v2359, %v2363
  %vm2365 = vweird.f32 %v2337
  %vm2366 = vweird.f32 %v2359
  %vm2367 = vmor %vm2365, %vm2366
  %v2368 = vsel %vm2367, %v2359, %v2364
  %v2369 = vrsqrt.pop %v2338
  %v2370 = vmul.f32 %v2369, %v2338
  %v2371 = vmul.f32 %v2370, %v2369
  %v2372 = vmul.f32 0.5, %v2371
  %v2373 = vsub.f32 1.5, %v2372
  %v2374 = vmul.f32 %v2369, %v2373
  %vm2375 = vweird.f32 %v2338
  %vm2376 = vweird.f32 %v2369
  %vm2377 = vmor %vm2375, %vm2376
  %v2378 = vsel %vm2377, %v2369, %v2374
  %v2383 = vrot.slane %v2358, 7
  %v2384 = vrot.slane %v2368, 6
  %v2385 = vrot.slane %v2378, 5
  %v2386 = vsel %vm1751, %v2348, %v2383
  %vm2387 = vcmask 1042434
  %v2388 = vsel %vm2387, %v2384, %v2385
  %vm2389 = vcmask 1041408
  %v2390 = vsel %vm2389, %v2386, %v2388
  %v2392 = vmul.f32 %v1469, %v2390
  %v2394 = vperm.slane %v2392, 0
  %v2395 = vperm.slane %v2392, 1
  %v2396 = vperm.slane %v2392, 2
  %v2397 = vperm.slane %v2392, 3
  %v2402 = vmul.f32 %v2295, %v2394
  %v2403 = vmul.f32 %v2296, %v2395
  %v2404 = vmul.f32 %v2297, %v2396
  %v2405 = vmul.f32 %v2298, %v2397
  %v2410 = vrot.slane %v2403, 7
  %v2411 = vrot.slane %v2404, 6
  %v2412 = vrot.slane %v2405, 5
  %v2413 = vsel %vm1751, %v2402, %v2410
  %v2414 = vsel %vm2387, %v2411, %v2412
  %v2415 = vsel %vm2389, %v2413, %v2414
  %v2417 = vsub.f32 %v1471, %v2415
  %v2418 = vmul.f32 %v2190, %v2394
  %v2419 = vmul.f32 %v2216, %v2395
  %v2420 = vmul.f32 %v2242, %v2396
  %v2421 = vmul.f32 %v2268, %v2397
  %v2423 = vperm.slane %v2417, 0
  %v2424 = vperm.slane %v2417, 1
  %v2425 = vperm.slane %v2417, 2
  %v2426 = vperm.slane %v2417, 3
  %v2431 = vadd.f32 %v2418, %v2423
  %v2432 = vadd.f32 %v2419, %v2424
  %v2433 = vadd.f32 %v2420, %v2425
  %v2434 = vadd.f32 %v2421, %v2426
  %v2435 = vmul.f32 %v2431, 0.2
  %v2436 = vmul.f32 %v2432, 0.2
  %v2437 = vmul.f32 %v2433, 0.2
  %v2438 = vmul.f32 %v2434, 0.2
  %v2439 = vmax.f32 %v2431, %v2435
  %v2440 = vmax.f32 %v2432, %v2436
  %v2441 = vmax.f32 %v2433, %v2437
  %v2442 = vmax.f32 %v2434, %v2438
  %s2443 = smul.u32 4, 64
  %s2444 = smul.u32 %s2443, 8
  %s2445 = sshll.u32 %s2444, 4
  %2446 = dma.done [#allocation5], %s2445
  %v2447 = vpack.c.bf16 %v2439, %v2439
  %v2448 = vpack.c.bf16 %v2440, %v2440
  %v2449 = vpack.c.bf16 %v2441, %v2441
  %v2450 = vpack.c.bf16 %v2442, %v2442
  %v2451 = vld [vmem:[#allocation2] sm:$0xff]
  %v2452 = vld [vmem:[#allocation2 + $0x8] sm:$0xff]
  %v2453 = vld [vmem:[#allocation2 + $0x10] sm:$0xff]
  %v2454 = vld [vmem:[#allocation2 + $0x18] sm:$0xff]
  %v2455 = vld [vmem:[#allocation2 + $0x20] sm:$0xff]
  %v2456 = vld [vmem:[#allocation2 + $0x28] sm:$0xff]
  %v2457 = vld [vmem:[#allocation2 + $0x30] sm:$0xff]
  %v2458 = vld [vmem:[#allocation2 + $0x38] sm:$0xff]
  %v2459 = vld [vmem:[#allocation2 + $0x40] sm:$0xff]
  %v2460 = vld [vmem:[#allocation2 + $0x48] sm:$0xff]
  %v2461 = vld [vmem:[#allocation2 + $0x50] sm:$0xff]
  %v2462 = vld [vmem:[#allocation2 + $0x58] sm:$0xff]
  %v2463 = vld [vmem:[#allocation2 + $0x60] sm:$0xff]
  %v2464 = vld [vmem:[#allocation2 + $0x68] sm:$0xff]
  %v2465 = vld [vmem:[#allocation2 + $0x70] sm:$0xff]
  %v2466 = vld [vmem:[#allocation2 + $0x78] sm:$0xff]
  %v2467 = vld [vmem:[#allocation2 + $0x80] sm:$0xff]
  %v2468 = vld [vmem:[#allocation2 + $0x88] sm:$0xff]
  %v2469 = vld [vmem:[#allocation2 + $0x90] sm:$0xff]
  %v2470 = vld [vmem:[#allocation2 + $0x98] sm:$0xff]
  %v2471 = vld [vmem:[#allocation2 + $0xa0] sm:$0xff]
  %v2472 = vld [vmem:[#allocation2 + $0xa8] sm:$0xff]
  %v2473 = vld [vmem:[#allocation2 + $0xb0] sm:$0xff]
  %v2474 = vld [vmem:[#allocation2 + $0xb8] sm:$0xff]
  %v2475 = vld [vmem:[#allocation2 + $0xc0] sm:$0xff]
  %v2476 = vld [vmem:[#allocation2 + $0xc8] sm:$0xff]
  %v2477 = vld [vmem:[#allocation2 + $0xd0] sm:$0xff]
  %v2478 = vld [vmem:[#allocation2 + $0xd8] sm:$0xff]
  %v2479 = vld [vmem:[#allocation2 + $0xe0] sm:$0xff]
  %v2480 = vld [vmem:[#allocation2 + $0xe8] sm:$0xff]
  %v2481 = vld [vmem:[#allocation2 + $0xf0] sm:$0xff]
  %v2482 = vld [vmem:[#allocation2 + $0xf8] sm:$0xff]
  %v2483 = vld [vmem:[#allocation2 + $0x100] sm:$0xff]
  %v2484 = vld [vmem:[#allocation2 + $0x108] sm:$0xff]
  %v2485 = vld [vmem:[#allocation2 + $0x110] sm:$0xff]
  %v2486 = vld [vmem:[#allocation2 + $0x118] sm:$0xff]
  %v2487 = vld [vmem:[#allocation2 + $0x120] sm:$0xff]
  %v2488 = vld [vmem:[#allocation2 + $0x128] sm:$0xff]
  %v2489 = vld [vmem:[#allocation2 + $0x130] sm:$0xff]
  %v2490 = vld [vmem:[#allocation2 + $0x138] sm:$0xff]
  %v2491 = vld [vmem:[#allocation2 + $0x140] sm:$0xff]
  %v2492 = vld [vmem:[#allocation2 + $0x148] sm:$0xff]
  %v2493 = vld [vmem:[#allocation2 + $0x150] sm:$0xff]
  %v2494 = vld [vmem:[#allocation2 + $0x158] sm:$0xff]
  %v2495 = vld [vmem:[#allocation2 + $0x160] sm:$0xff]
  %v2496 = vld [vmem:[#allocation2 + $0x168] sm:$0xff]
  %v2497 = vld [vmem:[#allocation2 + $0x170] sm:$0xff]
  %v2498 = vld [vmem:[#allocation2 + $0x178] sm:$0xff]
  %v2499 = vld [vmem:[#allocation2 + $0x180] sm:$0xff]
  %v2500 = vld [vmem:[#allocation2 + $0x188] sm:$0xff]
  %v2501 = vld [vmem:[#allocation2 + $0x190] sm:$0xff]
  %v2502 = vld [vmem:[#allocation2 + $0x198] sm:$0xff]
  %v2503 = vld [vmem:[#allocation2 + $0x1a0] sm:$0xff]
  %v2504 = vld [vmem:[#allocation2 + $0x1a8] sm:$0xff]
  %v2505 = vld [vmem:[#allocation2 + $0x1b0] sm:$0xff]
  %v2506 = vld [vmem:[#allocation2 + $0x1b8] sm:$0xff]
  %v2507 = vld [vmem:[#allocation2 + $0x1c0] sm:$0xff]
  %v2508 = vld [vmem:[#allocation2 + $0x1c8] sm:$0xff]
  %v2509 = vld [vmem:[#allocation2 + $0x1d0] sm:$0xff]
  %v2510 = vld [vmem:[#allocation2 + $0x1d8] sm:$0xff]
  %v2511 = vld [vmem:[#allocation2 + $0x1e0] sm:$0xff]
  %v2512 = vld [vmem:[#allocation2 + $0x1e8] sm:$0xff]
  %v2513 = vld [vmem:[#allocation2 + $0x1f0] sm:$0xff]
  %v2514 = vld [vmem:[#allocation2 + $0x1f8] sm:$0xff]
  %v2515 = vld [vmem:[#allocation2 + $0x200] sm:$0xff]
  %v2516 = vld [vmem:[#allocation2 + $0x208] sm:$0xff]
  %v2517 = vld [vmem:[#allocation2 + $0x210] sm:$0xff]
  %v2518 = vld [vmem:[#allocation2 + $0x218] sm:$0xff]
  %v2519 = vld [vmem:[#allocation2 + $0x220] sm:$0xff]
  %v2520 = vld [vmem:[#allocation2 + $0x228] sm:$0xff]
  %v2521 = vld [vmem:[#allocation2 + $0x230] sm:$0xff]
  %v2522 = vld [vmem:[#allocation2 + $0x238] sm:$0xff]
  %v2523 = vld [vmem:[#allocation2 + $0x240] sm:$0xff]
  %v2524 = vld [vmem:[#allocation2 + $0x248] sm:$0xff]
  %v2525 = vld [vmem:[#allocation2 + $0x250] sm:$0xff]
  %v2526 = vld [vmem:[#allocation2 + $0x258] sm:$0xff]
  %v2527 = vld [vmem:[#allocation2 + $0x260] sm:$0xff]
  %v2528 = vld [vmem:[#allocation2 + $0x268] sm:$0xff]
  %v2529 = vld [vmem:[#allocation2 + $0x270] sm:$0xff]
  %v2530 = vld [vmem:[#allocation2 + $0x278] sm:$0xff]
  %v2531 = vld [vmem:[#allocation2 + $0x280] sm:$0xff]
  %v2532 = vld [vmem:[#allocation2 + $0x288] sm:$0xff]
  %v2533 = vld [vmem:[#allocation2 + $0x290] sm:$0xff]
  %v2534 = vld [vmem:[#allocation2 + $0x298] sm:$0xff]
  %v2535 = vld [vmem:[#allocation2 + $0x2a0] sm:$0xff]
  %v2536 = vld [vmem:[#allocation2 + $0x2a8] sm:$0xff]
  %v2537 = vld [vmem:[#allocation2 + $0x2b0] sm:$0xff]
  %v2538 = vld [vmem:[#allocation2 + $0x2b8] sm:$0xff]
  %v2539 = vld [vmem:[#allocation2 + $0x2c0] sm:$0xff]
  %v2540 = vld [vmem:[#allocation2 + $0x2c8] sm:$0xff]
  %v2541 = vld [vmem:[#allocation2 + $0x2d0] sm:$0xff]
  %v2542 = vld [vmem:[#allocation2 + $0x2d8] sm:$0xff]
  %v2543 = vld [vmem:[#allocation2 + $0x2e0] sm:$0xff]
  %v2544 = vld [vmem:[#allocation2 + $0x2e8] sm:$0xff]
  %v2545 = vld [vmem:[#allocation2 + $0x2f0] sm:$0xff]
  %v2546 = vld [vmem:[#allocation2 + $0x2f8] sm:$0xff]
  %v2547 = vld [vmem:[#allocation2 + $0x300] sm:$0xff]
  %v2548 = vld [vmem:[#allocation2 + $0x308] sm:$0xff]
  %v2549 = vld [vmem:[#allocation2 + $0x310] sm:$0xff]
  %v2550 = vld [vmem:[#allocation2 + $0x318] sm:$0xff]
  %v2551 = vld [vmem:[#allocation2 + $0x320] sm:$0xff]
  %v2552 = vld [vmem:[#allocation2 + $0x328] sm:$0xff]
  %v2553 = vld [vmem:[#allocation2 + $0x330] sm:$0xff]
  %v2554 = vld [vmem:[#allocation2 + $0x338] sm:$0xff]
  %v2555 = vld [vmem:[#allocation2 + $0x340] sm:$0xff]
  %v2556 = vld [vmem:[#allocation2 + $0x348] sm:$0xff]
  %v2557 = vld [vmem:[#allocation2 + $0x350] sm:$0xff]
  %v2558 = vld [vmem:[#allocation2 + $0x358] sm:$0xff]
  %v2559 = vld [vmem:[#allocation2 + $0x360] sm:$0xff]
  %v2560 = vld [vmem:[#allocation2 + $0x368] sm:$0xff]
  %v2561 = vld [vmem:[#allocation2 + $0x370] sm:$0xff]
  %v2562 = vld [vmem:[#allocation2 + $0x378] sm:$0xff]
  %v2563 = vld [vmem:[#allocation2 + $0x380] sm:$0xff]
  %v2564 = vld [vmem:[#allocation2 + $0x388] sm:$0xff]
  %v2565 = vld [vmem:[#allocation2 + $0x390] sm:$0xff]
  %v2566 = vld [vmem:[#allocation2 + $0x398] sm:$0xff]
  %v2567 = vld [vmem:[#allocation2 + $0x3a0] sm:$0xff]
  %v2568 = vld [vmem:[#allocation2 + $0x3a8] sm:$0xff]
  %v2569 = vld [vmem:[#allocation2 + $0x3b0] sm:$0xff]
  %v2570 = vld [vmem:[#allocation2 + $0x3b8] sm:$0xff]
  %v2571 = vld [vmem:[#allocation2 + $0x3c0] sm:$0xff]
  %v2572 = vld [vmem:[#allocation2 + $0x3c8] sm:$0xff]
  %v2573 = vld [vmem:[#allocation2 + $0x3d0] sm:$0xff]
  %v2574 = vld [vmem:[#allocation2 + $0x3d8] sm:$0xff]
  %v2575 = vld [vmem:[#allocation2 + $0x3e0] sm:$0xff]
  %v2576 = vld [vmem:[#allocation2 + $0x3e8] sm:$0xff]
  %v2577 = vld [vmem:[#allocation2 + $0x3f0] sm:$0xff]
  %v2578 = vld [vmem:[#allocation2 + $0x3f8] sm:$0xff]
  %v2579 = vld [vmem:[#allocation2 + $0x400] sm:$0xff]
  %v2580 = vld [vmem:[#allocation2 + $0x408] sm:$0xff]
  %v2581 = vld [vmem:[#allocation2 + $0x410] sm:$0xff]
  %v2582 = vld [vmem:[#allocation2 + $0x418] sm:$0xff]
  %v2583 = vld [vmem:[#allocation2 + $0x420] sm:$0xff]
  %v2584 = vld [vmem:[#allocation2 + $0x428] sm:$0xff]
  %v2585 = vld [vmem:[#allocation2 + $0x430] sm:$0xff]
  %v2586 = vld [vmem:[#allocation2 + $0x438] sm:$0xff]
  %v2587 = vld [vmem:[#allocation2 + $0x440] sm:$0xff]
  %v2588 = vld [vmem:[#allocation2 + $0x448] sm:$0xff]
  %v2589 = vld [vmem:[#allocation2 + $0x450] sm:$0xff]
  %v2590 = vld [vmem:[#allocation2 + $0x458] sm:$0xff]
  %v2591 = vld [vmem:[#allocation2 + $0x460] sm:$0xff]
  %v2592 = vld [vmem:[#allocation2 + $0x468] sm:$0xff]
  %v2593 = vld [vmem:[#allocation2 + $0x470] sm:$0xff]
  %v2594 = vld [vmem:[#allocation2 + $0x478] sm:$0xff]
  %v2595 = vld [vmem:[#allocation2 + $0x480] sm:$0xff]
  %v2596 = vld [vmem:[#allocation2 + $0x488] sm:$0xff]
  %v2597 = vld [vmem:[#allocation2 + $0x490] sm:$0xff]
  %v2598 = vld [vmem:[#allocation2 + $0x498] sm:$0xff]
  %v2599 = vld [vmem:[#allocation2 + $0x4a0] sm:$0xff]
  %v2600 = vld [vmem:[#allocation2 + $0x4a8] sm:$0xff]
  %v2601 = vld [vmem:[#allocation2 + $0x4b0] sm:$0xff]
  %v2602 = vld [vmem:[#allocation2 + $0x4b8] sm:$0xff]
  %v2603 = vld [vmem:[#allocation2 + $0x4c0] sm:$0xff]
  %v2604 = vld [vmem:[#allocation2 + $0x4c8] sm:$0xff]
  %v2605 = vld [vmem:[#allocation2 + $0x4d0] sm:$0xff]
  %v2606 = vld [vmem:[#allocation2 + $0x4d8] sm:$0xff]
  %v2607 = vld [vmem:[#allocation2 + $0x4e0] sm:$0xff]
  %v2608 = vld [vmem:[#allocation2 + $0x4e8] sm:$0xff]
  %v2609 = vld [vmem:[#allocation2 + $0x4f0] sm:$0xff]
  %v2610 = vld [vmem:[#allocation2 + $0x4f8] sm:$0xff]
  %v2611 = vld [vmem:[#allocation2 + $0x500] sm:$0xff]
  %v2612 = vld [vmem:[#allocation2 + $0x508] sm:$0xff]
  %v2613 = vld [vmem:[#allocation2 + $0x510] sm:$0xff]
  %v2614 = vld [vmem:[#allocation2 + $0x518] sm:$0xff]
  %v2615 = vld [vmem:[#allocation2 + $0x520] sm:$0xff]
  %v2616 = vld [vmem:[#allocation2 + $0x528] sm:$0xff]
  %v2617 = vld [vmem:[#allocation2 + $0x530] sm:$0xff]
  %v2618 = vld [vmem:[#allocation2 + $0x538] sm:$0xff]
  %v2619 = vld [vmem:[#allocation2 + $0x540] sm:$0xff]
  %v2620 = vld [vmem:[#allocation2 + $0x548] sm:$0xff]
  %v2621 = vld [vmem:[#allocation2 + $0x550] sm:$0xff]
  %v2622 = vld [vmem:[#allocation2 + $0x558] sm:$0xff]
  %v2623 = vld [vmem:[#allocation2 + $0x560] sm:$0xff]
  %v2624 = vld [vmem:[#allocation2 + $0x568] sm:$0xff]
  %v2625 = vld [vmem:[#allocation2 + $0x570] sm:$0xff]
  %v2626 = vld [vmem:[#allocation2 + $0x578] sm:$0xff]
  %v2627 = vld [vmem:[#allocation2 + $0x580] sm:$0xff]
  %v2628 = vld [vmem:[#allocation2 + $0x588] sm:$0xff]
  %v2629 = vld [vmem:[#allocation2 + $0x590] sm:$0xff]
  %v2630 = vld [vmem:[#allocation2 + $0x598] sm:$0xff]
  %v2631 = vld [vmem:[#allocation2 + $0x5a0] sm:$0xff]
  %v2632 = vld [vmem:[#allocation2 + $0x5a8] sm:$0xff]
  %v2633 = vld [vmem:[#allocation2 + $0x5b0] sm:$0xff]
  %v2634 = vld [vmem:[#allocation2 + $0x5b8] sm:$0xff]
  %v2635 = vld [vmem:[#allocation2 + $0x5c0] sm:$0xff]
  %v2636 = vld [vmem:[#allocation2 + $0x5c8] sm:$0xff]
  %v2637 = vld [vmem:[#allocation2 + $0x5d0] sm:$0xff]
  %v2638 = vld [vmem:[#allocation2 + $0x5d8] sm:$0xff]
  %v2639 = vld [vmem:[#allocation2 + $0x5e0] sm:$0xff]
  %v2640 = vld [vmem:[#allocation2 + $0x5e8] sm:$0xff]
  %v2641 = vld [vmem:[#allocation2 + $0x5f0] sm:$0xff]
  %v2642 = vld [vmem:[#allocation2 + $0x5f8] sm:$0xff]
  %v2643 = vld [vmem:[#allocation2 + $0x600] sm:$0xff]
  %v2644 = vld [vmem:[#allocation2 + $0x608] sm:$0xff]
  %v2645 = vld [vmem:[#allocation2 + $0x610] sm:$0xff]
  %v2646 = vld [vmem:[#allocation2 + $0x618] sm:$0xff]
  %v2647 = vld [vmem:[#allocation2 + $0x620] sm:$0xff]
  %v2648 = vld [vmem:[#allocation2 + $0x628] sm:$0xff]
  %v2649 = vld [vmem:[#allocation2 + $0x630] sm:$0xff]
  %v2650 = vld [vmem:[#allocation2 + $0x638] sm:$0xff]
  %v2651 = vld [vmem:[#allocation2 + $0x640] sm:$0xff]
  %v2652 = vld [vmem:[#allocation2 + $0x648] sm:$0xff]
  %v2653 = vld [vmem:[#allocation2 + $0x650] sm:$0xff]
  %v2654 = vld [vmem:[#allocation2 + $0x658] sm:$0xff]
  %v2655 = vld [vmem:[#allocation2 + $0x660] sm:$0xff]
  %v2656 = vld [vmem:[#allocation2 + $0x668] sm:$0xff]
  %v2657 = vld [vmem:[#allocation2 + $0x670] sm:$0xff]
  %v2658 = vld [vmem:[#allocation2 + $0x678] sm:$0xff]
  %v2659 = vld [vmem:[#allocation2 + $0x680] sm:$0xff]
  %v2660 = vld [vmem:[#allocation2 + $0x688] sm:$0xff]
  %v2661 = vld [vmem:[#allocation2 + $0x690] sm:$0xff]
  %v2662 = vld [vmem:[#allocation2 + $0x698] sm:$0xff]
  %v2663 = vld [vmem:[#allocation2 + $0x6a0] sm:$0xff]
  %v2664 = vld [vmem:[#allocation2 + $0x6a8] sm:$0xff]
  %v2665 = vld [vmem:[#allocation2 + $0x6b0] sm:$0xff]
  %v2666 = vld [vmem:[#allocation2 + $0x6b8] sm:$0xff]
  %v2667 = vld [vmem:[#allocation2 + $0x6c0] sm:$0xff]
  %v2668 = vld [vmem:[#allocation2 + $0x6c8] sm:$0xff]
  %v2669 = vld [vmem:[#allocation2 + $0x6d0] sm:$0xff]
  %v2670 = vld [vmem:[#allocation2 + $0x6d8] sm:$0xff]
  %v2671 = vld [vmem:[#allocation2 + $0x6e0] sm:$0xff]
  %v2672 = vld [vmem:[#allocation2 + $0x6e8] sm:$0xff]
  %v2673 = vld [vmem:[#allocation2 + $0x6f0] sm:$0xff]
  %v2674 = vld [vmem:[#allocation2 + $0x6f8] sm:$0xff]
  %v2675 = vld [vmem:[#allocation2 + $0x700] sm:$0xff]
  %v2676 = vld [vmem:[#allocation2 + $0x708] sm:$0xff]
  %v2677 = vld [vmem:[#allocation2 + $0x710] sm:$0xff]
  %v2678 = vld [vmem:[#allocation2 + $0x718] sm:$0xff]
  %v2679 = vld [vmem:[#allocation2 + $0x720] sm:$0xff]
  %v2680 = vld [vmem:[#allocation2 + $0x728] sm:$0xff]
  %v2681 = vld [vmem:[#allocation2 + $0x730] sm:$0xff]
  %v2682 = vld [vmem:[#allocation2 + $0x738] sm:$0xff]
  %v2683 = vld [vmem:[#allocation2 + $0x740] sm:$0xff]
  %v2684 = vld [vmem:[#allocation2 + $0x748] sm:$0xff]
  %v2685 = vld [vmem:[#allocation2 + $0x750] sm:$0xff]
  %v2686 = vld [vmem:[#allocation2 + $0x758] sm:$0xff]
  %v2687 = vld [vmem:[#allocation2 + $0x760] sm:$0xff]
  %v2688 = vld [vmem:[#allocation2 + $0x768] sm:$0xff]
  %v2689 = vld [vmem:[#allocation2 + $0x770] sm:$0xff]
  %v2690 = vld [vmem:[#allocation2 + $0x778] sm:$0xff]
  %v2691 = vld [vmem:[#allocation2 + $0x780] sm:$0xff]
  %v2692 = vld [vmem:[#allocation2 + $0x788] sm:$0xff]
  %v2693 = vld [vmem:[#allocation2 + $0x790] sm:$0xff]
  %v2694 = vld [vmem:[#allocation2 + $0x798] sm:$0xff]
  %v2695 = vld [vmem:[#allocation2 + $0x7a0] sm:$0xff]
  %v2696 = vld [vmem:[#allocation2 + $0x7a8] sm:$0xff]
  %v2697 = vld [vmem:[#allocation2 + $0x7b0] sm:$0xff]
  %v2698 = vld [vmem:[#allocation2 + $0x7b8] sm:$0xff]
  %v2699 = vld [vmem:[#allocation2 + $0x7c0] sm:$0xff]
  %v2700 = vld [vmem:[#allocation2 + $0x7c8] sm:$0xff]
  %v2701 = vld [vmem:[#allocation2 + $0x7d0] sm:$0xff]
  %v2702 = vld [vmem:[#allocation2 + $0x7d8] sm:$0xff]
  %v2703 = vld [vmem:[#allocation2 + $0x7e0] sm:$0xff]
  %v2704 = vld [vmem:[#allocation2 + $0x7e8] sm:$0xff]
  %v2705 = vld [vmem:[#allocation2 + $0x7f0] sm:$0xff]
  %v2706 = vld [vmem:[#allocation2 + $0x7f8] sm:$0xff]
  %v2963 = vunpack.c.l.b16 %v2451
  %v2964 = vunpack.c.h.b16 %v2451
  %v2965 = vunpack.c.l.b16 %v2452
  %v2966 = vunpack.c.h.b16 %v2452
  %v2967 = vunpack.c.l.b16 %v2453
  %v2968 = vunpack.c.h.b16 %v2453
  %v2969 = vunpack.c.l.b16 %v2454
  %v2970 = vunpack.c.h.b16 %v2454
  %v2971 = vunpack.c.l.b16 %v2455
  %v2972 = vunpack.c.h.b16 %v2455
  %v2973 = vunpack.c.l.b16 %v2456
  %v2974 = vunpack.c.h.b16 %v2456
  %v2975 = vunpack.c.l.b16 %v2457
  %v2976 = vunpack.c.h.b16 %v2457
  %v2977 = vunpack.c.l.b16 %v2458
  %v2978 = vunpack.c.h.b16 %v2458
  %v2979 = vunpack.c.l.b16 %v2459
  %v2980 = vunpack.c.h.b16 %v2459
  %v2981 = vunpack.c.l.b16 %v2460
  %v2982 = vunpack.c.h.b16 %v2460
  %v2983 = vunpack.c.l.b16 %v2461
  %v2984 = vunpack.c.h.b16 %v2461
  %v2985 = vunpack.c.l.b16 %v2462
  %v2986 = vunpack.c.h.b16 %v2462
  %v2987 = vunpack.c.l.b16 %v2463
  %v2988 = vunpack.c.h.b16 %v2463
  %v2989 = vunpack.c.l.b16 %v2464
  %v2990 = vunpack.c.h.b16 %v2464
  %v2991 = vunpack.c.l.b16 %v2465
  %v2992 = vunpack.c.h.b16 %v2465
  %v2993 = vunpack.c.l.b16 %v2466
  %v2994 = vunpack.c.h.b16 %v2466
  %v2995 = vunpack.c.l.b16 %v2467
  %v2996 = vunpack.c.h.b16 %v2467
  %v2997 = vunpack.c.l.b16 %v2468
  %v2998 = vunpack.c.h.b16 %v2468
  %v2999 = vunpack.c.l.b16 %v2469
  %v3000 = vunpack.c.h.b16 %v2469
  %v3001 = vunpack.c.l.b16 %v2470
  %v3002 = vunpack.c.h.b16 %v2470
  %v3003 = vunpack.c.l.b16 %v2471
  %v3004 = vunpack.c.h.b16 %v2471
  %v3005 = vunpack.c.l.b16 %v2472
  %v3006 = vunpack.c.h.b16 %v2472
  %v3007 = vunpack.c.l.b16 %v2473
  %v3008 = vunpack.c.h.b16 %v2473
  %v3009 = vunpack.c.l.b16 %v2474
  %v3010 = vunpack.c.h.b16 %v2474
  %v3011 = vunpack.c.l.b16 %v2475
  %v3012 = vunpack.c.h.b16 %v2475
  %v3013 = vunpack.c.l.b16 %v2476
  %v3014 = vunpack.c.h.b16 %v2476
  %v3015 = vunpack.c.l.b16 %v2477
  %v3016 = vunpack.c.h.b16 %v2477
  %v3017 = vunpack.c.l.b16 %v2478
  %v3018 = vunpack.c.h.b16 %v2478
  %v3019 = vunpack.c.l.b16 %v2479
  %v3020 = vunpack.c.h.b16 %v2479
  %v3021 = vunpack.c.l.b16 %v2480
  %v3022 = vunpack.c.h.b16 %v2480
  %v3023 = vunpack.c.l.b16 %v2481
  %v3024 = vunpack.c.h.b16 %v2481
  %v3025 = vunpack.c.l.b16 %v2482
  %v3026 = vunpack.c.h.b16 %v2482
  %v3027 = vunpack.c.l.b16 %v2483
  %v3028 = vunpack.c.h.b16 %v2483
  %v3029 = vunpack.c.l.b16 %v2484
  %v3030 = vunpack.c.h.b16 %v2484
  %v3031 = vunpack.c.l.b16 %v2485
  %v3032 = vunpack.c.h.b16 %v2485
  %v3033 = vunpack.c.l.b16 %v2486
  %v3034 = vunpack.c.h.b16 %v2486
  %v3035 = vunpack.c.l.b16 %v2487
  %v3036 = vunpack.c.h.b16 %v2487
  %v3037 = vunpack.c.l.b16 %v2488
  %v3038 = vunpack.c.h.b16 %v2488
  %v3039 = vunpack.c.l.b16 %v2489
  %v3040 = vunpack.c.h.b16 %v2489
  %v3041 = vunpack.c.l.b16 %v2490
  %v3042 = vunpack.c.h.b16 %v2490
  %v3043 = vunpack.c.l.b16 %v2491
  %v3044 = vunpack.c.h.b16 %v2491
  %v3045 = vunpack.c.l.b16 %v2492
  %v3046 = vunpack.c.h.b16 %v2492
  %v3047 = vunpack.c.l.b16 %v2493
  %v3048 = vunpack.c.h.b16 %v2493
  %v3049 = vunpack.c.l.b16 %v2494
  %v3050 = vunpack.c.h.b16 %v2494
  %v3051 = vunpack.c.l.b16 %v2495
  %v3052 = vunpack.c.h.b16 %v2495
  %v3053 = vunpack.c.l.b16 %v2496
  %v3054 = vunpack.c.h.b16 %v2496
  %v3055 = vunpack.c.l.b16 %v2497
  %v3056 = vunpack.c.h.b16 %v2497
  %v3057 = vunpack.c.l.b16 %v2498
  %v3058 = vunpack.c.h.b16 %v2498
  %v3059 = vunpack.c.l.b16 %v2499
  %v3060 = vunpack.c.h.b16 %v2499
  %v3061 = vunpack.c.l.b16 %v2500
  %v3062 = vunpack.c.h.b16 %v2500
  %v3063 = vunpack.c.l.b16 %v2501
  %v3064 = vunpack.c.h.b16 %v2501
  %v3065 = vunpack.c.l.b16 %v2502
  %v3066 = vunpack.c.h.b16 %v2502
  %v3067 = vunpack.c.l.b16 %v2503
  %v3068 = vunpack.c.h.b16 %v2503
  %v3069 = vunpack.c.l.b16 %v2504
  %v3070 = vunpack.c.h.b16 %v2504
  %v3071 = vunpack.c.l.b16 %v2505
  %v3072 = vunpack.c.h.b16 %v2505
  %v3073 = vunpack.c.l.b16 %v2506
  %v3074 = vunpack.c.h.b16 %v2506
  %v3075 = vunpack.c.l.b16 %v2507
  %v3076 = vunpack.c.h.b16 %v2507
  %v3077 = vunpack.c.l.b16 %v2508
  %v3078 = vunpack.c.h.b16 %v2508
  %v3079 = vunpack.c.l.b16 %v2509
  %v3080 = vunpack.c.h.b16 %v2509
  %v3081 = vunpack.c.l.b16 %v2510
  %v3082 = vunpack.c.h.b16 %v2510
  %v3083 = vunpack.c.l.b16 %v2511
  %v3084 = vunpack.c.h.b16 %v2511
  %v3085 = vunpack.c.l.b16 %v2512
  %v3086 = vunpack.c.h.b16 %v2512
  %v3087 = vunpack.c.l.b16 %v2513
  %v3088 = vunpack.c.h.b16 %v2513
  %v3089 = vunpack.c.l.b16 %v2514
  %v3090 = vunpack.c.h.b16 %v2514
  %v3091 = vunpack.c.l.b16 %v2515
  %v3092 = vunpack.c.h.b16 %v2515
  %v3093 = vunpack.c.l.b16 %v2516
  %v3094 = vunpack.c.h.b16 %v2516
  %v3095 = vunpack.c.l.b16 %v2517
  %v3096 = vunpack.c.h.b16 %v2517
  %v3097 = vunpack.c.l.b16 %v2518
  %v3098 = vunpack.c.h.b16 %v2518
  %v3099 = vunpack.c.l.b16 %v2519
  %v3100 = vunpack.c.h.b16 %v2519
  %v3101 = vunpack.c.l.b16 %v2520
  %v3102 = vunpack.c.h.b16 %v2520
  %v3103 = vunpack.c.l.b16 %v2521
  %v3104 = vunpack.c.h.b16 %v2521
  %v3105 = vunpack.c.l.b16 %v2522
  %v3106 = vunpack.c.h.b16 %v2522
  %v3107 = vunpack.c.l.b16 %v2523
  %v3108 = vunpack.c.h.b16 %v2523
  %v3109 = vunpack.c.l.b16 %v2524
  %v3110 = vunpack.c.h.b16 %v2524
  %v3111 = vunpack.c.l.b16 %v2525
  %v3112 = vunpack.c.h.b16 %v2525
  %v3113 = vunpack.c.l.b16 %v2526
  %v3114 = vunpack.c.h.b16 %v2526
  %v3115 = vunpack.c.l.b16 %v2527
  %v3116 = vunpack.c.h.b16 %v2527
  %v3117 = vunpack.c.l.b16 %v2528
  %v3118 = vunpack.c.h.b16 %v2528
  %v3119 = vunpack.c.l.b16 %v2529
  %v3120 = vunpack.c.h.b16 %v2529
  %v3121 = vunpack.c.l.b16 %v2530
  %v3122 = vunpack.c.h.b16 %v2530
  %v3123 = vunpack.c.l.b16 %v2531
  %v3124 = vunpack.c.h.b16 %v2531
  %v3125 = vunpack.c.l.b16 %v2532
  %v3126 = vunpack.c.h.b16 %v2532
  %v3127 = vunpack.c.l.b16 %v2533
  %v3128 = vunpack.c.h.b16 %v2533
  %v3129 = vunpack.c.l.b16 %v2534
  %v3130 = vunpack.c.h.b16 %v2534
  %v3131 = vunpack.c.l.b16 %v2535
  %v3132 = vunpack.c.h.b16 %v2535
  %v3133 = vunpack.c.l.b16 %v2536
  %v3134 = vunpack.c.h.b16 %v2536
  %v3135 = vunpack.c.l.b16 %v2537
  %v3136 = vunpack.c.h.b16 %v2537
  %v3137 = vunpack.c.l.b16 %v2538
  %v3138 = vunpack.c.h.b16 %v2538
  %v3139 = vunpack.c.l.b16 %v2539
  %v3140 = vunpack.c.h.b16 %v2539
  %v3141 = vunpack.c.l.b16 %v2540
  %v3142 = vunpack.c.h.b16 %v2540
  %v3143 = vunpack.c.l.b16 %v2541
  %v3144 = vunpack.c.h.b16 %v2541
  %v3145 = vunpack.c.l.b16 %v2542
  %v3146 = vunpack.c.h.b16 %v2542
  %v3147 = vunpack.c.l.b16 %v2543
  %v3148 = vunpack.c.h.b16 %v2543
  %v3149 = vunpack.c.l.b16 %v2544
  %v3150 = vunpack.c.h.b16 %v2544
  %v3151 = vunpack.c.l.b16 %v2545
  %v3152 = vunpack.c.h.b16 %v2545
  %v3153 = vunpack.c.l.b16 %v2546
  %v3154 = vunpack.c.h.b16 %v2546
  %v3155 = vunpack.c.l.b16 %v2547
  %v3156 = vunpack.c.h.b16 %v2547
  %v3157 = vunpack.c.l.b16 %v2548
  %v3158 = vunpack.c.h.b16 %v2548
  %v3159 = vunpack.c.l.b16 %v2549
  %v3160 = vunpack.c.h.b16 %v2549
  %v3161 = vunpack.c.l.b16 %v2550
  %v3162 = vunpack.c.h.b16 %v2550
  %v3163 = vunpack.c.l.b16 %v2551
  %v3164 = vunpack.c.h.b16 %v2551
  %v3165 = vunpack.c.l.b16 %v2552
  %v3166 = vunpack.c.h.b16 %v2552
  %v3167 = vunpack.c.l.b16 %v2553
  %v3168 = vunpack.c.h.b16 %v2553
  %v3169 = vunpack.c.l.b16 %v2554
  %v3170 = vunpack.c.h.b16 %v2554
  %v3171 = vunpack.c.l.b16 %v2555
  %v3172 = vunpack.c.h.b16 %v2555
  %v3173 = vunpack.c.l.b16 %v2556
  %v3174 = vunpack.c.h.b16 %v2556
  %v3175 = vunpack.c.l.b16 %v2557
  %v3176 = vunpack.c.h.b16 %v2557
  %v3177 = vunpack.c.l.b16 %v2558
  %v3178 = vunpack.c.h.b16 %v2558
  %v3179 = vunpack.c.l.b16 %v2559
  %v3180 = vunpack.c.h.b16 %v2559
  %v3181 = vunpack.c.l.b16 %v2560
  %v3182 = vunpack.c.h.b16 %v2560
  %v3183 = vunpack.c.l.b16 %v2561
  %v3184 = vunpack.c.h.b16 %v2561
  %v3185 = vunpack.c.l.b16 %v2562
  %v3186 = vunpack.c.h.b16 %v2562
  %v3187 = vunpack.c.l.b16 %v2563
  %v3188 = vunpack.c.h.b16 %v2563
  %v3189 = vunpack.c.l.b16 %v2564
  %v3190 = vunpack.c.h.b16 %v2564
  %v3191 = vunpack.c.l.b16 %v2565
  %v3192 = vunpack.c.h.b16 %v2565
  %v3193 = vunpack.c.l.b16 %v2566
  %v3194 = vunpack.c.h.b16 %v2566
  %v3195 = vunpack.c.l.b16 %v2567
  %v3196 = vunpack.c.h.b16 %v2567
  %v3197 = vunpack.c.l.b16 %v2568
  %v3198 = vunpack.c.h.b16 %v2568
  %v3199 = vunpack.c.l.b16 %v2569
  %v3200 = vunpack.c.h.b16 %v2569
  %v3201 = vunpack.c.l.b16 %v2570
  %v3202 = vunpack.c.h.b16 %v2570
  %v3203 = vunpack.c.l.b16 %v2571
  %v3204 = vunpack.c.h.b16 %v2571
  %v3205 = vunpack.c.l.b16 %v2572
  %v3206 = vunpack.c.h.b16 %v2572
  %v3207 = vunpack.c.l.b16 %v2573
  %v3208 = vunpack.c.h.b16 %v2573
  %v3209 = vunpack.c.l.b16 %v2574
  %v3210 = vunpack.c.h.b16 %v2574
  %v3211 = vunpack.c.l.b16 %v2575
  %v3212 = vunpack.c.h.b16 %v2575
  %v3213 = vunpack.c.l.b16 %v2576
  %v3214 = vunpack.c.h.b16 %v2576
  %v3215 = vunpack.c.l.b16 %v2577
  %v3216 = vunpack.c.h.b16 %v2577
  %v3217 = vunpack.c.l.b16 %v2578
  %v3218 = vunpack.c.h.b16 %v2578
  %v3219 = vunpack.c.l.b16 %v2579
  %v3220 = vunpack.c.h.b16 %v2579
  %v3221 = vunpack.c.l.b16 %v2580
  %v3222 = vunpack.c.h.b16 %v2580
  %v3223 = vunpack.c.l.b16 %v2581
  %v3224 = vunpack.c.h.b16 %v2581
  %v3225 = vunpack.c.l.b16 %v2582
  %v3226 = vunpack.c.h.b16 %v2582
  %v3227 = vunpack.c.l.b16 %v2583
  %v3228 = vunpack.c.h.b16 %v2583
  %v3229 = vunpack.c.l.b16 %v2584
  %v3230 = vunpack.c.h.b16 %v2584
  %v3231 = vunpack.c.l.b16 %v2585
  %v3232 = vunpack.c.h.b16 %v2585
  %v3233 = vunpack.c.l.b16 %v2586
  %v3234 = vunpack.c.h.b16 %v2586
  %v3235 = vunpack.c.l.b16 %v2587
  %v3236 = vunpack.c.h.b16 %v2587
  %v3237 = vunpack.c.l.b16 %v2588
  %v3238 = vunpack.c.h.b16 %v2588
  %v3239 = vunpack.c.l.b16 %v2589
  %v3240 = vunpack.c.h.b16 %v2589
  %v3241 = vunpack.c.l.b16 %v2590
  %v3242 = vunpack.c.h.b16 %v2590
  %v3243 = vunpack.c.l.b16 %v2591
  %v3244 = vunpack.c.h.b16 %v2591
  %v3245 = vunpack.c.l.b16 %v2592
  %v3246 = vunpack.c.h.b16 %v2592
  %v3247 = vunpack.c.l.b16 %v2593
  %v3248 = vunpack.c.h.b16 %v2593
  %v3249 = vunpack.c.l.b16 %v2594
  %v3250 = vunpack.c.h.b16 %v2594
  %v3251 = vunpack.c.l.b16 %v2595
  %v3252 = vunpack.c.h.b16 %v2595
  %v3253 = vunpack.c.l.b16 %v2596
  %v3254 = vunpack.c.h.b16 %v2596
  %v3255 = vunpack.c.l.b16 %v2597
  %v3256 = vunpack.c.h.b16 %v2597
  %v3257 = vunpack.c.l.b16 %v2598
  %v3258 = vunpack.c.h.b16 %v2598
  %v3259 = vunpack.c.l.b16 %v2599
  %v3260 = vunpack.c.h.b16 %v2599
  %v3261 = vunpack.c.l.b16 %v2600
  %v3262 = vunpack.c.h.b16 %v2600
  %v3263 = vunpack.c.l.b16 %v2601
  %v3264 = vunpack.c.h.b16 %v2601
  %v3265 = vunpack.c.l.b16 %v2602
  %v3266 = vunpack.c.h.b16 %v2602
  %v3267 = vunpack.c.l.b16 %v2603
  %v3268 = vunpack.c.h.b16 %v2603
  %v3269 = vunpack.c.l.b16 %v2604
  %v3270 = vunpack.c.h.b16 %v2604
  %v3271 = vunpack.c.l.b16 %v2605
  %v3272 = vunpack.c.h.b16 %v2605
  %v3273 = vunpack.c.l.b16 %v2606
  %v3274 = vunpack.c.h.b16 %v2606
  %v3275 = vunpack.c.l.b16 %v2607
  %v3276 = vunpack.c.h.b16 %v2607
  %v3277 = vunpack.c.l.b16 %v2608
  %v3278 = vunpack.c.h.b16 %v2608
  %v3279 = vunpack.c.l.b16 %v2609
  %v3280 = vunpack.c.h.b16 %v2609
  %v3281 = vunpack.c.l.b16 %v2610
  %v3282 = vunpack.c.h.b16 %v2610
  %v3283 = vunpack.c.l.b16 %v2611
  %v3284 = vunpack.c.h.b16 %v2611
  %v3285 = vunpack.c.l.b16 %v2612
  %v3286 = vunpack.c.h.b16 %v2612
  %v3287 = vunpack.c.l.b16 %v2613
  %v3288 = vunpack.c.h.b16 %v2613
  %v3289 = vunpack.c.l.b16 %v2614
  %v3290 = vunpack.c.h.b16 %v2614
  %v3291 = vunpack.c.l.b16 %v2615
  %v3292 = vunpack.c.h.b16 %v2615
  %v3293 = vunpack.c.l.b16 %v2616
  %v3294 = vunpack.c.h.b16 %v2616
  %v3295 = vunpack.c.l.b16 %v2617
  %v3296 = vunpack.c.h.b16 %v2617
  %v3297 = vunpack.c.l.b16 %v2618
  %v3298 = vunpack.c.h.b16 %v2618
  %v3299 = vunpack.c.l.b16 %v2619
  %v3300 = vunpack.c.h.b16 %v2619
  %v3301 = vunpack.c.l.b16 %v2620
  %v3302 = vunpack.c.h.b16 %v2620
  %v3303 = vunpack.c.l.b16 %v2621
  %v3304 = vunpack.c.h.b16 %v2621
  %v3305 = vunpack.c.l.b16 %v2622
  %v3306 = vunpack.c.h.b16 %v2622
  %v3307 = vunpack.c.l.b16 %v2623
  %v3308 = vunpack.c.h.b16 %v2623
  %v3309 = vunpack.c.l.b16 %v2624
  %v3310 = vunpack.c.h.b16 %v2624
  %v3311 = vunpack.c.l.b16 %v2625
  %v3312 = vunpack.c.h.b16 %v2625
  %v3313 = vunpack.c.l.b16 %v2626
  %v3314 = vunpack.c.h.b16 %v2626
  %v3315 = vunpack.c.l.b16 %v2627
  %v3316 = vunpack.c.h.b16 %v2627
  %v3317 = vunpack.c.l.b16 %v2628
  %v3318 = vunpack.c.h.b16 %v2628
  %v3319 = vunpack.c.l.b16 %v2629
  %v3320 = vunpack.c.h.b16 %v2629
  %v3321 = vunpack.c.l.b16 %v2630
  %v3322 = vunpack.c.h.b16 %v2630
  %v3323 = vunpack.c.l.b16 %v2631
  %v3324 = vunpack.c.h.b16 %v2631
  %v3325 = vunpack.c.l.b16 %v2632
  %v3326 = vunpack.c.h.b16 %v2632
  %v3327 = vunpack.c.l.b16 %v2633
  %v3328 = vunpack.c.h.b16 %v2633
  %v3329 = vunpack.c.l.b16 %v2634
  %v3330 = vunpack.c.h.b16 %v2634
  %v3331 = vunpack.c.l.b16 %v2635
  %v3332 = vunpack.c.h.b16 %v2635
  %v3333 = vunpack.c.l.b16 %v2636
  %v3334 = vunpack.c.h.b16 %v2636
  %v3335 = vunpack.c.l.b16 %v2637
  %v3336 = vunpack.c.h.b16 %v2637
  %v3337 = vunpack.c.l.b16 %v2638
  %v3338 = vunpack.c.h.b16 %v2638
  %v3339 = vunpack.c.l.b16 %v2639
  %v3340 = vunpack.c.h.b16 %v2639
  %v3341 = vunpack.c.l.b16 %v2640
  %v3342 = vunpack.c.h.b16 %v2640
  %v3343 = vunpack.c.l.b16 %v2641
  %v3344 = vunpack.c.h.b16 %v2641
  %v3345 = vunpack.c.l.b16 %v2642
  %v3346 = vunpack.c.h.b16 %v2642
  %v3347 = vunpack.c.l.b16 %v2643
  %v3348 = vunpack.c.h.b16 %v2643
  %v3349 = vunpack.c.l.b16 %v2644
  %v3350 = vunpack.c.h.b16 %v2644
  %v3351 = vunpack.c.l.b16 %v2645
  %v3352 = vunpack.c.h.b16 %v2645
  %v3353 = vunpack.c.l.b16 %v2646
  %v3354 = vunpack.c.h.b16 %v2646
  %v3355 = vunpack.c.l.b16 %v2647
  %v3356 = vunpack.c.h.b16 %v2647
  %v3357 = vunpack.c.l.b16 %v2648
  %v3358 = vunpack.c.h.b16 %v2648
  %v3359 = vunpack.c.l.b16 %v2649
  %v3360 = vunpack.c.h.b16 %v2649
  %v3361 = vunpack.c.l.b16 %v2650
  %v3362 = vunpack.c.h.b16 %v2650
  %v3363 = vunpack.c.l.b16 %v2651
  %v3364 = vunpack.c.h.b16 %v2651
  %v3365 = vunpack.c.l.b16 %v2652
  %v3366 = vunpack.c.h.b16 %v2652
  %v3367 = vunpack.c.l.b16 %v2653
  %v3368 = vunpack.c.h.b16 %v2653
  %v3369 = vunpack.c.l.b16 %v2654
  %v3370 = vunpack.c.h.b16 %v2654
  %v3371 = vunpack.c.l.b16 %v2655
  %v3372 = vunpack.c.h.b16 %v2655
  %v3373 = vunpack.c.l.b16 %v2656
  %v3374 = vunpack.c.h.b16 %v2656
  %v3375 = vunpack.c.l.b16 %v2657
  %v3376 = vunpack.c.h.b16 %v2657
  %v3377 = vunpack.c.l.b16 %v2658
  %v3378 = vunpack.c.h.b16 %v2658
  %v3379 = vunpack.c.l.b16 %v2659
  %v3380 = vunpack.c.h.b16 %v2659
  %v3381 = vunpack.c.l.b16 %v2660
  %v3382 = vunpack.c.h.b16 %v2660
  %v3383 = vunpack.c.l.b16 %v2661
  %v3384 = vunpack.c.h.b16 %v2661
  %v3385 = vunpack.c.l.b16 %v2662
  %v3386 = vunpack.c.h.b16 %v2662
  %v3387 = vunpack.c.l.b16 %v2663
  %v3388 = vunpack.c.h.b16 %v2663
  %v3389 = vunpack.c.l.b16 %v2664
  %v3390 = vunpack.c.h.b16 %v2664
  %v3391 = vunpack.c.l.b16 %v2665
  %v3392 = vunpack.c.h.b16 %v2665
  %v3393 = vunpack.c.l.b16 %v2666
  %v3394 = vunpack.c.h.b16 %v2666
  %v3395 = vunpack.c.l.b16 %v2667
  %v3396 = vunpack.c.h.b16 %v2667
  %v3397 = vunpack.c.l.b16 %v2668
  %v3398 = vunpack.c.h.b16 %v2668
  %v3399 = vunpack.c.l.b16 %v2669
  %v3400 = vunpack.c.h.b16 %v2669
  %v3401 = vunpack.c.l.b16 %v2670
  %v3402 = vunpack.c.h.b16 %v2670
  %v3403 = vunpack.c.l.b16 %v2671
  %v3404 = vunpack.c.h.b16 %v2671
  %v3405 = vunpack.c.l.b16 %v2672
  %v3406 = vunpack.c.h.b16 %v2672
  %v3407 = vunpack.c.l.b16 %v2673
  %v3408 = vunpack.c.h.b16 %v2673
  %v3409 = vunpack.c.l.b16 %v2674
  %v3410 = vunpack.c.h.b16 %v2674
  %v3411 = vunpack.c.l.b16 %v2675
  %v3412 = vunpack.c.h.b16 %v2675
  %v3413 = vunpack.c.l.b16 %v2676
  %v3414 = vunpack.c.h.b16 %v2676
  %v3415 = vunpack.c.l.b16 %v2677
  %v3416 = vunpack.c.h.b16 %v2677
  %v3417 = vunpack.c.l.b16 %v2678
  %v3418 = vunpack.c.h.b16 %v2678
  %v3419 = vunpack.c.l.b16 %v2679
  %v3420 = vunpack.c.h.b16 %v2679
  %v3421 = vunpack.c.l.b16 %v2680
  %v3422 = vunpack.c.h.b16 %v2680
  %v3423 = vunpack.c.l.b16 %v2681
  %v3424 = vunpack.c.h.b16 %v2681
  %v3425 = vunpack.c.l.b16 %v2682
  %v3426 = vunpack.c.h.b16 %v2682
  %v3427 = vunpack.c.l.b16 %v2683
  %v3428 = vunpack.c.h.b16 %v2683
  %v3429 = vunpack.c.l.b16 %v2684
  %v3430 = vunpack.c.h.b16 %v2684
  %v3431 = vunpack.c.l.b16 %v2685
  %v3432 = vunpack.c.h.b16 %v2685
  %v3433 = vunpack.c.l.b16 %v2686
  %v3434 = vunpack.c.h.b16 %v2686
  %v3435 = vunpack.c.l.b16 %v2687
  %v3436 = vunpack.c.h.b16 %v2687
  %v3437 = vunpack.c.l.b16 %v2688
  %v3438 = vunpack.c.h.b16 %v2688
  %v3439 = vunpack.c.l.b16 %v2689
  %v3440 = vunpack.c.h.b16 %v2689
  %v3441 = vunpack.c.l.b16 %v2690
  %v3442 = vunpack.c.h.b16 %v2690
  %v3443 = vunpack.c.l.b16 %v2691
  %v3444 = vunpack.c.h.b16 %v2691
  %v3445 = vunpack.c.l.b16 %v2692
  %v3446 = vunpack.c.h.b16 %v2692
  %v3447 = vunpack.c.l.b16 %v2693
  %v3448 = vunpack.c.h.b16 %v2693
  %v3449 = vunpack.c.l.b16 %v2694
  %v3450 = vunpack.c.h.b16 %v2694
  %v3451 = vunpack.c.l.b16 %v2695
  %v3452 = vunpack.c.h.b16 %v2695
  %v3453 = vunpack.c.l.b16 %v2696
  %v3454 = vunpack.c.h.b16 %v2696
  %v3455 = vunpack.c.l.b16 %v2697
  %v3456 = vunpack.c.h.b16 %v2697
  %v3457 = vunpack.c.l.b16 %v2698
  %v3458 = vunpack.c.h.b16 %v2698
  %v3459 = vunpack.c.l.b16 %v2699
  %v3460 = vunpack.c.h.b16 %v2699
  %v3461 = vunpack.c.l.b16 %v2700
  %v3462 = vunpack.c.h.b16 %v2700
  %v3463 = vunpack.c.l.b16 %v2701
  %v3464 = vunpack.c.h.b16 %v2701
  %v3465 = vunpack.c.l.b16 %v2702
  %v3466 = vunpack.c.h.b16 %v2702
  %v3467 = vunpack.c.l.b16 %v2703
  %v3468 = vunpack.c.h.b16 %v2703
  %v3469 = vunpack.c.l.b16 %v2704
  %v3470 = vunpack.c.h.b16 %v2704
  %v3471 = vunpack.c.l.b16 %v2705
  %v3472 = vunpack.c.h.b16 %v2705
  %v3473 = vunpack.c.l.b16 %v2706
  %v3474 = vunpack.c.h.b16 %v2706
  %v3475 = vpack.c.b16 %v2971, %v2963
  %v3476 = vpack.c.b16 %v2972, %v2964
  %v3477 = vpack.c.b16 %v2973, %v2965
  %v3478 = vpack.c.b16 %v2974, %v2966
  %v3479 = vpack.c.b16 %v2975, %v2967
  %v3480 = vpack.c.b16 %v2976, %v2968
  %v3481 = vpack.c.b16 %v2977, %v2969
  %v3482 = vpack.c.b16 %v2978, %v2970
  %v3483 = vpack.c.b16 %v2987, %v2979
  %v3484 = vpack.c.b16 %v2988, %v2980
  %v3485 = vpack.c.b16 %v2989, %v2981
  %v3486 = vpack.c.b16 %v2990, %v2982
  %v3487 = vpack.c.b16 %v2991, %v2983
  %v3488 = vpack.c.b16 %v2992, %v2984
  %v3489 = vpack.c.b16 %v2993, %v2985
  %v3490 = vpack.c.b16 %v2994, %v2986
  %v3491 = vpack.c.b16 %v3003, %v2995
  %v3492 = vpack.c.b16 %v3004, %v2996
  %v3493 = vpack.c.b16 %v3005, %v2997
  %v3494 = vpack.c.b16 %v3006, %v2998
  %v3495 = vpack.c.b16 %v3007, %v2999
  %v3496 = vpack.c.b16 %v3008, %v3000
  %v3497 = vpack.c.b16 %v3009, %v3001
  %v3498 = vpack.c.b16 %v3010, %v3002
  %v3499 = vpack.c.b16 %v3019, %v3011
  %v3500 = vpack.c.b16 %v3020, %v3012
  %v3501 = vpack.c.b16 %v3021, %v3013
  %v3502 = vpack.c.b16 %v3022, %v3014
  %v3503 = vpack.c.b16 %v3023, %v3015
  %v3504 = vpack.c.b16 %v3024, %v3016
  %v3505 = vpack.c.b16 %v3025, %v3017
  %v3506 = vpack.c.b16 %v3026, %v3018
  %v3507 = vpack.c.b16 %v3035, %v3027
  %v3508 = vpack.c.b16 %v3036, %v3028
  %v3509 = vpack.c.b16 %v3037, %v3029
  %v3510 = vpack.c.b16 %v3038, %v3030
  %v3511 = vpack.c.b16 %v3039, %v3031
  %v3512 = vpack.c.b16 %v3040, %v3032
  %v3513 = vpack.c.b16 %v3041, %v3033
  %v3514 = vpack.c.b16 %v3042, %v3034
  %v3515 = vpack.c.b16 %v3051, %v3043
  %v3516 = vpack.c.b16 %v3052, %v3044
  %v3517 = vpack.c.b16 %v3053, %v3045
  %v3518 = vpack.c.b16 %v3054, %v3046
  %v3519 = vpack.c.b16 %v3055, %v3047
  %v3520 = vpack.c.b16 %v3056, %v3048
  %v3521 = vpack.c.b16 %v3057, %v3049
  %v3522 = vpack.c.b16 %v3058, %v3050
  %v3523 = vpack.c.b16 %v3067, %v3059
  %v3524 = vpack.c.b16 %v3068, %v3060
  %v3525 = vpack.c.b16 %v3069, %v3061
  %v3526 = vpack.c.b16 %v3070, %v3062
  %v3527 = vpack.c.b16 %v3071, %v3063
  %v3528 = vpack.c.b16 %v3072, %v3064
  %v3529 = vpack.c.b16 %v3073, %v3065
  %v3530 = vpack.c.b16 %v3074, %v3066
  %v3531 = vpack.c.b16 %v3083, %v3075
  %v3532 = vpack.c.b16 %v3084, %v3076
  %v3533 = vpack.c.b16 %v3085, %v3077
  %v3534 = vpack.c.b16 %v3086, %v3078
  %v3535 = vpack.c.b16 %v3087, %v3079
  %v3536 = vpack.c.b16 %v3088, %v3080
  %v3537 = vpack.c.b16 %v3089, %v3081
  %v3538 = vpack.c.b16 %v3090, %v3082
  %v3539 = vpack.c.b16 %v3099, %v3091
  %v3540 = vpack.c.b16 %v3100, %v3092
  %v3541 = vpack.c.b16 %v3101, %v3093
  %v3542 = vpack.c.b16 %v3102, %v3094
  %v3543 = vpack.c.b16 %v3103, %v3095
  %v3544 = vpack.c.b16 %v3104, %v3096
  %v3545 = vpack.c.b16 %v3105, %v3097
  %v3546 = vpack.c.b16 %v3106, %v3098
  %v3547 = vpack.c.b16 %v3115, %v3107
  %v3548 = vpack.c.b16 %v3116, %v3108
  %v3549 = vpack.c.b16 %v3117, %v3109
  %v3550 = vpack.c.b16 %v3118, %v3110
  %v3551 = vpack.c.b16 %v3119, %v3111
  %v3552 = vpack.c.b16 %v3120, %v3112
  %v3553 = vpack.c.b16 %v3121, %v3113
  %v3554 = vpack.c.b16 %v3122, %v3114
  %v3555 = vpack.c.b16 %v3131, %v3123
  %v3556 = vpack.c.b16 %v3132, %v3124
  %v3557 = vpack.c.b16 %v3133, %v3125
  %v3558 = vpack.c.b16 %v3134, %v3126
  %v3559 = vpack.c.b16 %v3135, %v3127
  %v3560 = vpack.c.b16 %v3136, %v3128
  %v3561 = vpack.c.b16 %v3137, %v3129
  %v3562 = vpack.c.b16 %v3138, %v3130
  %v3563 = vpack.c.b16 %v3147, %v3139
  %v3564 = vpack.c.b16 %v3148, %v3140
  %v3565 = vpack.c.b16 %v3149, %v3141
  %v3566 = vpack.c.b16 %v3150, %v3142
  %v3567 = vpack.c.b16 %v3151, %v3143
  %v3568 = vpack.c.b16 %v3152, %v3144
  %v3569 = vpack.c.b16 %v3153, %v3145
  %v3570 = vpack.c.b16 %v3154, %v3146
  %v3571 = vpack.c.b16 %v3163, %v3155
  %v3572 = vpack.c.b16 %v3164, %v3156
  %v3573 = vpack.c.b16 %v3165, %v3157
  %v3574 = vpack.c.b16 %v3166, %v3158
  %v3575 = vpack.c.b16 %v3167, %v3159
  %v3576 = vpack.c.b16 %v3168, %v3160
  %v3577 = vpack.c.b16 %v3169, %v3161
  %v3578 = vpack.c.b16 %v3170, %v3162
  %v3579 = vpack.c.b16 %v3179, %v3171
  %v3580 = vpack.c.b16 %v3180, %v3172
  %v3581 = vpack.c.b16 %v3181, %v3173
  %v3582 = vpack.c.b16 %v3182, %v3174
  %v3583 = vpack.c.b16 %v3183, %v3175
  %v3584 = vpack.c.b16 %v3184, %v3176
  %v3585 = vpack.c.b16 %v3185, %v3177
  %v3586 = vpack.c.b16 %v3186, %v3178
  %v3587 = vpack.c.b16 %v3195, %v3187
  %v3588 = vpack.c.b16 %v3196, %v3188
  %v3589 = vpack.c.b16 %v3197, %v3189
  %v3590 = vpack.c.b16 %v3198, %v3190
  %v3591 = vpack.c.b16 %v3199, %v3191
  %v3592 = vpack.c.b16 %v3200, %v3192
  %v3593 = vpack.c.b16 %v3201, %v3193
  %v3594 = vpack.c.b16 %v3202, %v3194
  %v3595 = vpack.c.b16 %v3211, %v3203
  %v3596 = vpack.c.b16 %v3212, %v3204
  %v3597 = vpack.c.b16 %v3213, %v3205
  %v3598 = vpack.c.b16 %v3214, %v3206
  %v3599 = vpack.c.b16 %v3215, %v3207
  %v3600 = vpack.c.b16 %v3216, %v3208
  %v3601 = vpack.c.b16 %v3217, %v3209
  %v3602 = vpack.c.b16 %v3218, %v3210
  %v3603 = vpack.c.b16 %v3227, %v3219
  %v3604 = vpack.c.b16 %v3228, %v3220
  %v3605 = vpack.c.b16 %v3229, %v3221
  %v3606 = vpack.c.b16 %v3230, %v3222
  %v3607 = vpack.c.b16 %v3231, %v3223
  %v3608 = vpack.c.b16 %v3232, %v3224
  %v3609 = vpack.c.b16 %v3233, %v3225
  %v3610 = vpack.c.b16 %v3234, %v3226
  %v3611 = vpack.c.b16 %v3243, %v3235
  %v3612 = vpack.c.b16 %v3244, %v3236
  %v3613 = vpack.c.b16 %v3245, %v3237
  %v3614 = vpack.c.b16 %v3246, %v3238
  %v3615 = vpack.c.b16 %v3247, %v3239
  %v3616 = vpack.c.b16 %v3248, %v3240
  %v3617 = vpack.c.b16 %v3249, %v3241
  %v3618 = vpack.c.b16 %v3250, %v3242
  %v3619 = vpack.c.b16 %v3259, %v3251
  %v3620 = vpack.c.b16 %v3260, %v3252
  %v3621 = vpack.c.b16 %v3261, %v3253
  %v3622 = vpack.c.b16 %v3262, %v3254
  %v3623 = vpack.c.b16 %v3263, %v3255
  %v3624 = vpack.c.b16 %v3264, %v3256
  %v3625 = vpack.c.b16 %v3265, %v3257
  %v3626 = vpack.c.b16 %v3266, %v3258
  %v3627 = vpack.c.b16 %v3275, %v3267
  %v3628 = vpack.c.b16 %v3276, %v3268
  %v3629 = vpack.c.b16 %v3277, %v3269
  %v3630 = vpack.c.b16 %v3278, %v3270
  %v3631 = vpack.c.b16 %v3279, %v3271
  %v3632 = vpack.c.b16 %v3280, %v3272
  %v3633 = vpack.c.b16 %v3281, %v3273
  %v3634 = vpack.c.b16 %v3282, %v3274
  %v3635 = vpack.c.b16 %v3291, %v3283
  %v3636 = vpack.c.b16 %v3292, %v3284
  %v3637 = vpack.c.b16 %v3293, %v3285
  %v3638 = vpack.c.b16 %v3294, %v3286
  %v3639 = vpack.c.b16 %v3295, %v3287
  %v3640 = vpack.c.b16 %v3296, %v3288
  %v3641 = vpack.c.b16 %v3297, %v3289
  %v3642 = vpack.c.b16 %v3298, %v3290
  %v3643 = vpack.c.b16 %v3307, %v3299
  %v3644 = vpack.c.b16 %v3308, %v3300
  %v3645 = vpack.c.b16 %v3309, %v3301
  %v3646 = vpack.c.b16 %v3310, %v3302
  %v3647 = vpack.c.b16 %v3311, %v3303
  %v3648 = vpack.c.b16 %v3312, %v3304
  %v3649 = vpack.c.b16 %v3313, %v3305
  %v3650 = vpack.c.b16 %v3314, %v3306
  %v3651 = vpack.c.b16 %v3323, %v3315
  %v3652 = vpack.c.b16 %v3324, %v3316
  %v3653 = vpack.c.b16 %v3325, %v3317
  %v3654 = vpack.c.b16 %v3326, %v3318
  %v3655 = vpack.c.b16 %v3327, %v3319
  %v3656 = vpack.c.b16 %v3328, %v3320
  %v3657 = vpack.c.b16 %v3329, %v3321
  %v3658 = vpack.c.b16 %v3330, %v3322
  %v3659 = vpack.c.b16 %v3339, %v3331
  %v3660 = vpack.c.b16 %v3340, %v3332
  %v3661 = vpack.c.b16 %v3341, %v3333
  %v3662 = vpack.c.b16 %v3342, %v3334
  %v3663 = vpack.c.b16 %v3343, %v3335
  %v3664 = vpack.c.b16 %v3344, %v3336
  %v3665 = vpack.c.b16 %v3345, %v3337
  %v3666 = vpack.c.b16 %v3346, %v3338
  %v3667 = vpack.c.b16 %v3355, %v3347
  %v3668 = vpack.c.b16 %v3356, %v3348
  %v3669 = vpack.c.b16 %v3357, %v3349
  %v3670 = vpack.c.b16 %v3358, %v3350
  %v3671 = vpack.c.b16 %v3359, %v3351
  %v3672 = vpack.c.b16 %v3360, %v3352
  %v3673 = vpack.c.b16 %v3361, %v3353
  %v3674 = vpack.c.b16 %v3362, %v3354
  %v3675 = vpack.c.b16 %v3371, %v3363
  %v3676 = vpack.c.b16 %v3372, %v3364
  %v3677 = vpack.c.b16 %v3373, %v3365
  %v3678 = vpack.c.b16 %v3374, %v3366
  %v3679 = vpack.c.b16 %v3375, %v3367
  %v3680 = vpack.c.b16 %v3376, %v3368
  %v3681 = vpack.c.b16 %v3377, %v3369
  %v3682 = vpack.c.b16 %v3378, %v3370
  %v3683 = vpack.c.b16 %v3387, %v3379
  %v3684 = vpack.c.b16 %v3388, %v3380
  %v3685 = vpack.c.b16 %v3389, %v3381
  %v3686 = vpack.c.b16 %v3390, %v3382
  %v3687 = vpack.c.b16 %v3391, %v3383
  %v3688 = vpack.c.b16 %v3392, %v3384
  %v3689 = vpack.c.b16 %v3393, %v3385
  %v3690 = vpack.c.b16 %v3394, %v3386
  %v3691 = vpack.c.b16 %v3403, %v3395
  %v3692 = vpack.c.b16 %v3404, %v3396
  %v3693 = vpack.c.b16 %v3405, %v3397
  %v3694 = vpack.c.b16 %v3406, %v3398
  %v3695 = vpack.c.b16 %v3407, %v3399
  %v3696 = vpack.c.b16 %v3408, %v3400
  %v3697 = vpack.c.b16 %v3409, %v3401
  %v3698 = vpack.c.b16 %v3410, %v3402
  %v3699 = vpack.c.b16 %v3419, %v3411
  %v3700 = vpack.c.b16 %v3420, %v3412
  %v3701 = vpack.c.b16 %v3421, %v3413
  %v3702 = vpack.c.b16 %v3422, %v3414
  %v3703 = vpack.c.b16 %v3423, %v3415
  %v3704 = vpack.c.b16 %v3424, %v3416
  %v3705 = vpack.c.b16 %v3425, %v3417
  %v3706 = vpack.c.b16 %v3426, %v3418
  %v3707 = vpack.c.b16 %v3435, %v3427
  %v3708 = vpack.c.b16 %v3436, %v3428
  %v3709 = vpack.c.b16 %v3437, %v3429
  %v3710 = vpack.c.b16 %v3438, %v3430
  %v3711 = vpack.c.b16 %v3439, %v3431
  %v3712 = vpack.c.b16 %v3440, %v3432
  %v3713 = vpack.c.b16 %v3441, %v3433
  %v3714 = vpack.c.b16 %v3442, %v3434
  %v3715 = vpack.c.b16 %v3451, %v3443
  %v3716 = vpack.c.b16 %v3452, %v3444
  %v3717 = vpack.c.b16 %v3453, %v3445
  %v3718 = vpack.c.b16 %v3454, %v3446
  %v3719 = vpack.c.b16 %v3455, %v3447
  %v3720 = vpack.c.b16 %v3456, %v3448
  %v3721 = vpack.c.b16 %v3457, %v3449
  %v3722 = vpack.c.b16 %v3458, %v3450
  %v3723 = vpack.c.b16 %v3467, %v3459
  %v3724 = vpack.c.b16 %v3468, %v3460
  %v3725 = vpack.c.b16 %v3469, %v3461
  %v3726 = vpack.c.b16 %v3470, %v3462
  %v3727 = vpack.c.b16 %v3471, %v3463
  %v3728 = vpack.c.b16 %v3472, %v3464
  %v3729 = vpack.c.b16 %v3473, %v3465
  %v3730 = vpack.c.b16 %v3474, %v3466
  %3987 = vmatpush.bf16.msra.mxu0 %v3531
  %3988 = vmatpush.bf16.msra.mxu0 %v3523
  %3989 = vmatpush.bf16.msra.mxu0 %v3515
  %3990 = vmatpush.bf16.msra.mxu0 %v3507
  %3991 = vmatpush.bf16.msra.mxu0 %v3499
  %3992 = vmatpush.bf16.msra.mxu0 %v3491
  %3993 = vmatpush.bf16.msra.mxu0 %v3483
  %3994 = vmatpush.bf16.msra.mxu0 %v3475
  %3995 = vmatmul.bf16.gmra.mxu0 %v2447
  %v3996 = vpop.f32.mrf.mxu0
  %v3997 = vadd.f32 0.0, %v3996
  %v3998 = vpop.f32.mrf.mxu0
  %3999 = vdwg.mxu0
  %4000 = vmatpush.bf16.msra.mxu0 %v3595
  %4001 = vmatpush.bf16.msra.mxu0 %v3587
  %4002 = vmatpush.bf16.msra.mxu0 %v3579
  %4003 = vmatpush.bf16.msra.mxu0 %v3571
  %4004 = vmatpush.bf16.msra.mxu0 %v3563
  %4005 = vmatpush.bf16.msra.mxu0 %v3555
  %4006 = vmatpush.bf16.msra.mxu0 %v3547
  %4007 = vmatpush.bf16.msra.mxu0 %v3539
  %4008 = vmatmul.bf16.gmra.mxu0 %v2448
  %v4009 = vpop.f32.mrf.mxu0
  %v4010 = vadd.f32 %v3997, %v4009
  %v4011 = vpop.f32.mrf.mxu0
  %4012 = vdwg.mxu0
  %4013 = vmatpush.bf16.msra.mxu0 %v3659
  %4014 = vmatpush.bf16.msra.mxu0 %v3651
  %4015 = vmatpush.bf16.msra.mxu0 %v3643
  %4016 = vmatpush.bf16.msra.mxu0 %v3635
  %4017 = vmatpush.bf16.msra.mxu0 %v3627
  %4018 = vmatpush.bf16.msra.mxu0 %v3619
  %4019 = vmatpush.bf16.msra.mxu0 %v3611
  %4020 = vmatpush.bf16.msra.mxu0 %v3603
  %4021 = vmatmul.bf16.gmra.mxu0 %v2449
  %v4022 = vpop.f32.mrf.mxu0
  %v4023 = vadd.f32 %v4010, %v4022
  %v4024 = vpop.f32.mrf.mxu0
  %4025 = vdwg.mxu0
  %4026 = vmatpush.bf16.msra.mxu0 %v3723
  %4027 = vmatpush.bf16.msra.mxu0 %v3715
  %4028 = vmatpush.bf16.msra.mxu0 %v3707
  %4029 = vmatpush.bf16.msra.mxu0 %v3699
  %4030 = vmatpush.bf16.msra.mxu0 %v3691
  %4031 = vmatpush.bf16.msra.mxu0 %v3683
  %4032 = vmatpush.bf16.msra.mxu0 %v3675
  %4033 = vmatpush.bf16.msra.mxu0 %v3667
  %4034 = vmatmul.bf16.gmra.mxu0 %v2450
  %v4035 = vpop.f32.mrf.mxu0
  %v4036 = vadd.f32 %v4023, %v4035
  %v4037 = vpop.f32.mrf.mxu0
  %4038 = vdwg.mxu0
  %4039 = vmatpush.bf16.msra.mxu0 %v3532
  %4040 = vmatpush.bf16.msra.mxu0 %v3524
  %4041 = vmatpush.bf16.msra.mxu0 %v3516
  %4042 = vmatpush.bf16.msra.mxu0 %v3508
  %4043 = vmatpush.bf16.msra.mxu0 %v3500
  %4044 = vmatpush.bf16.msra.mxu0 %v3492
  %4045 = vmatpush.bf16.msra.mxu0 %v3484
  %4046 = vmatpush.bf16.msra.mxu0 %v3476
  %4047 = vmatmul.bf16.gmra.mxu0 %v2447
  %v4048 = vpop.f32.mrf.mxu0
  %v4049 = vadd.f32 0.0, %v4048
  %v4050 = vpop.f32.mrf.mxu0
  %4051 = vdwg.mxu0
  %4052 = vmatpush.bf16.msra.mxu0 %v3596
  %4053 = vmatpush.bf16.msra.mxu0 %v3588
  %4054 = vmatpush.bf16.msra.mxu0 %v3580
  %4055 = vmatpush.bf16.msra.mxu0 %v3572
  %4056 = vmatpush.bf16.msra.mxu0 %v3564
  %4057 = vmatpush.bf16.msra.mxu0 %v3556
  %4058 = vmatpush.bf16.msra.mxu0 %v3548
  %4059 = vmatpush.bf16.msra.mxu0 %v3540
  %4060 = vmatmul.bf16.gmra.mxu0 %v2448
  %v4061 = vpop.f32.mrf.mxu0
  %v4062 = vadd.f32 %v4049, %v4061
  %v4063 = vpop.f32.mrf.mxu0
  %4064 = vdwg.mxu0
  %4065 = vmatpush.bf16.msra.mxu0 %v3660
  %4066 = vmatpush.bf16.msra.mxu0 %v3652
  %4067 = vmatpush.bf16.msra.mxu0 %v3644
  %4068 = vmatpush.bf16.msra.mxu0 %v3636
  %4069 = vmatpush.bf16.msra.mxu0 %v3628
  %4070 = vmatpush.bf16.msra.mxu0 %v3620
  %4071 = vmatpush.bf16.msra.mxu0 %v3612
  %4072 = vmatpush.bf16.msra.mxu0 %v3604
  %4073 = vmatmul.bf16.gmra.mxu0 %v2449
  %v4074 = vpop.f32.mrf.mxu0
  %v4075 = vadd.f32 %v4062, %v4074
  %v4076 = vpop.f32.mrf.mxu0
  %4077 = vdwg.mxu0
  %4078 = vmatpush.bf16.msra.mxu0 %v3724
  %4079 = vmatpush.bf16.msra.mxu0 %v3716
  %4080 = vmatpush.bf16.msra.mxu0 %v3708
  %4081 = vmatpush.bf16.msra.mxu0 %v3700
  %4082 = vmatpush.bf16.msra.mxu0 %v3692
  %4083 = vmatpush.bf16.msra.mxu0 %v3684
  %4084 = vmatpush.bf16.msra.mxu0 %v3676
  %4085 = vmatpush.bf16.msra.mxu0 %v3668
  %4086 = vmatmul.bf16.gmra.mxu0 %v2450
  %v4087 = vpop.f32.mrf.mxu0
  %v4088 = vadd.f32 %v4075, %v4087
  %v4089 = vpop.f32.mrf.mxu0
  %4090 = vdwg.mxu0
  %4091 = vmatpush.bf16.msra.mxu0 %v3533
  %4092 = vmatpush.bf16.msra.mxu0 %v3525
  %4093 = vmatpush.bf16.msra.mxu0 %v3517
  %4094 = vmatpush.bf16.msra.mxu0 %v3509
  %4095 = vmatpush.bf16.msra.mxu0 %v3501
  %4096 = vmatpush.bf16.msra.mxu0 %v3493
  %4097 = vmatpush.bf16.msra.mxu0 %v3485
  %4098 = vmatpush.bf16.msra.mxu0 %v3477
  %4099 = vmatmul.bf16.gmra.mxu0 %v2447
  %v4100 = vpop.f32.mrf.mxu0
  %v4101 = vadd.f32 0.0, %v4100
  %v4102 = vpop.f32.mrf.mxu0
  %4103 = vdwg.mxu0
  %4104 = vmatpush.bf16.msra.mxu0 %v3597
  %4105 = vmatpush.bf16.msra.mxu0 %v3589
  %4106 = vmatpush.bf16.msra.mxu0 %v3581
  %4107 = vmatpush.bf16.msra.mxu0 %v3573
  %4108 = vmatpush.bf16.msra.mxu0 %v3565
  %4109 = vmatpush.bf16.msra.mxu0 %v3557
  %4110 = vmatpush.bf16.msra.mxu0 %v3549
  %4111 = vmatpush.bf16.msra.mxu0 %v3541
  %4112 = vmatmul.bf16.gmra.mxu0 %v2448
  %v4113 = vpop.f32.mrf.mxu0
  %v4114 = vadd.f32 %v4101, %v4113
  %v4115 = vpop.f32.mrf.mxu0
  %4116 = vdwg.mxu0
  %4117 = vmatpush.bf16.msra.mxu0 %v3661
  %4118 = vmatpush.bf16.msra.mxu0 %v3653
  %4119 = vmatpush.bf16.msra.mxu0 %v3645
  %4120 = vmatpush.bf16.msra.mxu0 %v3637
  %4121 = vmatpush.bf16.msra.mxu0 %v3629
  %4122 = vmatpush.bf16.msra.mxu0 %v3621
  %4123 = vmatpush.bf16.msra.mxu0 %v3613
  %4124 = vmatpush.bf16.msra.mxu0 %v3605
  %4125 = vmatmul.bf16.gmra.mxu0 %v2449
  %v4126 = vpop.f32.mrf.mxu0
  %v4127 = vadd.f32 %v4114, %v4126
  %v4128 = vpop.f32.mrf.mxu0
  %4129 = vdwg.mxu0
  %4130 = vmatpush.bf16.msra.mxu0 %v3725
  %4131 = vmatpush.bf16.msra.mxu0 %v3717
  %4132 = vmatpush.bf16.msra.mxu0 %v3709
  %4133 = vmatpush.bf16.msra.mxu0 %v3701
  %4134 = vmatpush.bf16.msra.mxu0 %v3693
  %4135 = vmatpush.bf16.msra.mxu0 %v3685
  %4136 = vmatpush.bf16.msra.mxu0 %v3677
  %4137 = vmatpush.bf16.msra.mxu0 %v3669
  %4138 = vmatmul.bf16.gmra.mxu0 %v2450
  %v4139 = vpop.f32.mrf.mxu0
  %v4140 = vadd.f32 %v4127, %v4139
  %v4141 = vpop.f32.mrf.mxu0
  %4142 = vdwg.mxu0
  %4143 = vmatpush.bf16.msra.mxu0 %v3534
  %4144 = vmatpush.bf16.msra.mxu0 %v3526
  %4145 = vmatpush.bf16.msra.mxu0 %v3518
  %4146 = vmatpush.bf16.msra.mxu0 %v3510
  %4147 = vmatpush.bf16.msra.mxu0 %v3502
  %4148 = vmatpush.bf16.msra.mxu0 %v3494
  %4149 = vmatpush.bf16.msra.mxu0 %v3486
  %4150 = vmatpush.bf16.msra.mxu0 %v3478
  %4151 = vmatmul.bf16.gmra.mxu0 %v2447
  %v4152 = vpop.f32.mrf.mxu0
  %v4153 = vadd.f32 0.0, %v4152
  %v4154 = vpop.f32.mrf.mxu0
  %4155 = vdwg.mxu0
  %4156 = vmatpush.bf16.msra.mxu0 %v3598
  %4157 = vmatpush.bf16.msra.mxu0 %v3590
  %4158 = vmatpush.bf16.msra.mxu0 %v3582
  %4159 = vmatpush.bf16.msra.mxu0 %v3574
  %4160 = vmatpush.bf16.msra.mxu0 %v3566
  %4161 = vmatpush.bf16.msra.mxu0 %v3558
  %4162 = vmatpush.bf16.msra.mxu0 %v3550
  %4163 = vmatpush.bf16.msra.mxu0 %v3542
  %4164 = vmatmul.bf16.gmra.mxu0 %v2448
  %v4165 = vpop.f32.mrf.mxu0
  %v4166 = vadd.f32 %v4153, %v4165
  %v4167 = vpop.f32.mrf.mxu0
  %4168 = vdwg.mxu0
  %4169 = vmatpush.bf16.msra.mxu0 %v3662
  %4170 = vmatpush.bf16.msra.mxu0 %v3654
  %4171 = vmatpush.bf16.msra.mxu0 %v3646
  %4172 = vmatpush.bf16.msra.mxu0 %v3638
  %4173 = vmatpush.bf16.msra.mxu0 %v3630
  %4174 = vmatpush.bf16.msra.mxu0 %v3622
  %4175 = vmatpush.bf16.msra.mxu0 %v3614
  %4176 = vmatpush.bf16.msra.mxu0 %v3606
  %4177 = vmatmul.bf16.gmra.mxu0 %v2449
  %v4178 = vpop.f32.mrf.mxu0
  %v4179 = vadd.f32 %v4166, %v4178
  %v4180 = vpop.f32.mrf.mxu0
  %4181 = vdwg.mxu0
  %4182 = vmatpush.bf16.msra.mxu0 %v3726
  %4183 = vmatpush.bf16.msra.mxu0 %v3718
  %4184 = vmatpush.bf16.msra.mxu0 %v3710
  %4185 = vmatpush.bf16.msra.mxu0 %v3702
  %4186 = vmatpush.bf16.msra.mxu0 %v3694
  %4187 = vmatpush.bf16.msra.mxu0 %v3686
  %4188 = vmatpush.bf16.msra.mxu0 %v3678
  %4189 = vmatpush.bf16.msra.mxu0 %v3670
  %4190 = vmatmul.bf16.gmra.mxu0 %v2450
  %v4191 = vpop.f32.mrf.mxu0
  %v4192 = vadd.f32 %v4179, %v4191
  %v4193 = vpop.f32.mrf.mxu0
  %4194 = vdwg.mxu0
  %4195 = vmatpush.bf16.msra.mxu0 %v3535
  %4196 = vmatpush.bf16.msra.mxu0 %v3527
  %4197 = vmatpush.bf16.msra.mxu0 %v3519
  %4198 = vmatpush.bf16.msra.mxu0 %v3511
  %4199 = vmatpush.bf16.msra.mxu0 %v3503
  %4200 = vmatpush.bf16.msra.mxu0 %v3495
  %4201 = vmatpush.bf16.msra.mxu0 %v3487
  %4202 = vmatpush.bf16.msra.mxu0 %v3479
  %4203 = vmatmul.bf16.gmra.mxu0 %v2447
  %v4204 = vpop.f32.mrf.mxu0
  %v4205 = vadd.f32 0.0, %v4204
  %v4206 = vpop.f32.mrf.mxu0
  %4207 = vdwg.mxu0
  %4208 = vmatpush.bf16.msra.mxu0 %v3599
  %4209 = vmatpush.bf16.msra.mxu0 %v3591
  %4210 = vmatpush.bf16.msra.mxu0 %v3583
  %4211 = vmatpush.bf16.msra.mxu0 %v3575
  %4212 = vmatpush.bf16.msra.mxu0 %v3567
  %4213 = vmatpush.bf16.msra.mxu0 %v3559
  %4214 = vmatpush.bf16.msra.mxu0 %v3551
  %4215 = vmatpush.bf16.msra.mxu0 %v3543
  %4216 = vmatmul.bf16.gmra.mxu0 %v2448
  %v4217 = vpop.f32.mrf.mxu0
  %v4218 = vadd.f32 %v4205, %v4217
  %v4219 = vpop.f32.mrf.mxu0
  %4220 = vdwg.mxu0
  %4221 = vmatpush.bf16.msra.mxu0 %v3663
  %4222 = vmatpush.bf16.msra.mxu0 %v3655
  %4223 = vmatpush.bf16.msra.mxu0 %v3647
  %4224 = vmatpush.bf16.msra.mxu0 %v3639
  %4225 = vmatpush.bf16.msra.mxu0 %v3631
  %4226 = vmatpush.bf16.msra.mxu0 %v3623
  %4227 = vmatpush.bf16.msra.mxu0 %v3615
  %4228 = vmatpush.bf16.msra.mxu0 %v3607
  %4229 = vmatmul.bf16.gmra.mxu0 %v2449
  %v4230 = vpop.f32.mrf.mxu0
  %v4231 = vadd.f32 %v4218, %v4230
  %v4232 = vpop.f32.mrf.mxu0
  %4233 = vdwg.mxu0
  %4234 = vmatpush.bf16.msra.mxu0 %v3727
  %4235 = vmatpush.bf16.msra.mxu0 %v3719
  %4236 = vmatpush.bf16.msra.mxu0 %v3711
  %4237 = vmatpush.bf16.msra.mxu0 %v3703
  %4238 = vmatpush.bf16.msra.mxu0 %v3695
  %4239 = vmatpush.bf16.msra.mxu0 %v3687
  %4240 = vmatpush.bf16.msra.mxu0 %v3679
  %4241 = vmatpush.bf16.msra.mxu0 %v3671
  %4242 = vmatmul.bf16.gmra.mxu0 %v2450
  %v4243 = vpop.f32.mrf.mxu0
  %v4244 = vadd.f32 %v4231, %v4243
  %v4245 = vpop.f32.mrf.mxu0
  %4246 = vdwg.mxu0
  %4247 = vmatpush.bf16.msra.mxu0 %v3536
  %4248 = vmatpush.bf16.msra.mxu0 %v3528
  %4249 = vmatpush.bf16.msra.mxu0 %v3520
  %4250 = vmatpush.bf16.msra.mxu0 %v3512
  %4251 = vmatpush.bf16.msra.mxu0 %v3504
  %4252 = vmatpush.bf16.msra.mxu0 %v3496
  %4253 = vmatpush.bf16.msra.mxu0 %v3488
  %4254 = vmatpush.bf16.msra.mxu0 %v3480
  %4255 = vmatmul.bf16.gmra.mxu0 %v2447
  %v4256 = vpop.f32.mrf.mxu0
  %v4257 = vadd.f32 0.0, %v4256
  %v4258 = vpop.f32.mrf.mxu0
  %4259 = vdwg.mxu0
  %4260 = vmatpush.bf16.msra.mxu0 %v3600
  %4261 = vmatpush.bf16.msra.mxu0 %v3592
  %4262 = vmatpush.bf16.msra.mxu0 %v3584
  %4263 = vmatpush.bf16.msra.mxu0 %v3576
  %4264 = vmatpush.bf16.msra.mxu0 %v3568
  %4265 = vmatpush.bf16.msra.mxu0 %v3560
  %4266 = vmatpush.bf16.msra.mxu0 %v3552
  %4267 = vmatpush.bf16.msra.mxu0 %v3544
  %4268 = vmatmul.bf16.gmra.mxu0 %v2448
  %v4269 = vpop.f32.mrf.mxu0
  %v4270 = vadd.f32 %v4257, %v4269
  %v4271 = vpop.f32.mrf.mxu0
  %4272 = vdwg.mxu0
  %4273 = vmatpush.bf16.msra.mxu0 %v3664
  %4274 = vmatpush.bf16.msra.mxu0 %v3656
  %4275 = vmatpush.bf16.msra.mxu0 %v3648
  %4276 = vmatpush.bf16.msra.mxu0 %v3640
  %4277 = vmatpush.bf16.msra.mxu0 %v3632
  %4278 = vmatpush.bf16.msra.mxu0 %v3624
  %4279 = vmatpush.bf16.msra.mxu0 %v3616
  %4280 = vmatpush.bf16.msra.mxu0 %v3608
  %4281 = vmatmul.bf16.gmra.mxu0 %v2449
  %v4282 = vpop.f32.mrf.mxu0
  %v4283 = vadd.f32 %v4270, %v4282
  %v4284 = vpop.f32.mrf.mxu0
  %4285 = vdwg.mxu0
  %4286 = vmatpush.bf16.msra.mxu0 %v3728
  %4287 = vmatpush.bf16.msra.mxu0 %v3720
  %4288 = vmatpush.bf16.msra.mxu0 %v3712
  %4289 = vmatpush.bf16.msra.mxu0 %v3704
  %4290 = vmatpush.bf16.msra.mxu0 %v3696
  %4291 = vmatpush.bf16.msra.mxu0 %v3688
  %4292 = vmatpush.bf16.msra.mxu0 %v3680
  %4293 = vmatpush.bf16.msra.mxu0 %v3672
  %4294 = vmatmul.bf16.gmra.mxu0 %v2450
  %v4295 = vpop.f32.mrf.mxu0
  %v4296 = vadd.f32 %v4283, %v4295
  %v4297 = vpop.f32.mrf.mxu0
  %4298 = vdwg.mxu0
  %4299 = vmatpush.bf16.msra.mxu0 %v3537
  %4300 = vmatpush.bf16.msra.mxu0 %v3529
  %4301 = vmatpush.bf16.msra.mxu0 %v3521
  %4302 = vmatpush.bf16.msra.mxu0 %v3513
  %4303 = vmatpush.bf16.msra.mxu0 %v3505
  %4304 = vmatpush.bf16.msra.mxu0 %v3497
  %4305 = vmatpush.bf16.msra.mxu0 %v3489
  %4306 = vmatpush.bf16.msra.mxu0 %v3481
  %4307 = vmatmul.bf16.gmra.mxu0 %v2447
  %v4308 = vpop.f32.mrf.mxu0
  %v4309 = vadd.f32 0.0, %v4308
  %v4310 = vpop.f32.mrf.mxu0
  %4311 = vdwg.mxu0
  %4312 = vmatpush.bf16.msra.mxu0 %v3601
  %4313 = vmatpush.bf16.msra.mxu0 %v3593
  %4314 = vmatpush.bf16.msra.mxu0 %v3585
  %4315 = vmatpush.bf16.msra.mxu0 %v3577
  %4316 = vmatpush.bf16.msra.mxu0 %v3569
  %4317 = vmatpush.bf16.msra.mxu0 %v3561
  %4318 = vmatpush.bf16.msra.mxu0 %v3553
  %4319 = vmatpush.bf16.msra.mxu0 %v3545
  %4320 = vmatmul.bf16.gmra.mxu0 %v2448
  %v4321 = vpop.f32.mrf.mxu0
  %v4322 = vadd.f32 %v4309, %v4321
  %v4323 = vpop.f32.mrf.mxu0
  %4324 = vdwg.mxu0
  %4325 = vmatpush.bf16.msra.mxu0 %v3665
  %4326 = vmatpush.bf16.msra.mxu0 %v3657
  %4327 = vmatpush.bf16.msra.mxu0 %v3649
  %4328 = vmatpush.bf16.msra.mxu0 %v3641
  %4329 = vmatpush.bf16.msra.mxu0 %v3633
  %4330 = vmatpush.bf16.msra.mxu0 %v3625
  %4331 = vmatpush.bf16.msra.mxu0 %v3617
  %4332 = vmatpush.bf16.msra.mxu0 %v3609
  %4333 = vmatmul.bf16.gmra.mxu0 %v2449
  %v4334 = vpop.f32.mrf.mxu0
  %v4335 = vadd.f32 %v4322, %v4334
  %v4336 = vpop.f32.mrf.mxu0
  %4337 = vdwg.mxu0
  %4338 = vmatpush.bf16.msra.mxu0 %v3729
  %4339 = vmatpush.bf16.msra.mxu0 %v3721
  %4340 = vmatpush.bf16.msra.mxu0 %v3713
  %4341 = vmatpush.bf16.msra.mxu0 %v3705
  %4342 = vmatpush.bf16.msra.mxu0 %v3697
  %4343 = vmatpush.bf16.msra.mxu0 %v3689
  %4344 = vmatpush.bf16.msra.mxu0 %v3681
  %4345 = vmatpush.bf16.msra.mxu0 %v3673
  %4346 = vmatmul.bf16.gmra.mxu0 %v2450
  %v4347 = vpop.f32.mrf.mxu0
  %v4348 = vadd.f32 %v4335, %v4347
  %v4349 = vpop.f32.mrf.mxu0
  %4350 = vdwg.mxu0
  %4351 = vmatpush.bf16.msra.mxu0 %v3538
  %4352 = vmatpush.bf16.msra.mxu0 %v3530
  %4353 = vmatpush.bf16.msra.mxu0 %v3522
  %4354 = vmatpush.bf16.msra.mxu0 %v3514
  %4355 = vmatpush.bf16.msra.mxu0 %v3506
  %4356 = vmatpush.bf16.msra.mxu0 %v3498
  %4357 = vmatpush.bf16.msra.mxu0 %v3490
  %4358 = vmatpush.bf16.msra.mxu0 %v3482
  %4359 = vmatmul.bf16.gmra.mxu0 %v2447
  %v4360 = vpop.f32.mrf.mxu0
  %v4361 = vadd.f32 0.0, %v4360
  %v4362 = vpop.f32.mrf.mxu0
  %4363 = vdwg.mxu0
  %4364 = vmatpush.bf16.msra.mxu0 %v3602
  %4365 = vmatpush.bf16.msra.mxu0 %v3594
  %4366 = vmatpush.bf16.msra.mxu0 %v3586
  %4367 = vmatpush.bf16.msra.mxu0 %v3578
  %4368 = vmatpush.bf16.msra.mxu0 %v3570
  %4369 = vmatpush.bf16.msra.mxu0 %v3562
  %4370 = vmatpush.bf16.msra.mxu0 %v3554
  %4371 = vmatpush.bf16.msra.mxu0 %v3546
  %4372 = vmatmul.bf16.gmra.mxu0 %v2448
  %v4373 = vpop.f32.mrf.mxu0
  %v4374 = vadd.f32 %v4361, %v4373
  %v4375 = vpop.f32.mrf.mxu0
  %4376 = vdwg.mxu0
  %4377 = vmatpush.bf16.msra.mxu0 %v3666
  %4378 = vmatpush.bf16.msra.mxu0 %v3658
  %4379 = vmatpush.bf16.msra.mxu0 %v3650
  %4380 = vmatpush.bf16.msra.mxu0 %v3642
  %4381 = vmatpush.bf16.msra.mxu0 %v3634
  %4382 = vmatpush.bf16.msra.mxu0 %v3626
  %4383 = vmatpush.bf16.msra.mxu0 %v3618
  %4384 = vmatpush.bf16.msra.mxu0 %v3610
  %4385 = vmatmul.bf16.gmra.mxu0 %v2449
  %v4386 = vpop.f32.mrf.mxu0
  %v4387 = vadd.f32 %v4374, %v4386
  %v4388 = vpop.f32.mrf.mxu0
  %4389 = vdwg.mxu0
  %4390 = vmatpush.bf16.msra.mxu0 %v3730
  %4391 = vmatpush.bf16.msra.mxu0 %v3722
  %4392 = vmatpush.bf16.msra.mxu0 %v3714
  %4393 = vmatpush.bf16.msra.mxu0 %v3706
  %4394 = vmatpush.bf16.msra.mxu0 %v3698
  %4395 = vmatpush.bf16.msra.mxu0 %v3690
  %4396 = vmatpush.bf16.msra.mxu0 %v3682
  %4397 = vmatpush.bf16.msra.mxu0 %v3674
  %4398 = vmatmul.bf16.gmra.mxu0 %v2450
  %v4399 = vpop.f32.mrf.mxu0
  %v4400 = vadd.f32 %v4387, %v4399
  %v4401 = vpop.f32.mrf.mxu0
  %4402 = vdwg.mxu0
  %v4403 = vrot.slane %v4036, 4
  %v4404 = vadd.f32 %v4036, %v4403
  %v4405 = vrot.slane %v4404, 2
  %v4406 = vadd.f32 %v4404, %v4405
  %v4407 = vrot.slane %v4406, 1
  %v4408 = vadd.f32 %v4406, %v4407
  %v4409 = vrot.slane %v4088, 4
  %v4410 = vadd.f32 %v4088, %v4409
  %v4411 = vrot.slane %v4410, 2
  %v4412 = vadd.f32 %v4410, %v4411
  %v4413 = vrot.slane %v4412, 1
  %v4414 = vadd.f32 %v4412, %v4413
  %v4415 = vrot.slane %v4140, 4
  %v4416 = vadd.f32 %v4140, %v4415
  %v4417 = vrot.slane %v4416, 2
  %v4418 = vadd.f32 %v4416, %v4417
  %v4419 = vrot.slane %v4418, 1
  %v4420 = vadd.f32 %v4418, %v4419
  %v4421 = vrot.slane %v4192, 4
  %v4422 = vadd.f32 %v4192, %v4421
  %v4423 = vrot.slane %v4422, 2
  %v4424 = vadd.f32 %v4422, %v4423
  %v4425 = vrot.slane %v4424, 1
  %v4426 = vadd.f32 %v4424, %v4425
  %v4427 = vrot.slane %v4244, 4
  %v4428 = vadd.f32 %v4244, %v4427
  %v4429 = vrot.slane %v4428, 2
  %v4430 = vadd.f32 %v4428, %v4429
  %v4431 = vrot.slane %v4430, 1
  %v4432 = vadd.f32 %v4430, %v4431
  %v4433 = vrot.slane %v4296, 4
  %v4434 = vadd.f32 %v4296, %v4433
  %v4435 = vrot.slane %v4434, 2
  %v4436 = vadd.f32 %v4434, %v4435
  %v4437 = vrot.slane %v4436, 1
  %v4438 = vadd.f32 %v4436, %v4437
  %v4439 = vrot.slane %v4348, 4
  %v4440 = vadd.f32 %v4348, %v4439
  %v4441 = vrot.slane %v4440, 2
  %v4442 = vadd.f32 %v4440, %v4441
  %v4443 = vrot.slane %v4442, 1
  %v4444 = vadd.f32 %v4442, %v4443
  %v4445 = vrot.slane %v4400, 4
  %v4446 = vadd.f32 %v4400, %v4445
  %v4447 = vrot.slane %v4446, 2
  %v4448 = vadd.f32 %v4446, %v4447
  %v4449 = vrot.slane %v4448, 1
  %v4450 = vadd.f32 %v4448, %v4449
  %v4451 = vmul.f32 %v4408, %v1705
  %v4452 = vmul.f32 %v4414, %v1705
  %v4453 = vmul.f32 %v4420, %v1705
  %v4454 = vmul.f32 %v4426, %v1705
  %v4455 = vmul.f32 %v4432, %v1705
  %v4456 = vmul.f32 %v4438, %v1705
  %v4457 = vmul.f32 %v4444, %v1705
  %v4458 = vmul.f32 %v4450, %v1705
  %v4459 = vsub.f32 %v4036, %v4451
  %v4460 = vsub.f32 %v4088, %v4452
  %v4461 = vsub.f32 %v4140, %v4453
  %v4462 = vsub.f32 %v4192, %v4454
  %v4463 = vsub.f32 %v4244, %v4455
  %v4464 = vsub.f32 %v4296, %v4456
  %v4465 = vsub.f32 %v4348, %v4457
  %v4466 = vsub.f32 %v4400, %v4458
  %v4467 = vmul.f32 %v4459, %v4459
  %v4468 = vmul.f32 %v4460, %v4460
  %v4469 = vmul.f32 %v4461, %v4461
  %v4470 = vmul.f32 %v4462, %v4462
  %v4471 = vmul.f32 %v4463, %v4463
  %v4472 = vmul.f32 %v4464, %v4464
  %v4473 = vmul.f32 %v4465, %v4465
  %v4474 = vmul.f32 %v4466, %v4466
  %v4475 = vrot.slane %v4467, 4
  %v4476 = vadd.f32 %v4467, %v4475
  %v4477 = vrot.slane %v4476, 2
  %v4478 = vadd.f32 %v4476, %v4477
  %v4479 = vrot.slane %v4478, 1
  %v4480 = vadd.f32 %v4478, %v4479
  %v4481 = vrot.slane %v4468, 4
  %v4482 = vadd.f32 %v4468, %v4481
  %v4483 = vrot.slane %v4482, 2
  %v4484 = vadd.f32 %v4482, %v4483
  %v4485 = vrot.slane %v4484, 1
  %v4486 = vadd.f32 %v4484, %v4485
  %v4487 = vrot.slane %v4469, 4
  %v4488 = vadd.f32 %v4469, %v4487
  %v4489 = vrot.slane %v4488, 2
  %v4490 = vadd.f32 %v4488, %v4489
  %v4491 = vrot.slane %v4490, 1
  %v4492 = vadd.f32 %v4490, %v4491
  %v4493 = vrot.slane %v4470, 4
  %v4494 = vadd.f32 %v4470, %v4493
  %v4495 = vrot.slane %v4494, 2
  %v4496 = vadd.f32 %v4494, %v4495
  %v4497 = vrot.slane %v4496, 1
  %v4498 = vadd.f32 %v4496, %v4497
  %v4499 = vrot.slane %v4471, 4
  %v4500 = vadd.f32 %v4471, %v4499
  %v4501 = vrot.slane %v4500, 2
  %v4502 = vadd.f32 %v4500, %v4501
  %v4503 = vrot.slane %v4502, 1
  %v4504 = vadd.f32 %v4502, %v4503
  %v4505 = vrot.slane %v4472, 4
  %v4506 = vadd.f32 %v4472, %v4505
  %v4507 = vrot.slane %v4506, 2
  %v4508 = vadd.f32 %v4506, %v4507
  %v4509 = vrot.slane %v4508, 1
  %v4510 = vadd.f32 %v4508, %v4509
  %v4511 = vrot.slane %v4473, 4
  %v4512 = vadd.f32 %v4473, %v4511
  %v4513 = vrot.slane %v4512, 2
  %v4514 = vadd.f32 %v4512, %v4513
  %v4515 = vrot.slane %v4514, 1
  %v4516 = vadd.f32 %v4514, %v4515
  %v4517 = vrot.slane %v4474, 4
  %v4518 = vadd.f32 %v4474, %v4517
  %v4519 = vrot.slane %v4518, 2
  %v4520 = vadd.f32 %v4518, %v4519
  %v4521 = vrot.slane %v4520, 1
  %v4522 = vadd.f32 %v4520, %v4521
  %v4523 = vmul.f32 %v4480, %v1705
  %v4524 = vmul.f32 %v4486, %v1705
  %v4525 = vmul.f32 %v4492, %v1705
  %v4526 = vmul.f32 %v4498, %v1705
  %v4527 = vmul.f32 %v4504, %v1705
  %v4528 = vmul.f32 %v4510, %v1705
  %v4529 = vmul.f32 %v4516, %v1705
  %v4530 = vmul.f32 %v4522, %v1705
  %v4531 = vadd.f32 %v4523, 0.8
  %v4532 = vadd.f32 %v4524, 0.8
  %v4533 = vadd.f32 %v4525, 0.8
  %v4534 = vadd.f32 %v4526, 0.8
  %v4535 = vadd.f32 %v4527, 0.8
  %v4536 = vadd.f32 %v4528, 0.8
  %v4537 = vadd.f32 %v4529, 0.8
  %v4538 = vadd.f32 %v4530, 0.8
  %v4539 = vrsqrt.pop %v4531
  %v4540 = vmul.f32 %v4539, %v4531
  %v4541 = vmul.f32 %v4540, %v4539
  %v4542 = vmul.f32 0.5, %v4541
  %v4543 = vsub.f32 1.5, %v4542
  %v4544 = vmul.f32 %v4539, %v4543
  %vm4545 = vweird.f32 %v4531
  %vm4546 = vweird.f32 %v4539
  %vm4547 = vmor %vm4545, %vm4546
  %v4548 = vsel %vm4547, %v4539, %v4544
  %v4549 = vrsqrt.pop %v4532
  %v4550 = vmul.f32 %v4549, %v4532
  %v4551 = vmul.f32 %v4550, %v4549
  %v4552 = vmul.f32 0.5, %v4551
  %v4553 = vsub.f32 1.5, %v4552
  %v4554 = vmul.f32 %v4549, %v4553
  %vm4555 = vweird.f32 %v4532
  %vm4556 = vweird.f32 %v4549
  %vm4557 = vmor %vm4555, %vm4556
  %v4558 = vsel %vm4557, %v4549, %v4554
  %v4559 = vrsqrt.pop %v4533
  %v4560 = vmul.f32 %v4559, %v4533
  %v4561 = vmul.f32 %v4560, %v4559
  %v4562 = vmul.f32 0.5, %v4561
  %v4563 = vsub.f32 1.5, %v4562
  %v4564 = vmul.f32 %v4559, %v4563
  %vm4565 = vweird.f32 %v4533
  %vm4566 = vweird.f32 %v4559
  %vm4567 = vmor %vm4565, %vm4566
  %v4568 = vsel %vm4567, %v4559, %v4564
  %v4569 = vrsqrt.pop %v4534
  %v4570 = vmul.f32 %v4569, %v4534
  %v4571 = vmul.f32 %v4570, %v4569
  %v4572 = vmul.f32 0.5, %v4571
  %v4573 = vsub.f32 1.5, %v4572
  %v4574 = vmul.f32 %v4569, %v4573
  %vm4575 = vweird.f32 %v4534
  %vm4576 = vweird.f32 %v4569
  %vm4577 = vmor %vm4575, %vm4576
  %v4578 = vsel %vm4577, %v4569, %v4574
  %v4579 = vrsqrt.pop %v4535
  %v4580 = vmul.f32 %v4579, %v4535
  %v4581 = vmul.f32 %v4580, %v4579
  %v4582 = vmul.f32 0.5, %v4581
  %v4583 = vsub.f32 1.5, %v4582
  %v4584 = vmul.f32 %v4579, %v4583
  %vm4585 = vweird.f32 %v4535
  %vm4586 = vweird.f32 %v4579
  %vm4587 = vmor %vm4585, %vm4586
  %v4588 = vsel %vm4587, %v4579, %v4584
  %v4589 = vrsqrt.pop %v4536
  %v4590 = vmul.f32 %v4589, %v4536
  %v4591 = vmul.f32 %v4590, %v4589
  %v4592 = vmul.f32 0.5, %v4591
  %v4593 = vsub.f32 1.5, %v4592
  %v4594 = vmul.f32 %v4589, %v4593
  %vm4595 = vweird.f32 %v4536
  %vm4596 = vweird.f32 %v4589
  %vm4597 = vmor %vm4595, %vm4596
  %v4598 = vsel %vm4597, %v4589, %v4594
  %v4599 = vrsqrt.pop %v4537
  %v4600 = vmul.f32 %v4599, %v4537
  %v4601 = vmul.f32 %v4600, %v4599
  %v4602 = vmul.f32 0.5, %v4601
  %v4603 = vsub.f32 1.5, %v4602
  %v4604 = vmul.f32 %v4599, %v4603
  %vm4605 = vweird.f32 %v4537
  %vm4606 = vweird.f32 %v4599
  %vm4607 = vmor %vm4605, %vm4606
  %v4608 = vsel %vm4607, %v4599, %v4604
  %v4609 = vrsqrt.pop %v4538
  %v4610 = vmul.f32 %v4609, %v4538
  %v4611 = vmul.f32 %v4610, %v4609
  %v4612 = vmul.f32 0.5, %v4611
  %v4613 = vsub.f32 1.5, %v4612
  %v4614 = vmul.f32 %v4609, %v4613
  %vm4615 = vweird.f32 %v4538
  %vm4616 = vweird.f32 %v4609
  %vm4617 = vmor %vm4615, %vm4616
  %v4618 = vsel %vm4617, %v4609, %v4614
  %v4627 = vrot.slane %v4558, 7
  %v4628 = vrot.slane %v4568, 6
  %v4629 = vrot.slane %v4578, 5
  %v4630 = vrot.slane %v4588, 4
  %v4631 = vrot.slane %v4598, 3
  %v4632 = vrot.slane %v4608, 2
  %v4633 = vrot.slane %v4618, 1
  %v4634 = vsel %vm1751, %v4548, %v4627
  %v4635 = vsel %vm2387, %v4628, %v4629
  %v4636 = vsel %vm2389, %v4634, %v4635
  %vm4637 = vcmask 1044484
  %v4638 = vsel %vm4637, %v4630, %v4631
  %vm4639 = vcmask 1046534
  %v4640 = vsel %vm4639, %v4632, %v4633
  %vm4641 = vcmask 1045508
  %v4642 = vsel %vm4641, %v4638, %v4640
  %vm4643 = vcmask 1043456
  %v4644 = vsel %vm4643, %v4636, %v4642
  %v4646 = vmul.f32 %v1473, %v4644
  %v4648 = vperm.slane %v4646, 0
  %v4649 = vperm.slane %v4646, 1
  %v4650 = vperm.slane %v4646, 2
  %v4651 = vperm.slane %v4646, 3
  %v4652 = vperm.slane %v4646, 4
  %v4653 = vperm.slane %v4646, 5
  %v4654 = vperm.slane %v4646, 6
  %v4655 = vperm.slane %v4646, 7
  %v4664 = vmul.f32 %v4451, %v4648
  %v4665 = vmul.f32 %v4452, %v4649
  %v4666 = vmul.f32 %v4453, %v4650
  %v4667 = vmul.f32 %v4454, %v4651
  %v4668 = vmul.f32 %v4455, %v4652
  %v4669 = vmul.f32 %v4456, %v4653
  %v4670 = vmul.f32 %v4457, %v4654
  %v4671 = vmul.f32 %v4458, %v4655
  %v4680 = vrot.slane %v4665, 7
  %v4681 = vrot.slane %v4666, 6
  %v4682 = vrot.slane %v4667, 5
  %v4683 = vrot.slane %v4668, 4
  %v4684 = vrot.slane %v4669, 3
  %v4685 = vrot.slane %v4670, 2
  %v4686 = vrot.slane %v4671, 1
  %v4687 = vsel %vm1751, %v4664, %v4680
  %v4688 = vsel %vm2387, %v4681, %v4682
  %v4689 = vsel %vm2389, %v4687, %v4688
  %v4690 = vsel %vm4637, %v4683, %v4684
  %v4691 = vsel %vm4639, %v4685, %v4686
  %v4692 = vsel %vm4641, %v4690, %v4691
  %v4693 = vsel %vm4643, %v4689, %v4692
  %v4695 = vsub.f32 %v1475, %v4693
  %v4696 = vmul.f32 %v4036, %v4648
  %v4697 = vmul.f32 %v4088, %v4649
  %v4698 = vmul.f32 %v4140, %v4650
  %v4699 = vmul.f32 %v4192, %v4651
  %v4700 = vmul.f32 %v4244, %v4652
  %v4701 = vmul.f32 %v4296, %v4653
  %v4702 = vmul.f32 %v4348, %v4654
  %v4703 = vmul.f32 %v4400, %v4655
  %v4705 = vperm.slane %v4695, 0
  %v4706 = vperm.slane %v4695, 1
  %v4707 = vperm.slane %v4695, 2
  %v4708 = vperm.slane %v4695, 3
  %v4709 = vperm.slane %v4695, 4
  %v4710 = vperm.slane %v4695, 5
  %v4711 = vperm.slane %v4695, 6
  %v4712 = vperm.slane %v4695, 7
  %v4721 = vadd.f32 %v4696, %v4705
  %v4722 = vadd.f32 %v4697, %v4706
  %v4723 = vadd.f32 %v4698, %v4707
  %v4724 = vadd.f32 %v4699, %v4708
  %v4725 = vadd.f32 %v4700, %v4709
  %v4726 = vadd.f32 %v4701, %v4710
  %v4727 = vadd.f32 %v4702, %v4711
  %v4728 = vadd.f32 %v4703, %v4712
  %v4729 = vmul.f32 %v4721, 0.2
  %v4730 = vmul.f32 %v4722, 0.2
  %v4731 = vmul.f32 %v4723, 0.2
  %v4732 = vmul.f32 %v4724, 0.2
  %v4733 = vmul.f32 %v4725, 0.2
  %v4734 = vmul.f32 %v4726, 0.2
  %v4735 = vmul.f32 %v4727, 0.2
  %v4736 = vmul.f32 %v4728, 0.2
  %v4737 = vmax.f32 %v4721, %v4729
  %v4738 = vmax.f32 %v4722, %v4730
  %v4739 = vmax.f32 %v4723, %v4731
  %v4740 = vmax.f32 %v4724, %v4732
  %v4741 = vmax.f32 %v4725, %v4733
  %v4742 = vmax.f32 %v4726, %v4734
  %v4743 = vmax.f32 %v4727, %v4735
  %v4744 = vmax.f32 %v4728, %v4736
  %s4745 = smul.u32 4, 128
  %s4746 = smul.u32 %s4745, 7
  %s4747 = sshll.u32 %s4746, 4
  %4748 = dma.done %s550, %s4747
  %v4749 = vpack.c.bf16 %v4737, %v4737
  %v4750 = vpack.c.bf16 %v4738, %v4738
  %v4751 = vpack.c.bf16 %v4739, %v4739
  %v4752 = vpack.c.bf16 %v4740, %v4740
  %v4753 = vpack.c.bf16 %v4741, %v4741
  %v4754 = vpack.c.bf16 %v4742, %v4742
  %v4755 = vpack.c.bf16 %v4743, %v4743
  %v4756 = vpack.c.bf16 %v4744, %v4744
  %v4757 = vld [vmem:[#allocation3] sm:$0xff]
  %v4758 = vld [vmem:[#allocation3 + $0x8] sm:$0xff]
  %v4759 = vld [vmem:[#allocation3 + $0x10] sm:$0xff]
  %v4760 = vld [vmem:[#allocation3 + $0x18] sm:$0xf]
  %v4761 = vld [vmem:[#allocation3 + $0x1c] sm:$0xff]
  %v4762 = vld [vmem:[#allocation3 + $0x24] sm:$0xff]
  %v4763 = vld [vmem:[#allocation3 + $0x2c] sm:$0xff]
  %v4764 = vld [vmem:[#allocation3 + $0x34] sm:$0xf]
  %v4765 = vld [vmem:[#allocation3 + $0x38] sm:$0xff]
  %v4766 = vld [vmem:[#allocation3 + $0x40] sm:$0xff]
  %v4767 = vld [vmem:[#allocation3 + $0x48] sm:$0xff]
  %v4768 = vld [vmem:[#allocation3 + $0x50] sm:$0xf]
  %v4769 = vld [vmem:[#allocation3 + $0x54] sm:$0xff]
  %v4770 = vld [vmem:[#allocation3 + $0x5c] sm:$0xff]
  %v4771 = vld [vmem:[#allocation3 + $0x64] sm:$0xff]
  %v4772 = vld [vmem:[#allocation3 + $0x6c] sm:$0xf]
  %v4773 = vld [vmem:[#allocation3 + $0x70] sm:$0xff]
  %v4774 = vld [vmem:[#allocation3 + $0x78] sm:$0xff]
  %v4775 = vld [vmem:[#allocation3 + $0x80] sm:$0xff]
  %v4776 = vld [vmem:[#allocation3 + $0x88] sm:$0xf]
  %v4777 = vld [vmem:[#allocation3 + $0x8c] sm:$0xff]
  %v4778 = vld [vmem:[#allocation3 + $0x94] sm:$0xff]
  %v4779 = vld [vmem:[#allocation3 + $0x9c] sm:$0xff]
  %v4780 = vld [vmem:[#allocation3 + $0xa4] sm:$0xf]
  %v4781 = vld [vmem:[#allocation3 + $0xa8] sm:$0xff]
  %v4782 = vld [vmem:[#allocation3 + $0xb0] sm:$0xff]
  %v4783 = vld [vmem:[#allocation3 + $0xb8] sm:$0xff]
  %v4784 = vld [vmem:[#allocation3 + $0xc0] sm:$0xf]
  %v4785 = vld [vmem:[#allocation3 + $0xc4] sm:$0xff]
  %v4786 = vld [vmem:[#allocation3 + $0xcc] sm:$0xff]
  %v4787 = vld [vmem:[#allocation3 + $0xd4] sm:$0xff]
  %v4788 = vld [vmem:[#allocation3 + $0xdc] sm:$0xf]
  %v4789 = vld [vmem:[#allocation3 + $0xe0] sm:$0xff]
  %v4790 = vld [vmem:[#allocation3 + $0xe8] sm:$0xff]
  %v4791 = vld [vmem:[#allocation3 + $0xf0] sm:$0xff]
  %v4792 = vld [vmem:[#allocation3 + $0xf8] sm:$0xf]
  %v4793 = vld [vmem:[#allocation3 + $0xfc] sm:$0xff]
  %v4794 = vld [vmem:[#allocation3 + $0x104] sm:$0xff]
  %v4795 = vld [vmem:[#allocation3 + $0x10c] sm:$0xff]
  %v4796 = vld [vmem:[#allocation3 + $0x114] sm:$0xf]
  %v4797 = vld [vmem:[#allocation3 + $0x118] sm:$0xff]
  %v4798 = vld [vmem:[#allocation3 + $0x120] sm:$0xff]
  %v4799 = vld [vmem:[#allocation3 + $0x128] sm:$0xff]
  %v4800 = vld [vmem:[#allocation3 + $0x130] sm:$0xf]
  %v4801 = vld [vmem:[#allocation3 + $0x134] sm:$0xff]
  %v4802 = vld [vmem:[#allocation3 + $0x13c] sm:$0xff]
  %v4803 = vld [vmem:[#allocation3 + $0x144] sm:$0xff]
  %v4804 = vld [vmem:[#allocation3 + $0x14c] sm:$0xf]
  %v4805 = vld [vmem:[#allocation3 + $0x150] sm:$0xff]
  %v4806 = vld [vmem:[#allocation3 + $0x158] sm:$0xff]
  %v4807 = vld [vmem:[#allocation3 + $0x160] sm:$0xff]
  %v4808 = vld [vmem:[#allocation3 + $0x168] sm:$0xf]
  %v4809 = vld [vmem:[#allocation3 + $0x16c] sm:$0xff]
  %v4810 = vld [vmem:[#allocation3 + $0x174] sm:$0xff]
  %v4811 = vld [vmem:[#allocation3 + $0x17c] sm:$0xff]
  %v4812 = vld [vmem:[#allocation3 + $0x184] sm:$0xf]
  %v4813 = vld [vmem:[#allocation3 + $0x188] sm:$0xff]
  %v4814 = vld [vmem:[#allocation3 + $0x190] sm:$0xff]
  %v4815 = vld [vmem:[#allocation3 + $0x198] sm:$0xff]
  %v4816 = vld [vmem:[#allocation3 + $0x1a0] sm:$0xf]
  %v4817 = vld [vmem:[#allocation3 + $0x1a4] sm:$0xff]
  %v4818 = vld [vmem:[#allocation3 + $0x1ac] sm:$0xff]
  %v4819 = vld [vmem:[#allocation3 + $0x1b4] sm:$0xff]
  %v4820 = vld [vmem:[#allocation3 + $0x1bc] sm:$0xf]
  %v4821 = vld [vmem:[#allocation3 + $0x1c0] sm:$0xff]
  %v4822 = vld [vmem:[#allocation3 + $0x1c8] sm:$0xff]
  %v4823 = vld [vmem:[#allocation3 + $0x1d0] sm:$0xff]
  %v4824 = vld [vmem:[#allocation3 + $0x1d8] sm:$0xf]
  %v4825 = vld [vmem:[#allocation3 + $0x1dc] sm:$0xff]
  %v4826 = vld [vmem:[#allocation3 + $0x1e4] sm:$0xff]
  %v4827 = vld [vmem:[#allocation3 + $0x1ec] sm:$0xff]
  %v4828 = vld [vmem:[#allocation3 + $0x1f4] sm:$0xf]
  %v4829 = vld [vmem:[#allocation3 + $0x1f8] sm:$0xff]
  %v4830 = vld [vmem:[#allocation3 + $0x200] sm:$0xff]
  %v4831 = vld [vmem:[#allocation3 + $0x208] sm:$0xff]
  %v4832 = vld [vmem:[#allocation3 + $0x210] sm:$0xf]
  %v4833 = vld [vmem:[#allocation3 + $0x214] sm:$0xff]
  %v4834 = vld [vmem:[#allocation3 + $0x21c] sm:$0xff]
  %v4835 = vld [vmem:[#allocation3 + $0x224] sm:$0xff]
  %v4836 = vld [vmem:[#allocation3 + $0x22c] sm:$0xf]
  %v4837 = vld [vmem:[#allocation3 + $0x230] sm:$0xff]
  %v4838 = vld [vmem:[#allocation3 + $0x238] sm:$0xff]
  %v4839 = vld [vmem:[#allocation3 + $0x240] sm:$0xff]
  %v4840 = vld [vmem:[#allocation3 + $0x248] sm:$0xf]
  %v4841 = vld [vmem:[#allocation3 + $0x24c] sm:$0xff]
  %v4842 = vld [vmem:[#allocation3 + $0x254] sm:$0xff]
  %v4843 = vld [vmem:[#allocation3 + $0x25c] sm:$0xff]
  %v4844 = vld [vmem:[#allocation3 + $0x264] sm:$0xf]
  %v4845 = vld [vmem:[#allocation3 + $0x268] sm:$0xff]
  %v4846 = vld [vmem:[#allocation3 + $0x270] sm:$0xff]
  %v4847 = vld [vmem:[#allocation3 + $0x278] sm:$0xff]
  %v4848 = vld [vmem:[#allocation3 + $0x280] sm:$0xf]
  %v4849 = vld [vmem:[#allocation3 + $0x284] sm:$0xff]
  %v4850 = vld [vmem:[#allocation3 + $0x28c] sm:$0xff]
  %v4851 = vld [vmem:[#allocation3 + $0x294] sm:$0xff]
  %v4852 = vld [vmem:[#allocation3 + $0x29c] sm:$0xf]
  %v4853 = vld [vmem:[#allocation3 + $0x2a0] sm:$0xff]
  %v4854 = vld [vmem:[#allocation3 + $0x2a8] sm:$0xff]
  %v4855 = vld [vmem:[#allocation3 + $0x2b0] sm:$0xff]
  %v4856 = vld [vmem:[#allocation3 + $0x2b8] sm:$0xf]
  %v4857 = vld [vmem:[#allocation3 + $0x2bc] sm:$0xff]
  %v4858 = vld [vmem:[#allocation3 + $0x2c4] sm:$0xff]
  %v4859 = vld [vmem:[#allocation3 + $0x2cc] sm:$0xff]
  %v4860 = vld [vmem:[#allocation3 + $0x2d4] sm:$0xf]
  %v4861 = vld [vmem:[#allocation3 + $0x2d8] sm:$0xff]
  %v4862 = vld [vmem:[#allocation3 + $0x2e0] sm:$0xff]
  %v4863 = vld [vmem:[#allocation3 + $0x2e8] sm:$0xff]
  %v4864 = vld [vmem:[#allocation3 + $0x2f0] sm:$0xf]
  %v4865 = vld [vmem:[#allocation3 + $0x2f4] sm:$0xff]
  %v4866 = vld [vmem:[#allocation3 + $0x2fc] sm:$0xff]
  %v4867 = vld [vmem:[#allocation3 + $0x304] sm:$0xff]
  %v4868 = vld [vmem:[#allocation3 + $0x30c] sm:$0xf]
  %v4869 = vld [vmem:[#allocation3 + $0x310] sm:$0xff]
  %v4870 = vld [vmem:[#allocation3 + $0x318] sm:$0xff]
  %v4871 = vld [vmem:[#allocation3 + $0x320] sm:$0xff]
  %v4872 = vld [vmem:[#allocation3 + $0x328] sm:$0xf]
  %v4873 = vld [vmem:[#allocation3 + $0x32c] sm:$0xff]
  %v4874 = vld [vmem:[#allocation3 + $0x334] sm:$0xff]
  %v4875 = vld [vmem:[#allocation3 + $0x33c] sm:$0xff]
  %v4876 = vld [vmem:[#allocation3 + $0x344] sm:$0xf]
  %v4877 = vld [vmem:[#allocation3 + $0x348] sm:$0xff]
  %v4878 = vld [vmem:[#allocation3 + $0x350] sm:$0xff]
  %v4879 = vld [vmem:[#allocation3 + $0x358] sm:$0xff]
  %v4880 = vld [vmem:[#allocation3 + $0x360] sm:$0xf]
  %v4881 = vld [vmem:[#allocation3 + $0x364] sm:$0xff]
  %v4882 = vld [vmem:[#allocation3 + $0x36c] sm:$0xff]
  %v4883 = vld [vmem:[#allocation3 + $0x374] sm:$0xff]
  %v4884 = vld [vmem:[#allocation3 + $0x37c] sm:$0xf]
  %v4885 = vld [vmem:[#allocation3 + $0x380] sm:$0xff]
  %v4886 = vld [vmem:[#allocation3 + $0x388] sm:$0xff]
  %v4887 = vld [vmem:[#allocation3 + $0x390] sm:$0xff]
  %v4888 = vld [vmem:[#allocation3 + $0x398] sm:$0xf]
  %v4889 = vld [vmem:[#allocation3 + $0x39c] sm:$0xff]
  %v4890 = vld [vmem:[#allocation3 + $0x3a4] sm:$0xff]
  %v4891 = vld [vmem:[#allocation3 + $0x3ac] sm:$0xff]
  %v4892 = vld [vmem:[#allocation3 + $0x3b4] sm:$0xf]
  %v4893 = vld [vmem:[#allocation3 + $0x3b8] sm:$0xff]
  %v4894 = vld [vmem:[#allocation3 + $0x3c0] sm:$0xff]
  %v4895 = vld [vmem:[#allocation3 + $0x3c8] sm:$0xff]
  %v4896 = vld [vmem:[#allocation3 + $0x3d0] sm:$0xf]
  %v4897 = vld [vmem:[#allocation3 + $0x3d4] sm:$0xff]
  %v4898 = vld [vmem:[#allocation3 + $0x3dc] sm:$0xff]
  %v4899 = vld [vmem:[#allocation3 + $0x3e4] sm:$0xff]
  %v4900 = vld [vmem:[#allocation3 + $0x3ec] sm:$0xf]
  %v4901 = vld [vmem:[#allocation3 + $0x3f0] sm:$0xff]
  %v4902 = vld [vmem:[#allocation3 + $0x3f8] sm:$0xff]
  %v4903 = vld [vmem:[#allocation3 + $0x400] sm:$0xff]
  %v4904 = vld [vmem:[#allocation3 + $0x408] sm:$0xf]
  %v4905 = vld [vmem:[#allocation3 + $0x40c] sm:$0xff]
  %v4906 = vld [vmem:[#allocation3 + $0x414] sm:$0xff]
  %v4907 = vld [vmem:[#allocation3 + $0x41c] sm:$0xff]
  %v4908 = vld [vmem:[#allocation3 + $0x424] sm:$0xf]
  %v4909 = vld [vmem:[#allocation3 + $0x428] sm:$0xff]
  %v4910 = vld [vmem:[#allocation3 + $0x430] sm:$0xff]
  %v4911 = vld [vmem:[#allocation3 + $0x438] sm:$0xff]
  %v4912 = vld [vmem:[#allocation3 + $0x440] sm:$0xf]
  %v4913 = vld [vmem:[#allocation3 + $0x444] sm:$0xff]
  %v4914 = vld [vmem:[#allocation3 + $0x44c] sm:$0xff]
  %v4915 = vld [vmem:[#allocation3 + $0x454] sm:$0xff]
  %v4916 = vld [vmem:[#allocation3 + $0x45c] sm:$0xf]
  %v4917 = vld [vmem:[#allocation3 + $0x460] sm:$0xff]
  %v4918 = vld [vmem:[#allocation3 + $0x468] sm:$0xff]
  %v4919 = vld [vmem:[#allocation3 + $0x470] sm:$0xff]
  %v4920 = vld [vmem:[#allocation3 + $0x478] sm:$0xf]
  %v4921 = vld [vmem:[#allocation3 + $0x47c] sm:$0xff]
  %v4922 = vld [vmem:[#allocation3 + $0x484] sm:$0xff]
  %v4923 = vld [vmem:[#allocation3 + $0x48c] sm:$0xff]
  %v4924 = vld [vmem:[#allocation3 + $0x494] sm:$0xf]
  %v4925 = vld [vmem:[#allocation3 + $0x498] sm:$0xff]
  %v4926 = vld [vmem:[#allocation3 + $0x4a0] sm:$0xff]
  %v4927 = vld [vmem:[#allocation3 + $0x4a8] sm:$0xff]
  %v4928 = vld [vmem:[#allocation3 + $0x4b0] sm:$0xf]
  %v4929 = vld [vmem:[#allocation3 + $0x4b4] sm:$0xff]
  %v4930 = vld [vmem:[#allocation3 + $0x4bc] sm:$0xff]
  %v4931 = vld [vmem:[#allocation3 + $0x4c4] sm:$0xff]
  %v4932 = vld [vmem:[#allocation3 + $0x4cc] sm:$0xf]
  %v4933 = vld [vmem:[#allocation3 + $0x4d0] sm:$0xff]
  %v4934 = vld [vmem:[#allocation3 + $0x4d8] sm:$0xff]
  %v4935 = vld [vmem:[#allocation3 + $0x4e0] sm:$0xff]
  %v4936 = vld [vmem:[#allocation3 + $0x4e8] sm:$0xf]
  %v4937 = vld [vmem:[#allocation3 + $0x4ec] sm:$0xff]
  %v4938 = vld [vmem:[#allocation3 + $0x4f4] sm:$0xff]
  %v4939 = vld [vmem:[#allocation3 + $0x4fc] sm:$0xff]
  %v4940 = vld [vmem:[#allocation3 + $0x504] sm:$0xf]
  %v4941 = vld [vmem:[#allocation3 + $0x508] sm:$0xff]
  %v4942 = vld [vmem:[#allocation3 + $0x510] sm:$0xff]
  %v4943 = vld [vmem:[#allocation3 + $0x518] sm:$0xff]
  %v4944 = vld [vmem:[#allocation3 + $0x520] sm:$0xf]
  %v4945 = vld [vmem:[#allocation3 + $0x524] sm:$0xff]
  %v4946 = vld [vmem:[#allocation3 + $0x52c] sm:$0xff]
  %v4947 = vld [vmem:[#allocation3 + $0x534] sm:$0xff]
  %v4948 = vld [vmem:[#allocation3 + $0x53c] sm:$0xf]
  %v4949 = vld [vmem:[#allocation3 + $0x540] sm:$0xff]
  %v4950 = vld [vmem:[#allocation3 + $0x548] sm:$0xff]
  %v4951 = vld [vmem:[#allocation3 + $0x550] sm:$0xff]
  %v4952 = vld [vmem:[#allocation3 + $0x558] sm:$0xf]
  %v4953 = vld [vmem:[#allocation3 + $0x55c] sm:$0xff]
  %v4954 = vld [vmem:[#allocation3 + $0x564] sm:$0xff]
  %v4955 = vld [vmem:[#allocation3 + $0x56c] sm:$0xff]
  %v4956 = vld [vmem:[#allocation3 + $0x574] sm:$0xf]
  %v4957 = vld [vmem:[#allocation3 + $0x578] sm:$0xff]
  %v4958 = vld [vmem:[#allocation3 + $0x580] sm:$0xff]
  %v4959 = vld [vmem:[#allocation3 + $0x588] sm:$0xff]
  %v4960 = vld [vmem:[#allocation3 + $0x590] sm:$0xf]
  %v4961 = vld [vmem:[#allocation3 + $0x594] sm:$0xff]
  %v4962 = vld [vmem:[#allocation3 + $0x59c] sm:$0xff]
  %v4963 = vld [vmem:[#allocation3 + $0x5a4] sm:$0xff]
  %v4964 = vld [vmem:[#allocation3 + $0x5ac] sm:$0xf]
  %v4965 = vld [vmem:[#allocation3 + $0x5b0] sm:$0xff]
  %v4966 = vld [vmem:[#allocation3 + $0x5b8] sm:$0xff]
  %v4967 = vld [vmem:[#allocation3 + $0x5c0] sm:$0xff]
  %v4968 = vld [vmem:[#allocation3 + $0x5c8] sm:$0xf]
  %v4969 = vld [vmem:[#allocation3 + $0x5cc] sm:$0xff]
  %v4970 = vld [vmem:[#allocation3 + $0x5d4] sm:$0xff]
  %v4971 = vld [vmem:[#allocation3 + $0x5dc] sm:$0xff]
  %v4972 = vld [vmem:[#allocation3 + $0x5e4] sm:$0xf]
  %v4973 = vld [vmem:[#allocation3 + $0x5e8] sm:$0xff]
  %v4974 = vld [vmem:[#allocation3 + $0x5f0] sm:$0xff]
  %v4975 = vld [vmem:[#allocation3 + $0x5f8] sm:$0xff]
  %v4976 = vld [vmem:[#allocation3 + $0x600] sm:$0xf]
  %v4977 = vld [vmem:[#allocation3 + $0x604] sm:$0xff]
  %v4978 = vld [vmem:[#allocation3 + $0x60c] sm:$0xff]
  %v4979 = vld [vmem:[#allocation3 + $0x614] sm:$0xff]
  %v4980 = vld [vmem:[#allocation3 + $0x61c] sm:$0xf]
  %v4981 = vld [vmem:[#allocation3 + $0x620] sm:$0xff]
  %v4982 = vld [vmem:[#allocation3 + $0x628] sm:$0xff]
  %v4983 = vld [vmem:[#allocation3 + $0x630] sm:$0xff]
  %v4984 = vld [vmem:[#allocation3 + $0x638] sm:$0xf]
  %v4985 = vld [vmem:[#allocation3 + $0x63c] sm:$0xff]
  %v4986 = vld [vmem:[#allocation3 + $0x644] sm:$0xff]
  %v4987 = vld [vmem:[#allocation3 + $0x64c] sm:$0xff]
  %v4988 = vld [vmem:[#allocation3 + $0x654] sm:$0xf]
  %v4989 = vld [vmem:[#allocation3 + $0x658] sm:$0xff]
  %v4990 = vld [vmem:[#allocation3 + $0x660] sm:$0xff]
  %v4991 = vld [vmem:[#allocation3 + $0x668] sm:$0xff]
  %v4992 = vld [vmem:[#allocation3 + $0x670] sm:$0xf]
  %v4993 = vld [vmem:[#allocation3 + $0x674] sm:$0xff]
  %v4994 = vld [vmem:[#allocation3 + $0x67c] sm:$0xff]
  %v4995 = vld [vmem:[#allocation3 + $0x684] sm:$0xff]
  %v4996 = vld [vmem:[#allocation3 + $0x68c] sm:$0xf]
  %v4997 = vld [vmem:[#allocation3 + $0x690] sm:$0xff]
  %v4998 = vld [vmem:[#allocation3 + $0x698] sm:$0xff]
  %v4999 = vld [vmem:[#allocation3 + $0x6a0] sm:$0xff]
  %v5000 = vld [vmem:[#allocation3 + $0x6a8] sm:$0xf]
  %v5001 = vld [vmem:[#allocation3 + $0x6ac] sm:$0xff]
  %v5002 = vld [vmem:[#allocation3 + $0x6b4] sm:$0xff]
  %v5003 = vld [vmem:[#allocation3 + $0x6bc] sm:$0xff]
  %v5004 = vld [vmem:[#allocation3 + $0x6c4] sm:$0xf]
  %v5005 = vld [vmem:[#allocation3 + $0x6c8] sm:$0xff]
  %v5006 = vld [vmem:[#allocation3 + $0x6d0] sm:$0xff]
  %v5007 = vld [vmem:[#allocation3 + $0x6d8] sm:$0xff]
  %v5008 = vld [vmem:[#allocation3 + $0x6e0] sm:$0xf]
  %v5009 = vld [vmem:[#allocation3 + $0x6e4] sm:$0xff]
  %v5010 = vld [vmem:[#allocation3 + $0x6ec] sm:$0xff]
  %v5011 = vld [vmem:[#allocation3 + $0x6f4] sm:$0xff]
  %v5012 = vld [vmem:[#allocation3 + $0x6fc] sm:$0xf]
  %v5013 = vld [vmem:[#allocation3 + $0x700] sm:$0xff]
  %v5014 = vld [vmem:[#allocation3 + $0x708] sm:$0xff]
  %v5015 = vld [vmem:[#allocation3 + $0x710] sm:$0xff]
  %v5016 = vld [vmem:[#allocation3 + $0x718] sm:$0xf]
  %v5017 = vld [vmem:[#allocation3 + $0x71c] sm:$0xff]
  %v5018 = vld [vmem:[#allocation3 + $0x724] sm:$0xff]
  %v5019 = vld [vmem:[#allocation3 + $0x72c] sm:$0xff]
  %v5020 = vld [vmem:[#allocation3 + $0x734] sm:$0xf]
  %v5021 = vld [vmem:[#allocation3 + $0x738] sm:$0xff]
  %v5022 = vld [vmem:[#allocation3 + $0x740] sm:$0xff]
  %v5023 = vld [vmem:[#allocation3 + $0x748] sm:$0xff]
  %v5024 = vld [vmem:[#allocation3 + $0x750] sm:$0xf]
  %v5025 = vld [vmem:[#allocation3 + $0x754] sm:$0xff]
  %v5026 = vld [vmem:[#allocation3 + $0x75c] sm:$0xff]
  %v5027 = vld [vmem:[#allocation3 + $0x764] sm:$0xff]
  %v5028 = vld [vmem:[#allocation3 + $0x76c] sm:$0xf]
  %v5029 = vld [vmem:[#allocation3 + $0x770] sm:$0xff]
  %v5030 = vld [vmem:[#allocation3 + $0x778] sm:$0xff]
  %v5031 = vld [vmem:[#allocation3 + $0x780] sm:$0xff]
  %v5032 = vld [vmem:[#allocation3 + $0x788] sm:$0xf]
  %v5033 = vld [vmem:[#allocation3 + $0x78c] sm:$0xff]
  %v5034 = vld [vmem:[#allocation3 + $0x794] sm:$0xff]
  %v5035 = vld [vmem:[#allocation3 + $0x79c] sm:$0xff]
  %v5036 = vld [vmem:[#allocation3 + $0x7a4] sm:$0xf]
  %v5037 = vld [vmem:[#allocation3 + $0x7a8] sm:$0xff]
  %v5038 = vld [vmem:[#allocation3 + $0x7b0] sm:$0xff]
  %v5039 = vld [vmem:[#allocation3 + $0x7b8] sm:$0xff]
  %v5040 = vld [vmem:[#allocation3 + $0x7c0] sm:$0xf]
  %v5041 = vld [vmem:[#allocation3 + $0x7c4] sm:$0xff]
  %v5042 = vld [vmem:[#allocation3 + $0x7cc] sm:$0xff]
  %v5043 = vld [vmem:[#allocation3 + $0x7d4] sm:$0xff]
  %v5044 = vld [vmem:[#allocation3 + $0x7dc] sm:$0xf]
  %v5045 = vld [vmem:[#allocation3 + $0x7e0] sm:$0xff]
  %v5046 = vld [vmem:[#allocation3 + $0x7e8] sm:$0xff]
  %v5047 = vld [vmem:[#allocation3 + $0x7f0] sm:$0xff]
  %v5048 = vld [vmem:[#allocation3 + $0x7f8] sm:$0xf]
  %v5049 = vld [vmem:[#allocation3 + $0x7fc] sm:$0xff]
  %v5050 = vld [vmem:[#allocation3 + $0x804] sm:$0xff]
  %v5051 = vld [vmem:[#allocation3 + $0x80c] sm:$0xff]
  %v5052 = vld [vmem:[#allocation3 + $0x814] sm:$0xf]
  %v5053 = vld [vmem:[#allocation3 + $0x818] sm:$0xff]
  %v5054 = vld [vmem:[#allocation3 + $0x820] sm:$0xff]
  %v5055 = vld [vmem:[#allocation3 + $0x828] sm:$0xff]
  %v5056 = vld [vmem:[#allocation3 + $0x830] sm:$0xf]
  %v5057 = vld [vmem:[#allocation3 + $0x834] sm:$0xff]
  %v5058 = vld [vmem:[#allocation3 + $0x83c] sm:$0xff]
  %v5059 = vld [vmem:[#allocation3 + $0x844] sm:$0xff]
  %v5060 = vld [vmem:[#allocation3 + $0x84c] sm:$0xf]
  %v5061 = vld [vmem:[#allocation3 + $0x850] sm:$0xff]
  %v5062 = vld [vmem:[#allocation3 + $0x858] sm:$0xff]
  %v5063 = vld [vmem:[#allocation3 + $0x860] sm:$0xff]
  %v5064 = vld [vmem:[#allocation3 + $0x868] sm:$0xf]
  %v5065 = vld [vmem:[#allocation3 + $0x86c] sm:$0xff]
  %v5066 = vld [vmem:[#allocation3 + $0x874] sm:$0xff]
  %v5067 = vld [vmem:[#allocation3 + $0x87c] sm:$0xff]
  %v5068 = vld [vmem:[#allocation3 + $0x884] sm:$0xf]
  %v5069 = vld [vmem:[#allocation3 + $0x888] sm:$0xff]
  %v5070 = vld [vmem:[#allocation3 + $0x890] sm:$0xff]
  %v5071 = vld [vmem:[#allocation3 + $0x898] sm:$0xff]
  %v5072 = vld [vmem:[#allocation3 + $0x8a0] sm:$0xf]
  %v5073 = vld [vmem:[#allocation3 + $0x8a4] sm:$0xff]
  %v5074 = vld [vmem:[#allocation3 + $0x8ac] sm:$0xff]
  %v5075 = vld [vmem:[#allocation3 + $0x8b4] sm:$0xff]
  %v5076 = vld [vmem:[#allocation3 + $0x8bc] sm:$0xf]
  %v5077 = vld [vmem:[#allocation3 + $0x8c0] sm:$0xff]
  %v5078 = vld [vmem:[#allocation3 + $0x8c8] sm:$0xff]
  %v5079 = vld [vmem:[#allocation3 + $0x8d0] sm:$0xff]
  %v5080 = vld [vmem:[#allocation3 + $0x8d8] sm:$0xf]
  %v5081 = vld [vmem:[#allocation3 + $0x8dc] sm:$0xff]
  %v5082 = vld [vmem:[#allocation3 + $0x8e4] sm:$0xff]
  %v5083 = vld [vmem:[#allocation3 + $0x8ec] sm:$0xff]
  %v5084 = vld [vmem:[#allocation3 + $0x8f4] sm:$0xf]
  %v5085 = vld [vmem:[#allocation3 + $0x8f8] sm:$0xff]
  %v5086 = vld [vmem:[#allocation3 + $0x900] sm:$0xff]
  %v5087 = vld [vmem:[#allocation3 + $0x908] sm:$0xff]
  %v5088 = vld [vmem:[#allocation3 + $0x910] sm:$0xf]
  %v5089 = vld [vmem:[#allocation3 + $0x914] sm:$0xff]
  %v5090 = vld [vmem:[#allocation3 + $0x91c] sm:$0xff]
  %v5091 = vld [vmem:[#allocation3 + $0x924] sm:$0xff]
  %v5092 = vld [vmem:[#allocation3 + $0x92c] sm:$0xf]
  %v5093 = vld [vmem:[#allocation3 + $0x930] sm:$0xff]
  %v5094 = vld [vmem:[#allocation3 + $0x938] sm:$0xff]
  %v5095 = vld [vmem:[#allocation3 + $0x940] sm:$0xff]
  %v5096 = vld [vmem:[#allocation3 + $0x948] sm:$0xf]
  %v5097 = vld [vmem:[#allocation3 + $0x94c] sm:$0xff]
  %v5098 = vld [vmem:[#allocation3 + $0x954] sm:$0xff]
  %v5099 = vld [vmem:[#allocation3 + $0x95c] sm:$0xff]
  %v5100 = vld [vmem:[#allocation3 + $0x964] sm:$0xf]
  %v5101 = vld [vmem:[#allocation3 + $0x968] sm:$0xff]
  %v5102 = vld [vmem:[#allocation3 + $0x970] sm:$0xff]
  %v5103 = vld [vmem:[#allocation3 + $0x978] sm:$0xff]
  %v5104 = vld [vmem:[#allocation3 + $0x980] sm:$0xf]
  %v5105 = vld [vmem:[#allocation3 + $0x984] sm:$0xff]
  %v5106 = vld [vmem:[#allocation3 + $0x98c] sm:$0xff]
  %v5107 = vld [vmem:[#allocation3 + $0x994] sm:$0xff]
  %v5108 = vld [vmem:[#allocation3 + $0x99c] sm:$0xf]
  %v5109 = vld [vmem:[#allocation3 + $0x9a0] sm:$0xff]
  %v5110 = vld [vmem:[#allocation3 + $0x9a8] sm:$0xff]
  %v5111 = vld [vmem:[#allocation3 + $0x9b0] sm:$0xff]
  %v5112 = vld [vmem:[#allocation3 + $0x9b8] sm:$0xf]
  %v5113 = vld [vmem:[#allocation3 + $0x9bc] sm:$0xff]
  %v5114 = vld [vmem:[#allocation3 + $0x9c4] sm:$0xff]
  %v5115 = vld [vmem:[#allocation3 + $0x9cc] sm:$0xff]
  %v5116 = vld [vmem:[#allocation3 + $0x9d4] sm:$0xf]
  %v5117 = vld [vmem:[#allocation3 + $0x9d8] sm:$0xff]
  %v5118 = vld [vmem:[#allocation3 + $0x9e0] sm:$0xff]
  %v5119 = vld [vmem:[#allocation3 + $0x9e8] sm:$0xff]
  %v5120 = vld [vmem:[#allocation3 + $0x9f0] sm:$0xf]
  %v5121 = vld [vmem:[#allocation3 + $0x9f4] sm:$0xff]
  %v5122 = vld [vmem:[#allocation3 + $0x9fc] sm:$0xff]
  %v5123 = vld [vmem:[#allocation3 + $0xa04] sm:$0xff]
  %v5124 = vld [vmem:[#allocation3 + $0xa0c] sm:$0xf]
  %v5125 = vld [vmem:[#allocation3 + $0xa10] sm:$0xff]
  %v5126 = vld [vmem:[#allocation3 + $0xa18] sm:$0xff]
  %v5127 = vld [vmem:[#allocation3 + $0xa20] sm:$0xff]
  %v5128 = vld [vmem:[#allocation3 + $0xa28] sm:$0xf]
  %v5129 = vld [vmem:[#allocation3 + $0xa2c] sm:$0xff]
  %v5130 = vld [vmem:[#allocation3 + $0xa34] sm:$0xff]
  %v5131 = vld [vmem:[#allocation3 + $0xa3c] sm:$0xff]
  %v5132 = vld [vmem:[#allocation3 + $0xa44] sm:$0xf]
  %v5133 = vld [vmem:[#allocation3 + $0xa48] sm:$0xff]
  %v5134 = vld [vmem:[#allocation3 + $0xa50] sm:$0xff]
  %v5135 = vld [vmem:[#allocation3 + $0xa58] sm:$0xff]
  %v5136 = vld [vmem:[#allocation3 + $0xa60] sm:$0xf]
  %v5137 = vld [vmem:[#allocation3 + $0xa64] sm:$0xff]
  %v5138 = vld [vmem:[#allocation3 + $0xa6c] sm:$0xff]
  %v5139 = vld [vmem:[#allocation3 + $0xa74] sm:$0xff]
  %v5140 = vld [vmem:[#allocation3 + $0xa7c] sm:$0xf]
  %v5141 = vld [vmem:[#allocation3 + $0xa80] sm:$0xff]
  %v5142 = vld [vmem:[#allocation3 + $0xa88] sm:$0xff]
  %v5143 = vld [vmem:[#allocation3 + $0xa90] sm:$0xff]
  %v5144 = vld [vmem:[#allocation3 + $0xa98] sm:$0xf]
  %v5145 = vld [vmem:[#allocation3 + $0xa9c] sm:$0xff]
  %v5146 = vld [vmem:[#allocation3 + $0xaa4] sm:$0xff]
  %v5147 = vld [vmem:[#allocation3 + $0xaac] sm:$0xff]
  %v5148 = vld [vmem:[#allocation3 + $0xab4] sm:$0xf]
  %v5149 = vld [vmem:[#allocation3 + $0xab8] sm:$0xff]
  %v5150 = vld [vmem:[#allocation3 + $0xac0] sm:$0xff]
  %v5151 = vld [vmem:[#allocation3 + $0xac8] sm:$0xff]
  %v5152 = vld [vmem:[#allocation3 + $0xad0] sm:$0xf]
  %v5153 = vld [vmem:[#allocation3 + $0xad4] sm:$0xff]
  %v5154 = vld [vmem:[#allocation3 + $0xadc] sm:$0xff]
  %v5155 = vld [vmem:[#allocation3 + $0xae4] sm:$0xff]
  %v5156 = vld [vmem:[#allocation3 + $0xaec] sm:$0xf]
  %v5157 = vld [vmem:[#allocation3 + $0xaf0] sm:$0xff]
  %v5158 = vld [vmem:[#allocation3 + $0xaf8] sm:$0xff]
  %v5159 = vld [vmem:[#allocation3 + $0xb00] sm:$0xff]
  %v5160 = vld [vmem:[#allocation3 + $0xb08] sm:$0xf]
  %v5161 = vld [vmem:[#allocation3 + $0xb0c] sm:$0xff]
  %v5162 = vld [vmem:[#allocation3 + $0xb14] sm:$0xff]
  %v5163 = vld [vmem:[#allocation3 + $0xb1c] sm:$0xff]
  %v5164 = vld [vmem:[#allocation3 + $0xb24] sm:$0xf]
  %v5165 = vld [vmem:[#allocation3 + $0xb28] sm:$0xff]
  %v5166 = vld [vmem:[#allocation3 + $0xb30] sm:$0xff]
  %v5167 = vld [vmem:[#allocation3 + $0xb38] sm:$0xff]
  %v5168 = vld [vmem:[#allocation3 + $0xb40] sm:$0xf]
  %v5169 = vld [vmem:[#allocation3 + $0xb44] sm:$0xff]
  %v5170 = vld [vmem:[#allocation3 + $0xb4c] sm:$0xff]
  %v5171 = vld [vmem:[#allocation3 + $0xb54] sm:$0xff]
  %v5172 = vld [vmem:[#allocation3 + $0xb5c] sm:$0xf]
  %v5173 = vld [vmem:[#allocation3 + $0xb60] sm:$0xff]
  %v5174 = vld [vmem:[#allocation3 + $0xb68] sm:$0xff]
  %v5175 = vld [vmem:[#allocation3 + $0xb70] sm:$0xff]
  %v5176 = vld [vmem:[#allocation3 + $0xb78] sm:$0xf]
  %v5177 = vld [vmem:[#allocation3 + $0xb7c] sm:$0xff]
  %v5178 = vld [vmem:[#allocation3 + $0xb84] sm:$0xff]
  %v5179 = vld [vmem:[#allocation3 + $0xb8c] sm:$0xff]
  %v5180 = vld [vmem:[#allocation3 + $0xb94] sm:$0xf]
  %v5181 = vld [vmem:[#allocation3 + $0xb98] sm:$0xff]
  %v5182 = vld [vmem:[#allocation3 + $0xba0] sm:$0xff]
  %v5183 = vld [vmem:[#allocation3 + $0xba8] sm:$0xff]
  %v5184 = vld [vmem:[#allocation3 + $0xbb0] sm:$0xf]
  %v5185 = vld [vmem:[#allocation3 + $0xbb4] sm:$0xff]
  %v5186 = vld [vmem:[#allocation3 + $0xbbc] sm:$0xff]
  %v5187 = vld [vmem:[#allocation3 + $0xbc4] sm:$0xff]
  %v5188 = vld [vmem:[#allocation3 + $0xbcc] sm:$0xf]
  %v5189 = vld [vmem:[#allocation3 + $0xbd0] sm:$0xff]
  %v5190 = vld [vmem:[#allocation3 + $0xbd8] sm:$0xff]
  %v5191 = vld [vmem:[#allocation3 + $0xbe0] sm:$0xff]
  %v5192 = vld [vmem:[#allocation3 + $0xbe8] sm:$0xf]
  %v5193 = vld [vmem:[#allocation3 + $0xbec] sm:$0xff]
  %v5194 = vld [vmem:[#allocation3 + $0xbf4] sm:$0xff]
  %v5195 = vld [vmem:[#allocation3 + $0xbfc] sm:$0xff]
  %v5196 = vld [vmem:[#allocation3 + $0xc04] sm:$0xf]
  %v5197 = vld [vmem:[#allocation3 + $0xc08] sm:$0xff]
  %v5198 = vld [vmem:[#allocation3 + $0xc10] sm:$0xff]
  %v5199 = vld [vmem:[#allocation3 + $0xc18] sm:$0xff]
  %v5200 = vld [vmem:[#allocation3 + $0xc20] sm:$0xf]
  %v5201 = vld [vmem:[#allocation3 + $0xc24] sm:$0xff]
  %v5202 = vld [vmem:[#allocation3 + $0xc2c] sm:$0xff]
  %v5203 = vld [vmem:[#allocation3 + $0xc34] sm:$0xff]
  %v5204 = vld [vmem:[#allocation3 + $0xc3c] sm:$0xf]
  %v5205 = vld [vmem:[#allocation3 + $0xc40] sm:$0xff]
  %v5206 = vld [vmem:[#allocation3 + $0xc48] sm:$0xff]
  %v5207 = vld [vmem:[#allocation3 + $0xc50] sm:$0xff]
  %v5208 = vld [vmem:[#allocation3 + $0xc58] sm:$0xf]
  %v5209 = vld [vmem:[#allocation3 + $0xc5c] sm:$0xff]
  %v5210 = vld [vmem:[#allocation3 + $0xc64] sm:$0xff]
  %v5211 = vld [vmem:[#allocation3 + $0xc6c] sm:$0xff]
  %v5212 = vld [vmem:[#allocation3 + $0xc74] sm:$0xf]
  %v5213 = vld [vmem:[#allocation3 + $0xc78] sm:$0xff]
  %v5214 = vld [vmem:[#allocation3 + $0xc80] sm:$0xff]
  %v5215 = vld [vmem:[#allocation3 + $0xc88] sm:$0xff]
  %v5216 = vld [vmem:[#allocation3 + $0xc90] sm:$0xf]
  %v5217 = vld [vmem:[#allocation3 + $0xc94] sm:$0xff]
  %v5218 = vld [vmem:[#allocation3 + $0xc9c] sm:$0xff]
  %v5219 = vld [vmem:[#allocation3 + $0xca4] sm:$0xff]
  %v5220 = vld [vmem:[#allocation3 + $0xcac] sm:$0xf]
  %v5221 = vld [vmem:[#allocation3 + $0xcb0] sm:$0xff]
  %v5222 = vld [vmem:[#allocation3 + $0xcb8] sm:$0xff]
  %v5223 = vld [vmem:[#allocation3 + $0xcc0] sm:$0xff]
  %v5224 = vld [vmem:[#allocation3 + $0xcc8] sm:$0xf]
  %v5225 = vld [vmem:[#allocation3 + $0xccc] sm:$0xff]
  %v5226 = vld [vmem:[#allocation3 + $0xcd4] sm:$0xff]
  %v5227 = vld [vmem:[#allocation3 + $0xcdc] sm:$0xff]
  %v5228 = vld [vmem:[#allocation3 + $0xce4] sm:$0xf]
  %v5229 = vld [vmem:[#allocation3 + $0xce8] sm:$0xff]
  %v5230 = vld [vmem:[#allocation3 + $0xcf0] sm:$0xff]
  %v5231 = vld [vmem:[#allocation3 + $0xcf8] sm:$0xff]
  %v5232 = vld [vmem:[#allocation3 + $0xd00] sm:$0xf]
  %v5233 = vld [vmem:[#allocation3 + $0xd04] sm:$0xff]
  %v5234 = vld [vmem:[#allocation3 + $0xd0c] sm:$0xff]
  %v5235 = vld [vmem:[#allocation3 + $0xd14] sm:$0xff]
  %v5236 = vld [vmem:[#allocation3 + $0xd1c] sm:$0xf]
  %v5237 = vld [vmem:[#allocation3 + $0xd20] sm:$0xff]
  %v5238 = vld [vmem:[#allocation3 + $0xd28] sm:$0xff]
  %v5239 = vld [vmem:[#allocation3 + $0xd30] sm:$0xff]
  %v5240 = vld [vmem:[#allocation3 + $0xd38] sm:$0xf]
  %v5241 = vld [vmem:[#allocation3 + $0xd3c] sm:$0xff]
  %v5242 = vld [vmem:[#allocation3 + $0xd44] sm:$0xff]
  %v5243 = vld [vmem:[#allocation3 + $0xd4c] sm:$0xff]
  %v5244 = vld [vmem:[#allocation3 + $0xd54] sm:$0xf]
  %v5245 = vld [vmem:[#allocation3 + $0xd58] sm:$0xff]
  %v5246 = vld [vmem:[#allocation3 + $0xd60] sm:$0xff]
  %v5247 = vld [vmem:[#allocation3 + $0xd68] sm:$0xff]
  %v5248 = vld [vmem:[#allocation3 + $0xd70] sm:$0xf]
  %v5249 = vld [vmem:[#allocation3 + $0xd74] sm:$0xff]
  %v5250 = vld [vmem:[#allocation3 + $0xd7c] sm:$0xff]
  %v5251 = vld [vmem:[#allocation3 + $0xd84] sm:$0xff]
  %v5252 = vld [vmem:[#allocation3 + $0xd8c] sm:$0xf]
  %v5253 = vld [vmem:[#allocation3 + $0xd90] sm:$0xff]
  %v5254 = vld [vmem:[#allocation3 + $0xd98] sm:$0xff]
  %v5255 = vld [vmem:[#allocation3 + $0xda0] sm:$0xff]
  %v5256 = vld [vmem:[#allocation3 + $0xda8] sm:$0xf]
  %v5257 = vld [vmem:[#allocation3 + $0xdac] sm:$0xff]
  %v5258 = vld [vmem:[#allocation3 + $0xdb4] sm:$0xff]
  %v5259 = vld [vmem:[#allocation3 + $0xdbc] sm:$0xff]
  %v5260 = vld [vmem:[#allocation3 + $0xdc4] sm:$0xf]
  %v5261 = vld [vmem:[#allocation3 + $0xdc8] sm:$0xff]
  %v5262 = vld [vmem:[#allocation3 + $0xdd0] sm:$0xff]
  %v5263 = vld [vmem:[#allocation3 + $0xdd8] sm:$0xff]
  %v5264 = vld [vmem:[#allocation3 + $0xde0] sm:$0xf]
  %v5265 = vld [vmem:[#allocation3 + $0xde4] sm:$0xff]
  %v5266 = vld [vmem:[#allocation3 + $0xdec] sm:$0xff]
  %v5267 = vld [vmem:[#allocation3 + $0xdf4] sm:$0xff]
  %v5268 = vld [vmem:[#allocation3 + $0xdfc] sm:$0xf]
  %v5270 = vperm.slane %v1477, 0
  %v5271 = vperm.slane %v1477, 1
  %v5272 = vperm.slane %v1477, 2
  %v5273 = vperm.slane %v1477, 3
  %v5274 = vperm.slane %v1477, 4
  %v5275 = vperm.slane %v1477, 5
  %v5276 = vperm.slane %v1477, 6
  %v5796 = vunpack.c.l.b16 %v4757
  %v5797 = vunpack.c.h.b16 %v4757
  %v5798 = vunpack.c.l.b16 %v4758
  %v5799 = vunpack.c.h.b16 %v4758
  %v5800 = vunpack.c.l.b16 %v4759
  %v5801 = vunpack.c.h.b16 %v4759
  %v5802 = vunpack.c.l.b16 %v4760
  %v5803 = vunpack.c.l.b16 %v4761
  %v5804 = vunpack.c.h.b16 %v4761
  %v5805 = vunpack.c.l.b16 %v4762
  %v5806 = vunpack.c.h.b16 %v4762
  %v5807 = vunpack.c.l.b16 %v4763
  %v5808 = vunpack.c.h.b16 %v4763
  %v5809 = vunpack.c.l.b16 %v4764
  %v5810 = vunpack.c.l.b16 %v4765
  %v5811 = vunpack.c.h.b16 %v4765
  %v5812 = vunpack.c.l.b16 %v4766
  %v5813 = vunpack.c.h.b16 %v4766
  %v5814 = vunpack.c.l.b16 %v4767
  %v5815 = vunpack.c.h.b16 %v4767
  %v5816 = vunpack.c.l.b16 %v4768
  %v5817 = vunpack.c.l.b16 %v4769
  %v5818 = vunpack.c.h.b16 %v4769
  %v5819 = vunpack.c.l.b16 %v4770
  %v5820 = vunpack.c.h.b16 %v4770
  %v5821 = vunpack.c.l.b16 %v4771
  %v5822 = vunpack.c.h.b16 %v4771
  %v5823 = vunpack.c.l.b16 %v4772
  %v5824 = vunpack.c.l.b16 %v4773
  %v5825 = vunpack.c.h.b16 %v4773
  %v5826 = vunpack.c.l.b16 %v4774
  %v5827 = vunpack.c.h.b16 %v4774
  %v5828 = vunpack.c.l.b16 %v4775
  %v5829 = vunpack.c.h.b16 %v4775
  %v5830 = vunpack.c.l.b16 %v4776
  %v5831 = vunpack.c.l.b16 %v4777
  %v5832 = vunpack.c.h.b16 %v4777
  %v5833 = vunpack.c.l.b16 %v4778
  %v5834 = vunpack.c.h.b16 %v4778
  %v5835 = vunpack.c.l.b16 %v4779
  %v5836 = vunpack.c.h.b16 %v4779
  %v5837 = vunpack.c.l.b16 %v4780
  %v5838 = vunpack.c.l.b16 %v4781
  %v5839 = vunpack.c.h.b16 %v4781
  %v5840 = vunpack.c.l.b16 %v4782
  %v5841 = vunpack.c.h.b16 %v4782
  %v5842 = vunpack.c.l.b16 %v4783
  %v5843 = vunpack.c.h.b16 %v4783
  %v5844 = vunpack.c.l.b16 %v4784
  %v5845 = vunpack.c.l.b16 %v4785
  %v5846 = vunpack.c.h.b16 %v4785
  %v5847 = vunpack.c.l.b16 %v4786
  %v5848 = vunpack.c.h.b16 %v4786
  %v5849 = vunpack.c.l.b16 %v4787
  %v5850 = vunpack.c.h.b16 %v4787
  %v5851 = vunpack.c.l.b16 %v4788
  %v5852 = vunpack.c.l.b16 %v4789
  %v5853 = vunpack.c.h.b16 %v4789
  %v5854 = vunpack.c.l.b16 %v4790
  %v5855 = vunpack.c.h.b16 %v4790
  %v5856 = vunpack.c.l.b16 %v4791
  %v5857 = vunpack.c.h.b16 %v4791
  %v5858 = vunpack.c.l.b16 %v4792
  %v5859 = vunpack.c.l.b16 %v4793
  %v5860 = vunpack.c.h.b16 %v4793
  %v5861 = vunpack.c.l.b16 %v4794
  %v5862 = vunpack.c.h.b16 %v4794
  %v5863 = vunpack.c.l.b16 %v4795
  %v5864 = vunpack.c.h.b16 %v4795
  %v5865 = vunpack.c.l.b16 %v4796
  %v5866 = vunpack.c.l.b16 %v4797
  %v5867 = vunpack.c.h.b16 %v4797
  %v5868 = vunpack.c.l.b16 %v4798
  %v5869 = vunpack.c.h.b16 %v4798
  %v5870 = vunpack.c.l.b16 %v4799
  %v5871 = vunpack.c.h.b16 %v4799
  %v5872 = vunpack.c.l.b16 %v4800
  %v5873 = vunpack.c.l.b16 %v4801
  %v5874 = vunpack.c.h.b16 %v4801
  %v5875 = vunpack.c.l.b16 %v4802
  %v5876 = vunpack.c.h.b16 %v4802
  %v5877 = vunpack.c.l.b16 %v4803
  %v5878 = vunpack.c.h.b16 %v4803
  %v5879 = vunpack.c.l.b16 %v4804
  %v5880 = vunpack.c.l.b16 %v4805
  %v5881 = vunpack.c.h.b16 %v4805
  %v5882 = vunpack.c.l.b16 %v4806
  %v5883 = vunpack.c.h.b16 %v4806
  %v5884 = vunpack.c.l.b16 %v4807
  %v5885 = vunpack.c.h.b16 %v4807
  %v5886 = vunpack.c.l.b16 %v4808
  %v5887 = vunpack.c.l.b16 %v4809
  %v5888 = vunpack.c.h.b16 %v4809
  %v5889 = vunpack.c.l.b16 %v4810
  %v5890 = vunpack.c.h.b16 %v4810
  %v5891 = vunpack.c.l.b16 %v4811
  %v5892 = vunpack.c.h.b16 %v4811
  %v5893 = vunpack.c.l.b16 %v4812
  %v5894 = vunpack.c.l.b16 %v4813
  %v5895 = vunpack.c.h.b16 %v4813
  %v5896 = vunpack.c.l.b16 %v4814
  %v5897 = vunpack.c.h.b16 %v4814
  %v5898 = vunpack.c.l.b16 %v4815
  %v5899 = vunpack.c.h.b16 %v4815
  %v5900 = vunpack.c.l.b16 %v4816
  %v5901 = vunpack.c.l.b16 %v4817
  %v5902 = vunpack.c.h.b16 %v4817
  %v5903 = vunpack.c.l.b16 %v4818
  %v5904 = vunpack.c.h.b16 %v4818
  %v5905 = vunpack.c.l.b16 %v4819
  %v5906 = vunpack.c.h.b16 %v4819
  %v5907 = vunpack.c.l.b16 %v4820
  %v5908 = vunpack.c.l.b16 %v4821
  %v5909 = vunpack.c.h.b16 %v4821
  %v5910 = vunpack.c.l.b16 %v4822
  %v5911 = vunpack.c.h.b16 %v4822
  %v5912 = vunpack.c.l.b16 %v4823
  %v5913 = vunpack.c.h.b16 %v4823
  %v5914 = vunpack.c.l.b16 %v4824
  %v5915 = vunpack.c.l.b16 %v4825
  %v5916 = vunpack.c.h.b16 %v4825
  %v5917 = vunpack.c.l.b16 %v4826
  %v5918 = vunpack.c.h.b16 %v4826
  %v5919 = vunpack.c.l.b16 %v4827
  %v5920 = vunpack.c.h.b16 %v4827
  %v5921 = vunpack.c.l.b16 %v4828
  %v5922 = vunpack.c.l.b16 %v4829
  %v5923 = vunpack.c.h.b16 %v4829
  %v5924 = vunpack.c.l.b16 %v4830
  %v5925 = vunpack.c.h.b16 %v4830
  %v5926 = vunpack.c.l.b16 %v4831
  %v5927 = vunpack.c.h.b16 %v4831
  %v5928 = vunpack.c.l.b16 %v4832
  %v5929 = vunpack.c.l.b16 %v4833
  %v5930 = vunpack.c.h.b16 %v4833
  %v5931 = vunpack.c.l.b16 %v4834
  %v5932 = vunpack.c.h.b16 %v4834
  %v5933 = vunpack.c.l.b16 %v4835
  %v5934 = vunpack.c.h.b16 %v4835
  %v5935 = vunpack.c.l.b16 %v4836
  %v5936 = vunpack.c.l.b16 %v4837
  %v5937 = vunpack.c.h.b16 %v4837
  %v5938 = vunpack.c.l.b16 %v4838
  %v5939 = vunpack.c.h.b16 %v4838
  %v5940 = vunpack.c.l.b16 %v4839
  %v5941 = vunpack.c.h.b16 %v4839
  %v5942 = vunpack.c.l.b16 %v4840
  %v5943 = vunpack.c.l.b16 %v4841
  %v5944 = vunpack.c.h.b16 %v4841
  %v5945 = vunpack.c.l.b16 %v4842
  %v5946 = vunpack.c.h.b16 %v4842
  %v5947 = vunpack.c.l.b16 %v4843
  %v5948 = vunpack.c.h.b16 %v4843
  %v5949 = vunpack.c.l.b16 %v4844
  %v5950 = vunpack.c.l.b16 %v4845
  %v5951 = vunpack.c.h.b16 %v4845
  %v5952 = vunpack.c.l.b16 %v4846
  %v5953 = vunpack.c.h.b16 %v4846
  %v5954 = vunpack.c.l.b16 %v4847
  %v5955 = vunpack.c.h.b16 %v4847
  %v5956 = vunpack.c.l.b16 %v4848
  %v5957 = vunpack.c.l.b16 %v4849
  %v5958 = vunpack.c.h.b16 %v4849
  %v5959 = vunpack.c.l.b16 %v4850
  %v5960 = vunpack.c.h.b16 %v4850
  %v5961 = vunpack.c.l.b16 %v4851
  %v5962 = vunpack.c.h.b16 %v4851
  %v5963 = vunpack.c.l.b16 %v4852
  %v5964 = vunpack.c.l.b16 %v4853
  %v5965 = vunpack.c.h.b16 %v4853
  %v5966 = vunpack.c.l.b16 %v4854
  %v5967 = vunpack.c.h.b16 %v4854
  %v5968 = vunpack.c.l.b16 %v4855
  %v5969 = vunpack.c.h.b16 %v4855
  %v5970 = vunpack.c.l.b16 %v4856
  %v5971 = vunpack.c.l.b16 %v4857
  %v5972 = vunpack.c.h.b16 %v4857
  %v5973 = vunpack.c.l.b16 %v4858
  %v5974 = vunpack.c.h.b16 %v4858
  %v5975 = vunpack.c.l.b16 %v4859
  %v5976 = vunpack.c.h.b16 %v4859
  %v5977 = vunpack.c.l.b16 %v4860
  %v5978 = vunpack.c.l.b16 %v4861
  %v5979 = vunpack.c.h.b16 %v4861
  %v5980 = vunpack.c.l.b16 %v4862
  %v5981 = vunpack.c.h.b16 %v4862
  %v5982 = vunpack.c.l.b16 %v4863
  %v5983 = vunpack.c.h.b16 %v4863
  %v5984 = vunpack.c.l.b16 %v4864
  %v5985 = vunpack.c.l.b16 %v4865
  %v5986 = vunpack.c.h.b16 %v4865
  %v5987 = vunpack.c.l.b16 %v4866
  %v5988 = vunpack.c.h.b16 %v4866
  %v5989 = vunpack.c.l.b16 %v4867
  %v5990 = vunpack.c.h.b16 %v4867
  %v5991 = vunpack.c.l.b16 %v4868
  %v5992 = vunpack.c.l.b16 %v4869
  %v5993 = vunpack.c.h.b16 %v4869
  %v5994 = vunpack.c.l.b16 %v4870
  %v5995 = vunpack.c.h.b16 %v4870
  %v5996 = vunpack.c.l.b16 %v4871
  %v5997 = vunpack.c.h.b16 %v4871
  %v5998 = vunpack.c.l.b16 %v4872
  %v5999 = vunpack.c.l.b16 %v4873
  %v6000 = vunpack.c.h.b16 %v4873
  %v6001 = vunpack.c.l.b16 %v4874
  %v6002 = vunpack.c.h.b16 %v4874
  %v6003 = vunpack.c.l.b16 %v4875
  %v6004 = vunpack.c.h.b16 %v4875
  %v6005 = vunpack.c.l.b16 %v4876
  %v6006 = vunpack.c.l.b16 %v4877
  %v6007 = vunpack.c.h.b16 %v4877
  %v6008 = vunpack.c.l.b16 %v4878
  %v6009 = vunpack.c.h.b16 %v4878
  %v6010 = vunpack.c.l.b16 %v4879
  %v6011 = vunpack.c.h.b16 %v4879
  %v6012 = vunpack.c.l.b16 %v4880
  %v6013 = vunpack.c.l.b16 %v4881
  %v6014 = vunpack.c.h.b16 %v4881
  %v6015 = vunpack.c.l.b16 %v4882
  %v6016 = vunpack.c.h.b16 %v4882
  %v6017 = vunpack.c.l.b16 %v4883
  %v6018 = vunpack.c.h.b16 %v4883
  %v6019 = vunpack.c.l.b16 %v4884
  %v6020 = vunpack.c.l.b16 %v4885
  %v6021 = vunpack.c.h.b16 %v4885
  %v6022 = vunpack.c.l.b16 %v4886
  %v6023 = vunpack.c.h.b16 %v4886
  %v6024 = vunpack.c.l.b16 %v4887
  %v6025 = vunpack.c.h.b16 %v4887
  %v6026 = vunpack.c.l.b16 %v4888
  %v6027 = vunpack.c.l.b16 %v4889
  %v6028 = vunpack.c.h.b16 %v4889
  %v6029 = vunpack.c.l.b16 %v4890
  %v6030 = vunpack.c.h.b16 %v4890
  %v6031 = vunpack.c.l.b16 %v4891
  %v6032 = vunpack.c.h.b16 %v4891
  %v6033 = vunpack.c.l.b16 %v4892
  %v6034 = vunpack.c.l.b16 %v4893
  %v6035 = vunpack.c.h.b16 %v4893
  %v6036 = vunpack.c.l.b16 %v4894
  %v6037 = vunpack.c.h.b16 %v4894
  %v6038 = vunpack.c.l.b16 %v4895
  %v6039 = vunpack.c.h.b16 %v4895
  %v6040 = vunpack.c.l.b16 %v4896
  %v6041 = vunpack.c.l.b16 %v4897
  %v6042 = vunpack.c.h.b16 %v4897
  %v6043 = vunpack.c.l.b16 %v4898
  %v6044 = vunpack.c.h.b16 %v4898
  %v6045 = vunpack.c.l.b16 %v4899
  %v6046 = vunpack.c.h.b16 %v4899
  %v6047 = vunpack.c.l.b16 %v4900
  %v6048 = vunpack.c.l.b16 %v4901
  %v6049 = vunpack.c.h.b16 %v4901
  %v6050 = vunpack.c.l.b16 %v4902
  %v6051 = vunpack.c.h.b16 %v4902
  %v6052 = vunpack.c.l.b16 %v4903
  %v6053 = vunpack.c.h.b16 %v4903
  %v6054 = vunpack.c.l.b16 %v4904
  %v6055 = vunpack.c.l.b16 %v4905
  %v6056 = vunpack.c.h.b16 %v4905
  %v6057 = vunpack.c.l.b16 %v4906
  %v6058 = vunpack.c.h.b16 %v4906
  %v6059 = vunpack.c.l.b16 %v4907
  %v6060 = vunpack.c.h.b16 %v4907
  %v6061 = vunpack.c.l.b16 %v4908
  %v6062 = vunpack.c.l.b16 %v4909
  %v6063 = vunpack.c.h.b16 %v4909
  %v6064 = vunpack.c.l.b16 %v4910
  %v6065 = vunpack.c.h.b16 %v4910
  %v6066 = vunpack.c.l.b16 %v4911
  %v6067 = vunpack.c.h.b16 %v4911
  %v6068 = vunpack.c.l.b16 %v4912
  %v6069 = vunpack.c.l.b16 %v4913
  %v6070 = vunpack.c.h.b16 %v4913
  %v6071 = vunpack.c.l.b16 %v4914
  %v6072 = vunpack.c.h.b16 %v4914
  %v6073 = vunpack.c.l.b16 %v4915
  %v6074 = vunpack.c.h.b16 %v4915
  %v6075 = vunpack.c.l.b16 %v4916
  %v6076 = vunpack.c.l.b16 %v4917
  %v6077 = vunpack.c.h.b16 %v4917
  %v6078 = vunpack.c.l.b16 %v4918
  %v6079 = vunpack.c.h.b16 %v4918
  %v6080 = vunpack.c.l.b16 %v4919
  %v6081 = vunpack.c.h.b16 %v4919
  %v6082 = vunpack.c.l.b16 %v4920
  %v6083 = vunpack.c.l.b16 %v4921
  %v6084 = vunpack.c.h.b16 %v4921
  %v6085 = vunpack.c.l.b16 %v4922
  %v6086 = vunpack.c.h.b16 %v4922
  %v6087 = vunpack.c.l.b16 %v4923
  %v6088 = vunpack.c.h.b16 %v4923
  %v6089 = vunpack.c.l.b16 %v4924
  %v6090 = vunpack.c.l.b16 %v4925
  %v6091 = vunpack.c.h.b16 %v4925
  %v6092 = vunpack.c.l.b16 %v4926
  %v6093 = vunpack.c.h.b16 %v4926
  %v6094 = vunpack.c.l.b16 %v4927
  %v6095 = vunpack.c.h.b16 %v4927
  %v6096 = vunpack.c.l.b16 %v4928
  %v6097 = vunpack.c.l.b16 %v4929
  %v6098 = vunpack.c.h.b16 %v4929
  %v6099 = vunpack.c.l.b16 %v4930
  %v6100 = vunpack.c.h.b16 %v4930
  %v6101 = vunpack.c.l.b16 %v4931
  %v6102 = vunpack.c.h.b16 %v4931
  %v6103 = vunpack.c.l.b16 %v4932
  %v6104 = vunpack.c.l.b16 %v4933
  %v6105 = vunpack.c.h.b16 %v4933
  %v6106 = vunpack.c.l.b16 %v4934
  %v6107 = vunpack.c.h.b16 %v4934
  %v6108 = vunpack.c.l.b16 %v4935
  %v6109 = vunpack.c.h.b16 %v4935
  %v6110 = vunpack.c.l.b16 %v4936
  %v6111 = vunpack.c.l.b16 %v4937
  %v6112 = vunpack.c.h.b16 %v4937
  %v6113 = vunpack.c.l.b16 %v4938
  %v6114 = vunpack.c.h.b16 %v4938
  %v6115 = vunpack.c.l.b16 %v4939
  %v6116 = vunpack.c.h.b16 %v4939
  %v6117 = vunpack.c.l.b16 %v4940
  %v6118 = vunpack.c.l.b16 %v4941
  %v6119 = vunpack.c.h.b16 %v4941
  %v6120 = vunpack.c.l.b16 %v4942
  %v6121 = vunpack.c.h.b16 %v4942
  %v6122 = vunpack.c.l.b16 %v4943
  %v6123 = vunpack.c.h.b16 %v4943
  %v6124 = vunpack.c.l.b16 %v4944
  %v6125 = vunpack.c.l.b16 %v4945
  %v6126 = vunpack.c.h.b16 %v4945
  %v6127 = vunpack.c.l.b16 %v4946
  %v6128 = vunpack.c.h.b16 %v4946
  %v6129 = vunpack.c.l.b16 %v4947
  %v6130 = vunpack.c.h.b16 %v4947
  %v6131 = vunpack.c.l.b16 %v4948
  %v6132 = vunpack.c.l.b16 %v4949
  %v6133 = vunpack.c.h.b16 %v4949
  %v6134 = vunpack.c.l.b16 %v4950
  %v6135 = vunpack.c.h.b16 %v4950
  %v6136 = vunpack.c.l.b16 %v4951
  %v6137 = vunpack.c.h.b16 %v4951
  %v6138 = vunpack.c.l.b16 %v4952
  %v6139 = vunpack.c.l.b16 %v4953
  %v6140 = vunpack.c.h.b16 %v4953
  %v6141 = vunpack.c.l.b16 %v4954
  %v6142 = vunpack.c.h.b16 %v4954
  %v6143 = vunpack.c.l.b16 %v4955
  %v6144 = vunpack.c.h.b16 %v4955
  %v6145 = vunpack.c.l.b16 %v4956
  %v6146 = vunpack.c.l.b16 %v4957
  %v6147 = vunpack.c.h.b16 %v4957
  %v6148 = vunpack.c.l.b16 %v4958
  %v6149 = vunpack.c.h.b16 %v4958
  %v6150 = vunpack.c.l.b16 %v4959
  %v6151 = vunpack.c.h.b16 %v4959
  %v6152 = vunpack.c.l.b16 %v4960
  %v6153 = vunpack.c.l.b16 %v4961
  %v6154 = vunpack.c.h.b16 %v4961
  %v6155 = vunpack.c.l.b16 %v4962
  %v6156 = vunpack.c.h.b16 %v4962
  %v6157 = vunpack.c.l.b16 %v4963
  %v6158 = vunpack.c.h.b16 %v4963
  %v6159 = vunpack.c.l.b16 %v4964
  %v6160 = vunpack.c.l.b16 %v4965
  %v6161 = vunpack.c.h.b16 %v4965
  %v6162 = vunpack.c.l.b16 %v4966
  %v6163 = vunpack.c.h.b16 %v4966
  %v6164 = vunpack.c.l.b16 %v4967
  %v6165 = vunpack.c.h.b16 %v4967
  %v6166 = vunpack.c.l.b16 %v4968
  %v6167 = vunpack.c.l.b16 %v4969
  %v6168 = vunpack.c.h.b16 %v4969
  %v6169 = vunpack.c.l.b16 %v4970
  %v6170 = vunpack.c.h.b16 %v4970
  %v6171 = vunpack.c.l.b16 %v4971
  %v6172 = vunpack.c.h.b16 %v4971
  %v6173 = vunpack.c.l.b16 %v4972
  %v6174 = vunpack.c.l.b16 %v4973
  %v6175 = vunpack.c.h.b16 %v4973
  %v6176 = vunpack.c.l.b16 %v4974
  %v6177 = vunpack.c.h.b16 %v4974
  %v6178 = vunpack.c.l.b16 %v4975
  %v6179 = vunpack.c.h.b16 %v4975
  %v6180 = vunpack.c.l.b16 %v4976
  %v6181 = vunpack.c.l.b16 %v4977
  %v6182 = vunpack.c.h.b16 %v4977
  %v6183 = vunpack.c.l.b16 %v4978
  %v6184 = vunpack.c.h.b16 %v4978
  %v6185 = vunpack.c.l.b16 %v4979
  %v6186 = vunpack.c.h.b16 %v4979
  %v6187 = vunpack.c.l.b16 %v4980
  %v6188 = vunpack.c.l.b16 %v4981
  %v6189 = vunpack.c.h.b16 %v4981
  %v6190 = vunpack.c.l.b16 %v4982
  %v6191 = vunpack.c.h.b16 %v4982
  %v6192 = vunpack.c.l.b16 %v4983
  %v6193 = vunpack.c.h.b16 %v4983
  %v6194 = vunpack.c.l.b16 %v4984
  %v6195 = vunpack.c.l.b16 %v4985
  %v6196 = vunpack.c.h.b16 %v4985
  %v6197 = vunpack.c.l.b16 %v4986
  %v6198 = vunpack.c.h.b16 %v4986
  %v6199 = vunpack.c.l.b16 %v4987
  %v6200 = vunpack.c.h.b16 %v4987
  %v6201 = vunpack.c.l.b16 %v4988
  %v6202 = vunpack.c.l.b16 %v4989
  %v6203 = vunpack.c.h.b16 %v4989
  %v6204 = vunpack.c.l.b16 %v4990
  %v6205 = vunpack.c.h.b16 %v4990
  %v6206 = vunpack.c.l.b16 %v4991
  %v6207 = vunpack.c.h.b16 %v4991
  %v6208 = vunpack.c.l.b16 %v4992
  %v6209 = vunpack.c.l.b16 %v4993
  %v6210 = vunpack.c.h.b16 %v4993
  %v6211 = vunpack.c.l.b16 %v4994
  %v6212 = vunpack.c.h.b16 %v4994
  %v6213 = vunpack.c.l.b16 %v4995
  %v6214 = vunpack.c.h.b16 %v4995
  %v6215 = vunpack.c.l.b16 %v4996
  %v6216 = vunpack.c.l.b16 %v4997
  %v6217 = vunpack.c.h.b16 %v4997
  %v6218 = vunpack.c.l.b16 %v4998
  %v6219 = vunpack.c.h.b16 %v4998
  %v6220 = vunpack.c.l.b16 %v4999
  %v6221 = vunpack.c.h.b16 %v4999
  %v6222 = vunpack.c.l.b16 %v5000
  %v6223 = vunpack.c.l.b16 %v5001
  %v6224 = vunpack.c.h.b16 %v5001
  %v6225 = vunpack.c.l.b16 %v5002
  %v6226 = vunpack.c.h.b16 %v5002
  %v6227 = vunpack.c.l.b16 %v5003
  %v6228 = vunpack.c.h.b16 %v5003
  %v6229 = vunpack.c.l.b16 %v5004
  %v6230 = vunpack.c.l.b16 %v5005
  %v6231 = vunpack.c.h.b16 %v5005
  %v6232 = vunpack.c.l.b16 %v5006
  %v6233 = vunpack.c.h.b16 %v5006
  %v6234 = vunpack.c.l.b16 %v5007
  %v6235 = vunpack.c.h.b16 %v5007
  %v6236 = vunpack.c.l.b16 %v5008
  %v6237 = vunpack.c.l.b16 %v5009
  %v6238 = vunpack.c.h.b16 %v5009
  %v6239 = vunpack.c.l.b16 %v5010
  %v6240 = vunpack.c.h.b16 %v5010
  %v6241 = vunpack.c.l.b16 %v5011
  %v6242 = vunpack.c.h.b16 %v5011
  %v6243 = vunpack.c.l.b16 %v5012
  %v6244 = vunpack.c.l.b16 %v5013
  %v6245 = vunpack.c.h.b16 %v5013
  %v6246 = vunpack.c.l.b16 %v5014
  %v6247 = vunpack.c.h.b16 %v5014
  %v6248 = vunpack.c.l.b16 %v5015
  %v6249 = vunpack.c.h.b16 %v5015
  %v6250 = vunpack.c.l.b16 %v5016
  %v6251 = vunpack.c.l.b16 %v5017
  %v6252 = vunpack.c.h.b16 %v5017
  %v6253 = vunpack.c.l.b16 %v5018
  %v6254 = vunpack.c.h.b16 %v5018
  %v6255 = vunpack.c.l.b16 %v5019
  %v6256 = vunpack.c.h.b16 %v5019
  %v6257 = vunpack.c.l.b16 %v5020
  %v6258 = vunpack.c.l.b16 %v5021
  %v6259 = vunpack.c.h.b16 %v5021
  %v6260 = vunpack.c.l.b16 %v5022
  %v6261 = vunpack.c.h.b16 %v5022
  %v6262 = vunpack.c.l.b16 %v5023
  %v6263 = vunpack.c.h.b16 %v5023
  %v6264 = vunpack.c.l.b16 %v5024
  %v6265 = vunpack.c.l.b16 %v5025
  %v6266 = vunpack.c.h.b16 %v5025
  %v6267 = vunpack.c.l.b16 %v5026
  %v6268 = vunpack.c.h.b16 %v5026
  %v6269 = vunpack.c.l.b16 %v5027
  %v6270 = vunpack.c.h.b16 %v5027
  %v6271 = vunpack.c.l.b16 %v5028
  %v6272 = vunpack.c.l.b16 %v5029
  %v6273 = vunpack.c.h.b16 %v5029
  %v6274 = vunpack.c.l.b16 %v5030
  %v6275 = vunpack.c.h.b16 %v5030
  %v6276 = vunpack.c.l.b16 %v5031
  %v6277 = vunpack.c.h.b16 %v5031
  %v6278 = vunpack.c.l.b16 %v5032
  %v6279 = vunpack.c.l.b16 %v5033
  %v6280 = vunpack.c.h.b16 %v5033
  %v6281 = vunpack.c.l.b16 %v5034
  %v6282 = vunpack.c.h.b16 %v5034
  %v6283 = vunpack.c.l.b16 %v5035
  %v6284 = vunpack.c.h.b16 %v5035
  %v6285 = vunpack.c.l.b16 %v5036
  %v6286 = vunpack.c.l.b16 %v5037
  %v6287 = vunpack.c.h.b16 %v5037
  %v6288 = vunpack.c.l.b16 %v5038
  %v6289 = vunpack.c.h.b16 %v5038
  %v6290 = vunpack.c.l.b16 %v5039
  %v6291 = vunpack.c.h.b16 %v5039
  %v6292 = vunpack.c.l.b16 %v5040
  %v6293 = vunpack.c.l.b16 %v5041
  %v6294 = vunpack.c.h.b16 %v5041
  %v6295 = vunpack.c.l.b16 %v5042
  %v6296 = vunpack.c.h.b16 %v5042
  %v6297 = vunpack.c.l.b16 %v5043
  %v6298 = vunpack.c.h.b16 %v5043
  %v6299 = vunpack.c.l.b16 %v5044
  %v6300 = vunpack.c.l.b16 %v5045
  %v6301 = vunpack.c.h.b16 %v5045
  %v6302 = vunpack.c.l.b16 %v5046
  %v6303 = vunpack.c.h.b16 %v5046
  %v6304 = vunpack.c.l.b16 %v5047
  %v6305 = vunpack.c.h.b16 %v5047
  %v6306 = vunpack.c.l.b16 %v5048
  %v6307 = vunpack.c.l.b16 %v5049
  %v6308 = vunpack.c.h.b16 %v5049
  %v6309 = vunpack.c.l.b16 %v5050
  %v6310 = vunpack.c.h.b16 %v5050
  %v6311 = vunpack.c.l.b16 %v5051
  %v6312 = vunpack.c.h.b16 %v5051
  %v6313 = vunpack.c.l.b16 %v5052
  %v6314 = vunpack.c.l.b16 %v5053
  %v6315 = vunpack.c.h.b16 %v5053
  %v6316 = vunpack.c.l.b16 %v5054
  %v6317 = vunpack.c.h.b16 %v5054
  %v6318 = vunpack.c.l.b16 %v5055
  %v6319 = vunpack.c.h.b16 %v5055
  %v6320 = vunpack.c.l.b16 %v5056
  %v6321 = vunpack.c.l.b16 %v5057
  %v6322 = vunpack.c.h.b16 %v5057
  %v6323 = vunpack.c.l.b16 %v5058
  %v6324 = vunpack.c.h.b16 %v5058
  %v6325 = vunpack.c.l.b16 %v5059
  %v6326 = vunpack.c.h.b16 %v5059
  %v6327 = vunpack.c.l.b16 %v5060
  %v6328 = vunpack.c.l.b16 %v5061
  %v6329 = vunpack.c.h.b16 %v5061
  %v6330 = vunpack.c.l.b16 %v5062
  %v6331 = vunpack.c.h.b16 %v5062
  %v6332 = vunpack.c.l.b16 %v5063
  %v6333 = vunpack.c.h.b16 %v5063
  %v6334 = vunpack.c.l.b16 %v5064
  %v6335 = vunpack.c.l.b16 %v5065
  %v6336 = vunpack.c.h.b16 %v5065
  %v6337 = vunpack.c.l.b16 %v5066
  %v6338 = vunpack.c.h.b16 %v5066
  %v6339 = vunpack.c.l.b16 %v5067
  %v6340 = vunpack.c.h.b16 %v5067
  %v6341 = vunpack.c.l.b16 %v5068
  %v6342 = vunpack.c.l.b16 %v5069
  %v6343 = vunpack.c.h.b16 %v5069
  %v6344 = vunpack.c.l.b16 %v5070
  %v6345 = vunpack.c.h.b16 %v5070
  %v6346 = vunpack.c.l.b16 %v5071
  %v6347 = vunpack.c.h.b16 %v5071
  %v6348 = vunpack.c.l.b16 %v5072
  %v6349 = vunpack.c.l.b16 %v5073
  %v6350 = vunpack.c.h.b16 %v5073
  %v6351 = vunpack.c.l.b16 %v5074
  %v6352 = vunpack.c.h.b16 %v5074
  %v6353 = vunpack.c.l.b16 %v5075
  %v6354 = vunpack.c.h.b16 %v5075
  %v6355 = vunpack.c.l.b16 %v5076
  %v6356 = vunpack.c.l.b16 %v5077
  %v6357 = vunpack.c.h.b16 %v5077
  %v6358 = vunpack.c.l.b16 %v5078
  %v6359 = vunpack.c.h.b16 %v5078
  %v6360 = vunpack.c.l.b16 %v5079
  %v6361 = vunpack.c.h.b16 %v5079
  %v6362 = vunpack.c.l.b16 %v5080
  %v6363 = vunpack.c.l.b16 %v5081
  %v6364 = vunpack.c.h.b16 %v5081
  %v6365 = vunpack.c.l.b16 %v5082
  %v6366 = vunpack.c.h.b16 %v5082
  %v6367 = vunpack.c.l.b16 %v5083
  %v6368 = vunpack.c.h.b16 %v5083
  %v6369 = vunpack.c.l.b16 %v5084
  %v6370 = vunpack.c.l.b16 %v5085
  %v6371 = vunpack.c.h.b16 %v5085
  %v6372 = vunpack.c.l.b16 %v5086
  %v6373 = vunpack.c.h.b16 %v5086
  %v6374 = vunpack.c.l.b16 %v5087
  %v6375 = vunpack.c.h.b16 %v5087
  %v6376 = vunpack.c.l.b16 %v5088
  %v6377 = vunpack.c.l.b16 %v5089
  %v6378 = vunpack.c.h.b16 %v5089
  %v6379 = vunpack.c.l.b16 %v5090
  %v6380 = vunpack.c.h.b16 %v5090
  %v6381 = vunpack.c.l.b16 %v5091
  %v6382 = vunpack.c.h.b16 %v5091
  %v6383 = vunpack.c.l.b16 %v5092
  %v6384 = vunpack.c.l.b16 %v5093
  %v6385 = vunpack.c.h.b16 %v5093
  %v6386 = vunpack.c.l.b16 %v5094
  %v6387 = vunpack.c.h.b16 %v5094
  %v6388 = vunpack.c.l.b16 %v5095
  %v6389 = vunpack.c.h.b16 %v5095
  %v6390 = vunpack.c.l.b16 %v5096
  %v6391 = vunpack.c.l.b16 %v5097
  %v6392 = vunpack.c.h.b16 %v5097
  %v6393 = vunpack.c.l.b16 %v5098
  %v6394 = vunpack.c.h.b16 %v5098
  %v6395 = vunpack.c.l.b16 %v5099
  %v6396 = vunpack.c.h.b16 %v5099
  %v6397 = vunpack.c.l.b16 %v5100
  %v6398 = vunpack.c.l.b16 %v5101
  %v6399 = vunpack.c.h.b16 %v5101
  %v6400 = vunpack.c.l.b16 %v5102
  %v6401 = vunpack.c.h.b16 %v5102
  %v6402 = vunpack.c.l.b16 %v5103
  %v6403 = vunpack.c.h.b16 %v5103
  %v6404 = vunpack.c.l.b16 %v5104
  %v6405 = vunpack.c.l.b16 %v5105
  %v6406 = vunpack.c.h.b16 %v5105
  %v6407 = vunpack.c.l.b16 %v5106
  %v6408 = vunpack.c.h.b16 %v5106
  %v6409 = vunpack.c.l.b16 %v5107
  %v6410 = vunpack.c.h.b16 %v5107
  %v6411 = vunpack.c.l.b16 %v5108
  %v6412 = vunpack.c.l.b16 %v5109
  %v6413 = vunpack.c.h.b16 %v5109
  %v6414 = vunpack.c.l.b16 %v5110
  %v6415 = vunpack.c.h.b16 %v5110
  %v6416 = vunpack.c.l.b16 %v5111
  %v6417 = vunpack.c.h.b16 %v5111
  %v6418 = vunpack.c.l.b16 %v5112
  %v6419 = vunpack.c.l.b16 %v5113
  %v6420 = vunpack.c.h.b16 %v5113
  %v6421 = vunpack.c.l.b16 %v5114
  %v6422 = vunpack.c.h.b16 %v5114
  %v6423 = vunpack.c.l.b16 %v5115
  %v6424 = vunpack.c.h.b16 %v5115
  %v6425 = vunpack.c.l.b16 %v5116
  %v6426 = vunpack.c.l.b16 %v5117
  %v6427 = vunpack.c.h.b16 %v5117
  %v6428 = vunpack.c.l.b16 %v5118
  %v6429 = vunpack.c.h.b16 %v5118
  %v6430 = vunpack.c.l.b16 %v5119
  %v6431 = vunpack.c.h.b16 %v5119
  %v6432 = vunpack.c.l.b16 %v5120
  %v6433 = vunpack.c.l.b16 %v5121
  %v6434 = vunpack.c.h.b16 %v5121
  %v6435 = vunpack.c.l.b16 %v5122
  %v6436 = vunpack.c.h.b16 %v5122
  %v6437 = vunpack.c.l.b16 %v5123
  %v6438 = vunpack.c.h.b16 %v5123
  %v6439 = vunpack.c.l.b16 %v5124
  %v6440 = vunpack.c.l.b16 %v5125
  %v6441 = vunpack.c.h.b16 %v5125
  %v6442 = vunpack.c.l.b16 %v5126
  %v6443 = vunpack.c.h.b16 %v5126
  %v6444 = vunpack.c.l.b16 %v5127
  %v6445 = vunpack.c.h.b16 %v5127
  %v6446 = vunpack.c.l.b16 %v5128
  %v6447 = vunpack.c.l.b16 %v5129
  %v6448 = vunpack.c.h.b16 %v5129
  %v6449 = vunpack.c.l.b16 %v5130
  %v6450 = vunpack.c.h.b16 %v5130
  %v6451 = vunpack.c.l.b16 %v5131
  %v6452 = vunpack.c.h.b16 %v5131
  %v6453 = vunpack.c.l.b16 %v5132
  %v6454 = vunpack.c.l.b16 %v5133
  %v6455 = vunpack.c.h.b16 %v5133
  %v6456 = vunpack.c.l.b16 %v5134
  %v6457 = vunpack.c.h.b16 %v5134
  %v6458 = vunpack.c.l.b16 %v5135
  %v6459 = vunpack.c.h.b16 %v5135
  %v6460 = vunpack.c.l.b16 %v5136
  %v6461 = vunpack.c.l.b16 %v5137
  %v6462 = vunpack.c.h.b16 %v5137
  %v6463 = vunpack.c.l.b16 %v5138
  %v6464 = vunpack.c.h.b16 %v5138
  %v6465 = vunpack.c.l.b16 %v5139
  %v6466 = vunpack.c.h.b16 %v5139
  %v6467 = vunpack.c.l.b16 %v5140
  %v6468 = vunpack.c.l.b16 %v5141
  %v6469 = vunpack.c.h.b16 %v5141
  %v6470 = vunpack.c.l.b16 %v5142
  %v6471 = vunpack.c.h.b16 %v5142
  %v6472 = vunpack.c.l.b16 %v5143
  %v6473 = vunpack.c.h.b16 %v5143
  %v6474 = vunpack.c.l.b16 %v5144
  %v6475 = vunpack.c.l.b16 %v5145
  %v6476 = vunpack.c.h.b16 %v5145
  %v6477 = vunpack.c.l.b16 %v5146
  %v6478 = vunpack.c.h.b16 %v5146
  %v6479 = vunpack.c.l.b16 %v5147
  %v6480 = vunpack.c.h.b16 %v5147
  %v6481 = vunpack.c.l.b16 %v5148
  %v6482 = vunpack.c.l.b16 %v5149
  %v6483 = vunpack.c.h.b16 %v5149
  %v6484 = vunpack.c.l.b16 %v5150
  %v6485 = vunpack.c.h.b16 %v5150
  %v6486 = vunpack.c.l.b16 %v5151
  %v6487 = vunpack.c.h.b16 %v5151
  %v6488 = vunpack.c.l.b16 %v5152
  %v6489 = vunpack.c.l.b16 %v5153
  %v6490 = vunpack.c.h.b16 %v5153
  %v6491 = vunpack.c.l.b16 %v5154
  %v6492 = vunpack.c.h.b16 %v5154
  %v6493 = vunpack.c.l.b16 %v5155
  %v6494 = vunpack.c.h.b16 %v5155
  %v6495 = vunpack.c.l.b16 %v5156
  %v6496 = vunpack.c.l.b16 %v5157
  %v6497 = vunpack.c.h.b16 %v5157
  %v6498 = vunpack.c.l.b16 %v5158
  %v6499 = vunpack.c.h.b16 %v5158
  %v6500 = vunpack.c.l.b16 %v5159
  %v6501 = vunpack.c.h.b16 %v5159
  %v6502 = vunpack.c.l.b16 %v5160
  %v6503 = vunpack.c.l.b16 %v5161
  %v6504 = vunpack.c.h.b16 %v5161
  %v6505 = vunpack.c.l.b16 %v5162
  %v6506 = vunpack.c.h.b16 %v5162
  %v6507 = vunpack.c.l.b16 %v5163
  %v6508 = vunpack.c.h.b16 %v5163
  %v6509 = vunpack.c.l.b16 %v5164
  %v6510 = vunpack.c.l.b16 %v5165
  %v6511 = vunpack.c.h.b16 %v5165
  %v6512 = vunpack.c.l.b16 %v5166
  %v6513 = vunpack.c.h.b16 %v5166
  %v6514 = vunpack.c.l.b16 %v5167
  %v6515 = vunpack.c.h.b16 %v5167
  %v6516 = vunpack.c.l.b16 %v5168
  %v6517 = vunpack.c.l.b16 %v5169
  %v6518 = vunpack.c.h.b16 %v5169
  %v6519 = vunpack.c.l.b16 %v5170
  %v6520 = vunpack.c.h.b16 %v5170
  %v6521 = vunpack.c.l.b16 %v5171
  %v6522 = vunpack.c.h.b16 %v5171
  %v6523 = vunpack.c.l.b16 %v5172
  %v6524 = vunpack.c.l.b16 %v5173
  %v6525 = vunpack.c.h.b16 %v5173
  %v6526 = vunpack.c.l.b16 %v5174
  %v6527 = vunpack.c.h.b16 %v5174
  %v6528 = vunpack.c.l.b16 %v5175
  %v6529 = vunpack.c.h.b16 %v5175
  %v6530 = vunpack.c.l.b16 %v5176
  %v6531 = vunpack.c.l.b16 %v5177
  %v6532 = vunpack.c.h.b16 %v5177
  %v6533 = vunpack.c.l.b16 %v5178
  %v6534 = vunpack.c.h.b16 %v5178
  %v6535 = vunpack.c.l.b16 %v5179
  %v6536 = vunpack.c.h.b16 %v5179
  %v6537 = vunpack.c.l.b16 %v5180
  %v6538 = vunpack.c.l.b16 %v5181
  %v6539 = vunpack.c.h.b16 %v5181
  %v6540 = vunpack.c.l.b16 %v5182
  %v6541 = vunpack.c.h.b16 %v5182
  %v6542 = vunpack.c.l.b16 %v5183
  %v6543 = vunpack.c.h.b16 %v5183
  %v6544 = vunpack.c.l.b16 %v5184
  %v6545 = vunpack.c.l.b16 %v5185
  %v6546 = vunpack.c.h.b16 %v5185
  %v6547 = vunpack.c.l.b16 %v5186
  %v6548 = vunpack.c.h.b16 %v5186
  %v6549 = vunpack.c.l.b16 %v5187
  %v6550 = vunpack.c.h.b16 %v5187
  %v6551 = vunpack.c.l.b16 %v5188
  %v6552 = vunpack.c.l.b16 %v5189
  %v6553 = vunpack.c.h.b16 %v5189
  %v6554 = vunpack.c.l.b16 %v5190
  %v6555 = vunpack.c.h.b16 %v5190
  %v6556 = vunpack.c.l.b16 %v5191
  %v6557 = vunpack.c.h.b16 %v5191
  %v6558 = vunpack.c.l.b16 %v5192
  %v6559 = vunpack.c.l.b16 %v5193
  %v6560 = vunpack.c.h.b16 %v5193
  %v6561 = vunpack.c.l.b16 %v5194
  %v6562 = vunpack.c.h.b16 %v5194
  %v6563 = vunpack.c.l.b16 %v5195
  %v6564 = vunpack.c.h.b16 %v5195
  %v6565 = vunpack.c.l.b16 %v5196
  %v6566 = vunpack.c.l.b16 %v5197
  %v6567 = vunpack.c.h.b16 %v5197
  %v6568 = vunpack.c.l.b16 %v5198
  %v6569 = vunpack.c.h.b16 %v5198
  %v6570 = vunpack.c.l.b16 %v5199
  %v6571 = vunpack.c.h.b16 %v5199
  %v6572 = vunpack.c.l.b16 %v5200
  %v6573 = vunpack.c.l.b16 %v5201
  %v6574 = vunpack.c.h.b16 %v5201
  %v6575 = vunpack.c.l.b16 %v5202
  %v6576 = vunpack.c.h.b16 %v5202
  %v6577 = vunpack.c.l.b16 %v5203
  %v6578 = vunpack.c.h.b16 %v5203
  %v6579 = vunpack.c.l.b16 %v5204
  %v6580 = vunpack.c.l.b16 %v5205
  %v6581 = vunpack.c.h.b16 %v5205
  %v6582 = vunpack.c.l.b16 %v5206
  %v6583 = vunpack.c.h.b16 %v5206
  %v6584 = vunpack.c.l.b16 %v5207
  %v6585 = vunpack.c.h.b16 %v5207
  %v6586 = vunpack.c.l.b16 %v5208
  %v6587 = vunpack.c.l.b16 %v5209
  %v6588 = vunpack.c.h.b16 %v5209
  %v6589 = vunpack.c.l.b16 %v5210
  %v6590 = vunpack.c.h.b16 %v5210
  %v6591 = vunpack.c.l.b16 %v5211
  %v6592 = vunpack.c.h.b16 %v5211
  %v6593 = vunpack.c.l.b16 %v5212
  %v6594 = vunpack.c.l.b16 %v5213
  %v6595 = vunpack.c.h.b16 %v5213
  %v6596 = vunpack.c.l.b16 %v5214
  %v6597 = vunpack.c.h.b16 %v5214
  %v6598 = vunpack.c.l.b16 %v5215
  %v6599 = vunpack.c.h.b16 %v5215
  %v6600 = vunpack.c.l.b16 %v5216
  %v6601 = vunpack.c.l.b16 %v5217
  %v6602 = vunpack.c.h.b16 %v5217
  %v6603 = vunpack.c.l.b16 %v5218
  %v6604 = vunpack.c.h.b16 %v5218
  %v6605 = vunpack.c.l.b16 %v5219
  %v6606 = vunpack.c.h.b16 %v5219
  %v6607 = vunpack.c.l.b16 %v5220
  %v6608 = vunpack.c.l.b16 %v5221
  %v6609 = vunpack.c.h.b16 %v5221
  %v6610 = vunpack.c.l.b16 %v5222
  %v6611 = vunpack.c.h.b16 %v5222
  %v6612 = vunpack.c.l.b16 %v5223
  %v6613 = vunpack.c.h.b16 %v5223
  %v6614 = vunpack.c.l.b16 %v5224
  %v6615 = vunpack.c.l.b16 %v5225
  %v6616 = vunpack.c.h.b16 %v5225
  %v6617 = vunpack.c.l.b16 %v5226
  %v6618 = vunpack.c.h.b16 %v5226
  %v6619 = vunpack.c.l.b16 %v5227
  %v6620 = vunpack.c.h.b16 %v5227
  %v6621 = vunpack.c.l.b16 %v5228
  %v6622 = vunpack.c.l.b16 %v5229
  %v6623 = vunpack.c.h.b16 %v5229
  %v6624 = vunpack.c.l.b16 %v5230
  %v6625 = vunpack.c.h.b16 %v5230
  %v6626 = vunpack.c.l.b16 %v5231
  %v6627 = vunpack.c.h.b16 %v5231
  %v6628 = vunpack.c.l.b16 %v5232
  %v6629 = vunpack.c.l.b16 %v5233
  %v6630 = vunpack.c.h.b16 %v5233
  %v6631 = vunpack.c.l.b16 %v5234
  %v6632 = vunpack.c.h.b16 %v5234
  %v6633 = vunpack.c.l.b16 %v5235
  %v6634 = vunpack.c.h.b16 %v5235
  %v6635 = vunpack.c.l.b16 %v5236
  %v6636 = vunpack.c.l.b16 %v5237
  %v6637 = vunpack.c.h.b16 %v5237
  %v6638 = vunpack.c.l.b16 %v5238
  %v6639 = vunpack.c.h.b16 %v5238
  %v6640 = vunpack.c.l.b16 %v5239
  %v6641 = vunpack.c.h.b16 %v5239
  %v6642 = vunpack.c.l.b16 %v5240
  %v6643 = vunpack.c.l.b16 %v5241
  %v6644 = vunpack.c.h.b16 %v5241
  %v6645 = vunpack.c.l.b16 %v5242
  %v6646 = vunpack.c.h.b16 %v5242
  %v6647 = vunpack.c.l.b16 %v5243
  %v6648 = vunpack.c.h.b16 %v5243
  %v6649 = vunpack.c.l.b16 %v5244
  %v6650 = vunpack.c.l.b16 %v5245
  %v6651 = vunpack.c.h.b16 %v5245
  %v6652 = vunpack.c.l.b16 %v5246
  %v6653 = vunpack.c.h.b16 %v5246
  %v6654 = vunpack.c.l.b16 %v5247
  %v6655 = vunpack.c.h.b16 %v5247
  %v6656 = vunpack.c.l.b16 %v5248
  %v6657 = vunpack.c.l.b16 %v5249
  %v6658 = vunpack.c.h.b16 %v5249
  %v6659 = vunpack.c.l.b16 %v5250
  %v6660 = vunpack.c.h.b16 %v5250
  %v6661 = vunpack.c.l.b16 %v5251
  %v6662 = vunpack.c.h.b16 %v5251
  %v6663 = vunpack.c.l.b16 %v5252
  %v6664 = vunpack.c.l.b16 %v5253
  %v6665 = vunpack.c.h.b16 %v5253
  %v6666 = vunpack.c.l.b16 %v5254
  %v6667 = vunpack.c.h.b16 %v5254
  %v6668 = vunpack.c.l.b16 %v5255
  %v6669 = vunpack.c.h.b16 %v5255
  %v6670 = vunpack.c.l.b16 %v5256
  %v6671 = vunpack.c.l.b16 %v5257
  %v6672 = vunpack.c.h.b16 %v5257
  %v6673 = vunpack.c.l.b16 %v5258
  %v6674 = vunpack.c.h.b16 %v5258
  %v6675 = vunpack.c.l.b16 %v5259
  %v6676 = vunpack.c.h.b16 %v5259
  %v6677 = vunpack.c.l.b16 %v5260
  %v6678 = vunpack.c.l.b16 %v5261
  %v6679 = vunpack.c.h.b16 %v5261
  %v6680 = vunpack.c.l.b16 %v5262
  %v6681 = vunpack.c.h.b16 %v5262
  %v6682 = vunpack.c.l.b16 %v5263
  %v6683 = vunpack.c.h.b16 %v5263
  %v6684 = vunpack.c.l.b16 %v5264
  %v6685 = vunpack.c.l.b16 %v5265
  %v6686 = vunpack.c.h.b16 %v5265
  %v6687 = vunpack.c.l.b16 %v5266
  %v6688 = vunpack.c.h.b16 %v5266
  %v6689 = vunpack.c.l.b16 %v5267
  %v6690 = vunpack.c.h.b16 %v5267
  %v6691 = vunpack.c.l.b16 %v5268
  %v6692 = vpack.c.b16 %v5803, %v5796
  %v6693 = vpack.c.b16 %v5804, %v5797
  %v6694 = vpack.c.b16 %v5805, %v5798
  %v6695 = vpack.c.b16 %v5806, %v5799
  %v6696 = vpack.c.b16 %v5807, %v5800
  %v6697 = vpack.c.b16 %v5808, %v5801
  %v6698 = vpack.c.b16 %v5809, %v5802
  %v6699 = vpack.c.b16 %v5817, %v5810
  %v6700 = vpack.c.b16 %v5818, %v5811
  %v6701 = vpack.c.b16 %v5819, %v5812
  %v6702 = vpack.c.b16 %v5820, %v5813
  %v6703 = vpack.c.b16 %v5821, %v5814
  %v6704 = vpack.c.b16 %v5822, %v5815
  %v6705 = vpack.c.b16 %v5823, %v5816
  %v6706 = vpack.c.b16 %v5831, %v5824
  %v6707 = vpack.c.b16 %v5832, %v5825
  %v6708 = vpack.c.b16 %v5833, %v5826
  %v6709 = vpack.c.b16 %v5834, %v5827
  %v6710 = vpack.c.b16 %v5835, %v5828
  %v6711 = vpack.c.b16 %v5836, %v5829
  %v6712 = vpack.c.b16 %v5837, %v5830
  %v6713 = vpack.c.b16 %v5845, %v5838
  %v6714 = vpack.c.b16 %v5846, %v5839
  %v6715 = vpack.c.b16 %v5847, %v5840
  %v6716 = vpack.c.b16 %v5848, %v5841
  %v6717 = vpack.c.b16 %v5849, %v5842
  %v6718 = vpack.c.b16 %v5850, %v5843
  %v6719 = vpack.c.b16 %v5851, %v5844
  %v6720 = vpack.c.b16 %v5859, %v5852
  %v6721 = vpack.c.b16 %v5860, %v5853
  %v6722 = vpack.c.b16 %v5861, %v5854
  %v6723 = vpack.c.b16 %v5862, %v5855
  %v6724 = vpack.c.b16 %v5863, %v5856
  %v6725 = vpack.c.b16 %v5864, %v5857
  %v6726 = vpack.c.b16 %v5865, %v5858
  %v6727 = vpack.c.b16 %v5873, %v5866
  %v6728 = vpack.c.b16 %v5874, %v5867
  %v6729 = vpack.c.b16 %v5875, %v5868
  %v6730 = vpack.c.b16 %v5876, %v5869
  %v6731 = vpack.c.b16 %v5877, %v5870
  %v6732 = vpack.c.b16 %v5878, %v5871
  %v6733 = vpack.c.b16 %v5879, %v5872
  %v6734 = vpack.c.b16 %v5887, %v5880
  %v6735 = vpack.c.b16 %v5888, %v5881
  %v6736 = vpack.c.b16 %v5889, %v5882
  %v6737 = vpack.c.b16 %v5890, %v5883
  %v6738 = vpack.c.b16 %v5891, %v5884
  %v6739 = vpack.c.b16 %v5892, %v5885
  %v6740 = vpack.c.b16 %v5893, %v5886
  %v6741 = vpack.c.b16 %v5901, %v5894
  %v6742 = vpack.c.b16 %v5902, %v5895
  %v6743 = vpack.c.b16 %v5903, %v5896
  %v6744 = vpack.c.b16 %v5904, %v5897
  %v6745 = vpack.c.b16 %v5905, %v5898
  %v6746 = vpack.c.b16 %v5906, %v5899
  %v6747 = vpack.c.b16 %v5907, %v5900
  %v6748 = vpack.c.b16 %v5915, %v5908
  %v6749 = vpack.c.b16 %v5916, %v5909
  %v6750 = vpack.c.b16 %v5917, %v5910
  %v6751 = vpack.c.b16 %v5918, %v5911
  %v6752 = vpack.c.b16 %v5919, %v5912
  %v6753 = vpack.c.b16 %v5920, %v5913
  %v6754 = vpack.c.b16 %v5921, %v5914
  %v6755 = vpack.c.b16 %v5929, %v5922
  %v6756 = vpack.c.b16 %v5930, %v5923
  %v6757 = vpack.c.b16 %v5931, %v5924
  %v6758 = vpack.c.b16 %v5932, %v5925
  %v6759 = vpack.c.b16 %v5933, %v5926
  %v6760 = vpack.c.b16 %v5934, %v5927
  %v6761 = vpack.c.b16 %v5935, %v5928
  %v6762 = vpack.c.b16 %v5943, %v5936
  %v6763 = vpack.c.b16 %v5944, %v5937
  %v6764 = vpack.c.b16 %v5945, %v5938
  %v6765 = vpack.c.b16 %v5946, %v5939
  %v6766 = vpack.c.b16 %v5947, %v5940
  %v6767 = vpack.c.b16 %v5948, %v5941
  %v6768 = vpack.c.b16 %v5949, %v5942
  %v6769 = vpack.c.b16 %v5957, %v5950
  %v6770 = vpack.c.b16 %v5958, %v5951
  %v6771 = vpack.c.b16 %v5959, %v5952
  %v6772 = vpack.c.b16 %v5960, %v5953
  %v6773 = vpack.c.b16 %v5961, %v5954
  %v6774 = vpack.c.b16 %v5962, %v5955
  %v6775 = vpack.c.b16 %v5963, %v5956
  %v6776 = vpack.c.b16 %v5971, %v5964
  %v6777 = vpack.c.b16 %v5972, %v5965
  %v6778 = vpack.c.b16 %v5973, %v5966
  %v6779 = vpack.c.b16 %v5974, %v5967
  %v6780 = vpack.c.b16 %v5975, %v5968
  %v6781 = vpack.c.b16 %v5976, %v5969
  %v6782 = vpack.c.b16 %v5977, %v5970
  %v6783 = vpack.c.b16 %v5985, %v5978
  %v6784 = vpack.c.b16 %v5986, %v5979
  %v6785 = vpack.c.b16 %v5987, %v5980
  %v6786 = vpack.c.b16 %v5988, %v5981
  %v6787 = vpack.c.b16 %v5989, %v5982
  %v6788 = vpack.c.b16 %v5990, %v5983
  %v6789 = vpack.c.b16 %v5991, %v5984
  %v6790 = vpack.c.b16 %v5999, %v5992
  %v6791 = vpack.c.b16 %v6000, %v5993
  %v6792 = vpack.c.b16 %v6001, %v5994
  %v6793 = vpack.c.b16 %v6002, %v5995
  %v6794 = vpack.c.b16 %v6003, %v5996
  %v6795 = vpack.c.b16 %v6004, %v5997
  %v6796 = vpack.c.b16 %v6005, %v5998
  %v6797 = vpack.c.b16 %v6013, %v6006
  %v6798 = vpack.c.b16 %v6014, %v6007
  %v6799 = vpack.c.b16 %v6015, %v6008
  %v6800 = vpack.c.b16 %v6016, %v6009
  %v6801 = vpack.c.b16 %v6017, %v6010
  %v6802 = vpack.c.b16 %v6018, %v6011
  %v6803 = vpack.c.b16 %v6019, %v6012
  %v6804 = vpack.c.b16 %v6027, %v6020
  %v6805 = vpack.c.b16 %v6028, %v6021
  %v6806 = vpack.c.b16 %v6029, %v6022
  %v6807 = vpack.c.b16 %v6030, %v6023
  %v6808 = vpack.c.b16 %v6031, %v6024
  %v6809 = vpack.c.b16 %v6032, %v6025
  %v6810 = vpack.c.b16 %v6033, %v6026
  %v6811 = vpack.c.b16 %v6041, %v6034
  %v6812 = vpack.c.b16 %v6042, %v6035
  %v6813 = vpack.c.b16 %v6043, %v6036
  %v6814 = vpack.c.b16 %v6044, %v6037
  %v6815 = vpack.c.b16 %v6045, %v6038
  %v6816 = vpack.c.b16 %v6046, %v6039
  %v6817 = vpack.c.b16 %v6047, %v6040
  %v6818 = vpack.c.b16 %v6055, %v6048
  %v6819 = vpack.c.b16 %v6056, %v6049
  %v6820 = vpack.c.b16 %v6057, %v6050
  %v6821 = vpack.c.b16 %v6058, %v6051
  %v6822 = vpack.c.b16 %v6059, %v6052
  %v6823 = vpack.c.b16 %v6060, %v6053
  %v6824 = vpack.c.b16 %v6061, %v6054
  %v6825 = vpack.c.b16 %v6069, %v6062
  %v6826 = vpack.c.b16 %v6070, %v6063
  %v6827 = vpack.c.b16 %v6071, %v6064
  %v6828 = vpack.c.b16 %v6072, %v6065
  %v6829 = vpack.c.b16 %v6073, %v6066
  %v6830 = vpack.c.b16 %v6074, %v6067
  %v6831 = vpack.c.b16 %v6075, %v6068
  %v6832 = vpack.c.b16 %v6083, %v6076
  %v6833 = vpack.c.b16 %v6084, %v6077
  %v6834 = vpack.c.b16 %v6085, %v6078
  %v6835 = vpack.c.b16 %v6086, %v6079
  %v6836 = vpack.c.b16 %v6087, %v6080
  %v6837 = vpack.c.b16 %v6088, %v6081
  %v6838 = vpack.c.b16 %v6089, %v6082
  %v6839 = vpack.c.b16 %v6097, %v6090
  %v6840 = vpack.c.b16 %v6098, %v6091
  %v6841 = vpack.c.b16 %v6099, %v6092
  %v6842 = vpack.c.b16 %v6100, %v6093
  %v6843 = vpack.c.b16 %v6101, %v6094
  %v6844 = vpack.c.b16 %v6102, %v6095
  %v6845 = vpack.c.b16 %v6103, %v6096
  %v6846 = vpack.c.b16 %v6111, %v6104
  %v6847 = vpack.c.b16 %v6112, %v6105
  %v6848 = vpack.c.b16 %v6113, %v6106
  %v6849 = vpack.c.b16 %v6114, %v6107
  %v6850 = vpack.c.b16 %v6115, %v6108
  %v6851 = vpack.c.b16 %v6116, %v6109
  %v6852 = vpack.c.b16 %v6117, %v6110
  %v6853 = vpack.c.b16 %v6125, %v6118
  %v6854 = vpack.c.b16 %v6126, %v6119
  %v6855 = vpack.c.b16 %v6127, %v6120
  %v6856 = vpack.c.b16 %v6128, %v6121
  %v6857 = vpack.c.b16 %v6129, %v6122
  %v6858 = vpack.c.b16 %v6130, %v6123
  %v6859 = vpack.c.b16 %v6131, %v6124
  %v6860 = vpack.c.b16 %v6139, %v6132
  %v6861 = vpack.c.b16 %v6140, %v6133
  %v6862 = vpack.c.b16 %v6141, %v6134
  %v6863 = vpack.c.b16 %v6142, %v6135
  %v6864 = vpack.c.b16 %v6143, %v6136
  %v6865 = vpack.c.b16 %v6144, %v6137
  %v6866 = vpack.c.b16 %v6145, %v6138
  %v6867 = vpack.c.b16 %v6153, %v6146
  %v6868 = vpack.c.b16 %v6154, %v6147
  %v6869 = vpack.c.b16 %v6155, %v6148
  %v6870 = vpack.c.b16 %v6156, %v6149
  %v6871 = vpack.c.b16 %v6157, %v6150
  %v6872 = vpack.c.b16 %v6158, %v6151
  %v6873 = vpack.c.b16 %v6159, %v6152
  %v6874 = vpack.c.b16 %v6167, %v6160
  %v6875 = vpack.c.b16 %v6168, %v6161
  %v6876 = vpack.c.b16 %v6169, %v6162
  %v6877 = vpack.c.b16 %v6170, %v6163
  %v6878 = vpack.c.b16 %v6171, %v6164
  %v6879 = vpack.c.b16 %v6172, %v6165
  %v6880 = vpack.c.b16 %v6173, %v6166
  %v6881 = vpack.c.b16 %v6181, %v6174
  %v6882 = vpack.c.b16 %v6182, %v6175
  %v6883 = vpack.c.b16 %v6183, %v6176
  %v6884 = vpack.c.b16 %v6184, %v6177
  %v6885 = vpack.c.b16 %v6185, %v6178
  %v6886 = vpack.c.b16 %v6186, %v6179
  %v6887 = vpack.c.b16 %v6187, %v6180
  %v6888 = vpack.c.b16 %v6195, %v6188
  %v6889 = vpack.c.b16 %v6196, %v6189
  %v6890 = vpack.c.b16 %v6197, %v6190
  %v6891 = vpack.c.b16 %v6198, %v6191
  %v6892 = vpack.c.b16 %v6199, %v6192
  %v6893 = vpack.c.b16 %v6200, %v6193
  %v6894 = vpack.c.b16 %v6201, %v6194
  %v6895 = vpack.c.b16 %v6209, %v6202
  %v6896 = vpack.c.b16 %v6210, %v6203
  %v6897 = vpack.c.b16 %v6211, %v6204
  %v6898 = vpack.c.b16 %v6212, %v6205
  %v6899 = vpack.c.b16 %v6213, %v6206
  %v6900 = vpack.c.b16 %v6214, %v6207
  %v6901 = vpack.c.b16 %v6215, %v6208
  %v6902 = vpack.c.b16 %v6223, %v6216
  %v6903 = vpack.c.b16 %v6224, %v6217
  %v6904 = vpack.c.b16 %v6225, %v6218
  %v6905 = vpack.c.b16 %v6226, %v6219
  %v6906 = vpack.c.b16 %v6227, %v6220
  %v6907 = vpack.c.b16 %v6228, %v6221
  %v6908 = vpack.c.b16 %v6229, %v6222
  %v6909 = vpack.c.b16 %v6237, %v6230
  %v6910 = vpack.c.b16 %v6238, %v6231
  %v6911 = vpack.c.b16 %v6239, %v6232
  %v6912 = vpack.c.b16 %v6240, %v6233
  %v6913 = vpack.c.b16 %v6241, %v6234
  %v6914 = vpack.c.b16 %v6242, %v6235
  %v6915 = vpack.c.b16 %v6243, %v6236
  %v6916 = vpack.c.b16 %v6251, %v6244
  %v6917 = vpack.c.b16 %v6252, %v6245
  %v6918 = vpack.c.b16 %v6253, %v6246
  %v6919 = vpack.c.b16 %v6254, %v6247
  %v6920 = vpack.c.b16 %v6255, %v6248
  %v6921 = vpack.c.b16 %v6256, %v6249
  %v6922 = vpack.c.b16 %v6257, %v6250
  %v6923 = vpack.c.b16 %v6265, %v6258
  %v6924 = vpack.c.b16 %v6266, %v6259
  %v6925 = vpack.c.b16 %v6267, %v6260
  %v6926 = vpack.c.b16 %v6268, %v6261
  %v6927 = vpack.c.b16 %v6269, %v6262
  %v6928 = vpack.c.b16 %v6270, %v6263
  %v6929 = vpack.c.b16 %v6271, %v6264
  %v6930 = vpack.c.b16 %v6279, %v6272
  %v6931 = vpack.c.b16 %v6280, %v6273
  %v6932 = vpack.c.b16 %v6281, %v6274
  %v6933 = vpack.c.b16 %v6282, %v6275
  %v6934 = vpack.c.b16 %v6283, %v6276
  %v6935 = vpack.c.b16 %v6284, %v6277
  %v6936 = vpack.c.b16 %v6285, %v6278
  %v6937 = vpack.c.b16 %v6293, %v6286
  %v6938 = vpack.c.b16 %v6294, %v6287
  %v6939 = vpack.c.b16 %v6295, %v6288
  %v6940 = vpack.c.b16 %v6296, %v6289
  %v6941 = vpack.c.b16 %v6297, %v6290
  %v6942 = vpack.c.b16 %v6298, %v6291
  %v6943 = vpack.c.b16 %v6299, %v6292
  %v6944 = vpack.c.b16 %v6307, %v6300
  %v6945 = vpack.c.b16 %v6308, %v6301
  %v6946 = vpack.c.b16 %v6309, %v6302
  %v6947 = vpack.c.b16 %v6310, %v6303
  %v6948 = vpack.c.b16 %v6311, %v6304
  %v6949 = vpack.c.b16 %v6312, %v6305
  %v6950 = vpack.c.b16 %v6313, %v6306
  %v6951 = vpack.c.b16 %v6321, %v6314
  %v6952 = vpack.c.b16 %v6322, %v6315
  %v6953 = vpack.c.b16 %v6323, %v6316
  %v6954 = vpack.c.b16 %v6324, %v6317
  %v6955 = vpack.c.b16 %v6325, %v6318
  %v6956 = vpack.c.b16 %v6326, %v6319
  %v6957 = vpack.c.b16 %v6327, %v6320
  %v6958 = vpack.c.b16 %v6335, %v6328
  %v6959 = vpack.c.b16 %v6336, %v6329
  %v6960 = vpack.c.b16 %v6337, %v6330
  %v6961 = vpack.c.b16 %v6338, %v6331
  %v6962 = vpack.c.b16 %v6339, %v6332
  %v6963 = vpack.c.b16 %v6340, %v6333
  %v6964 = vpack.c.b16 %v6341, %v6334
  %v6965 = vpack.c.b16 %v6349, %v6342
  %v6966 = vpack.c.b16 %v6350, %v6343
  %v6967 = vpack.c.b16 %v6351, %v6344
  %v6968 = vpack.c.b16 %v6352, %v6345
  %v6969 = vpack.c.b16 %v6353, %v6346
  %v6970 = vpack.c.b16 %v6354, %v6347
  %v6971 = vpack.c.b16 %v6355, %v6348
  %v6972 = vpack.c.b16 %v6363, %v6356
  %v6973 = vpack.c.b16 %v6364, %v6357
  %v6974 = vpack.c.b16 %v6365, %v6358
  %v6975 = vpack.c.b16 %v6366, %v6359
  %v6976 = vpack.c.b16 %v6367, %v6360
  %v6977 = vpack.c.b16 %v6368, %v6361
  %v6978 = vpack.c.b16 %v6369, %v6362
  %v6979 = vpack.c.b16 %v6377, %v6370
  %v6980 = vpack.c.b16 %v6378, %v6371
  %v6981 = vpack.c.b16 %v6379, %v6372
  %v6982 = vpack.c.b16 %v6380, %v6373
  %v6983 = vpack.c.b16 %v6381, %v6374
  %v6984 = vpack.c.b16 %v6382, %v6375
  %v6985 = vpack.c.b16 %v6383, %v6376
  %v6986 = vpack.c.b16 %v6391, %v6384
  %v6987 = vpack.c.b16 %v6392, %v6385
  %v6988 = vpack.c.b16 %v6393, %v6386
  %v6989 = vpack.c.b16 %v6394, %v6387
  %v6990 = vpack.c.b16 %v6395, %v6388
  %v6991 = vpack.c.b16 %v6396, %v6389
  %v6992 = vpack.c.b16 %v6397, %v6390
  %v6993 = vpack.c.b16 %v6405, %v6398
  %v6994 = vpack.c.b16 %v6406, %v6399
  %v6995 = vpack.c.b16 %v6407, %v6400
  %v6996 = vpack.c.b16 %v6408, %v6401
  %v6997 = vpack.c.b16 %v6409, %v6402
  %v6998 = vpack.c.b16 %v6410, %v6403
  %v6999 = vpack.c.b16 %v6411, %v6404
  %v7000 = vpack.c.b16 %v6419, %v6412
  %v7001 = vpack.c.b16 %v6420, %v6413
  %v7002 = vpack.c.b16 %v6421, %v6414
  %v7003 = vpack.c.b16 %v6422, %v6415
  %v7004 = vpack.c.b16 %v6423, %v6416
  %v7005 = vpack.c.b16 %v6424, %v6417
  %v7006 = vpack.c.b16 %v6425, %v6418
  %v7007 = vpack.c.b16 %v6433, %v6426
  %v7008 = vpack.c.b16 %v6434, %v6427
  %v7009 = vpack.c.b16 %v6435, %v6428
  %v7010 = vpack.c.b16 %v6436, %v6429
  %v7011 = vpack.c.b16 %v6437, %v6430
  %v7012 = vpack.c.b16 %v6438, %v6431
  %v7013 = vpack.c.b16 %v6439, %v6432
  %v7014 = vpack.c.b16 %v6447, %v6440
  %v7015 = vpack.c.b16 %v6448, %v6441
  %v7016 = vpack.c.b16 %v6449, %v6442
  %v7017 = vpack.c.b16 %v6450, %v6443
  %v7018 = vpack.c.b16 %v6451, %v6444
  %v7019 = vpack.c.b16 %v6452, %v6445
  %v7020 = vpack.c.b16 %v6453, %v6446
  %v7021 = vpack.c.b16 %v6461, %v6454
  %v7022 = vpack.c.b16 %v6462, %v6455
  %v7023 = vpack.c.b16 %v6463, %v6456
  %v7024 = vpack.c.b16 %v6464, %v6457
  %v7025 = vpack.c.b16 %v6465, %v6458
  %v7026 = vpack.c.b16 %v6466, %v6459
  %v7027 = vpack.c.b16 %v6467, %v6460
  %v7028 = vpack.c.b16 %v6475, %v6468
  %v7029 = vpack.c.b16 %v6476, %v6469
  %v7030 = vpack.c.b16 %v6477, %v6470
  %v7031 = vpack.c.b16 %v6478, %v6471
  %v7032 = vpack.c.b16 %v6479, %v6472
  %v7033 = vpack.c.b16 %v6480, %v6473
  %v7034 = vpack.c.b16 %v6481, %v6474
  %v7035 = vpack.c.b16 %v6489, %v6482
  %v7036 = vpack.c.b16 %v6490, %v6483
  %v7037 = vpack.c.b16 %v6491, %v6484
  %v7038 = vpack.c.b16 %v6492, %v6485
  %v7039 = vpack.c.b16 %v6493, %v6486
  %v7040 = vpack.c.b16 %v6494, %v6487
  %v7041 = vpack.c.b16 %v6495, %v6488
  %v7042 = vpack.c.b16 %v6503, %v6496
  %v7043 = vpack.c.b16 %v6504, %v6497
  %v7044 = vpack.c.b16 %v6505, %v6498
  %v7045 = vpack.c.b16 %v6506, %v6499
  %v7046 = vpack.c.b16 %v6507, %v6500
  %v7047 = vpack.c.b16 %v6508, %v6501
  %v7048 = vpack.c.b16 %v6509, %v6502
  %v7049 = vpack.c.b16 %v6517, %v6510
  %v7050 = vpack.c.b16 %v6518, %v6511
  %v7051 = vpack.c.b16 %v6519, %v6512
  %v7052 = vpack.c.b16 %v6520, %v6513
  %v7053 = vpack.c.b16 %v6521, %v6514
  %v7054 = vpack.c.b16 %v6522, %v6515
  %v7055 = vpack.c.b16 %v6523, %v6516
  %v7056 = vpack.c.b16 %v6531, %v6524
  %v7057 = vpack.c.b16 %v6532, %v6525
  %v7058 = vpack.c.b16 %v6533, %v6526
  %v7059 = vpack.c.b16 %v6534, %v6527
  %v7060 = vpack.c.b16 %v6535, %v6528
  %v7061 = vpack.c.b16 %v6536, %v6529
  %v7062 = vpack.c.b16 %v6537, %v6530
  %v7063 = vpack.c.b16 %v6545, %v6538
  %v7064 = vpack.c.b16 %v6546, %v6539
  %v7065 = vpack.c.b16 %v6547, %v6540
  %v7066 = vpack.c.b16 %v6548, %v6541
  %v7067 = vpack.c.b16 %v6549, %v6542
  %v7068 = vpack.c.b16 %v6550, %v6543
  %v7069 = vpack.c.b16 %v6551, %v6544
  %v7070 = vpack.c.b16 %v6559, %v6552
  %v7071 = vpack.c.b16 %v6560, %v6553
  %v7072 = vpack.c.b16 %v6561, %v6554
  %v7073 = vpack.c.b16 %v6562, %v6555
  %v7074 = vpack.c.b16 %v6563, %v6556
  %v7075 = vpack.c.b16 %v6564, %v6557
  %v7076 = vpack.c.b16 %v6565, %v6558
  %v7077 = vpack.c.b16 %v6573, %v6566
  %v7078 = vpack.c.b16 %v6574, %v6567
  %v7079 = vpack.c.b16 %v6575, %v6568
  %v7080 = vpack.c.b16 %v6576, %v6569
  %v7081 = vpack.c.b16 %v6577, %v6570
  %v7082 = vpack.c.b16 %v6578, %v6571
  %v7083 = vpack.c.b16 %v6579, %v6572
  %v7084 = vpack.c.b16 %v6587, %v6580
  %v7085 = vpack.c.b16 %v6588, %v6581
  %v7086 = vpack.c.b16 %v6589, %v6582
  %v7087 = vpack.c.b16 %v6590, %v6583
  %v7088 = vpack.c.b16 %v6591, %v6584
  %v7089 = vpack.c.b16 %v6592, %v6585
  %v7090 = vpack.c.b16 %v6593, %v6586
  %v7091 = vpack.c.b16 %v6601, %v6594
  %v7092 = vpack.c.b16 %v6602, %v6595
  %v7093 = vpack.c.b16 %v6603, %v6596
  %v7094 = vpack.c.b16 %v6604, %v6597
  %v7095 = vpack.c.b16 %v6605, %v6598
  %v7096 = vpack.c.b16 %v6606, %v6599
  %v7097 = vpack.c.b16 %v6607, %v6600
  %v7098 = vpack.c.b16 %v6615, %v6608
  %v7099 = vpack.c.b16 %v6616, %v6609
  %v7100 = vpack.c.b16 %v6617, %v6610
  %v7101 = vpack.c.b16 %v6618, %v6611
  %v7102 = vpack.c.b16 %v6619, %v6612
  %v7103 = vpack.c.b16 %v6620, %v6613
  %v7104 = vpack.c.b16 %v6621, %v6614
  %v7105 = vpack.c.b16 %v6629, %v6622
  %v7106 = vpack.c.b16 %v6630, %v6623
  %v7107 = vpack.c.b16 %v6631, %v6624
  %v7108 = vpack.c.b16 %v6632, %v6625
  %v7109 = vpack.c.b16 %v6633, %v6626
  %v7110 = vpack.c.b16 %v6634, %v6627
  %v7111 = vpack.c.b16 %v6635, %v6628
  %v7112 = vpack.c.b16 %v6643, %v6636
  %v7113 = vpack.c.b16 %v6644, %v6637
  %v7114 = vpack.c.b16 %v6645, %v6638
  %v7115 = vpack.c.b16 %v6646, %v6639
  %v7116 = vpack.c.b16 %v6647, %v6640
  %v7117 = vpack.c.b16 %v6648, %v6641
  %v7118 = vpack.c.b16 %v6649, %v6642
  %v7119 = vpack.c.b16 %v6657, %v6650
  %v7120 = vpack.c.b16 %v6658, %v6651
  %v7121 = vpack.c.b16 %v6659, %v6652
  %v7122 = vpack.c.b16 %v6660, %v6653
  %v7123 = vpack.c.b16 %v6661, %v6654
  %v7124 = vpack.c.b16 %v6662, %v6655
  %v7125 = vpack.c.b16 %v6663, %v6656
  %v7126 = vpack.c.b16 %v6671, %v6664
  %v7127 = vpack.c.b16 %v6672, %v6665
  %v7128 = vpack.c.b16 %v6673, %v6666
  %v7129 = vpack.c.b16 %v6674, %v6667
  %v7130 = vpack.c.b16 %v6675, %v6668
  %v7131 = vpack.c.b16 %v6676, %v6669
  %v7132 = vpack.c.b16 %v6677, %v6670
  %v7133 = vpack.c.b16 %v6685, %v6678
  %v7134 = vpack.c.b16 %v6686, %v6679
  %v7135 = vpack.c.b16 %v6687, %v6680
  %v7136 = vpack.c.b16 %v6688, %v6681
  %v7137 = vpack.c.b16 %v6689, %v6682
  %v7138 = vpack.c.b16 %v6690, %v6683
  %v7139 = vpack.c.b16 %v6691, %v6684
  %7588 = vmatpush.bf16.msra.mxu0 %v6741
  %7589 = vmatpush.bf16.msra.mxu0 %v6734
  %7590 = vmatpush.bf16.msra.mxu0 %v6727
  %7591 = vmatpush.bf16.msra.mxu0 %v6720
  %7592 = vmatpush.bf16.msra.mxu0 %v6713
  %7593 = vmatpush.bf16.msra.mxu0 %v6706
  %7594 = vmatpush.bf16.msra.mxu0 %v6699
  %7595 = vmatpush.bf16.msra.mxu0 %v6692
  %7596 = vmatmul.bf16.gmra.mxu0 %v4749
  %v7597 = vpop.f32.mrf.mxu0
  %v7598 = vadd.f32 %v5270, %v7597
  %v7599 = vpop.f32.mrf.mxu0
  %7600 = vdwg.mxu0
  %7601 = vmatpush.bf16.msra.mxu0 %v6797
  %7602 = vmatpush.bf16.msra.mxu0 %v6790
  %7603 = vmatpush.bf16.msra.mxu0 %v6783
  %7604 = vmatpush.bf16.msra.mxu0 %v6776
  %7605 = vmatpush.bf16.msra.mxu0 %v6769
  %7606 = vmatpush.bf16.msra.mxu0 %v6762
  %7607 = vmatpush.bf16.msra.mxu0 %v6755
  %7608 = vmatpush.bf16.msra.mxu0 %v6748
  %7609 = vmatmul.bf16.gmra.mxu0 %v4750
  %v7610 = vpop.f32.mrf.mxu0
  %v7611 = vadd.f32 %v7598, %v7610
  %v7612 = vpop.f32.mrf.mxu0
  %7613 = vdwg.mxu0
  %7614 = vmatpush.bf16.msra.mxu0 %v6853
  %7615 = vmatpush.bf16.msra.mxu0 %v6846
  %7616 = vmatpush.bf16.msra.mxu0 %v6839
  %7617 = vmatpush.bf16.msra.mxu0 %v6832
  %7618 = vmatpush.bf16.msra.mxu0 %v6825
  %7619 = vmatpush.bf16.msra.mxu0 %v6818
  %7620 = vmatpush.bf16.msra.mxu0 %v6811
  %7621 = vmatpush.bf16.msra.mxu0 %v6804
  %7622 = vmatmul.bf16.gmra.mxu0 %v4751
  %v7623 = vpop.f32.mrf.mxu0
  %v7624 = vadd.f32 %v7611, %v7623
  %v7625 = vpop.f32.mrf.mxu0
  %7626 = vdwg.mxu0
  %7627 = vmatpush.bf16.msra.mxu0 %v6909
  %7628 = vmatpush.bf16.msra.mxu0 %v6902
  %7629 = vmatpush.bf16.msra.mxu0 %v6895
  %7630 = vmatpush.bf16.msra.mxu0 %v6888
  %7631 = vmatpush.bf16.msra.mxu0 %v6881
  %7632 = vmatpush.bf16.msra.mxu0 %v6874
  %7633 = vmatpush.bf16.msra.mxu0 %v6867
  %7634 = vmatpush.bf16.msra.mxu0 %v6860
  %7635 = vmatmul.bf16.gmra.mxu0 %v4752
  %v7636 = vpop.f32.mrf.mxu0
  %v7637 = vadd.f32 %v7624, %v7636
  %v7638 = vpop.f32.mrf.mxu0
  %7639 = vdwg.mxu0
  %7640 = vmatpush.bf16.msra.mxu0 %v6965
  %7641 = vmatpush.bf16.msra.mxu0 %v6958
  %7642 = vmatpush.bf16.msra.mxu0 %v6951
  %7643 = vmatpush.bf16.msra.mxu0 %v6944
  %7644 = vmatpush.bf16.msra.mxu0 %v6937
  %7645 = vmatpush.bf16.msra.mxu0 %v6930
  %7646 = vmatpush.bf16.msra.mxu0 %v6923
  %7647 = vmatpush.bf16.msra.mxu0 %v6916
  %7648 = vmatmul.bf16.gmra.mxu0 %v4753
  %v7649 = vpop.f32.mrf.mxu0
  %v7650 = vadd.f32 %v7637, %v7649
  %v7651 = vpop.f32.mrf.mxu0
  %7652 = vdwg.mxu0
  %7653 = vmatpush.bf16.msra.mxu0 %v7021
  %7654 = vmatpush.bf16.msra.mxu0 %v7014
  %7655 = vmatpush.bf16.msra.mxu0 %v7007
  %7656 = vmatpush.bf16.msra.mxu0 %v7000
  %7657 = vmatpush.bf16.msra.mxu0 %v6993
  %7658 = vmatpush.bf16.msra.mxu0 %v6986
  %7659 = vmatpush.bf16.msra.mxu0 %v6979
  %7660 = vmatpush.bf16.msra.mxu0 %v6972
  %7661 = vmatmul.bf16.gmra.mxu0 %v4754
  %v7662 = vpop.f32.mrf.mxu0
  %v7663 = vadd.f32 %v7650, %v7662
  %v7664 = vpop.f32.mrf.mxu0
  %7665 = vdwg.mxu0
  %7666 = vmatpush.bf16.msra.mxu0 %v7077
  %7667 = vmatpush.bf16.msra.mxu0 %v7070
  %7668 = vmatpush.bf16.msra.mxu0 %v7063
  %7669 = vmatpush.bf16.msra.mxu0 %v7056
  %7670 = vmatpush.bf16.msra.mxu0 %v7049
  %7671 = vmatpush.bf16.msra.mxu0 %v7042
  %7672 = vmatpush.bf16.msra.mxu0 %v7035
  %7673 = vmatpush.bf16.msra.mxu0 %v7028
  %7674 = vmatmul.bf16.gmra.mxu0 %v4755
  %v7675 = vpop.f32.mrf.mxu0
  %v7676 = vadd.f32 %v7663, %v7675
  %v7677 = vpop.f32.mrf.mxu0
  %7678 = vdwg.mxu0
  %7679 = vmatpush.bf16.msra.mxu0 %v7133
  %7680 = vmatpush.bf16.msra.mxu0 %v7126
  %7681 = vmatpush.bf16.msra.mxu0 %v7119
  %7682 = vmatpush.bf16.msra.mxu0 %v7112
  %7683 = vmatpush.bf16.msra.mxu0 %v7105
  %7684 = vmatpush.bf16.msra.mxu0 %v7098
  %7685 = vmatpush.bf16.msra.mxu0 %v7091
  %7686 = vmatpush.bf16.msra.mxu0 %v7084
  %7687 = vmatmul.bf16.gmra.mxu0 %v4756
  %v7688 = vpop.f32.mrf.mxu0
  %v7689 = vadd.f32 %v7676, %v7688
  %v7690 = vpop.f32.mrf.mxu0
  %7691 = vdwg.mxu0
  %7692 = vmatpush.bf16.msra.mxu0 %v6742
  %7693 = vmatpush.bf16.msra.mxu0 %v6735
  %7694 = vmatpush.bf16.msra.mxu0 %v6728
  %7695 = vmatpush.bf16.msra.mxu0 %v6721
  %7696 = vmatpush.bf16.msra.mxu0 %v6714
  %7697 = vmatpush.bf16.msra.mxu0 %v6707
  %7698 = vmatpush.bf16.msra.mxu0 %v6700
  %7699 = vmatpush.bf16.msra.mxu0 %v6693
  %7700 = vmatmul.bf16.gmra.mxu0 %v4749
  %v7701 = vpop.f32.mrf.mxu0
  %v7702 = vadd.f32 %v5271, %v7701
  %v7703 = vpop.f32.mrf.mxu0
  %7704 = vdwg.mxu0
  %7705 = vmatpush.bf16.msra.mxu0 %v6798
  %7706 = vmatpush.bf16.msra.mxu0 %v6791
  %7707 = vmatpush.bf16.msra.mxu0 %v6784
  %7708 = vmatpush.bf16.msra.mxu0 %v6777
  %7709 = vmatpush.bf16.msra.mxu0 %v6770
  %7710 = vmatpush.bf16.msra.mxu0 %v6763
  %7711 = vmatpush.bf16.msra.mxu0 %v6756
  %7712 = vmatpush.bf16.msra.mxu0 %v6749
  %7713 = vmatmul.bf16.gmra.mxu0 %v4750
  %v7714 = vpop.f32.mrf.mxu0
  %v7715 = vadd.f32 %v7702, %v7714
  %v7716 = vpop.f32.mrf.mxu0
  %7717 = vdwg.mxu0
  %7718 = vmatpush.bf16.msra.mxu0 %v6854
  %7719 = vmatpush.bf16.msra.mxu0 %v6847
  %7720 = vmatpush.bf16.msra.mxu0 %v6840
  %7721 = vmatpush.bf16.msra.mxu0 %v6833
  %7722 = vmatpush.bf16.msra.mxu0 %v6826
  %7723 = vmatpush.bf16.msra.mxu0 %v6819
  %7724 = vmatpush.bf16.msra.mxu0 %v6812
  %7725 = vmatpush.bf16.msra.mxu0 %v6805
  %7726 = vmatmul.bf16.gmra.mxu0 %v4751
  %v7727 = vpop.f32.mrf.mxu0
  %v7728 = vadd.f32 %v7715, %v7727
  %v7729 = vpop.f32.mrf.mxu0
  %7730 = vdwg.mxu0
  %7731 = vmatpush.bf16.msra.mxu0 %v6910
  %7732 = vmatpush.bf16.msra.mxu0 %v6903
  %7733 = vmatpush.bf16.msra.mxu0 %v6896
  %7734 = vmatpush.bf16.msra.mxu0 %v6889
  %7735 = vmatpush.bf16.msra.mxu0 %v6882
  %7736 = vmatpush.bf16.msra.mxu0 %v6875
  %7737 = vmatpush.bf16.msra.mxu0 %v6868
  %7738 = vmatpush.bf16.msra.mxu0 %v6861
  %7739 = vmatmul.bf16.gmra.mxu0 %v4752
  %v7740 = vpop.f32.mrf.mxu0
  %v7741 = vadd.f32 %v7728, %v7740
  %v7742 = vpop.f32.mrf.mxu0
  %7743 = vdwg.mxu0
  %7744 = vmatpush.bf16.msra.mxu0 %v6966
  %7745 = vmatpush.bf16.msra.mxu0 %v6959
  %7746 = vmatpush.bf16.msra.mxu0 %v6952
  %7747 = vmatpush.bf16.msra.mxu0 %v6945
  %7748 = vmatpush.bf16.msra.mxu0 %v6938
  %7749 = vmatpush.bf16.msra.mxu0 %v6931
  %7750 = vmatpush.bf16.msra.mxu0 %v6924
  %7751 = vmatpush.bf16.msra.mxu0 %v6917
  %7752 = vmatmul.bf16.gmra.mxu0 %v4753
  %v7753 = vpop.f32.mrf.mxu0
  %v7754 = vadd.f32 %v7741, %v7753
  %v7755 = vpop.f32.mrf.mxu0
  %7756 = vdwg.mxu0
  %7757 = vmatpush.bf16.msra.mxu0 %v7022
  %7758 = vmatpush.bf16.msra.mxu0 %v7015
  %7759 = vmatpush.bf16.msra.mxu0 %v7008
  %7760 = vmatpush.bf16.msra.mxu0 %v7001
  %7761 = vmatpush.bf16.msra.mxu0 %v6994
  %7762 = vmatpush.bf16.msra.mxu0 %v6987
  %7763 = vmatpush.bf16.msra.mxu0 %v6980
  %7764 = vmatpush.bf16.msra.mxu0 %v6973
  %7765 = vmatmul.bf16.gmra.mxu0 %v4754
  %v7766 = vpop.f32.mrf.mxu0
  %v7767 = vadd.f32 %v7754, %v7766
  %v7768 = vpop.f32.mrf.mxu0
  %7769 = vdwg.mxu0
  %7770 = vmatpush.bf16.msra.mxu0 %v7078
  %7771 = vmatpush.bf16.msra.mxu0 %v7071
  %7772 = vmatpush.bf16.msra.mxu0 %v7064
  %7773 = vmatpush.bf16.msra.mxu0 %v7057
  %7774 = vmatpush.bf16.msra.mxu0 %v7050
  %7775 = vmatpush.bf16.msra.mxu0 %v7043
  %7776 = vmatpush.bf16.msra.mxu0 %v7036
  %7777 = vmatpush.bf16.msra.mxu0 %v7029
  %7778 = vmatmul.bf16.gmra.mxu0 %v4755
  %v7779 = vpop.f32.mrf.mxu0
  %v7780 = vadd.f32 %v7767, %v7779
  %v7781 = vpop.f32.mrf.mxu0
  %7782 = vdwg.mxu0
  %7783 = vmatpush.bf16.msra.mxu0 %v7134
  %7784 = vmatpush.bf16.msra.mxu0 %v7127
  %7785 = vmatpush.bf16.msra.mxu0 %v7120
  %7786 = vmatpush.bf16.msra.mxu0 %v7113
  %7787 = vmatpush.bf16.msra.mxu0 %v7106
  %7788 = vmatpush.bf16.msra.mxu0 %v7099
  %7789 = vmatpush.bf16.msra.mxu0 %v7092
  %7790 = vmatpush.bf16.msra.mxu0 %v7085
  %7791 = vmatmul.bf16.gmra.mxu0 %v4756
  %v7792 = vpop.f32.mrf.mxu0
  %v7793 = vadd.f32 %v7780, %v7792
  %v7794 = vpop.f32.mrf.mxu0
  %7795 = vdwg.mxu0
  %7796 = vmatpush.bf16.msra.mxu0 %v6743
  %7797 = vmatpush.bf16.msra.mxu0 %v6736
  %7798 = vmatpush.bf16.msra.mxu0 %v6729
  %7799 = vmatpush.bf16.msra.mxu0 %v6722
  %7800 = vmatpush.bf16.msra.mxu0 %v6715
  %7801 = vmatpush.bf16.msra.mxu0 %v6708
  %7802 = vmatpush.bf16.msra.mxu0 %v6701
  %7803 = vmatpush.bf16.msra.mxu0 %v6694
  %7804 = vmatmul.bf16.gmra.mxu0 %v4749
  %v7805 = vpop.f32.mrf.mxu0
  %v7806 = vadd.f32 %v5272, %v7805
  %v7807 = vpop.f32.mrf.mxu0
  %7808 = vdwg.mxu0
  %7809 = vmatpush.bf16.msra.mxu0 %v6799
  %7810 = vmatpush.bf16.msra.mxu0 %v6792
  %7811 = vmatpush.bf16.msra.mxu0 %v6785
  %7812 = vmatpush.bf16.msra.mxu0 %v6778
  %7813 = vmatpush.bf16.msra.mxu0 %v6771
  %7814 = vmatpush.bf16.msra.mxu0 %v6764
  %7815 = vmatpush.bf16.msra.mxu0 %v6757
  %7816 = vmatpush.bf16.msra.mxu0 %v6750
  %7817 = vmatmul.bf16.gmra.mxu0 %v4750
  %v7818 = vpop.f32.mrf.mxu0
  %v7819 = vadd.f32 %v7806, %v7818
  %v7820 = vpop.f32.mrf.mxu0
  %7821 = vdwg.mxu0
  %7822 = vmatpush.bf16.msra.mxu0 %v6855
  %7823 = vmatpush.bf16.msra.mxu0 %v6848
  %7824 = vmatpush.bf16.msra.mxu0 %v6841
  %7825 = vmatpush.bf16.msra.mxu0 %v6834
  %7826 = vmatpush.bf16.msra.mxu0 %v6827
  %7827 = vmatpush.bf16.msra.mxu0 %v6820
  %7828 = vmatpush.bf16.msra.mxu0 %v6813
  %7829 = vmatpush.bf16.msra.mxu0 %v6806
  %7830 = vmatmul.bf16.gmra.mxu0 %v4751
  %v7831 = vpop.f32.mrf.mxu0
  %v7832 = vadd.f32 %v7819, %v7831
  %v7833 = vpop.f32.mrf.mxu0
  %7834 = vdwg.mxu0
  %7835 = vmatpush.bf16.msra.mxu0 %v6911
  %7836 = vmatpush.bf16.msra.mxu0 %v6904
  %7837 = vmatpush.bf16.msra.mxu0 %v6897
  %7838 = vmatpush.bf16.msra.mxu0 %v6890
  %7839 = vmatpush.bf16.msra.mxu0 %v6883
  %7840 = vmatpush.bf16.msra.mxu0 %v6876
  %7841 = vmatpush.bf16.msra.mxu0 %v6869
  %7842 = vmatpush.bf16.msra.mxu0 %v6862
  %7843 = vmatmul.bf16.gmra.mxu0 %v4752
  %v7844 = vpop.f32.mrf.mxu0
  %v7845 = vadd.f32 %v7832, %v7844
  %v7846 = vpop.f32.mrf.mxu0
  %7847 = vdwg.mxu0
  %7848 = vmatpush.bf16.msra.mxu0 %v6967
  %7849 = vmatpush.bf16.msra.mxu0 %v6960
  %7850 = vmatpush.bf16.msra.mxu0 %v6953
  %7851 = vmatpush.bf16.msra.mxu0 %v6946
  %7852 = vmatpush.bf16.msra.mxu0 %v6939
  %7853 = vmatpush.bf16.msra.mxu0 %v6932
  %7854 = vmatpush.bf16.msra.mxu0 %v6925
  %7855 = vmatpush.bf16.msra.mxu0 %v6918
  %7856 = vmatmul.bf16.gmra.mxu0 %v4753
  %v7857 = vpop.f32.mrf.mxu0
  %v7858 = vadd.f32 %v7845, %v7857
  %v7859 = vpop.f32.mrf.mxu0
  %7860 = vdwg.mxu0
  %7861 = vmatpush.bf16.msra.mxu0 %v7023
  %7862 = vmatpush.bf16.msra.mxu0 %v7016
  %7863 = vmatpush.bf16.msra.mxu0 %v7009
  %7864 = vmatpush.bf16.msra.mxu0 %v7002
  %7865 = vmatpush.bf16.msra.mxu0 %v6995
  %7866 = vmatpush.bf16.msra.mxu0 %v6988
  %7867 = vmatpush.bf16.msra.mxu0 %v6981
  %7868 = vmatpush.bf16.msra.mxu0 %v6974
  %7869 = vmatmul.bf16.gmra.mxu0 %v4754
  %v7870 = vpop.f32.mrf.mxu0
  %v7871 = vadd.f32 %v7858, %v7870
  %v7872 = vpop.f32.mrf.mxu0
  %7873 = vdwg.mxu0
  %7874 = vmatpush.bf16.msra.mxu0 %v7079
  %7875 = vmatpush.bf16.msra.mxu0 %v7072
  %7876 = vmatpush.bf16.msra.mxu0 %v7065
  %7877 = vmatpush.bf16.msra.mxu0 %v7058
  %7878 = vmatpush.bf16.msra.mxu0 %v7051
  %7879 = vmatpush.bf16.msra.mxu0 %v7044
  %7880 = vmatpush.bf16.msra.mxu0 %v7037
  %7881 = vmatpush.bf16.msra.mxu0 %v7030
  %7882 = vmatmul.bf16.gmra.mxu0 %v4755
  %v7883 = vpop.f32.mrf.mxu0
  %v7884 = vadd.f32 %v7871, %v7883
  %v7885 = vpop.f32.mrf.mxu0
  %7886 = vdwg.mxu0
  %7887 = vmatpush.bf16.msra.mxu0 %v7135
  %7888 = vmatpush.bf16.msra.mxu0 %v7128
  %7889 = vmatpush.bf16.msra.mxu0 %v7121
  %7890 = vmatpush.bf16.msra.mxu0 %v7114
  %7891 = vmatpush.bf16.msra.mxu0 %v7107
  %7892 = vmatpush.bf16.msra.mxu0 %v7100
  %7893 = vmatpush.bf16.msra.mxu0 %v7093
  %7894 = vmatpush.bf16.msra.mxu0 %v7086
  %7895 = vmatmul.bf16.gmra.mxu0 %v4756
  %v7896 = vpop.f32.mrf.mxu0
  %v7897 = vadd.f32 %v7884, %v7896
  %v7898 = vpop.f32.mrf.mxu0
  %7899 = vdwg.mxu0
  %7900 = vmatpush.bf16.msra.mxu0 %v6744
  %7901 = vmatpush.bf16.msra.mxu0 %v6737
  %7902 = vmatpush.bf16.msra.mxu0 %v6730
  %7903 = vmatpush.bf16.msra.mxu0 %v6723
  %7904 = vmatpush.bf16.msra.mxu0 %v6716
  %7905 = vmatpush.bf16.msra.mxu0 %v6709
  %7906 = vmatpush.bf16.msra.mxu0 %v6702
  %7907 = vmatpush.bf16.msra.mxu0 %v6695
  %7908 = vmatmul.bf16.gmra.mxu0 %v4749
  %v7909 = vpop.f32.mrf.mxu0
  %v7910 = vadd.f32 %v5273, %v7909
  %v7911 = vpop.f32.mrf.mxu0
  %7912 = vdwg.mxu0
  %7913 = vmatpush.bf16.msra.mxu0 %v6800
  %7914 = vmatpush.bf16.msra.mxu0 %v6793
  %7915 = vmatpush.bf16.msra.mxu0 %v6786
  %7916 = vmatpush.bf16.msra.mxu0 %v6779
  %7917 = vmatpush.bf16.msra.mxu0 %v6772
  %7918 = vmatpush.bf16.msra.mxu0 %v6765
  %7919 = vmatpush.bf16.msra.mxu0 %v6758
  %7920 = vmatpush.bf16.msra.mxu0 %v6751
  %7921 = vmatmul.bf16.gmra.mxu0 %v4750
  %v7922 = vpop.f32.mrf.mxu0
  %v7923 = vadd.f32 %v7910, %v7922
  %v7924 = vpop.f32.mrf.mxu0
  %7925 = vdwg.mxu0
  %7926 = vmatpush.bf16.msra.mxu0 %v6856
  %7927 = vmatpush.bf16.msra.mxu0 %v6849
  %7928 = vmatpush.bf16.msra.mxu0 %v6842
  %7929 = vmatpush.bf16.msra.mxu0 %v6835
  %7930 = vmatpush.bf16.msra.mxu0 %v6828
  %7931 = vmatpush.bf16.msra.mxu0 %v6821
  %7932 = vmatpush.bf16.msra.mxu0 %v6814
  %7933 = vmatpush.bf16.msra.mxu0 %v6807
  %7934 = vmatmul.bf16.gmra.mxu0 %v4751
  %v7935 = vpop.f32.mrf.mxu0
  %v7936 = vadd.f32 %v7923, %v7935
  %v7937 = vpop.f32.mrf.mxu0
  %7938 = vdwg.mxu0
  %7939 = vmatpush.bf16.msra.mxu0 %v6912
  %7940 = vmatpush.bf16.msra.mxu0 %v6905
  %7941 = vmatpush.bf16.msra.mxu0 %v6898
  %7942 = vmatpush.bf16.msra.mxu0 %v6891
  %7943 = vmatpush.bf16.msra.mxu0 %v6884
  %7944 = vmatpush.bf16.msra.mxu0 %v6877
  %7945 = vmatpush.bf16.msra.mxu0 %v6870
  %7946 = vmatpush.bf16.msra.mxu0 %v6863
  %7947 = vmatmul.bf16.gmra.mxu0 %v4752
  %v7948 = vpop.f32.mrf.mxu0
  %v7949 = vadd.f32 %v7936, %v7948
  %v7950 = vpop.f32.mrf.mxu0
  %7951 = vdwg.mxu0
  %7952 = vmatpush.bf16.msra.mxu0 %v6968
  %7953 = vmatpush.bf16.msra.mxu0 %v6961
  %7954 = vmatpush.bf16.msra.mxu0 %v6954
  %7955 = vmatpush.bf16.msra.mxu0 %v6947
  %7956 = vmatpush.bf16.msra.mxu0 %v6940
  %7957 = vmatpush.bf16.msra.mxu0 %v6933
  %7958 = vmatpush.bf16.msra.mxu0 %v6926
  %7959 = vmatpush.bf16.msra.mxu0 %v6919
  %7960 = vmatmul.bf16.gmra.mxu0 %v4753
  %v7961 = vpop.f32.mrf.mxu0
  %v7962 = vadd.f32 %v7949, %v7961
  %v7963 = vpop.f32.mrf.mxu0
  %7964 = vdwg.mxu0
  %7965 = vmatpush.bf16.msra.mxu0 %v7024
  %7966 = vmatpush.bf16.msra.mxu0 %v7017
  %7967 = vmatpush.bf16.msra.mxu0 %v7010
  %7968 = vmatpush.bf16.msra.mxu0 %v7003
  %7969 = vmatpush.bf16.msra.mxu0 %v6996
  %7970 = vmatpush.bf16.msra.mxu0 %v6989
  %7971 = vmatpush.bf16.msra.mxu0 %v6982
  %7972 = vmatpush.bf16.msra.mxu0 %v6975
  %7973 = vmatmul.bf16.gmra.mxu0 %v4754
  %v7974 = vpop.f32.mrf.mxu0
  %v7975 = vadd.f32 %v7962, %v7974
  %v7976 = vpop.f32.mrf.mxu0
  %7977 = vdwg.mxu0
  %7978 = vmatpush.bf16.msra.mxu0 %v7080
  %7979 = vmatpush.bf16.msra.mxu0 %v7073
  %7980 = vmatpush.bf16.msra.mxu0 %v7066
  %7981 = vmatpush.bf16.msra.mxu0 %v7059
  %7982 = vmatpush.bf16.msra.mxu0 %v7052
  %7983 = vmatpush.bf16.msra.mxu0 %v7045
  %7984 = vmatpush.bf16.msra.mxu0 %v7038
  %7985 = vmatpush.bf16.msra.mxu0 %v7031
  %7986 = vmatmul.bf16.gmra.mxu0 %v4755
  %v7987 = vpop.f32.mrf.mxu0
  %v7988 = vadd.f32 %v7975, %v7987
  %v7989 = vpop.f32.mrf.mxu0
  %7990 = vdwg.mxu0
  %7991 = vmatpush.bf16.msra.mxu0 %v7136
  %7992 = vmatpush.bf16.msra.mxu0 %v7129
  %7993 = vmatpush.bf16.msra.mxu0 %v7122
  %7994 = vmatpush.bf16.msra.mxu0 %v7115
  %7995 = vmatpush.bf16.msra.mxu0 %v7108
  %7996 = vmatpush.bf16.msra.mxu0 %v7101
  %7997 = vmatpush.bf16.msra.mxu0 %v7094
  %7998 = vmatpush.bf16.msra.mxu0 %v7087
  %7999 = vmatmul.bf16.gmra.mxu0 %v4756
  %v8000 = vpop.f32.mrf.mxu0
  %v8001 = vadd.f32 %v7988, %v8000
  %v8002 = vpop.f32.mrf.mxu0
  %8003 = vdwg.mxu0
  %8004 = vmatpush.bf16.msra.mxu0 %v6745
  %8005 = vmatpush.bf16.msra.mxu0 %v6738
  %8006 = vmatpush.bf16.msra.mxu0 %v6731
  %8007 = vmatpush.bf16.msra.mxu0 %v6724
  %8008 = vmatpush.bf16.msra.mxu0 %v6717
  %8009 = vmatpush.bf16.msra.mxu0 %v6710
  %8010 = vmatpush.bf16.msra.mxu0 %v6703
  %8011 = vmatpush.bf16.msra.mxu0 %v6696
  %8012 = vmatmul.bf16.gmra.mxu0 %v4749
  %v8013 = vpop.f32.mrf.mxu0
  %v8014 = vadd.f32 %v5274, %v8013
  %v8015 = vpop.f32.mrf.mxu0
  %8016 = vdwg.mxu0
  %8017 = vmatpush.bf16.msra.mxu0 %v6801
  %8018 = vmatpush.bf16.msra.mxu0 %v6794
  %8019 = vmatpush.bf16.msra.mxu0 %v6787
  %8020 = vmatpush.bf16.msra.mxu0 %v6780
  %8021 = vmatpush.bf16.msra.mxu0 %v6773
  %8022 = vmatpush.bf16.msra.mxu0 %v6766
  %8023 = vmatpush.bf16.msra.mxu0 %v6759
  %8024 = vmatpush.bf16.msra.mxu0 %v6752
  %8025 = vmatmul.bf16.gmra.mxu0 %v4750
  %v8026 = vpop.f32.mrf.mxu0
  %v8027 = vadd.f32 %v8014, %v8026
  %v8028 = vpop.f32.mrf.mxu0
  %8029 = vdwg.mxu0
  %8030 = vmatpush.bf16.msra.mxu0 %v6857
  %8031 = vmatpush.bf16.msra.mxu0 %v6850
  %8032 = vmatpush.bf16.msra.mxu0 %v6843
  %8033 = vmatpush.bf16.msra.mxu0 %v6836
  %8034 = vmatpush.bf16.msra.mxu0 %v6829
  %8035 = vmatpush.bf16.msra.mxu0 %v6822
  %8036 = vmatpush.bf16.msra.mxu0 %v6815
  %8037 = vmatpush.bf16.msra.mxu0 %v6808
  %8038 = vmatmul.bf16.gmra.mxu0 %v4751
  %v8039 = vpop.f32.mrf.mxu0
  %v8040 = vadd.f32 %v8027, %v8039
  %v8041 = vpop.f32.mrf.mxu0
  %8042 = vdwg.mxu0
  %8043 = vmatpush.bf16.msra.mxu0 %v6913
  %8044 = vmatpush.bf16.msra.mxu0 %v6906
  %8045 = vmatpush.bf16.msra.mxu0 %v6899
  %8046 = vmatpush.bf16.msra.mxu0 %v6892
  %8047 = vmatpush.bf16.msra.mxu0 %v6885
  %8048 = vmatpush.bf16.msra.mxu0 %v6878
  %8049 = vmatpush.bf16.msra.mxu0 %v6871
  %8050 = vmatpush.bf16.msra.mxu0 %v6864
  %8051 = vmatmul.bf16.gmra.mxu0 %v4752
  %v8052 = vpop.f32.mrf.mxu0
  %v8053 = vadd.f32 %v8040, %v8052
  %v8054 = vpop.f32.mrf.mxu0
  %8055 = vdwg.mxu0
  %8056 = vmatpush.bf16.msra.mxu0 %v6969
  %8057 = vmatpush.bf16.msra.mxu0 %v6962
  %8058 = vmatpush.bf16.msra.mxu0 %v6955
  %8059 = vmatpush.bf16.msra.mxu0 %v6948
  %8060 = vmatpush.bf16.msra.mxu0 %v6941
  %8061 = vmatpush.bf16.msra.mxu0 %v6934
  %8062 = vmatpush.bf16.msra.mxu0 %v6927
  %8063 = vmatpush.bf16.msra.mxu0 %v6920
  %8064 = vmatmul.bf16.gmra.mxu0 %v4753
  %v8065 = vpop.f32.mrf.mxu0
  %v8066 = vadd.f32 %v8053, %v8065
  %v8067 = vpop.f32.mrf.mxu0
  %8068 = vdwg.mxu0
  %8069 = vmatpush.bf16.msra.mxu0 %v7025
  %8070 = vmatpush.bf16.msra.mxu0 %v7018
  %8071 = vmatpush.bf16.msra.mxu0 %v7011
  %8072 = vmatpush.bf16.msra.mxu0 %v7004
  %8073 = vmatpush.bf16.msra.mxu0 %v6997
  %8074 = vmatpush.bf16.msra.mxu0 %v6990
  %8075 = vmatpush.bf16.msra.mxu0 %v6983
  %8076 = vmatpush.bf16.msra.mxu0 %v6976
  %8077 = vmatmul.bf16.gmra.mxu0 %v4754
  %v8078 = vpop.f32.mrf.mxu0
  %v8079 = vadd.f32 %v8066, %v8078
  %v8080 = vpop.f32.mrf.mxu0
  %8081 = vdwg.mxu0
  %8082 = vmatpush.bf16.msra.mxu0 %v7081
  %8083 = vmatpush.bf16.msra.mxu0 %v7074
  %8084 = vmatpush.bf16.msra.mxu0 %v7067
  %8085 = vmatpush.bf16.msra.mxu0 %v7060
  %8086 = vmatpush.bf16.msra.mxu0 %v7053
  %8087 = vmatpush.bf16.msra.mxu0 %v7046
  %8088 = vmatpush.bf16.msra.mxu0 %v7039
  %8089 = vmatpush.bf16.msra.mxu0 %v7032
  %8090 = vmatmul.bf16.gmra.mxu0 %v4755
  %v8091 = vpop.f32.mrf.mxu0
  %v8092 = vadd.f32 %v8079, %v8091
  %v8093 = vpop.f32.mrf.mxu0
  %8094 = vdwg.mxu0
  %8095 = vmatpush.bf16.msra.mxu0 %v7137
  %8096 = vmatpush.bf16.msra.mxu0 %v7130
  %8097 = vmatpush.bf16.msra.mxu0 %v7123
  %8098 = vmatpush.bf16.msra.mxu0 %v7116
  %8099 = vmatpush.bf16.msra.mxu0 %v7109
  %8100 = vmatpush.bf16.msra.mxu0 %v7102
  %8101 = vmatpush.bf16.msra.mxu0 %v7095
  %8102 = vmatpush.bf16.msra.mxu0 %v7088
  %8103 = vmatmul.bf16.gmra.mxu0 %v4756
  %v8104 = vpop.f32.mrf.mxu0
  %v8105 = vadd.f32 %v8092, %v8104
  %v8106 = vpop.f32.mrf.mxu0
  %8107 = vdwg.mxu0
  %8108 = vmatpush.bf16.msra.mxu0 %v6746
  %8109 = vmatpush.bf16.msra.mxu0 %v6739
  %8110 = vmatpush.bf16.msra.mxu0 %v6732
  %8111 = vmatpush.bf16.msra.mxu0 %v6725
  %8112 = vmatpush.bf16.msra.mxu0 %v6718
  %8113 = vmatpush.bf16.msra.mxu0 %v6711
  %8114 = vmatpush.bf16.msra.mxu0 %v6704
  %8115 = vmatpush.bf16.msra.mxu0 %v6697
  %8116 = vmatmul.bf16.gmra.mxu0 %v4749
  %v8117 = vpop.f32.mrf.mxu0
  %v8118 = vadd.f32 %v5275, %v8117
  %v8119 = vpop.f32.mrf.mxu0
  %8120 = vdwg.mxu0
  %8121 = vmatpush.bf16.msra.mxu0 %v6802
  %8122 = vmatpush.bf16.msra.mxu0 %v6795
  %8123 = vmatpush.bf16.msra.mxu0 %v6788
  %8124 = vmatpush.bf16.msra.mxu0 %v6781
  %8125 = vmatpush.bf16.msra.mxu0 %v6774
  %8126 = vmatpush.bf16.msra.mxu0 %v6767
  %8127 = vmatpush.bf16.msra.mxu0 %v6760
  %8128 = vmatpush.bf16.msra.mxu0 %v6753
  %8129 = vmatmul.bf16.gmra.mxu0 %v4750
  %v8130 = vpop.f32.mrf.mxu0
  %v8131 = vadd.f32 %v8118, %v8130
  %v8132 = vpop.f32.mrf.mxu0
  %8133 = vdwg.mxu0
  %8134 = vmatpush.bf16.msra.mxu0 %v6858
  %8135 = vmatpush.bf16.msra.mxu0 %v6851
  %8136 = vmatpush.bf16.msra.mxu0 %v6844
  %8137 = vmatpush.bf16.msra.mxu0 %v6837
  %8138 = vmatpush.bf16.msra.mxu0 %v6830
  %8139 = vmatpush.bf16.msra.mxu0 %v6823
  %8140 = vmatpush.bf16.msra.mxu0 %v6816
  %8141 = vmatpush.bf16.msra.mxu0 %v6809
  %8142 = vmatmul.bf16.gmra.mxu0 %v4751
  %v8143 = vpop.f32.mrf.mxu0
  %v8144 = vadd.f32 %v8131, %v8143
  %v8145 = vpop.f32.mrf.mxu0
  %8146 = vdwg.mxu0
  %8147 = vmatpush.bf16.msra.mxu0 %v6914
  %8148 = vmatpush.bf16.msra.mxu0 %v6907
  %8149 = vmatpush.bf16.msra.mxu0 %v6900
  %8150 = vmatpush.bf16.msra.mxu0 %v6893
  %8151 = vmatpush.bf16.msra.mxu0 %v6886
  %8152 = vmatpush.bf16.msra.mxu0 %v6879
  %8153 = vmatpush.bf16.msra.mxu0 %v6872
  %8154 = vmatpush.bf16.msra.mxu0 %v6865
  %8155 = vmatmul.bf16.gmra.mxu0 %v4752
  %v8156 = vpop.f32.mrf.mxu0
  %v8157 = vadd.f32 %v8144, %v8156
  %v8158 = vpop.f32.mrf.mxu0
  %8159 = vdwg.mxu0
  %8160 = vmatpush.bf16.msra.mxu0 %v6970
  %8161 = vmatpush.bf16.msra.mxu0 %v6963
  %8162 = vmatpush.bf16.msra.mxu0 %v6956
  %8163 = vmatpush.bf16.msra.mxu0 %v6949
  %8164 = vmatpush.bf16.msra.mxu0 %v6942
  %8165 = vmatpush.bf16.msra.mxu0 %v6935
  %8166 = vmatpush.bf16.msra.mxu0 %v6928
  %8167 = vmatpush.bf16.msra.mxu0 %v6921
  %8168 = vmatmul.bf16.gmra.mxu0 %v4753
  %v8169 = vpop.f32.mrf.mxu0
  %v8170 = vadd.f32 %v8157, %v8169
  %v8171 = vpop.f32.mrf.mxu0
  %8172 = vdwg.mxu0
  %8173 = vmatpush.bf16.msra.mxu0 %v7026
  %8174 = vmatpush.bf16.msra.mxu0 %v7019
  %8175 = vmatpush.bf16.msra.mxu0 %v7012
  %8176 = vmatpush.bf16.msra.mxu0 %v7005
  %8177 = vmatpush.bf16.msra.mxu0 %v6998
  %8178 = vmatpush.bf16.msra.mxu0 %v6991
  %8179 = vmatpush.bf16.msra.mxu0 %v6984
  %8180 = vmatpush.bf16.msra.mxu0 %v6977
  %8181 = vmatmul.bf16.gmra.mxu0 %v4754
  %v8182 = vpop.f32.mrf.mxu0
  %v8183 = vadd.f32 %v8170, %v8182
  %v8184 = vpop.f32.mrf.mxu0
  %8185 = vdwg.mxu0
  %8186 = vmatpush.bf16.msra.mxu0 %v7082
  %8187 = vmatpush.bf16.msra.mxu0 %v7075
  %8188 = vmatpush.bf16.msra.mxu0 %v7068
  %8189 = vmatpush.bf16.msra.mxu0 %v7061
  %8190 = vmatpush.bf16.msra.mxu0 %v7054
  %8191 = vmatpush.bf16.msra.mxu0 %v7047
  %8192 = vmatpush.bf16.msra.mxu0 %v7040
  %8193 = vmatpush.bf16.msra.mxu0 %v7033
  %8194 = vmatmul.bf16.gmra.mxu0 %v4755
  %v8195 = vpop.f32.mrf.mxu0
  %v8196 = vadd.f32 %v8183, %v8195
  %v8197 = vpop.f32.mrf.mxu0
  %8198 = vdwg.mxu0
  %8199 = vmatpush.bf16.msra.mxu0 %v7138
  %8200 = vmatpush.bf16.msra.mxu0 %v7131
  %8201 = vmatpush.bf16.msra.mxu0 %v7124
  %8202 = vmatpush.bf16.msra.mxu0 %v7117
  %8203 = vmatpush.bf16.msra.mxu0 %v7110
  %8204 = vmatpush.bf16.msra.mxu0 %v7103
  %8205 = vmatpush.bf16.msra.mxu0 %v7096
  %8206 = vmatpush.bf16.msra.mxu0 %v7089
  %8207 = vmatmul.bf16.gmra.mxu0 %v4756
  %v8208 = vpop.f32.mrf.mxu0
  %v8209 = vadd.f32 %v8196, %v8208
  %v8210 = vpop.f32.mrf.mxu0
  %8211 = vdwg.mxu0
  %8212 = vmatpush.bf16.msra.mxu0 %v6747
  %8213 = vmatpush.bf16.msra.mxu0 %v6740
  %8214 = vmatpush.bf16.msra.mxu0 %v6733
  %8215 = vmatpush.bf16.msra.mxu0 %v6726
  %8216 = vmatpush.bf16.msra.mxu0 %v6719
  %8217 = vmatpush.bf16.msra.mxu0 %v6712
  %8218 = vmatpush.bf16.msra.mxu0 %v6705
  %8219 = vmatpush.bf16.msra.mxu0 %v6698
  %8220 = vmatmul.bf16.gmra.mxu0 %v4749
  %v8221 = vpop.f32.mrf.mxu0
  %v8222 = vadd.f32 %v5276, %v8221
  %v8223 = vpop.f32.mrf.mxu0
  %8224 = vdwg.mxu0
  %8225 = vmatpush.bf16.msra.mxu0 %v6803
  %8226 = vmatpush.bf16.msra.mxu0 %v6796
  %8227 = vmatpush.bf16.msra.mxu0 %v6789
  %8228 = vmatpush.bf16.msra.mxu0 %v6782
  %8229 = vmatpush.bf16.msra.mxu0 %v6775
  %8230 = vmatpush.bf16.msra.mxu0 %v6768
  %8231 = vmatpush.bf16.msra.mxu0 %v6761
  %8232 = vmatpush.bf16.msra.mxu0 %v6754
  %8233 = vmatmul.bf16.gmra.mxu0 %v4750
  %v8234 = vpop.f32.mrf.mxu0
  %v8235 = vadd.f32 %v8222, %v8234
  %v8236 = vpop.f32.mrf.mxu0
  %8237 = vdwg.mxu0
  %8238 = vmatpush.bf16.msra.mxu0 %v6859
  %8239 = vmatpush.bf16.msra.mxu0 %v6852
  %8240 = vmatpush.bf16.msra.mxu0 %v6845
  %8241 = vmatpush.bf16.msra.mxu0 %v6838
  %8242 = vmatpush.bf16.msra.mxu0 %v6831
  %8243 = vmatpush.bf16.msra.mxu0 %v6824
  %8244 = vmatpush.bf16.msra.mxu0 %v6817
  %8245 = vmatpush.bf16.msra.mxu0 %v6810
  %8246 = vmatmul.bf16.gmra.mxu0 %v4751
  %v8247 = vpop.f32.mrf.mxu0
  %v8248 = vadd.f32 %v8235, %v8247
  %v8249 = vpop.f32.mrf.mxu0
  %8250 = vdwg.mxu0
  %8251 = vmatpush.bf16.msra.mxu0 %v6915
  %8252 = vmatpush.bf16.msra.mxu0 %v6908
  %8253 = vmatpush.bf16.msra.mxu0 %v6901
  %8254 = vmatpush.bf16.msra.mxu0 %v6894
  %8255 = vmatpush.bf16.msra.mxu0 %v6887
  %8256 = vmatpush.bf16.msra.mxu0 %v6880
  %8257 = vmatpush.bf16.msra.mxu0 %v6873
  %8258 = vmatpush.bf16.msra.mxu0 %v6866
  %8259 = vmatmul.bf16.gmra.mxu0 %v4752
  %v8260 = vpop.f32.mrf.mxu0
  %v8261 = vadd.f32 %v8248, %v8260
  %v8262 = vpop.f32.mrf.mxu0
  %8263 = vdwg.mxu0
  %8264 = vmatpush.bf16.msra.mxu0 %v6971
  %8265 = vmatpush.bf16.msra.mxu0 %v6964
  %8266 = vmatpush.bf16.msra.mxu0 %v6957
  %8267 = vmatpush.bf16.msra.mxu0 %v6950
  %8268 = vmatpush.bf16.msra.mxu0 %v6943
  %8269 = vmatpush.bf16.msra.mxu0 %v6936
  %8270 = vmatpush.bf16.msra.mxu0 %v6929
  %8271 = vmatpush.bf16.msra.mxu0 %v6922
  %8272 = vmatmul.bf16.gmra.mxu0 %v4753
  %v8273 = vpop.f32.mrf.mxu0
  %v8274 = vadd.f32 %v8261, %v8273
  %v8275 = vpop.f32.mrf.mxu0
  %8276 = vdwg.mxu0
  %8277 = vmatpush.bf16.msra.mxu0 %v7027
  %8278 = vmatpush.bf16.msra.mxu0 %v7020
  %8279 = vmatpush.bf16.msra.mxu0 %v7013
  %8280 = vmatpush.bf16.msra.mxu0 %v7006
  %8281 = vmatpush.bf16.msra.mxu0 %v6999
  %8282 = vmatpush.bf16.msra.mxu0 %v6992
  %8283 = vmatpush.bf16.msra.mxu0 %v6985
  %8284 = vmatpush.bf16.msra.mxu0 %v6978
  %8285 = vmatmul.bf16.gmra.mxu0 %v4754
  %v8286 = vpop.f32.mrf.mxu0
  %v8287 = vadd.f32 %v8274, %v8286
  %v8288 = vpop.f32.mrf.mxu0
  %8289 = vdwg.mxu0
  %8290 = vmatpush.bf16.msra.mxu0 %v7083
  %8291 = vmatpush.bf16.msra.mxu0 %v7076
  %8292 = vmatpush.bf16.msra.mxu0 %v7069
  %8293 = vmatpush.bf16.msra.mxu0 %v7062
  %8294 = vmatpush.bf16.msra.mxu0 %v7055
  %8295 = vmatpush.bf16.msra.mxu0 %v7048
  %8296 = vmatpush.bf16.msra.mxu0 %v7041
  %8297 = vmatpush.bf16.msra.mxu0 %v7034
  %8298 = vmatmul.bf16.gmra.mxu0 %v4755
  %v8299 = vpop.f32.mrf.mxu0
  %v8300 = vadd.f32 %v8287, %v8299
  %v8301 = vpop.f32.mrf.mxu0
  %8302 = vdwg.mxu0
  %8303 = vmatpush.bf16.msra.mxu0 %v7139
  %8304 = vmatpush.bf16.msra.mxu0 %v7132
  %8305 = vmatpush.bf16.msra.mxu0 %v7125
  %8306 = vmatpush.bf16.msra.mxu0 %v7118
  %8307 = vmatpush.bf16.msra.mxu0 %v7111
  %8308 = vmatpush.bf16.msra.mxu0 %v7104
  %8309 = vmatpush.bf16.msra.mxu0 %v7097
  %8310 = vmatpush.bf16.msra.mxu0 %v7090
  %8311 = vmatmul.bf16.gmra.mxu0 %v4756
  %v8312 = vpop.f32.mrf.mxu0
  %v8313 = vadd.f32 %v8300, %v8312
  %v8314 = vpop.f32.mrf.mxu0
  %8315 = vdwg.mxu0
  %v8316 = vtanh.pop %v7689
  %v8317 = vtanh.pop %v7793
  %v8318 = vtanh.pop %v7897
  %v8319 = vtanh.pop %v8001
  %v8320 = vtanh.pop %v8105
  %v8321 = vtanh.pop %v8209
  %v8322 = vtanh.pop %v8313
  %8323 = vst [vmem:[%s7] sm:$0xff] %v8316
  %8324 = vst [vmem:[%s7 + $0x8] sm:$0xff] %v8317
  %8325 = vst [vmem:[%s7 + $0x10] sm:$0xff] %v8318
  %8326 = vst [vmem:[%s7 + $0x18] sm:$0xff] %v8319
  %8327 = vst [vmem:[%s7 + $0x20] sm:$0xff] %v8320
  %8328 = vst [vmem:[%s7 + $0x28] sm:$0xff] %v8321
  %vm8329 = vcmask 130048
  %8330 = vst.msk [vmem:[%s7 + $0x30] sm:$0xff] %vm8329, %v8322
  // Predicated region
  $region60: #{generator_forward.1} parent=0 // pred_check
    _
  $region61: #{generator_forward.1} parent=0 // pred_check_branch
    %8332 = sbr.rel (0) target = $region63
  $region62: #{generator_forward.1} parent=0 // pred_region
    _
  $region63: #{generator_forward.1} parent=0 // pred_fallthru
    _
  // Predicated region
  $region64: #{generator_forward.1} parent=0 // pred_check
    _
  $region65: #{generator_forward.1} parent=0 // pred_check_branch
    %8334 = sbr.rel (0) target = $region67
  $region66: #{generator_forward.1} parent=0 // pred_region
    _
  $region67: #{generator_forward.1} parent=0 // pred_fallthru
    _
  %8335 = vsyncmov [#allocation5]
  %s8336 = vpop.sfrf %8335
  %p8337 = scmp.eq.s32.totalorder %s8336, 0
  %p8338 = pneg %p8337
  %8340 = shalt.err (%p8338)
  %s8341 = scalar_lea.sflag [#allocation5], 1
  %8342 = vsyncmov %s8341
  %s8343 = vpop.sfrf %8342
  %p8344 = scmp.eq.s32.totalorder %s8343, 0
  %p8345 = pneg %p8344
  %8347 = shalt.err (%p8345)

</llo_original>
